<compile_context>
chip_gen: v5e
topology: v5e:2x2
jax: 0.10.0
libtpu: 0.0.40
codegen_flags: <defaults>
</compile_context>

<pallas_src>
import functools

import jax
import jax.numpy as jnp
from jax import lax
from jax.experimental import pallas as pl
from jax.experimental.pallas import tpu as pltpu

# ----- small-scale config (mirrors cfg / module attributes) -------------------
MAP_SIZE = 7
S = MAP_SIZE * MAP_SIZE          # coef = 49
COV_CHANNEL = 64                 # stands in for 2048 at small scale
PARTS = 4                        # cfg['parts']
COMPRESS_MAP = 8                 # cfg['cpp_map']
ATTR_DIM = 16                    # d  (attribute dimension)
N_TRAIN_CLASSES = 10             # c1
N_TEST_CLASSES = 6               # c2
THRESHOLD = 0.8                  # cfg['threshold']


def _round_up(x, m):
    return ((x + m - 1) // m) * m


def aren_kernel(f_ref, whi_ref, wlo_ref, bcomb_ref, wp2_ref, wb2_ref, out_ref,
                *, parts, cmap, threshold):
    """AREN forward for a block of BT batch elements (grid axis 0)."""
    bt, s, c_pad = f_ref.shape

    f_bf = f_ref[...]                                    # (BT, S, Cp) bf16

    # ---- fused cov + conv_bilinear 1x1 convs: ONE pass over the features ----
    # Split-bf16 weights (hi + residual) keep the pre-sigmoid part-map values
    # f32-exact without materializing an f32 copy of the feature block.
    whi_b = jnp.broadcast_to(whi_ref[...][None], (bt,) + whi_ref.shape)
    wlo_b = jnp.broadcast_to(wlo_ref[...][None], (bt,) + wlo_ref.shape)
    dims = (((2,), (1,)), ((0,), (0,)))                  # batched, contract K
    comb = (lax.dot_general(f_bf, whi_b, dims, preferred_element_type=jnp.float32)
            + lax.dot_general(f_bf, wlo_b, dims, preferred_element_type=jnp.float32)
            + bcomb_ref[...])                            # (BT, S, P+M) f32

    w_sp = jax.nn.sigmoid(comb[:, :, :parts])            # (BT, S, P)
    x_sp = comb[:, :, parts:]                            # (BT, S, M), has 1/coef

    # ---- thresholding of the part maps: single mask, shared by both branches
    local_max = jnp.max(w_sp, axis=1, keepdims=True)     # (BT, 1, P)
    tv = jnp.max(local_max, axis=2, keepdims=True)       # (BT, 1, 1)
    mask = (local_max >= threshold * tv).astype(jnp.float32)
    wm_sp = w_sp * mask                                  # (BT, S, P)

    # ---- b branch: all-part bilinear Z in one wide batched bf16 matmul ------
    # only the tiny (S x M)/(S x P) tiles get transposed to maps-major (XLU).
    x_t = jnp.transpose(x_sp, (0, 2, 1))                 # (BT, M, S)
    wm_t = jnp.transpose(wm_sp, (0, 2, 1))               # (BT, P, S)
    # pieces are full (M=8)-sublane tiles -> this concat is plain tile copies.
    xw = jnp.concatenate([x_t * wm_t[:, k:k + 1, :] for k in range(parts)],
                         axis=1)                         # (BT, P*M, S) f32
    zall = lax.dot_general(xw.astype(jnp.bfloat16), f_bf, dims,
                           preferred_element_type=jnp.float32)   # (BT, P*M, Cp)

    zmax = zall[:, 0:cmap, :]                            # max over parts
    for k in range(1, parts):
        zmax = jnp.maximum(zmax, zall[:, k * cmap:(k + 1) * cmap, :])
    zmax_bf = zmax.astype(jnp.bfloat16)                  # (BT, M, Cp)

    # single classifier matmul, K = M*Cp (m-major lane layout matches wb2)
    zflat = jnp.concatenate([zmax_bf[:, m, :] for m in range(cmap)], axis=1)
    b_out = jnp.dot(zflat, wb2_ref[...],
                    preferred_element_type=jnp.float32)  # (BT, Npad)

    # ---- p branch: per-part masked max-pool, then one classifier matmul -----
    wm_bf = wm_sp.astype(jnp.bfloat16)                   # (BT, S, P)
    pooled = [jnp.max(f_bf * wm_bf[:, :, k:k + 1], axis=1)   # MaxPool2d(7,7)
              for k in range(parts)]                     # each (BT, Cp) bf16
    pcat = jnp.concatenate(pooled, axis=1)               # (BT, P*Cp)
    p_out = jnp.dot(pcat, wp2_ref[...],
                    preferred_element_type=jnp.float32)  # (BT, Npad)

    # single lane-dense output block: [:,0,:] = p branch, [:,1,:] = b branch
    out_ref[...] = jnp.concatenate([p_out[:, None, :], b_out[:, None, :]],
                                   axis=1)


def _pick_block_b(batch):
    """Generation-aware batch-block size (one grid step per TensorCore)."""
    try:
        kind = jax.devices()[0].device_kind.lower()
    except Exception:
        kind = ""
    multi_tc = ("v7" in kind) or ("7x" in kind) or ("v4" in kind)
    if multi_tc and batch >= 2 and batch % 2 == 0:
        return batch // 2        # two "parallel" steps -> one per TensorCore
    return batch                 # single-TC chips: one step, no per-step overhead


def _fullspec(arr):
    nd = arr.ndim
    return pl.BlockSpec(arr.shape, lambda i, _nd=nd: (0,) * _nd)


def aren_forward(features_nchw, params, *, threshold=THRESHOLD, training=False,
                 block_b=None):
    """features_nchw: (B, C, 7, 7) float32 feature map (output of backbone)."""
    B, C, H, W = features_nchw.shape
    S_ = H * W
    coef = float(S_)
    P = params['cov_w'].shape[0]
    M = params['bil_w'].shape[0]
    C_pad = _round_up(C, 128)

    # NCHW -> (B, S, C), zero-pad channels to a lane-aligned width, cast bf16.
    f = jnp.transpose(features_nchw, (0, 2, 3, 1)).reshape(B, S_, C)
    f = jnp.pad(f, ((0, 0), (0, 0), (0, C_pad - C))).astype(jnp.bfloat16)

    # fused 1x1-conv weights (cov rows, then bilinear rows pre-scaled by 1/coef)
    wcomb = jnp.concatenate([params['cov_w'], params['bil_w'] / coef], axis=0)
    wcomb = jnp.pad(wcomb, ((0, 0), (0, C_pad - C))).T.astype(jnp.float32)   # (Cp, P+M)
    # split-bf16 (hi + residual): bf16 MXU inputs, ~f32-exact pre-sigmoid values
    w_hi = wcomb.astype(jnp.bfloat16)
    w_lo = (wcomb - w_hi.astype(jnp.float32)).astype(jnp.bfloat16)
    bcomb = jnp.concatenate(
        [params['cov_b'], params['bil_b'] / coef])[None, :].astype(jnp.float32)  # (1, P+M)

    # fold the attribute classifier into the (bias-free) p/b linears, pad the
    # class dim to a lane-dense width and the channel dim to C_pad.
    attr = params['train_attr'] if training else params['test_attr']   # (n, d)
    n_cls = attr.shape[0]
    n_pad = _round_up(n_cls, 128)
    wp = (params['p_linear_w'].T @ attr.T).reshape(P, C, n_cls)
    wb = (params['b_linear_w'].T @ attr.T).reshape(M, C, n_cls)
    wp = jnp.pad(wp, ((0, 0), (0, C_pad - C), (0, n_pad - n_cls)))
    wb = jnp.pad(wb, ((0, 0), (0, C_pad - C), (0, n_pad - n_cls)))
    wp2 = wp.reshape(P * C_pad, n_pad).astype(jnp.bfloat16)
    wb2 = wb.reshape(M * C_pad, n_pad).astype(jnp.bfloat16)

    if block_b is None:
        block_b = _pick_block_b(B)
    assert B % block_b == 0

    kern = functools.partial(aren_kernel, parts=P, cmap=M,
                             threshold=float(threshold))

    out = pl.pallas_call(
        kern,
        out_shape=jax.ShapeDtypeStruct((B, 2, n_pad), jnp.float32),
        grid_spec=pltpu.PrefetchScalarGridSpec(
            num_scalar_prefetch=0,
            grid=(B // block_b,),
            in_specs=[
                pl.BlockSpec((block_b, S_, C_pad), lambda i: (i, 0, 0)),  # features
                _fullspec(w_hi), _fullspec(w_lo), _fullspec(bcomb),
                _fullspec(wp2), _fullspec(wb2),
            ],
            out_specs=pl.BlockSpec((block_b, 2, n_pad), lambda i: (i, 0, 0)),
        ),
        compiler_params=pltpu.CompilerParams(
            dimension_semantics=("parallel",),
            # well under the scoped default on every generation; never asks for
            # the whole physical VMEM of v7x.
            vmem_limit_bytes=32 * 1024 * 1024),
    )(f, w_hi, w_lo, bcomb, wp2, wb2)

    return out[:, 0, :n_cls], out[:, 1, :n_cls]


def aren_reference(features_nchw, params, *, threshold=THRESHOLD, training=False):
    """Pure-JAX f32 reference mirroring the PyTorch forward (eval-mode dropout)."""
    B, C, H, W = features_nchw.shape
    coef = float(H * W)
    f = features_nchw                                               # (B,C,H,W)
    w = jax.nn.sigmoid(jnp.einsum('bchw,pc->bphw', f, params['cov_w'])
                       + params['cov_b'][None, :, None, None])       # (B,P,H,W)
    x = (jnp.einsum('bchw,mc->bmhw', f, params['bil_w'])
         + params['bil_b'][None, :, None, None])                     # (B,M,H,W)
    P = w.shape[1]
    tv = jnp.max(w.reshape(B, -1), axis=1)                           # (B,)
    local_max = jnp.max(w.reshape(B, P, -1), axis=2)                 # (B,P)
    mask = (local_max >= threshold * tv[:, None]).astype(jnp.float32)
    w = w * mask[:, :, None, None]
    X = x.reshape(B, x.shape[1], -1)                                 # (B,M,S)
    blocks, blocks_z = [], []
    for k in range(P):
        Y = f * w[:, k][:, None, :, :]                               # (B,C,H,W)
        blocks.append(jnp.max(Y.reshape(B, C, -1), axis=2))          # (B,C)
        Yf = Y.reshape(B, C, -1)                                     # (B,C,S)
        Z = jnp.einsum('bms,bcs->bmc', X, Yf) / coef                 # (B,M,C)
        blocks_z.append(Z.reshape(B, -1))
    p_out = jnp.concatenate(blocks, axis=1) @ params['p_linear_w'].T
    b_out = jnp.max(jnp.stack(blocks_z), axis=0) @ params['b_linear_w'].T
    attr = params['train_attr'] if training else params['test_attr']
    return p_out @ attr.T, b_out @ attr.T


def init_params(key):
    ks = jax.random.split(key, 8)
    scale = 0.05
    return {
        'cov_w': scale * jax.random.normal(ks[0], (PARTS, COV_CHANNEL), jnp.float32),
        'cov_b': scale * jax.random.normal(ks[1], (PARTS,), jnp.float32),
        'bil_w': scale * jax.random.normal(ks[2], (COMPRESS_MAP, COV_CHANNEL), jnp.float32),
        'bil_b': scale * jax.random.normal(ks[3], (COMPRESS_MAP,), jnp.float32),
        'p_linear_w': scale * jax.random.normal(ks[4], (ATTR_DIM, COV_CHANNEL * PARTS), jnp.float32),
        'b_linear_w': scale * jax.random.normal(ks[5], (ATTR_DIM, COMPRESS_MAP * COV_CHANNEL), jnp.float32),
        'train_attr': scale * jax.random.normal(ks[6], (N_TRAIN_CLASSES, ATTR_DIM), jnp.float32),
        'test_attr': scale * jax.random.normal(ks[7], (N_TEST_CLASSES, ATTR_DIM), jnp.float32),
    }


if __name__ == "__main__":
    key = jax.random.PRNGKey(0)
    pkey, xkey = jax.random.split(key)
    params = init_params(pkey)

    B = 8
    # feature map as produced by the (external) backbone: (B, 2048->64, 7, 7)
    features = jax.random.normal(xkey, (B, COV_CHANNEL, MAP_SIZE, MAP_SIZE),
                                 jnp.float32)
    # Snap inputs to bf16-representable values so the kernel's bf16 feature
    # path and the f32 reference see identical inputs (keeps the threshold
    # mask decision deterministic across the two implementations).
    features = features.astype(jnp.bfloat16).astype(jnp.float32)

    p_out, b_out = aren_forward(features, params, training=False)
    p_out = jax.block_until_ready(p_out)
    b_out = jax.block_until_ready(b_out)

    p_ref, b_ref = aren_reference(features, params, training=False)
    assert p_out.shape == (B, N_TEST_CLASSES) and b_out.shape == (B, N_TEST_CLASSES)
    # p branch runs its pooled features / folded classifier in bf16 -> slightly
    # looser absolute tolerance (its outputs are ~20x larger than the b branch).
    assert jnp.allclose(p_out, p_ref, rtol=2e-2, atol=5e-3)
    assert jnp.allclose(b_out, b_ref, rtol=2e-2, atol=2e-3)

    print("KERNEL_OK")
</pallas_src>

<mosaic_0001>
module attributes {stable_mosaic.version = 11 : i64} {
  func.func @aren_kernel(%arg0: i32, %arg1: memref<8x49x128xbf16, #tpu.memory_space<vmem>>, %arg2: memref<128x12xbf16, #tpu.memory_space<vmem>>, %arg3: memref<128x12xbf16, #tpu.memory_space<vmem>>, %arg4: memref<1x12xf32, #tpu.memory_space<vmem>>, %arg5: memref<512x128xbf16, #tpu.memory_space<vmem>>, %arg6: memref<1024x128xbf16, #tpu.memory_space<vmem>>, %arg7: memref<8x2x128xf32, #tpu.memory_space<vmem>>) attributes {dimension_semantics = [#tpu.dimension_semantics<parallel>], iteration_bounds = array<i64: 1>, scalar_prefetch = 0 : i64, scratch_operands = 0 : i64, tpu.core_type = #tpu.core_type<tc>, window_params = [{transform_indices = @transform_0, window_bounds = array<i64: 8, 49, 128>}, {pipeline_mode = #tpu.pipeline_mode<synchronous>, transform_indices = @transform_1, window_bounds = array<i64: 128, 12>}, {pipeline_mode = #tpu.pipeline_mode<synchronous>, transform_indices = @transform_2, window_bounds = array<i64: 128, 12>}, {pipeline_mode = #tpu.pipeline_mode<synchronous>, transform_indices = @transform_3, window_bounds = array<i64: 1, 12>}, {pipeline_mode = #tpu.pipeline_mode<synchronous>, transform_indices = @transform_4, window_bounds = array<i64: 512, 128>}, {pipeline_mode = #tpu.pipeline_mode<synchronous>, transform_indices = @transform_5, window_bounds = array<i64: 1024, 128>}, {transform_indices = @transform_6, window_bounds = array<i64: 8, 2, 128>}]} {
    %c0 = arith.constant 0 : index
    %c0_0 = arith.constant 0 : index
    %c0_1 = arith.constant 0 : index
    %0 = vector.load %arg1[%c0, %c0_0, %c0_1] : memref<8x49x128xbf16, #tpu.memory_space<vmem>>, vector<8x49x128xbf16>
    %c0_2 = arith.constant 0 : index
    %c0_3 = arith.constant 0 : index
    %1 = vector.load %arg2[%c0_2, %c0_3] : memref<128x12xbf16, #tpu.memory_space<vmem>>, vector<128x12xbf16>
    %2 = vector.shape_cast %1 : vector<128x12xbf16> to vector<1x128x12xbf16>
    %3 = vector.shape_cast %2 : vector<1x128x12xbf16> to vector<1x128x12xbf16>
    %4 = vector.broadcast %3 : vector<1x128x12xbf16> to vector<8x128x12xbf16>
    %c0_4 = arith.constant 0 : index
    %c0_5 = arith.constant 0 : index
    %5 = vector.load %arg3[%c0_4, %c0_5] : memref<128x12xbf16, #tpu.memory_space<vmem>>, vector<128x12xbf16>
    %6 = vector.shape_cast %5 : vector<128x12xbf16> to vector<1x128x12xbf16>
    %7 = vector.shape_cast %6 : vector<1x128x12xbf16> to vector<1x128x12xbf16>
    %8 = vector.broadcast %7 : vector<1x128x12xbf16> to vector<8x128x12xbf16>
    %cst = arith.constant dense<0.000000e+00> : vector<8x49x12xf32>
    %9 = tpu.matmul %0, %4, %cst {dimension_numbers = #tpu.dot_dimension_numbers<[2], [1], [1], [2], [0, 0, 0, 1, 1, 2], [0], [0]>} : vector<8x49x128xbf16>, vector<8x128x12xbf16>, vector<8x49x12xf32> -> vector<8x49x12xf32>
    %cst_6 = arith.constant dense<0.000000e+00> : vector<8x49x12xf32>
    %10 = tpu.matmul %0, %8, %cst_6 {dimension_numbers = #tpu.dot_dimension_numbers<[2], [1], [1], [2], [0, 0, 0, 1, 1, 2], [0], [0]>} : vector<8x49x128xbf16>, vector<8x128x12xbf16>, vector<8x49x12xf32> -> vector<8x49x12xf32>
    %11 = arith.addf %9, %10 : vector<8x49x12xf32>
    %c0_7 = arith.constant 0 : index
    %c0_8 = arith.constant 0 : index
    %12 = vector.load %arg4[%c0_7, %c0_8] : memref<1x12xf32, #tpu.memory_space<vmem>>, vector<1x12xf32>
    %13 = vector.shape_cast %12 : vector<1x12xf32> to vector<1x1x12xf32>
    %14 = vector.broadcast %13 : vector<1x1x12xf32> to vector<8x49x12xf32>
    %15 = arith.addf %11, %14 : vector<8x49x12xf32>
    %16 = vector.extract_strided_slice %15 {offsets = [0, 0, 0], sizes = [8, 49, 4], strides = [1, 1, 1]} : vector<8x49x12xf32> to vector<8x49x4xf32>
    %17 = arith.negf %16 : vector<8x49x4xf32>
    %18 = math.exp %17 : vector<8x49x4xf32>
    %cst_9 = arith.constant 1.000000e+00 : f32
    %19 = vector.broadcast %cst_9 : f32 to vector<8x49x4xf32>
    %20 = arith.addf %19, %18 : vector<8x49x4xf32>
    %21 = arith.divf %19, %20 : vector<8x49x4xf32>
    %22 = vector.extract_strided_slice %15 {offsets = [0, 0, 4], sizes = [8, 49, 8], strides = [1, 1, 1]} : vector<8x49x12xf32> to vector<8x49x8xf32>
    %cst_10 = arith.constant dense<0xFF800000> : vector<8x4xf32>
    %23 = vector.multi_reduction <maximumf>, %21, %cst_10 [1] : vector<8x49x4xf32> to vector<8x4xf32>
    %24 = vector.shape_cast %23 : vector<8x4xf32> to vector<8x1x4xf32>
    %cst_11 = arith.constant dense<0xFF800000> : vector<8x1xf32>
    %25 = vector.multi_reduction <maximumf>, %24, %cst_11 [2] : vector<8x1x4xf32> to vector<8x1xf32>
    %26 = vector.shape_cast %25 : vector<8x1xf32> to vector<8x1x1xf32>
    %cst_12 = arith.constant 8.000000e-01 : f32
    %27 = vector.broadcast %cst_12 : f32 to vector<8x1x1xf32>
    %28 = arith.mulf %27, %26 : vector<8x1x1xf32>
    %29 = vector.broadcast %28 : vector<8x1x1xf32> to vector<8x1x4xf32>
    %30 = arith.cmpf oge, %24, %29 : vector<8x1x4xf32>
    %31 = arith.extui %30 : vector<8x1x4xi1> to vector<8x1x4xi32>
    %32 = arith.sitofp %31 : vector<8x1x4xi32> to vector<8x1x4xf32>
    %33 = vector.broadcast %32 : vector<8x1x4xf32> to vector<8x49x4xf32>
    %34 = arith.mulf %21, %33 : vector<8x49x4xf32>
    %35 = tpu.transpose %22, [0, 2, 1] : vector<8x49x8xf32> -> vector<8x8x49xf32>
    %36 = tpu.transpose %34, [0, 2, 1] : vector<8x49x4xf32> -> vector<8x4x49xf32>
    %37 = vector.extract_strided_slice %36 {offsets = [0, 0, 0], sizes = [8, 1, 49], strides = [1, 1, 1]} : vector<8x4x49xf32> to vector<8x1x49xf32>
    %38 = vector.broadcast %37 : vector<8x1x49xf32> to vector<8x8x49xf32>
    %39 = arith.mulf %35, %38 : vector<8x8x49xf32>
    %40 = vector.extract_strided_slice %36 {offsets = [0, 1, 0], sizes = [8, 1, 49], strides = [1, 1, 1]} : vector<8x4x49xf32> to vector<8x1x49xf32>
    %41 = vector.broadcast %40 : vector<8x1x49xf32> to vector<8x8x49xf32>
    %42 = arith.mulf %35, %41 : vector<8x8x49xf32>
    %43 = vector.extract_strided_slice %36 {offsets = [0, 2, 0], sizes = [8, 1, 49], strides = [1, 1, 1]} : vector<8x4x49xf32> to vector<8x1x49xf32>
    %44 = vector.broadcast %43 : vector<8x1x49xf32> to vector<8x8x49xf32>
    %45 = arith.mulf %35, %44 : vector<8x8x49xf32>
    %46 = vector.extract_strided_slice %36 {offsets = [0, 3, 0], sizes = [8, 1, 49], strides = [1, 1, 1]} : vector<8x4x49xf32> to vector<8x1x49xf32>
    %47 = vector.broadcast %46 : vector<8x1x49xf32> to vector<8x8x49xf32>
    %48 = arith.mulf %35, %47 : vector<8x8x49xf32>
    %49 = tpu.concatenate %39, %42, %45, %48 in 1 : vector<8x8x49xf32>, vector<8x8x49xf32>, vector<8x8x49xf32>, vector<8x8x49xf32> -> vector<8x32x49xf32>
    %50 = arith.truncf %49 : vector<8x32x49xf32> to vector<8x32x49xbf16>
    %cst_13 = arith.constant dense<0.000000e+00> : vector<8x32x128xf32>
    %51 = tpu.matmul %50, %0, %cst_13 {dimension_numbers = #tpu.dot_dimension_numbers<[2], [1], [1], [2], [0, 0, 0, 1, 1, 2], [0], [0]>} : vector<8x32x49xbf16>, vector<8x49x128xbf16>, vector<8x32x128xf32> -> vector<8x32x128xf32>
    %52 = vector.extract_strided_slice %51 {offsets = [0, 0, 0], sizes = [8, 8, 128], strides = [1, 1, 1]} : vector<8x32x128xf32> to vector<8x8x128xf32>
    %53 = vector.extract_strided_slice %51 {offsets = [0, 8, 0], sizes = [8, 8, 128], strides = [1, 1, 1]} : vector<8x32x128xf32> to vector<8x8x128xf32>
    %54 = arith.maximumf %52, %53 : vector<8x8x128xf32>
    %55 = vector.extract_strided_slice %51 {offsets = [0, 16, 0], sizes = [8, 8, 128], strides = [1, 1, 1]} : vector<8x32x128xf32> to vector<8x8x128xf32>
    %56 = arith.maximumf %54, %55 : vector<8x8x128xf32>
    %57 = vector.extract_strided_slice %51 {offsets = [0, 24, 0], sizes = [8, 8, 128], strides = [1, 1, 1]} : vector<8x32x128xf32> to vector<8x8x128xf32>
    %58 = arith.maximumf %56, %57 : vector<8x8x128xf32>
    %59 = arith.truncf %58 : vector<8x8x128xf32> to vector<8x8x128xbf16>
    %60 = vector.extract_strided_slice %59 {offsets = [0, 0, 0], sizes = [8, 1, 128], strides = [1, 1, 1]} : vector<8x8x128xbf16> to vector<8x1x128xbf16>
    %61 = vector.shape_cast %60 : vector<8x1x128xbf16> to vector<8x128xbf16>
    %62 = vector.extract_strided_slice %59 {offsets = [0, 1, 0], sizes = [8, 1, 128], strides = [1, 1, 1]} : vector<8x8x128xbf16> to vector<8x1x128xbf16>
    %63 = vector.shape_cast %62 : vector<8x1x128xbf16> to vector<8x128xbf16>
    %64 = vector.extract_strided_slice %59 {offsets = [0, 2, 0], sizes = [8, 1, 128], strides = [1, 1, 1]} : vector<8x8x128xbf16> to vector<8x1x128xbf16>
    %65 = vector.shape_cast %64 : vector<8x1x128xbf16> to vector<8x128xbf16>
    %66 = vector.extract_strided_slice %59 {offsets = [0, 3, 0], sizes = [8, 1, 128], strides = [1, 1, 1]} : vector<8x8x128xbf16> to vector<8x1x128xbf16>
    %67 = vector.shape_cast %66 : vector<8x1x128xbf16> to vector<8x128xbf16>
    %68 = vector.extract_strided_slice %59 {offsets = [0, 4, 0], sizes = [8, 1, 128], strides = [1, 1, 1]} : vector<8x8x128xbf16> to vector<8x1x128xbf16>
    %69 = vector.shape_cast %68 : vector<8x1x128xbf16> to vector<8x128xbf16>
    %70 = vector.extract_strided_slice %59 {offsets = [0, 5, 0], sizes = [8, 1, 128], strides = [1, 1, 1]} : vector<8x8x128xbf16> to vector<8x1x128xbf16>
    %71 = vector.shape_cast %70 : vector<8x1x128xbf16> to vector<8x128xbf16>
    %72 = vector.extract_strided_slice %59 {offsets = [0, 6, 0], sizes = [8, 1, 128], strides = [1, 1, 1]} : vector<8x8x128xbf16> to vector<8x1x128xbf16>
    %73 = vector.shape_cast %72 : vector<8x1x128xbf16> to vector<8x128xbf16>
    %74 = vector.extract_strided_slice %59 {offsets = [0, 7, 0], sizes = [8, 1, 128], strides = [1, 1, 1]} : vector<8x8x128xbf16> to vector<8x1x128xbf16>
    %75 = vector.shape_cast %74 : vector<8x1x128xbf16> to vector<8x128xbf16>
    %76 = tpu.concatenate %61, %63, %65, %67, %69, %71, %73, %75 in 1 : vector<8x128xbf16>, vector<8x128xbf16>, vector<8x128xbf16>, vector<8x128xbf16>, vector<8x128xbf16>, vector<8x128xbf16>, vector<8x128xbf16>, vector<8x128xbf16> -> vector<8x1024xbf16>
    %c0_14 = arith.constant 0 : index
    %c0_15 = arith.constant 0 : index
    %77 = vector.load %arg6[%c0_14, %c0_15] : memref<1024x128xbf16, #tpu.memory_space<vmem>>, vector<1024x128xbf16>
    %cst_16 = arith.constant dense<0.000000e+00> : vector<8x128xf32>
    %78 = tpu.matmul %76, %77, %cst_16 {dimension_numbers = #tpu.dot_dimension_numbers<[1], [0], [0], [1], [0, 0, 1, 1], [], []>} : vector<8x1024xbf16>, vector<1024x128xbf16>, vector<8x128xf32> -> vector<8x128xf32>
    %79 = arith.truncf %34 : vector<8x49x4xf32> to vector<8x49x4xbf16>
    %80 = vector.extract_strided_slice %79 {offsets = [0, 0, 0], sizes = [8, 49, 1], strides = [1, 1, 1]} : vector<8x49x4xbf16> to vector<8x49x1xbf16>
    %81 = vector.broadcast %80 : vector<8x49x1xbf16> to vector<8x49x128xbf16>
    %82 = arith.mulf %0, %81 : vector<8x49x128xbf16>
    %cst_17 = arith.constant dense<0xFF80> : vector<8x128xbf16>
    %83 = vector.multi_reduction <maximumf>, %82, %cst_17 [1] : vector<8x49x128xbf16> to vector<8x128xbf16>
    %84 = vector.extract_strided_slice %79 {offsets = [0, 0, 1], sizes = [8, 49, 1], strides = [1, 1, 1]} : vector<8x49x4xbf16> to vector<8x49x1xbf16>
    %85 = vector.broadcast %84 : vector<8x49x1xbf16> to vector<8x49x128xbf16>
    %86 = arith.mulf %0, %85 : vector<8x49x128xbf16>
    %cst_18 = arith.constant dense<0xFF80> : vector<8x128xbf16>
    %87 = vector.multi_reduction <maximumf>, %86, %cst_18 [1] : vector<8x49x128xbf16> to vector<8x128xbf16>
    %88 = vector.extract_strided_slice %79 {offsets = [0, 0, 2], sizes = [8, 49, 1], strides = [1, 1, 1]} : vector<8x49x4xbf16> to vector<8x49x1xbf16>
    %89 = vector.broadcast %88 : vector<8x49x1xbf16> to vector<8x49x128xbf16>
    %90 = arith.mulf %0, %89 : vector<8x49x128xbf16>
    %cst_19 = arith.constant dense<0xFF80> : vector<8x128xbf16>
    %91 = vector.multi_reduction <maximumf>, %90, %cst_19 [1] : vector<8x49x128xbf16> to vector<8x128xbf16>
    %92 = vector.extract_strided_slice %79 {offsets = [0, 0, 3], sizes = [8, 49, 1], strides = [1, 1, 1]} : vector<8x49x4xbf16> to vector<8x49x1xbf16>
    %93 = vector.broadcast %92 : vector<8x49x1xbf16> to vector<8x49x128xbf16>
    %94 = arith.mulf %0, %93 : vector<8x49x128xbf16>
    %cst_20 = arith.constant dense<0xFF80> : vector<8x128xbf16>
    %95 = vector.multi_reduction <maximumf>, %94, %cst_20 [1] : vector<8x49x128xbf16> to vector<8x128xbf16>
    %96 = tpu.concatenate %83, %87, %91, %95 in 1 : vector<8x128xbf16>, vector<8x128xbf16>, vector<8x128xbf16>, vector<8x128xbf16> -> vector<8x512xbf16>
    %c0_21 = arith.constant 0 : index
    %c0_22 = arith.constant 0 : index
    %97 = vector.load %arg5[%c0_21, %c0_22] : memref<512x128xbf16, #tpu.memory_space<vmem>>, vector<512x128xbf16>
    %cst_23 = arith.constant dense<0.000000e+00> : vector<8x128xf32>
    %98 = tpu.matmul %96, %97, %cst_23 {dimension_numbers = #tpu.dot_dimension_numbers<[1], [0], [0], [1], [0, 0, 1, 1], [], []>} : vector<8x512xbf16>, vector<512x128xbf16>, vector<8x128xf32> -> vector<8x128xf32>
    %99 = vector.shape_cast %98 : vector<8x128xf32> to vector<8x1x128xf32>
    %100 = vector.shape_cast %78 : vector<8x128xf32> to vector<8x1x128xf32>
    %101 = tpu.concatenate %99, %100 in 1 : vector<8x1x128xf32>, vector<8x1x128xf32> -> vector<8x2x128xf32>
    %c0_24 = arith.constant 0 : index
    %c0_25 = arith.constant 0 : index
    %c0_26 = arith.constant 0 : index
    %102 = vector.load %arg7[%c0_24, %c0_25, %c0_26] : memref<8x2x128xf32, #tpu.memory_space<vmem>>, vector<8x2x128xf32>
    tpu.vector_store %arg7[%c0_24, %c0_25, %c0_26], %101 {strides = array<i32>} : memref<8x2x128xf32, #tpu.memory_space<vmem>>, vector<8x2x128xf32>,
    return
  }
  func.func @transform_0(%arg0: i32) -> (i32, i32, i32) {
    %c0_i32 = arith.constant 0 : i32
    %c0_i32_0 = arith.constant 0 : i32
    %c0_i32_1 = arith.constant 0 : i32
    return %arg0, %c0_i32, %c0_i32_0 : i32, i32, i32
  }
  func.func @transform_1(%arg0: i32) -> (i32, i32) {
    %c0_i32 = arith.constant 0 : i32
    %c0_i32_0 = arith.constant 0 : i32
    %c0_i32_1 = arith.constant 0 : i32
    return %c0_i32, %c0_i32_0 : i32, i32
  }
  func.func @transform_2(%arg0: i32) -> (i32, i32) {
    %c0_i32 = arith.constant 0 : i32
    %c0_i32_0 = arith.constant 0 : i32
    %c0_i32_1 = arith.constant 0 : i32
    return %c0_i32, %c0_i32_0 : i32, i32
  }
  func.func @transform_3(%arg0: i32) -> (i32, i32) {
    %c0_i32 = arith.constant 0 : i32
    %c0_i32_0 = arith.constant 0 : i32
    %c0_i32_1 = arith.constant 0 : i32
    return %c0_i32, %c0_i32_0 : i32, i32
  }
  func.func @transform_4(%arg0: i32) -> (i32, i32) {
    %c0_i32 = arith.constant 0 : i32
    %c0_i32_0 = arith.constant 0 : i32
    %c0_i32_1 = arith.constant 0 : i32
    return %c0_i32, %c0_i32_0 : i32, i32
  }
  func.func @transform_5(%arg0: i32) -> (i32, i32) {
    %c0_i32 = arith.constant 0 : i32
    %c0_i32_0 = arith.constant 0 : i32
    %c0_i32_1 = arith.constant 0 : i32
    return %c0_i32, %c0_i32_0 : i32, i32
  }
  func.func @transform_6(%arg0: i32) -> (i32, i32, i32) {
    %c0_i32 = arith.constant 0 : i32
    %c0_i32_0 = arith.constant 0 : i32
    %c0_i32_1 = arith.constant 0 : i32
    return %arg0, %c0_i32, %c0_i32_0 : i32, i32, i32
  }
}

</mosaic_0001>

<llo_original>
// kernel: tpu_custom_call.1
$region0: #{tpu_custom_call.1}
  #allocation0 [shape = 'u32[]', space=smem, size = 0x4, offset = 0x4, fixed_abs, tag = 'smem constant byte address 0x4 - core index']
  #allocation1 [shape = 'u32[72,128]{1,0:T(1,128)}', space=vmem, size = 0x9000, scoped, tag = 'internal scratch']
  %s0 = inlined_call_operand.vmem [shape: bf16[8,49,128], index: 0, kind: input, shape index: {}]
  %s1 = inlined_call_operand.vmem [shape: bf16[128,12], index: 1, kind: input, shape index: {}]
  %s2 = inlined_call_operand.vmem [shape: bf16[128,12], index: 2, kind: input, shape index: {}]
  %s3 = inlined_call_operand.vmem [shape: f32[1,12], index: 3, kind: input, shape index: {}]
  %s4 = inlined_call_operand.hbm [shape: bf16[512,128], index: 4, kind: input, shape index: {}]
  %s5 = inlined_call_operand.vmem [shape: bf16[1024,128], index: 5, kind: input, shape index: {}]
  %s6 = inlined_call_operand.hbm [shape: f32[8,2,128], index: 6, kind: output, shape index: {}]
  %s7 = sld [smem:[#allocation0]]
  $region38: #{tpu_custom_call.1} parent=0
    _
  %s9 = ssub.s32 1, %s7
  %s10 = scalar_select 0, %s9, %s7
  $region1: #{tpu_custom_call.1} parent=0
    #allocation2 [shape = 'u8[131072]{0}', space=vmem, size = 0x20000, scoped, tag = 'input window, operand 4, single buffered']
    #allocation3 [shape = 's32[1]{0}', space=sflag, size = 0x4, scoped, tag = 'scoped memory for tpu_custom_call.1']
    #allocation4 [shape = 's32[1]{0}', space=sflag, size = 0x4, scoped, tag = 'scoped memory for tpu_custom_call.1']
    #allocation5 [shape = 'u8[8192]{0}', space=vmem, size = 0x2000, scoped, tag = 'output window, operand 0, single buffered']
    %11 = vsyncpa [#allocation3], 0
    %12 = vsyncpa [#allocation4], 0
    // Predicated region
    $region2: #{tpu_custom_call.1} parent=1 // pred_check
      _
    $region3: #{tpu_custom_call.1} parent=1 // pred_check_branch
      %14 = sbr.rel (0) target = $region5
    $region4: #{tpu_custom_call.1} parent=1 // pred_region
      _
    $region5: #{tpu_custom_call.1} parent=1 // pred_fallthru
      _
    // Predicated region
    $region6: #{tpu_custom_call.1} parent=1 // pred_check
      _
    $region7: #{tpu_custom_call.1} parent=1 // pred_check_branch
      %16 = sbr.rel (0) target = $region9
    $region8: #{tpu_custom_call.1} parent=1 // pred_region
      _
    $region9: #{tpu_custom_call.1} parent=1 // pred_fallthru
      _
    // Predicated region
    $region10: #{tpu_custom_call.1} parent=1 // pred_check
      _
    $region11: #{tpu_custom_call.1} parent=1 // pred_check_branch
      %18 = sbr.rel (0) target = $region13
    $region12: #{tpu_custom_call.1} parent=1 // pred_region
      _
    $region13: #{tpu_custom_call.1} parent=1 // pred_fallthru
      _
    // Predicated region
    $region14: #{tpu_custom_call.1} parent=1 // pred_check
      _
    $region15: #{tpu_custom_call.1} parent=1 // pred_check_branch
      %20 = sbr.rel (0) target = $region17
    $region16: #{tpu_custom_call.1} parent=1 // pred_region
      _
    $region17: #{tpu_custom_call.1} parent=1 // pred_fallthru
      _
    // Predicated region
    $region18: #{tpu_custom_call.1} parent=1 // pred_check
      _
    $region19: #{tpu_custom_call.1} parent=1 // pred_check_branch
      %22 = sbr.rel (0) target = $region21
    $region20: #{tpu_custom_call.1} parent=1 // pred_region
      %24 = vsyncadd [#allocation3], 0
      %s25 = sshll.u32 %s4, 4
      %s26 = int_to_ptr.hbm [resolvable:$true] %s25
      %s27 = sshll.u32 [#allocation2], 4
      %s28 = int_to_ptr.vmem [resolvable:$true] %s27
      %33 = dma.hbm_to_vmem [thread:$0]  %s26, 4096, %s28, [#allocation3], 64, 64, 4
    $region21: #{tpu_custom_call.1} parent=1 // pred_fallthru
      _
    // Predicated region
    $region22: #{tpu_custom_call.1} parent=1 // pred_check
      _
    $region23: #{tpu_custom_call.1} parent=1 // pred_check_branch
      %35 = sbr.rel (0) target = $region25
    $region24: #{tpu_custom_call.1} parent=1 // pred_region
      _
    $region25: #{tpu_custom_call.1} parent=1 // pred_fallthru
      _
    // Predicated region
    $region26: #{tpu_custom_call.1} parent=1 // pred_check
      _
    $region27: #{tpu_custom_call.1} parent=1 // pred_check_branch
      %37 = sbr.rel (0) target = $region29
    $region28: #{tpu_custom_call.1} parent=1 // pred_region
      %39 = dma.done [#allocation3], 4096
    $region29: #{tpu_custom_call.1} parent=1 // pred_fallthru
      _
    %v41 = vld [vmem:[%s0] sm:$0xf]
    %v42 = vld [vmem:[%s0 + $0x4] sm:$0xf]
    %v43 = vld [vmem:[%s0 + $0x8] sm:$0xf]
    %v44 = vld [vmem:[%s0 + $0xc] sm:$0xf]
    %v45 = vld [vmem:[%s0 + $0x10] sm:$0xf]
    %v46 = vld [vmem:[%s0 + $0x14] sm:$0xf]
    %v47 = vld [vmem:[%s0 + $0x18] sm:$0x1]
    %v48 = vld [vmem:[%s0 + $0x1c] sm:$0xf]
    %v49 = vld [vmem:[%s0 + $0x20] sm:$0xf]
    %v50 = vld [vmem:[%s0 + $0x24] sm:$0xf]
    %v51 = vld [vmem:[%s0 + $0x28] sm:$0xf]
    %v52 = vld [vmem:[%s0 + $0x2c] sm:$0xf]
    %v53 = vld [vmem:[%s0 + $0x30] sm:$0xf]
    %v54 = vld [vmem:[%s0 + $0x34] sm:$0x1]
    %v55 = vld [vmem:[%s0 + $0x38] sm:$0xf]
    %v56 = vld [vmem:[%s0 + $0x3c] sm:$0xf]
    %v57 = vld [vmem:[%s0 + $0x40] sm:$0xf]
    %v58 = vld [vmem:[%s0 + $0x44] sm:$0xf]
    %v59 = vld [vmem:[%s0 + $0x48] sm:$0xf]
    %v60 = vld [vmem:[%s0 + $0x4c] sm:$0xf]
    %v61 = vld [vmem:[%s0 + $0x50] sm:$0x1]
    %v62 = vld [vmem:[%s0 + $0x54] sm:$0xf]
    %v63 = vld [vmem:[%s0 + $0x58] sm:$0xf]
    %v64 = vld [vmem:[%s0 + $0x5c] sm:$0xf]
    %v65 = vld [vmem:[%s0 + $0x60] sm:$0xf]
    %v66 = vld [vmem:[%s0 + $0x64] sm:$0xf]
    %v67 = vld [vmem:[%s0 + $0x68] sm:$0xf]
    %v68 = vld [vmem:[%s0 + $0x6c] sm:$0x1]
    %v69 = vld [vmem:[%s0 + $0x70] sm:$0xf]
    %v70 = vld [vmem:[%s0 + $0x74] sm:$0xf]
    %v71 = vld [vmem:[%s0 + $0x78] sm:$0xf]
    %v72 = vld [vmem:[%s0 + $0x7c] sm:$0xf]
    %v73 = vld [vmem:[%s0 + $0x80] sm:$0xf]
    %v74 = vld [vmem:[%s0 + $0x84] sm:$0xf]
    %v75 = vld [vmem:[%s0 + $0x88] sm:$0x1]
    %v76 = vld [vmem:[%s0 + $0x8c] sm:$0xf]
    %v77 = vld [vmem:[%s0 + $0x90] sm:$0xf]
    %v78 = vld [vmem:[%s0 + $0x94] sm:$0xf]
    %v79 = vld [vmem:[%s0 + $0x98] sm:$0xf]
    %v80 = vld [vmem:[%s0 + $0x9c] sm:$0xf]
    %v81 = vld [vmem:[%s0 + $0xa0] sm:$0xf]
    %v82 = vld [vmem:[%s0 + $0xa4] sm:$0x1]
    %v83 = vld [vmem:[%s0 + $0xa8] sm:$0xf]
    %v84 = vld [vmem:[%s0 + $0xac] sm:$0xf]
    %v85 = vld [vmem:[%s0 + $0xb0] sm:$0xf]
    %v86 = vld [vmem:[%s0 + $0xb4] sm:$0xf]
    %v87 = vld [vmem:[%s0 + $0xb8] sm:$0xf]
    %v88 = vld [vmem:[%s0 + $0xbc] sm:$0xf]
    %v89 = vld [vmem:[%s0 + $0xc0] sm:$0x1]
    %v90 = vld [vmem:[%s0 + $0xc4] sm:$0xf]
    %v91 = vld [vmem:[%s0 + $0xc8] sm:$0xf]
    %v92 = vld [vmem:[%s0 + $0xcc] sm:$0xf]
    %v93 = vld [vmem:[%s0 + $0xd0] sm:$0xf]
    %v94 = vld [vmem:[%s0 + $0xd4] sm:$0xf]
    %v95 = vld [vmem:[%s0 + $0xd8] sm:$0xf]
    %v96 = vld [vmem:[%s0 + $0xdc] sm:$0x1]
    %v97 = vld [vmem:[%s1] sm:$0xf]
    %v98 = vld [vmem:[%s1 + $0x4] sm:$0xf]
    %v99 = vld [vmem:[%s1 + $0x8] sm:$0xf]
    %v100 = vld [vmem:[%s1 + $0xc] sm:$0xf]
    %v101 = vld [vmem:[%s1 + $0x10] sm:$0xf]
    %v102 = vld [vmem:[%s1 + $0x14] sm:$0xf]
    %v103 = vld [vmem:[%s1 + $0x18] sm:$0xf]
    %v104 = vld [vmem:[%s1 + $0x1c] sm:$0xf]
    %v105 = vld [vmem:[%s1 + $0x20] sm:$0xf]
    %v106 = vld [vmem:[%s1 + $0x24] sm:$0xf]
    %v107 = vld [vmem:[%s1 + $0x28] sm:$0xf]
    %v108 = vld [vmem:[%s1 + $0x2c] sm:$0xf]
    %v109 = vld [vmem:[%s1 + $0x30] sm:$0xf]
    %v110 = vld [vmem:[%s1 + $0x34] sm:$0xf]
    %v111 = vld [vmem:[%s1 + $0x38] sm:$0xf]
    %v112 = vld [vmem:[%s1 + $0x3c] sm:$0xf]
    %v113 = vld [vmem:[%s2] sm:$0xf]
    %v114 = vld [vmem:[%s2 + $0x4] sm:$0xf]
    %v115 = vld [vmem:[%s2 + $0x8] sm:$0xf]
    %v116 = vld [vmem:[%s2 + $0xc] sm:$0xf]
    %v117 = vld [vmem:[%s2 + $0x10] sm:$0xf]
    %v118 = vld [vmem:[%s2 + $0x14] sm:$0xf]
    %v119 = vld [vmem:[%s2 + $0x18] sm:$0xf]
    %v120 = vld [vmem:[%s2 + $0x1c] sm:$0xf]
    %v121 = vld [vmem:[%s2 + $0x20] sm:$0xf]
    %v122 = vld [vmem:[%s2 + $0x24] sm:$0xf]
    %v123 = vld [vmem:[%s2 + $0x28] sm:$0xf]
    %v124 = vld [vmem:[%s2 + $0x2c] sm:$0xf]
    %v125 = vld [vmem:[%s2 + $0x30] sm:$0xf]
    %v126 = vld [vmem:[%s2 + $0x34] sm:$0xf]
    %v127 = vld [vmem:[%s2 + $0x38] sm:$0xf]
    %v128 = vld [vmem:[%s2 + $0x3c] sm:$0xf]
    %v136 = vunpack.c.l.b16 %v41
    %v137 = vunpack.c.l.b16 %v42
    %v138 = vunpack.c.l.b16 %v43
    %v139 = vunpack.c.l.b16 %v44
    %v140 = vunpack.c.l.b16 %v45
    %v141 = vunpack.c.l.b16 %v46
    %v142 = vunpack.c.l.b16 %v47
    %v143 = vpack.c.b16 %v137, %v136
    %v144 = vpack.c.b16 %v139, %v138
    %v145 = vpack.c.b16 %v141, %v140
    %v146 = vpack.c.b16 %v142, %v142
    %v167 = vunpack.c.l.b16 %v113
    %v168 = vunpack.c.l.b16 %v114
    %v169 = vunpack.c.l.b16 %v115
    %v170 = vunpack.c.l.b16 %v116
    %v171 = vunpack.c.l.b16 %v117
    %v172 = vunpack.c.l.b16 %v118
    %v173 = vunpack.c.l.b16 %v119
    %v174 = vunpack.c.l.b16 %v120
    %v175 = vunpack.c.l.b16 %v121
    %v176 = vunpack.c.l.b16 %v122
    %v177 = vunpack.c.l.b16 %v123
    %v178 = vunpack.c.l.b16 %v124
    %v179 = vunpack.c.l.b16 %v125
    %v180 = vunpack.c.l.b16 %v126
    %v181 = vunpack.c.l.b16 %v127
    %v182 = vunpack.c.l.b16 %v128
    %v183 = vpack.c.b16 %v168, %v167
    %v184 = vpack.c.b16 %v170, %v169
    %v185 = vpack.c.b16 %v172, %v171
    %v186 = vpack.c.b16 %v174, %v173
    %v187 = vpack.c.b16 %v176, %v175
    %v188 = vpack.c.b16 %v178, %v177
    %v189 = vpack.c.b16 %v180, %v179
    %v190 = vpack.c.b16 %v182, %v181
    %199 = vmatpush.bf16.msra.mxu0 %v190
    %200 = vmatpush.bf16.msra.mxu0 %v189
    %201 = vmatpush.bf16.msra.mxu0 %v188
    %202 = vmatpush.bf16.msra.mxu0 %v187
    %203 = vmatpush.bf16.msra.mxu0 %v186
    %204 = vmatpush.bf16.msra.mxu0 %v185
    %205 = vmatpush.bf16.msra.mxu0 %v184
    %206 = vmatpush.bf16.msra.mxu0 %v183
    %207 = vmatmul.bf16.gmra.mxu0 %v143
    %v208 = vpop.f32.mrf.mxu0
    %v209 = vadd.f32 0.0, %v208
    %v210 = vpop.f32.mrf.mxu0
    %v211 = vadd.f32 0.0, %v210
    %212 = vmatmul.bf16.gmra.mxu0 %v144
    %v213 = vpop.f32.mrf.mxu0
    %v214 = vadd.f32 0.0, %v213
    %v215 = vpop.f32.mrf.mxu0
    %v216 = vadd.f32 0.0, %v215
    %217 = vmatmul.bf16.gmra.mxu0 %v145
    %v218 = vpop.f32.mrf.mxu0
    %v219 = vadd.f32 0.0, %v218
    %v220 = vpop.f32.mrf.mxu0
    %v221 = vadd.f32 0.0, %v220
    %222 = vmatmul.bf16.gmra.mxu0 %v146
    %v223 = vpop.f32.mrf.mxu0
    %v224 = vadd.f32 0.0, %v223
    %v225 = vpop.f32.mrf.mxu0
    %226 = vdwg.mxu0
    %v234 = vunpack.c.l.b16 %v48
    %v235 = vunpack.c.l.b16 %v49
    %v236 = vunpack.c.l.b16 %v50
    %v237 = vunpack.c.l.b16 %v51
    %v238 = vunpack.c.l.b16 %v52
    %v239 = vunpack.c.l.b16 %v53
    %v240 = vunpack.c.l.b16 %v54
    %v241 = vpack.c.b16 %v235, %v234
    %v242 = vpack.c.b16 %v237, %v236
    %v243 = vpack.c.b16 %v239, %v238
    %v244 = vpack.c.b16 %v240, %v240
    %249 = vmatpush.bf16.msra.mxu0 %v190
    %250 = vmatpush.bf16.msra.mxu0 %v189
    %251 = vmatpush.bf16.msra.mxu0 %v188
    %252 = vmatpush.bf16.msra.mxu0 %v187
    %253 = vmatpush.bf16.msra.mxu0 %v186
    %254 = vmatpush.bf16.msra.mxu0 %v185
    %255 = vmatpush.bf16.msra.mxu0 %v184
    %256 = vmatpush.bf16.msra.mxu0 %v183
    %257 = vmatmul.bf16.gmra.mxu0 %v241
    %v258 = vpop.f32.mrf.mxu0
    %v259 = vadd.f32 0.0, %v258
    %v260 = vpop.f32.mrf.mxu0
    %v261 = vadd.f32 0.0, %v260
    %262 = vmatmul.bf16.gmra.mxu0 %v242
    %v263 = vpop.f32.mrf.mxu0
    %v264 = vadd.f32 0.0, %v263
    %v265 = vpop.f32.mrf.mxu0
    %v266 = vadd.f32 0.0, %v265
    %267 = vmatmul.bf16.gmra.mxu0 %v243
    %v268 = vpop.f32.mrf.mxu0
    %v269 = vadd.f32 0.0, %v268
    %v270 = vpop.f32.mrf.mxu0
    %v271 = vadd.f32 0.0, %v270
    %272 = vmatmul.bf16.gmra.mxu0 %v244
    %v273 = vpop.f32.mrf.mxu0
    %v274 = vadd.f32 0.0, %v273
    %v275 = vpop.f32.mrf.mxu0
    %276 = vdwg.mxu0
    %v284 = vunpack.c.l.b16 %v55
    %v285 = vunpack.c.l.b16 %v56
    %v286 = vunpack.c.l.b16 %v57
    %v287 = vunpack.c.l.b16 %v58
    %v288 = vunpack.c.l.b16 %v59
    %v289 = vunpack.c.l.b16 %v60
    %v290 = vunpack.c.l.b16 %v61
    %v291 = vpack.c.b16 %v285, %v284
    %v292 = vpack.c.b16 %v287, %v286
    %v293 = vpack.c.b16 %v289, %v288
    %v294 = vpack.c.b16 %v290, %v290
    %299 = vmatpush.bf16.msra.mxu0 %v190
    %300 = vmatpush.bf16.msra.mxu0 %v189
    %301 = vmatpush.bf16.msra.mxu0 %v188
    %302 = vmatpush.bf16.msra.mxu0 %v187
    %303 = vmatpush.bf16.msra.mxu0 %v186
    %304 = vmatpush.bf16.msra.mxu0 %v185
    %305 = vmatpush.bf16.msra.mxu0 %v184
    %306 = vmatpush.bf16.msra.mxu0 %v183
    %307 = vmatmul.bf16.gmra.mxu0 %v291
    %v308 = vpop.f32.mrf.mxu0
    %v309 = vadd.f32 0.0, %v308
    %v310 = vpop.f32.mrf.mxu0
    %v311 = vadd.f32 0.0, %v310
    %312 = vmatmul.bf16.gmra.mxu0 %v292
    %v313 = vpop.f32.mrf.mxu0
    %v314 = vadd.f32 0.0, %v313
    %v315 = vpop.f32.mrf.mxu0
    %v316 = vadd.f32 0.0, %v315
    %317 = vmatmul.bf16.gmra.mxu0 %v293
    %v318 = vpop.f32.mrf.mxu0
    %v319 = vadd.f32 0.0, %v318
    %v320 = vpop.f32.mrf.mxu0
    %v321 = vadd.f32 0.0, %v320
    %322 = vmatmul.bf16.gmra.mxu0 %v294
    %v323 = vpop.f32.mrf.mxu0
    %v324 = vadd.f32 0.0, %v323
    %v325 = vpop.f32.mrf.mxu0
    %326 = vdwg.mxu0
    %v334 = vunpack.c.l.b16 %v62
    %v335 = vunpack.c.l.b16 %v63
    %v336 = vunpack.c.l.b16 %v64
    %v337 = vunpack.c.l.b16 %v65
    %v338 = vunpack.c.l.b16 %v66
    %v339 = vunpack.c.l.b16 %v67
    %v340 = vunpack.c.l.b16 %v68
    %v341 = vpack.c.b16 %v335, %v334
    %v342 = vpack.c.b16 %v337, %v336
    %v343 = vpack.c.b16 %v339, %v338
    %v344 = vpack.c.b16 %v340, %v340
    %349 = vmatpush.bf16.msra.mxu0 %v190
    %350 = vmatpush.bf16.msra.mxu0 %v189
    %351 = vmatpush.bf16.msra.mxu0 %v188
    %352 = vmatpush.bf16.msra.mxu0 %v187
    %353 = vmatpush.bf16.msra.mxu0 %v186
    %354 = vmatpush.bf16.msra.mxu0 %v185
    %355 = vmatpush.bf16.msra.mxu0 %v184
    %356 = vmatpush.bf16.msra.mxu0 %v183
    %357 = vmatmul.bf16.gmra.mxu0 %v341
    %v358 = vpop.f32.mrf.mxu0
    %v359 = vadd.f32 0.0, %v358
    %v360 = vpop.f32.mrf.mxu0
    %v361 = vadd.f32 0.0, %v360
    %362 = vmatmul.bf16.gmra.mxu0 %v342
    %v363 = vpop.f32.mrf.mxu0
    %v364 = vadd.f32 0.0, %v363
    %v365 = vpop.f32.mrf.mxu0
    %v366 = vadd.f32 0.0, %v365
    %367 = vmatmul.bf16.gmra.mxu0 %v343
    %v368 = vpop.f32.mrf.mxu0
    %v369 = vadd.f32 0.0, %v368
    %v370 = vpop.f32.mrf.mxu0
    %v371 = vadd.f32 0.0, %v370
    %372 = vmatmul.bf16.gmra.mxu0 %v344
    %v373 = vpop.f32.mrf.mxu0
    %v374 = vadd.f32 0.0, %v373
    %v375 = vpop.f32.mrf.mxu0
    %376 = vdwg.mxu0
    %v384 = vunpack.c.l.b16 %v69
    %v385 = vunpack.c.l.b16 %v70
    %v386 = vunpack.c.l.b16 %v71
    %v387 = vunpack.c.l.b16 %v72
    %v388 = vunpack.c.l.b16 %v73
    %v389 = vunpack.c.l.b16 %v74
    %v390 = vunpack.c.l.b16 %v75
    %v391 = vpack.c.b16 %v385, %v384
    %v392 = vpack.c.b16 %v387, %v386
    %v393 = vpack.c.b16 %v389, %v388
    %v394 = vpack.c.b16 %v390, %v390
    %399 = vmatpush.bf16.msra.mxu0 %v190
    %400 = vmatpush.bf16.msra.mxu0 %v189
    %401 = vmatpush.bf16.msra.mxu0 %v188
    %402 = vmatpush.bf16.msra.mxu0 %v187
    %403 = vmatpush.bf16.msra.mxu0 %v186
    %404 = vmatpush.bf16.msra.mxu0 %v185
    %405 = vmatpush.bf16.msra.mxu0 %v184
    %406 = vmatpush.bf16.msra.mxu0 %v183
    %407 = vmatmul.bf16.gmra.mxu0 %v391
    %v408 = vpop.f32.mrf.mxu0
    %v409 = vadd.f32 0.0, %v408
    %v410 = vpop.f32.mrf.mxu0
    %v411 = vadd.f32 0.0, %v410
    %412 = vmatmul.bf16.gmra.mxu0 %v392
    %v413 = vpop.f32.mrf.mxu0
    %v414 = vadd.f32 0.0, %v413
    %v415 = vpop.f32.mrf.mxu0
    %v416 = vadd.f32 0.0, %v415
    %417 = vmatmul.bf16.gmra.mxu0 %v393
    %v418 = vpop.f32.mrf.mxu0
    %v419 = vadd.f32 0.0, %v418
    %v420 = vpop.f32.mrf.mxu0
    %v421 = vadd.f32 0.0, %v420
    %422 = vmatmul.bf16.gmra.mxu0 %v394
    %v423 = vpop.f32.mrf.mxu0
    %v424 = vadd.f32 0.0, %v423
    %v425 = vpop.f32.mrf.mxu0
    %426 = vdwg.mxu0
    %v434 = vunpack.c.l.b16 %v76
    %v435 = vunpack.c.l.b16 %v77
    %v436 = vunpack.c.l.b16 %v78
    %v437 = vunpack.c.l.b16 %v79
    %v438 = vunpack.c.l.b16 %v80
    %v439 = vunpack.c.l.b16 %v81
    %v440 = vunpack.c.l.b16 %v82
    %v441 = vpack.c.b16 %v435, %v434
    %v442 = vpack.c.b16 %v437, %v436
    %v443 = vpack.c.b16 %v439, %v438
    %v444 = vpack.c.b16 %v440, %v440
    %449 = vmatpush.bf16.msra.mxu0 %v190
    %450 = vmatpush.bf16.msra.mxu0 %v189
    %451 = vmatpush.bf16.msra.mxu0 %v188
    %452 = vmatpush.bf16.msra.mxu0 %v187
    %453 = vmatpush.bf16.msra.mxu0 %v186
    %454 = vmatpush.bf16.msra.mxu0 %v185
    %455 = vmatpush.bf16.msra.mxu0 %v184
    %456 = vmatpush.bf16.msra.mxu0 %v183
    %457 = vmatmul.bf16.gmra.mxu0 %v441
    %v458 = vpop.f32.mrf.mxu0
    %v459 = vadd.f32 0.0, %v458
    %v460 = vpop.f32.mrf.mxu0
    %v461 = vadd.f32 0.0, %v460
    %462 = vmatmul.bf16.gmra.mxu0 %v442
    %v463 = vpop.f32.mrf.mxu0
    %v464 = vadd.f32 0.0, %v463
    %v465 = vpop.f32.mrf.mxu0
    %v466 = vadd.f32 0.0, %v465
    %467 = vmatmul.bf16.gmra.mxu0 %v443
    %v468 = vpop.f32.mrf.mxu0
    %v469 = vadd.f32 0.0, %v468
    %v470 = vpop.f32.mrf.mxu0
    %v471 = vadd.f32 0.0, %v470
    %472 = vmatmul.bf16.gmra.mxu0 %v444
    %v473 = vpop.f32.mrf.mxu0
    %v474 = vadd.f32 0.0, %v473
    %v475 = vpop.f32.mrf.mxu0
    %476 = vdwg.mxu0
    %v484 = vunpack.c.l.b16 %v83
    %v485 = vunpack.c.l.b16 %v84
    %v486 = vunpack.c.l.b16 %v85
    %v487 = vunpack.c.l.b16 %v86
    %v488 = vunpack.c.l.b16 %v87
    %v489 = vunpack.c.l.b16 %v88
    %v490 = vunpack.c.l.b16 %v89
    %v491 = vpack.c.b16 %v485, %v484
    %v492 = vpack.c.b16 %v487, %v486
    %v493 = vpack.c.b16 %v489, %v488
    %v494 = vpack.c.b16 %v490, %v490
    %499 = vmatpush.bf16.msra.mxu0 %v190
    %500 = vmatpush.bf16.msra.mxu0 %v189
    %501 = vmatpush.bf16.msra.mxu0 %v188
    %502 = vmatpush.bf16.msra.mxu0 %v187
    %503 = vmatpush.bf16.msra.mxu0 %v186
    %504 = vmatpush.bf16.msra.mxu0 %v185
    %505 = vmatpush.bf16.msra.mxu0 %v184
    %506 = vmatpush.bf16.msra.mxu0 %v183
    %507 = vmatmul.bf16.gmra.mxu0 %v491
    %v508 = vpop.f32.mrf.mxu0
    %v509 = vadd.f32 0.0, %v508
    %v510 = vpop.f32.mrf.mxu0
    %v511 = vadd.f32 0.0, %v510
    %512 = vmatmul.bf16.gmra.mxu0 %v492
    %v513 = vpop.f32.mrf.mxu0
    %v514 = vadd.f32 0.0, %v513
    %v515 = vpop.f32.mrf.mxu0
    %v516 = vadd.f32 0.0, %v515
    %517 = vmatmul.bf16.gmra.mxu0 %v493
    %v518 = vpop.f32.mrf.mxu0
    %v519 = vadd.f32 0.0, %v518
    %v520 = vpop.f32.mrf.mxu0
    %v521 = vadd.f32 0.0, %v520
    %522 = vmatmul.bf16.gmra.mxu0 %v494
    %v523 = vpop.f32.mrf.mxu0
    %v524 = vadd.f32 0.0, %v523
    %v525 = vpop.f32.mrf.mxu0
    %526 = vdwg.mxu0
    %v534 = vunpack.c.l.b16 %v90
    %v535 = vunpack.c.l.b16 %v91
    %v536 = vunpack.c.l.b16 %v92
    %v537 = vunpack.c.l.b16 %v93
    %v538 = vunpack.c.l.b16 %v94
    %v539 = vunpack.c.l.b16 %v95
    %v540 = vunpack.c.l.b16 %v96
    %v541 = vpack.c.b16 %v535, %v534
    %v542 = vpack.c.b16 %v537, %v536
    %v543 = vpack.c.b16 %v539, %v538
    %v544 = vpack.c.b16 %v540, %v540
    %549 = vmatpush.bf16.msra.mxu0 %v190
    %550 = vmatpush.bf16.msra.mxu0 %v189
    %551 = vmatpush.bf16.msra.mxu0 %v188
    %552 = vmatpush.bf16.msra.mxu0 %v187
    %553 = vmatpush.bf16.msra.mxu0 %v186
    %554 = vmatpush.bf16.msra.mxu0 %v185
    %555 = vmatpush.bf16.msra.mxu0 %v184
    %556 = vmatpush.bf16.msra.mxu0 %v183
    %557 = vmatmul.bf16.gmra.mxu0 %v541
    %v558 = vpop.f32.mrf.mxu0
    %v559 = vadd.f32 0.0, %v558
    %v560 = vpop.f32.mrf.mxu0
    %v561 = vadd.f32 0.0, %v560
    %562 = vmatmul.bf16.gmra.mxu0 %v542
    %v563 = vpop.f32.mrf.mxu0
    %v564 = vadd.f32 0.0, %v563
    %v565 = vpop.f32.mrf.mxu0
    %v566 = vadd.f32 0.0, %v565
    %567 = vmatmul.bf16.gmra.mxu0 %v543
    %v568 = vpop.f32.mrf.mxu0
    %v569 = vadd.f32 0.0, %v568
    %v570 = vpop.f32.mrf.mxu0
    %v571 = vadd.f32 0.0, %v570
    %572 = vmatmul.bf16.gmra.mxu0 %v544
    %v573 = vpop.f32.mrf.mxu0
    %v574 = vadd.f32 0.0, %v573
    %v575 = vpop.f32.mrf.mxu0
    %576 = vdwg.mxu0
    %v593 = vunpack.c.l.b16 %v97
    %v594 = vunpack.c.l.b16 %v98
    %v595 = vunpack.c.l.b16 %v99
    %v596 = vunpack.c.l.b16 %v100
    %v597 = vunpack.c.l.b16 %v101
    %v598 = vunpack.c.l.b16 %v102
    %v599 = vunpack.c.l.b16 %v103
    %v600 = vunpack.c.l.b16 %v104
    %v601 = vunpack.c.l.b16 %v105
    %v602 = vunpack.c.l.b16 %v106
    %v603 = vunpack.c.l.b16 %v107
    %v604 = vunpack.c.l.b16 %v108
    %v605 = vunpack.c.l.b16 %v109
    %v606 = vunpack.c.l.b16 %v110
    %v607 = vunpack.c.l.b16 %v111
    %v608 = vunpack.c.l.b16 %v112
    %v609 = vpack.c.b16 %v594, %v593
    %v610 = vpack.c.b16 %v596, %v595
    %v611 = vpack.c.b16 %v598, %v597
    %v612 = vpack.c.b16 %v600, %v599
    %v613 = vpack.c.b16 %v602, %v601
    %v614 = vpack.c.b16 %v604, %v603
    %v615 = vpack.c.b16 %v606, %v605
    %v616 = vpack.c.b16 %v608, %v607
    %625 = vmatpush.bf16.msra.mxu0 %v616
    %626 = vmatpush.bf16.msra.mxu0 %v615
    %627 = vmatpush.bf16.msra.mxu0 %v614
    %628 = vmatpush.bf16.msra.mxu0 %v613
    %629 = vmatpush.bf16.msra.mxu0 %v612
    %630 = vmatpush.bf16.msra.mxu0 %v611
    %631 = vmatpush.bf16.msra.mxu0 %v610
    %632 = vmatpush.bf16.msra.mxu0 %v609
    %633 = vmatmul.bf16.gmra.mxu0 %v143
    %v634 = vpop.f32.mrf.mxu0
    %v635 = vadd.f32 %v209, %v634
    %v636 = vpop.f32.mrf.mxu0
    %v637 = vadd.f32 %v211, %v636
    %638 = vmatmul.bf16.gmra.mxu0 %v144
    %v639 = vpop.f32.mrf.mxu0
    %v640 = vadd.f32 %v214, %v639
    %v641 = vpop.f32.mrf.mxu0
    %v642 = vadd.f32 %v216, %v641
    %643 = vmatmul.bf16.gmra.mxu0 %v145
    %v644 = vpop.f32.mrf.mxu0
    %v645 = vadd.f32 %v219, %v644
    %v646 = vpop.f32.mrf.mxu0
    %v647 = vadd.f32 %v221, %v646
    %648 = vmatmul.bf16.gmra.mxu0 %v146
    %v649 = vpop.f32.mrf.mxu0
    %v650 = vadd.f32 %v224, %v649
    %v651 = vpop.f32.mrf.mxu0
    %652 = vdwg.mxu0
    %653 = vmatpush.bf16.msra.mxu0 %v616
    %654 = vmatpush.bf16.msra.mxu0 %v615
    %655 = vmatpush.bf16.msra.mxu0 %v614
    %656 = vmatpush.bf16.msra.mxu0 %v613
    %657 = vmatpush.bf16.msra.mxu0 %v612
    %658 = vmatpush.bf16.msra.mxu0 %v611
    %659 = vmatpush.bf16.msra.mxu0 %v610
    %660 = vmatpush.bf16.msra.mxu0 %v609
    %661 = vmatmul.bf16.gmra.mxu0 %v241
    %v662 = vpop.f32.mrf.mxu0
    %v663 = vadd.f32 %v259, %v662
    %v664 = vpop.f32.mrf.mxu0
    %v665 = vadd.f32 %v261, %v664
    %666 = vmatmul.bf16.gmra.mxu0 %v242
    %v667 = vpop.f32.mrf.mxu0
    %v668 = vadd.f32 %v264, %v667
    %v669 = vpop.f32.mrf.mxu0
    %v670 = vadd.f32 %v266, %v669
    %671 = vmatmul.bf16.gmra.mxu0 %v243
    %v672 = vpop.f32.mrf.mxu0
    %v673 = vadd.f32 %v269, %v672
    %v674 = vpop.f32.mrf.mxu0
    %v675 = vadd.f32 %v271, %v674
    %676 = vmatmul.bf16.gmra.mxu0 %v244
    %v677 = vpop.f32.mrf.mxu0
    %v678 = vadd.f32 %v274, %v677
    %v679 = vpop.f32.mrf.mxu0
    %680 = vdwg.mxu0
    %681 = vmatpush.bf16.msra.mxu0 %v616
    %682 = vmatpush.bf16.msra.mxu0 %v615
    %683 = vmatpush.bf16.msra.mxu0 %v614
    %684 = vmatpush.bf16.msra.mxu0 %v613
    %685 = vmatpush.bf16.msra.mxu0 %v612
    %686 = vmatpush.bf16.msra.mxu0 %v611
    %687 = vmatpush.bf16.msra.mxu0 %v610
    %688 = vmatpush.bf16.msra.mxu0 %v609
    %689 = vmatmul.bf16.gmra.mxu0 %v291
    %v690 = vpop.f32.mrf.mxu0
    %v691 = vadd.f32 %v309, %v690
    %v692 = vpop.f32.mrf.mxu0
    %v693 = vadd.f32 %v311, %v692
    %694 = vmatmul.bf16.gmra.mxu0 %v292
    %v695 = vpop.f32.mrf.mxu0
    %v696 = vadd.f32 %v314, %v695
    %v697 = vpop.f32.mrf.mxu0
    %v698 = vadd.f32 %v316, %v697
    %699 = vmatmul.bf16.gmra.mxu0 %v293
    %v700 = vpop.f32.mrf.mxu0
    %v701 = vadd.f32 %v319, %v700
    %v702 = vpop.f32.mrf.mxu0
    %v703 = vadd.f32 %v321, %v702
    %704 = vmatmul.bf16.gmra.mxu0 %v294
    %v705 = vpop.f32.mrf.mxu0
    %v706 = vadd.f32 %v324, %v705
    %v707 = vpop.f32.mrf.mxu0
    %708 = vdwg.mxu0
    %709 = vmatpush.bf16.msra.mxu0 %v616
    %710 = vmatpush.bf16.msra.mxu0 %v615
    %711 = vmatpush.bf16.msra.mxu0 %v614
    %712 = vmatpush.bf16.msra.mxu0 %v613
    %713 = vmatpush.bf16.msra.mxu0 %v612
    %714 = vmatpush.bf16.msra.mxu0 %v611
    %715 = vmatpush.bf16.msra.mxu0 %v610
    %716 = vmatpush.bf16.msra.mxu0 %v609
    %717 = vmatmul.bf16.gmra.mxu0 %v341
    %v718 = vpop.f32.mrf.mxu0
    %v719 = vadd.f32 %v359, %v718
    %v720 = vpop.f32.mrf.mxu0
    %v721 = vadd.f32 %v361, %v720
    %722 = vmatmul.bf16.gmra.mxu0 %v342
    %v723 = vpop.f32.mrf.mxu0
    %v724 = vadd.f32 %v364, %v723
    %v725 = vpop.f32.mrf.mxu0
    %v726 = vadd.f32 %v366, %v725
    %727 = vmatmul.bf16.gmra.mxu0 %v343
    %v728 = vpop.f32.mrf.mxu0
    %v729 = vadd.f32 %v369, %v728
    %v730 = vpop.f32.mrf.mxu0
    %v731 = vadd.f32 %v371, %v730
    %732 = vmatmul.bf16.gmra.mxu0 %v344
    %v733 = vpop.f32.mrf.mxu0
    %v734 = vadd.f32 %v374, %v733
    %v735 = vpop.f32.mrf.mxu0
    %736 = vdwg.mxu0
    %737 = vmatpush.bf16.msra.mxu0 %v616
    %738 = vmatpush.bf16.msra.mxu0 %v615
    %739 = vmatpush.bf16.msra.mxu0 %v614
    %740 = vmatpush.bf16.msra.mxu0 %v613
    %741 = vmatpush.bf16.msra.mxu0 %v612
    %742 = vmatpush.bf16.msra.mxu0 %v611
    %743 = vmatpush.bf16.msra.mxu0 %v610
    %744 = vmatpush.bf16.msra.mxu0 %v609
    %745 = vmatmul.bf16.gmra.mxu0 %v391
    %v746 = vpop.f32.mrf.mxu0
    %v747 = vadd.f32 %v409, %v746
    %v748 = vpop.f32.mrf.mxu0
    %v749 = vadd.f32 %v411, %v748
    %750 = vmatmul.bf16.gmra.mxu0 %v392
    %v751 = vpop.f32.mrf.mxu0
    %v752 = vadd.f32 %v414, %v751
    %v753 = vpop.f32.mrf.mxu0
    %v754 = vadd.f32 %v416, %v753
    %755 = vmatmul.bf16.gmra.mxu0 %v393
    %v756 = vpop.f32.mrf.mxu0
    %v757 = vadd.f32 %v419, %v756
    %v758 = vpop.f32.mrf.mxu0
    %v759 = vadd.f32 %v421, %v758
    %760 = vmatmul.bf16.gmra.mxu0 %v394
    %v761 = vpop.f32.mrf.mxu0
    %v762 = vadd.f32 %v424, %v761
    %v763 = vpop.f32.mrf.mxu0
    %764 = vdwg.mxu0
    %765 = vmatpush.bf16.msra.mxu0 %v616
    %766 = vmatpush.bf16.msra.mxu0 %v615
    %767 = vmatpush.bf16.msra.mxu0 %v614
    %768 = vmatpush.bf16.msra.mxu0 %v613
    %769 = vmatpush.bf16.msra.mxu0 %v612
    %770 = vmatpush.bf16.msra.mxu0 %v611
    %771 = vmatpush.bf16.msra.mxu0 %v610
    %772 = vmatpush.bf16.msra.mxu0 %v609
    %773 = vmatmul.bf16.gmra.mxu0 %v441
    %v774 = vpop.f32.mrf.mxu0
    %v775 = vadd.f32 %v459, %v774
    %v776 = vpop.f32.mrf.mxu0
    %v777 = vadd.f32 %v461, %v776
    %778 = vmatmul.bf16.gmra.mxu0 %v442
    %v779 = vpop.f32.mrf.mxu0
    %v780 = vadd.f32 %v464, %v779
    %v781 = vpop.f32.mrf.mxu0
    %v782 = vadd.f32 %v466, %v781
    %783 = vmatmul.bf16.gmra.mxu0 %v443
    %v784 = vpop.f32.mrf.mxu0
    %v785 = vadd.f32 %v469, %v784
    %v786 = vpop.f32.mrf.mxu0
    %v787 = vadd.f32 %v471, %v786
    %788 = vmatmul.bf16.gmra.mxu0 %v444
    %v789 = vpop.f32.mrf.mxu0
    %v790 = vadd.f32 %v474, %v789
    %v791 = vpop.f32.mrf.mxu0
    %792 = vdwg.mxu0
    %793 = vmatpush.bf16.msra.mxu0 %v616
    %794 = vmatpush.bf16.msra.mxu0 %v615
    %795 = vmatpush.bf16.msra.mxu0 %v614
    %796 = vmatpush.bf16.msra.mxu0 %v613
    %797 = vmatpush.bf16.msra.mxu0 %v612
    %798 = vmatpush.bf16.msra.mxu0 %v611
    %799 = vmatpush.bf16.msra.mxu0 %v610
    %800 = vmatpush.bf16.msra.mxu0 %v609
    %801 = vmatmul.bf16.gmra.mxu0 %v491
    %v802 = vpop.f32.mrf.mxu0
    %v803 = vadd.f32 %v509, %v802
    %v804 = vpop.f32.mrf.mxu0
    %v805 = vadd.f32 %v511, %v804
    %806 = vmatmul.bf16.gmra.mxu0 %v492
    %v807 = vpop.f32.mrf.mxu0
    %v808 = vadd.f32 %v514, %v807
    %v809 = vpop.f32.mrf.mxu0
    %v810 = vadd.f32 %v516, %v809
    %811 = vmatmul.bf16.gmra.mxu0 %v493
    %v812 = vpop.f32.mrf.mxu0
    %v813 = vadd.f32 %v519, %v812
    %v814 = vpop.f32.mrf.mxu0
    %v815 = vadd.f32 %v521, %v814
    %816 = vmatmul.bf16.gmra.mxu0 %v494
    %v817 = vpop.f32.mrf.mxu0
    %v818 = vadd.f32 %v524, %v817
    %v819 = vpop.f32.mrf.mxu0
    %820 = vdwg.mxu0
    %821 = vmatpush.bf16.msra.mxu0 %v616
    %822 = vmatpush.bf16.msra.mxu0 %v615
    %823 = vmatpush.bf16.msra.mxu0 %v614
    %824 = vmatpush.bf16.msra.mxu0 %v613
    %825 = vmatpush.bf16.msra.mxu0 %v612
    %826 = vmatpush.bf16.msra.mxu0 %v611
    %827 = vmatpush.bf16.msra.mxu0 %v610
    %828 = vmatpush.bf16.msra.mxu0 %v609
    %829 = vmatmul.bf16.gmra.mxu0 %v541
    %v830 = vpop.f32.mrf.mxu0
    %v831 = vadd.f32 %v559, %v830
    %v832 = vpop.f32.mrf.mxu0
    %v833 = vadd.f32 %v561, %v832
    %834 = vmatmul.bf16.gmra.mxu0 %v542
    %v835 = vpop.f32.mrf.mxu0
    %v836 = vadd.f32 %v564, %v835
    %v837 = vpop.f32.mrf.mxu0
    %v838 = vadd.f32 %v566, %v837
    %839 = vmatmul.bf16.gmra.mxu0 %v543
    %v840 = vpop.f32.mrf.mxu0
    %v841 = vadd.f32 %v569, %v840
    %v842 = vpop.f32.mrf.mxu0
    %v843 = vadd.f32 %v571, %v842
    %844 = vmatmul.bf16.gmra.mxu0 %v544
    %v845 = vpop.f32.mrf.mxu0
    %v846 = vadd.f32 %v574, %v845
    %v847 = vpop.f32.mrf.mxu0
    %848 = vdwg.mxu0
    %v849 = vld [vmem:[%s3] sm:$0x1]
    %v851 = vperm.slane %v849, 0
    %v853 = vadd.f32 %v635, %v851
    %v854 = vadd.f32 %v637, %v851
    %v855 = vadd.f32 %v640, %v851
    %v856 = vadd.f32 %v642, %v851
    %v857 = vadd.f32 %v645, %v851
    %v858 = vadd.f32 %v647, %v851
    %v859 = vadd.f32 %v650, %v851
    %v860 = vadd.f32 %v663, %v851
    %v861 = vadd.f32 %v665, %v851
    %v862 = vadd.f32 %v668, %v851
    %v863 = vadd.f32 %v670, %v851
    %v864 = vadd.f32 %v673, %v851
    %v865 = vadd.f32 %v675, %v851
    %v866 = vadd.f32 %v678, %v851
    %v867 = vadd.f32 %v691, %v851
    %v868 = vadd.f32 %v693, %v851
    %v869 = vadd.f32 %v696, %v851
    %v870 = vadd.f32 %v698, %v851
    %v871 = vadd.f32 %v701, %v851
    %v872 = vadd.f32 %v703, %v851
    %v873 = vadd.f32 %v706, %v851
    %v874 = vadd.f32 %v719, %v851
    %v875 = vadd.f32 %v721, %v851
    %v876 = vadd.f32 %v724, %v851
    %v877 = vadd.f32 %v726, %v851
    %v878 = vadd.f32 %v729, %v851
    %v879 = vadd.f32 %v731, %v851
    %v880 = vadd.f32 %v734, %v851
    %v881 = vadd.f32 %v747, %v851
    %v882 = vadd.f32 %v749, %v851
    %v883 = vadd.f32 %v752, %v851
    %v884 = vadd.f32 %v754, %v851
    %v885 = vadd.f32 %v757, %v851
    %v886 = vadd.f32 %v759, %v851
    %v887 = vadd.f32 %v762, %v851
    %v888 = vadd.f32 %v775, %v851
    %v889 = vadd.f32 %v777, %v851
    %v890 = vadd.f32 %v780, %v851
    %v891 = vadd.f32 %v782, %v851
    %v892 = vadd.f32 %v785, %v851
    %v893 = vadd.f32 %v787, %v851
    %v894 = vadd.f32 %v790, %v851
    %v895 = vadd.f32 %v803, %v851
    %v896 = vadd.f32 %v805, %v851
    %v897 = vadd.f32 %v808, %v851
    %v898 = vadd.f32 %v810, %v851
    %v899 = vadd.f32 %v813, %v851
    %v900 = vadd.f32 %v815, %v851
    %v901 = vadd.f32 %v818, %v851
    %v902 = vadd.f32 %v831, %v851
    %v903 = vadd.f32 %v833, %v851
    %v904 = vadd.f32 %v836, %v851
    %v905 = vadd.f32 %v838, %v851
    %v906 = vadd.f32 %v841, %v851
    %v907 = vadd.f32 %v843, %v851
    %v908 = vadd.f32 %v846, %v851
    %v909 = vxor.u32 %v853, 2147483648
    %v910 = vxor.u32 %v854, 2147483648
    %v911 = vxor.u32 %v855, 2147483648
    %v912 = vxor.u32 %v856, 2147483648
    %v913 = vxor.u32 %v857, 2147483648
    %v914 = vxor.u32 %v858, 2147483648
    %v915 = vxor.u32 %v859, 2147483648
    %v916 = vxor.u32 %v860, 2147483648
    %v917 = vxor.u32 %v861, 2147483648
    %v918 = vxor.u32 %v862, 2147483648
    %v919 = vxor.u32 %v863, 2147483648
    %v920 = vxor.u32 %v864, 2147483648
    %v921 = vxor.u32 %v865, 2147483648
    %v922 = vxor.u32 %v866, 2147483648
    %v923 = vxor.u32 %v867, 2147483648
    %v924 = vxor.u32 %v868, 2147483648
    %v925 = vxor.u32 %v869, 2147483648
    %v926 = vxor.u32 %v870, 2147483648
    %v927 = vxor.u32 %v871, 2147483648
    %v928 = vxor.u32 %v872, 2147483648
    %v929 = vxor.u32 %v873, 2147483648
    %v930 = vxor.u32 %v874, 2147483648
    %v931 = vxor.u32 %v875, 2147483648
    %v932 = vxor.u32 %v876, 2147483648
    %v933 = vxor.u32 %v877, 2147483648
    %v934 = vxor.u32 %v878, 2147483648
    %v935 = vxor.u32 %v879, 2147483648
    %v936 = vxor.u32 %v880, 2147483648
    %v937 = vxor.u32 %v881, 2147483648
    %v938 = vxor.u32 %v882, 2147483648
    %v939 = vxor.u32 %v883, 2147483648
    %v940 = vxor.u32 %v884, 2147483648
    %v941 = vxor.u32 %v885, 2147483648
    %v942 = vxor.u32 %v886, 2147483648
    %v943 = vxor.u32 %v887, 2147483648
    %v944 = vxor.u32 %v888, 2147483648
    %v945 = vxor.u32 %v889, 2147483648
    %v946 = vxor.u32 %v890, 2147483648
    %v947 = vxor.u32 %v891, 2147483648
    %v948 = vxor.u32 %v892, 2147483648
    %v949 = vxor.u32 %v893, 2147483648
    %v950 = vxor.u32 %v894, 2147483648
    %v951 = vxor.u32 %v895, 2147483648
    %v952 = vxor.u32 %v896, 2147483648
    %v953 = vxor.u32 %v897, 2147483648
    %v954 = vxor.u32 %v898, 2147483648
    %v955 = vxor.u32 %v899, 2147483648
    %v956 = vxor.u32 %v900, 2147483648
    %v957 = vxor.u32 %v901, 2147483648
    %v958 = vxor.u32 %v902, 2147483648
    %v959 = vxor.u32 %v903, 2147483648
    %v960 = vxor.u32 %v904, 2147483648
    %v961 = vxor.u32 %v905, 2147483648
    %v962 = vxor.u32 %v906, 2147483648
    %v963 = vxor.u32 %v907, 2147483648
    %v964 = vxor.u32 %v908, 2147483648
    %v965 = vmul.f32 %v909, 1.442695
    %v966 = vpow.pop %v965
    %v967 = vmul.f32 %v910, 1.442695
    %v968 = vpow.pop %v967
    %v969 = vmul.f32 %v911, 1.442695
    %v970 = vpow.pop %v969
    %v971 = vmul.f32 %v912, 1.442695
    %v972 = vpow.pop %v971
    %v973 = vmul.f32 %v913, 1.442695
    %v974 = vpow.pop %v973
    %v975 = vmul.f32 %v914, 1.442695
    %v976 = vpow.pop %v975
    %v977 = vmul.f32 %v915, 1.442695
    %v978 = vpow.pop %v977
    %v979 = vmul.f32 %v916, 1.442695
    %v980 = vpow.pop %v979
    %v981 = vmul.f32 %v917, 1.442695
    %v982 = vpow.pop %v981
    %v983 = vmul.f32 %v918, 1.442695
    %v984 = vpow.pop %v983
    %v985 = vmul.f32 %v919, 1.442695
    %v986 = vpow.pop %v985
    %v987 = vmul.f32 %v920, 1.442695
    %v988 = vpow.pop %v987
    %v989 = vmul.f32 %v921, 1.442695
    %v990 = vpow.pop %v989
    %v991 = vmul.f32 %v922, 1.442695
    %v992 = vpow.pop %v991
    %v993 = vmul.f32 %v923, 1.442695
    %v994 = vpow.pop %v993
    %v995 = vmul.f32 %v924, 1.442695
    %v996 = vpow.pop %v995
    %v997 = vmul.f32 %v925, 1.442695
    %v998 = vpow.pop %v997
    %v999 = vmul.f32 %v926, 1.442695
    %v1000 = vpow.pop %v999
    %v1001 = vmul.f32 %v927, 1.442695
    %v1002 = vpow.pop %v1001
    %v1003 = vmul.f32 %v928, 1.442695
    %v1004 = vpow.pop %v1003
    %v1005 = vmul.f32 %v929, 1.442695
    %v1006 = vpow.pop %v1005
    %v1007 = vmul.f32 %v930, 1.442695
    %v1008 = vpow.pop %v1007
    %v1009 = vmul.f32 %v931, 1.442695
    %v1010 = vpow.pop %v1009
    %v1011 = vmul.f32 %v932, 1.442695
    %v1012 = vpow.pop %v1011
    %v1013 = vmul.f32 %v933, 1.442695
    %v1014 = vpow.pop %v1013
    %v1015 = vmul.f32 %v934, 1.442695
    %v1016 = vpow.pop %v1015
    %v1017 = vmul.f32 %v935, 1.442695
    %v1018 = vpow.pop %v1017
    %v1019 = vmul.f32 %v936, 1.442695
    %v1020 = vpow.pop %v1019
    %v1021 = vmul.f32 %v937, 1.442695
    %v1022 = vpow.pop %v1021
    %v1023 = vmul.f32 %v938, 1.442695
    %v1024 = vpow.pop %v1023
    %v1025 = vmul.f32 %v939, 1.442695
    %v1026 = vpow.pop %v1025
    %v1027 = vmul.f32 %v940, 1.442695
    %v1028 = vpow.pop %v1027
    %v1029 = vmul.f32 %v941, 1.442695
    %v1030 = vpow.pop %v1029
    %v1031 = vmul.f32 %v942, 1.442695
    %v1032 = vpow.pop %v1031
    %v1033 = vmul.f32 %v943, 1.442695
    %v1034 = vpow.pop %v1033
    %v1035 = vmul.f32 %v944, 1.442695
    %v1036 = vpow.pop %v1035
    %v1037 = vmul.f32 %v945, 1.442695
    %v1038 = vpow.pop %v1037
    %v1039 = vmul.f32 %v946, 1.442695
    %v1040 = vpow.pop %v1039
    %v1041 = vmul.f32 %v947, 1.442695
    %v1042 = vpow.pop %v1041
    %v1043 = vmul.f32 %v948, 1.442695
    %v1044 = vpow.pop %v1043
    %v1045 = vmul.f32 %v949, 1.442695
    %v1046 = vpow.pop %v1045
    %v1047 = vmul.f32 %v950, 1.442695
    %v1048 = vpow.pop %v1047
    %v1049 = vmul.f32 %v951, 1.442695
    %v1050 = vpow.pop %v1049
    %v1051 = vmul.f32 %v952, 1.442695
    %v1052 = vpow.pop %v1051
    %v1053 = vmul.f32 %v953, 1.442695
    %v1054 = vpow.pop %v1053
    %v1055 = vmul.f32 %v954, 1.442695
    %v1056 = vpow.pop %v1055
    %v1057 = vmul.f32 %v955, 1.442695
    %v1058 = vpow.pop %v1057
    %v1059 = vmul.f32 %v956, 1.442695
    %v1060 = vpow.pop %v1059
    %v1061 = vmul.f32 %v957, 1.442695
    %v1062 = vpow.pop %v1061
    %v1063 = vmul.f32 %v958, 1.442695
    %v1064 = vpow.pop %v1063
    %v1065 = vmul.f32 %v959, 1.442695
    %v1066 = vpow.pop %v1065
    %v1067 = vmul.f32 %v960, 1.442695
    %v1068 = vpow.pop %v1067
    %v1069 = vmul.f32 %v961, 1.442695
    %v1070 = vpow.pop %v1069
    %v1071 = vmul.f32 %v962, 1.442695
    %v1072 = vpow.pop %v1071
    %v1073 = vmul.f32 %v963, 1.442695
    %v1074 = vpow.pop %v1073
    %v1075 = vmul.f32 %v964, 1.442695
    %v1076 = vpow.pop %v1075
    %v1077 = vadd.f32 %v966, 1.0
    %v1078 = vadd.f32 %v968, 1.0
    %v1079 = vadd.f32 %v970, 1.0
    %v1080 = vadd.f32 %v972, 1.0
    %v1081 = vadd.f32 %v974, 1.0
    %v1082 = vadd.f32 %v976, 1.0
    %v1083 = vadd.f32 %v978, 1.0
    %v1084 = vadd.f32 %v980, 1.0
    %v1085 = vadd.f32 %v982, 1.0
    %v1086 = vadd.f32 %v984, 1.0
    %v1087 = vadd.f32 %v986, 1.0
    %v1088 = vadd.f32 %v988, 1.0
    %v1089 = vadd.f32 %v990, 1.0
    %v1090 = vadd.f32 %v992, 1.0
    %v1091 = vadd.f32 %v994, 1.0
    %v1092 = vadd.f32 %v996, 1.0
    %v1093 = vadd.f32 %v998, 1.0
    %v1094 = vadd.f32 %v1000, 1.0
    %v1095 = vadd.f32 %v1002, 1.0
    %v1096 = vadd.f32 %v1004, 1.0
    %v1097 = vadd.f32 %v1006, 1.0
    %v1098 = vadd.f32 %v1008, 1.0
    %v1099 = vadd.f32 %v1010, 1.0
    %v1100 = vadd.f32 %v1012, 1.0
    %v1101 = vadd.f32 %v1014, 1.0
    %v1102 = vadd.f32 %v1016, 1.0
    %v1103 = vadd.f32 %v1018, 1.0
    %v1104 = vadd.f32 %v1020, 1.0
    %v1105 = vadd.f32 %v1022, 1.0
    %v1106 = vadd.f32 %v1024, 1.0
    %v1107 = vadd.f32 %v1026, 1.0
    %v1108 = vadd.f32 %v1028, 1.0
    %v1109 = vadd.f32 %v1030, 1.0
    %v1110 = vadd.f32 %v1032, 1.0
    %v1111 = vadd.f32 %v1034, 1.0
    %v1112 = vadd.f32 %v1036, 1.0
    %v1113 = vadd.f32 %v1038, 1.0
    %v1114 = vadd.f32 %v1040, 1.0
    %v1115 = vadd.f32 %v1042, 1.0
    %v1116 = vadd.f32 %v1044, 1.0
    %v1117 = vadd.f32 %v1046, 1.0
    %v1118 = vadd.f32 %v1048, 1.0
    %v1119 = vadd.f32 %v1050, 1.0
    %v1120 = vadd.f32 %v1052, 1.0
    %v1121 = vadd.f32 %v1054, 1.0
    %v1122 = vadd.f32 %v1056, 1.0
    %v1123 = vadd.f32 %v1058, 1.0
    %v1124 = vadd.f32 %v1060, 1.0
    %v1125 = vadd.f32 %v1062, 1.0
    %v1126 = vadd.f32 %v1064, 1.0
    %v1127 = vadd.f32 %v1066, 1.0
    %v1128 = vadd.f32 %v1068, 1.0
    %v1129 = vadd.f32 %v1070, 1.0
    %v1130 = vadd.f32 %v1072, 1.0
    %v1131 = vadd.f32 %v1074, 1.0
    %v1132 = vadd.f32 %v1076, 1.0
    %v1133 = vrcp.pop %v1077
    %v1134 = vmul.f32 %v1077, %v1133
    %v1135 = vsub.f32 1.0, %v1134
    %v1136 = vmul.f32 %v1133, %v1135
    %v1137 = vadd.f32 %v1133, %v1136
    %vm1138 = vweird.f32 %v1077
    %vm1139 = vweird.f32 %v1133
    %vm1140 = vmor %vm1138, %vm1139
    %v1141 = vsel %vm1140, %v1133, %v1137
    %v1142 = vand.u32 2147483647, %v1077
    %vm1143 = vcmp.eq.f32.partialorder %v1142, 8.507059e+37
    %v1144 = vand.u32 %v1077, 2147483648
    %v1145 = vor.u32 1.1754944e-38, %v1144
    %v1146 = vsel %vm1143, %v1145, %v1141
    %v1147 = vmul.f32 1.0, %v1146
    %v1148 = vrcp.pop %v1078
    %v1149 = vmul.f32 %v1078, %v1148
    %v1150 = vsub.f32 1.0, %v1149
    %v1151 = vmul.f32 %v1148, %v1150
    %v1152 = vadd.f32 %v1148, %v1151
    %vm1153 = vweird.f32 %v1078
    %vm1154 = vweird.f32 %v1148
    %vm1155 = vmor %vm1153, %vm1154
    %v1156 = vsel %vm1155, %v1148, %v1152
    %v1157 = vand.u32 2147483647, %v1078
    %vm1158 = vcmp.eq.f32.partialorder %v1157, 8.507059e+37
    %v1159 = vand.u32 %v1078, 2147483648
    %v1160 = vor.u32 1.1754944e-38, %v1159
    %v1161 = vsel %vm1158, %v1160, %v1156
    %v1162 = vmul.f32 1.0, %v1161
    %v1163 = vrcp.pop %v1079
    %v1164 = vmul.f32 %v1079, %v1163
    %v1165 = vsub.f32 1.0, %v1164
    %v1166 = vmul.f32 %v1163, %v1165
    %v1167 = vadd.f32 %v1163, %v1166
    %vm1168 = vweird.f32 %v1079
    %vm1169 = vweird.f32 %v1163
    %vm1170 = vmor %vm1168, %vm1169
    %v1171 = vsel %vm1170, %v1163, %v1167
    %v1172 = vand.u32 2147483647, %v1079
    %vm1173 = vcmp.eq.f32.partialorder %v1172, 8.507059e+37
    %v1174 = vand.u32 %v1079, 2147483648
    %v1175 = vor.u32 1.1754944e-38, %v1174
    %v1176 = vsel %vm1173, %v1175, %v1171
    %v1177 = vmul.f32 1.0, %v1176
    %v1178 = vrcp.pop %v1080
    %v1179 = vmul.f32 %v1080, %v1178
    %v1180 = vsub.f32 1.0, %v1179
    %v1181 = vmul.f32 %v1178, %v1180
    %v1182 = vadd.f32 %v1178, %v1181
    %vm1183 = vweird.f32 %v1080
    %vm1184 = vweird.f32 %v1178
    %vm1185 = vmor %vm1183, %vm1184
    %v1186 = vsel %vm1185, %v1178, %v1182
    %v1187 = vand.u32 2147483647, %v1080
    %vm1188 = vcmp.eq.f32.partialorder %v1187, 8.507059e+37
    %v1189 = vand.u32 %v1080, 2147483648
    %v1190 = vor.u32 1.1754944e-38, %v1189
    %v1191 = vsel %vm1188, %v1190, %v1186
    %v1192 = vmul.f32 1.0, %v1191
    %v1193 = vrcp.pop %v1081
    %v1194 = vmul.f32 %v1081, %v1193
    %v1195 = vsub.f32 1.0, %v1194
    %v1196 = vmul.f32 %v1193, %v1195
    %v1197 = vadd.f32 %v1193, %v1196
    %vm1198 = vweird.f32 %v1081
    %vm1199 = vweird.f32 %v1193
    %vm1200 = vmor %vm1198, %vm1199
    %v1201 = vsel %vm1200, %v1193, %v1197
    %v1202 = vand.u32 2147483647, %v1081
    %vm1203 = vcmp.eq.f32.partialorder %v1202, 8.507059e+37
    %v1204 = vand.u32 %v1081, 2147483648
    %v1205 = vor.u32 1.1754944e-38, %v1204
    %v1206 = vsel %vm1203, %v1205, %v1201
    %v1207 = vmul.f32 1.0, %v1206
    %v1208 = vrcp.pop %v1082
    %v1209 = vmul.f32 %v1082, %v1208
    %v1210 = vsub.f32 1.0, %v1209
    %v1211 = vmul.f32 %v1208, %v1210
    %v1212 = vadd.f32 %v1208, %v1211
    %vm1213 = vweird.f32 %v1082
    %vm1214 = vweird.f32 %v1208
    %vm1215 = vmor %vm1213, %vm1214
    %v1216 = vsel %vm1215, %v1208, %v1212
    %v1217 = vand.u32 2147483647, %v1082
    %vm1218 = vcmp.eq.f32.partialorder %v1217, 8.507059e+37
    %v1219 = vand.u32 %v1082, 2147483648
    %v1220 = vor.u32 1.1754944e-38, %v1219
    %v1221 = vsel %vm1218, %v1220, %v1216
    %v1222 = vmul.f32 1.0, %v1221
    %v1223 = vrcp.pop %v1083
    %v1224 = vmul.f32 %v1083, %v1223
    %v1225 = vsub.f32 1.0, %v1224
    %v1226 = vmul.f32 %v1223, %v1225
    %v1227 = vadd.f32 %v1223, %v1226
    %vm1228 = vweird.f32 %v1083
    %vm1229 = vweird.f32 %v1223
    %vm1230 = vmor %vm1228, %vm1229
    %v1231 = vsel %vm1230, %v1223, %v1227
    %v1232 = vand.u32 2147483647, %v1083
    %vm1233 = vcmp.eq.f32.partialorder %v1232, 8.507059e+37
    %v1234 = vand.u32 %v1083, 2147483648
    %v1235 = vor.u32 1.1754944e-38, %v1234
    %v1236 = vsel %vm1233, %v1235, %v1231
    %v1237 = vmul.f32 1.0, %v1236
    %v1238 = vrcp.pop %v1084
    %v1239 = vmul.f32 %v1084, %v1238
    %v1240 = vsub.f32 1.0, %v1239
    %v1241 = vmul.f32 %v1238, %v1240
    %v1242 = vadd.f32 %v1238, %v1241
    %vm1243 = vweird.f32 %v1084
    %vm1244 = vweird.f32 %v1238
    %vm1245 = vmor %vm1243, %vm1244
    %v1246 = vsel %vm1245, %v1238, %v1242
    %v1247 = vand.u32 2147483647, %v1084
    %vm1248 = vcmp.eq.f32.partialorder %v1247, 8.507059e+37
    %v1249 = vand.u32 %v1084, 2147483648
    %v1250 = vor.u32 1.1754944e-38, %v1249
    %v1251 = vsel %vm1248, %v1250, %v1246
    %v1252 = vmul.f32 1.0, %v1251
    %v1253 = vrcp.pop %v1085
    %v1254 = vmul.f32 %v1085, %v1253
    %v1255 = vsub.f32 1.0, %v1254
    %v1256 = vmul.f32 %v1253, %v1255
    %v1257 = vadd.f32 %v1253, %v1256
    %vm1258 = vweird.f32 %v1085
    %vm1259 = vweird.f32 %v1253
    %vm1260 = vmor %vm1258, %vm1259
    %v1261 = vsel %vm1260, %v1253, %v1257
    %v1262 = vand.u32 2147483647, %v1085
    %vm1263 = vcmp.eq.f32.partialorder %v1262, 8.507059e+37
    %v1264 = vand.u32 %v1085, 2147483648
    %v1265 = vor.u32 1.1754944e-38, %v1264
    %v1266 = vsel %vm1263, %v1265, %v1261
    %v1267 = vmul.f32 1.0, %v1266
    %v1268 = vrcp.pop %v1086
    %v1269 = vmul.f32 %v1086, %v1268
    %v1270 = vsub.f32 1.0, %v1269
    %v1271 = vmul.f32 %v1268, %v1270
    %v1272 = vadd.f32 %v1268, %v1271
    %vm1273 = vweird.f32 %v1086
    %vm1274 = vweird.f32 %v1268
    %vm1275 = vmor %vm1273, %vm1274
    %v1276 = vsel %vm1275, %v1268, %v1272
    %v1277 = vand.u32 2147483647, %v1086
    %vm1278 = vcmp.eq.f32.partialorder %v1277, 8.507059e+37
    %v1279 = vand.u32 %v1086, 2147483648
    %v1280 = vor.u32 1.1754944e-38, %v1279
    %v1281 = vsel %vm1278, %v1280, %v1276
    %v1282 = vmul.f32 1.0, %v1281
    %v1283 = vrcp.pop %v1087
    %v1284 = vmul.f32 %v1087, %v1283
    %v1285 = vsub.f32 1.0, %v1284
    %v1286 = vmul.f32 %v1283, %v1285
    %v1287 = vadd.f32 %v1283, %v1286
    %vm1288 = vweird.f32 %v1087
    %vm1289 = vweird.f32 %v1283
    %vm1290 = vmor %vm1288, %vm1289
    %v1291 = vsel %vm1290, %v1283, %v1287
    %v1292 = vand.u32 2147483647, %v1087
    %vm1293 = vcmp.eq.f32.partialorder %v1292, 8.507059e+37
    %v1294 = vand.u32 %v1087, 2147483648
    %v1295 = vor.u32 1.1754944e-38, %v1294
    %v1296 = vsel %vm1293, %v1295, %v1291
    %v1297 = vmul.f32 1.0, %v1296
    %v1298 = vrcp.pop %v1088
    %v1299 = vmul.f32 %v1088, %v1298
    %v1300 = vsub.f32 1.0, %v1299
    %v1301 = vmul.f32 %v1298, %v1300
    %v1302 = vadd.f32 %v1298, %v1301
    %vm1303 = vweird.f32 %v1088
    %vm1304 = vweird.f32 %v1298
    %vm1305 = vmor %vm1303, %vm1304
    %v1306 = vsel %vm1305, %v1298, %v1302
    %v1307 = vand.u32 2147483647, %v1088
    %vm1308 = vcmp.eq.f32.partialorder %v1307, 8.507059e+37
    %v1309 = vand.u32 %v1088, 2147483648
    %v1310 = vor.u32 1.1754944e-38, %v1309
    %v1311 = vsel %vm1308, %v1310, %v1306
    %v1312 = vmul.f32 1.0, %v1311
    %v1313 = vrcp.pop %v1089
    %v1314 = vmul.f32 %v1089, %v1313
    %v1315 = vsub.f32 1.0, %v1314
    %v1316 = vmul.f32 %v1313, %v1315
    %v1317 = vadd.f32 %v1313, %v1316
    %vm1318 = vweird.f32 %v1089
    %vm1319 = vweird.f32 %v1313
    %vm1320 = vmor %vm1318, %vm1319
    %v1321 = vsel %vm1320, %v1313, %v1317
    %v1322 = vand.u32 2147483647, %v1089
    %vm1323 = vcmp.eq.f32.partialorder %v1322, 8.507059e+37
    %v1324 = vand.u32 %v1089, 2147483648
    %v1325 = vor.u32 1.1754944e-38, %v1324
    %v1326 = vsel %vm1323, %v1325, %v1321
    %v1327 = vmul.f32 1.0, %v1326
    %v1328 = vrcp.pop %v1090
    %v1329 = vmul.f32 %v1090, %v1328
    %v1330 = vsub.f32 1.0, %v1329
    %v1331 = vmul.f32 %v1328, %v1330
    %v1332 = vadd.f32 %v1328, %v1331
    %vm1333 = vweird.f32 %v1090
    %vm1334 = vweird.f32 %v1328
    %vm1335 = vmor %vm1333, %vm1334
    %v1336 = vsel %vm1335, %v1328, %v1332
    %v1337 = vand.u32 2147483647, %v1090
    %vm1338 = vcmp.eq.f32.partialorder %v1337, 8.507059e+37
    %v1339 = vand.u32 %v1090, 2147483648
    %v1340 = vor.u32 1.1754944e-38, %v1339
    %v1341 = vsel %vm1338, %v1340, %v1336
    %v1342 = vmul.f32 1.0, %v1341
    %v1343 = vrcp.pop %v1091
    %v1344 = vmul.f32 %v1091, %v1343
    %v1345 = vsub.f32 1.0, %v1344
    %v1346 = vmul.f32 %v1343, %v1345
    %v1347 = vadd.f32 %v1343, %v1346
    %vm1348 = vweird.f32 %v1091
    %vm1349 = vweird.f32 %v1343
    %vm1350 = vmor %vm1348, %vm1349
    %v1351 = vsel %vm1350, %v1343, %v1347
    %v1352 = vand.u32 2147483647, %v1091
    %vm1353 = vcmp.eq.f32.partialorder %v1352, 8.507059e+37
    %v1354 = vand.u32 %v1091, 2147483648
    %v1355 = vor.u32 1.1754944e-38, %v1354
    %v1356 = vsel %vm1353, %v1355, %v1351
    %v1357 = vmul.f32 1.0, %v1356
    %v1358 = vrcp.pop %v1092
    %v1359 = vmul.f32 %v1092, %v1358
    %v1360 = vsub.f32 1.0, %v1359
    %v1361 = vmul.f32 %v1358, %v1360
    %v1362 = vadd.f32 %v1358, %v1361
    %vm1363 = vweird.f32 %v1092
    %vm1364 = vweird.f32 %v1358
    %vm1365 = vmor %vm1363, %vm1364
    %v1366 = vsel %vm1365, %v1358, %v1362
    %v1367 = vand.u32 2147483647, %v1092
    %vm1368 = vcmp.eq.f32.partialorder %v1367, 8.507059e+37
    %v1369 = vand.u32 %v1092, 2147483648
    %v1370 = vor.u32 1.1754944e-38, %v1369
    %v1371 = vsel %vm1368, %v1370, %v1366
    %v1372 = vmul.f32 1.0, %v1371
    %v1373 = vrcp.pop %v1093
    %v1374 = vmul.f32 %v1093, %v1373
    %v1375 = vsub.f32 1.0, %v1374
    %v1376 = vmul.f32 %v1373, %v1375
    %v1377 = vadd.f32 %v1373, %v1376
    %vm1378 = vweird.f32 %v1093
    %vm1379 = vweird.f32 %v1373
    %vm1380 = vmor %vm1378, %vm1379
    %v1381 = vsel %vm1380, %v1373, %v1377
    %v1382 = vand.u32 2147483647, %v1093
    %vm1383 = vcmp.eq.f32.partialorder %v1382, 8.507059e+37
    %v1384 = vand.u32 %v1093, 2147483648
    %v1385 = vor.u32 1.1754944e-38, %v1384
    %v1386 = vsel %vm1383, %v1385, %v1381
    %v1387 = vmul.f32 1.0, %v1386
    %v1388 = vrcp.pop %v1094
    %v1389 = vmul.f32 %v1094, %v1388
    %v1390 = vsub.f32 1.0, %v1389
    %v1391 = vmul.f32 %v1388, %v1390
    %v1392 = vadd.f32 %v1388, %v1391
    %vm1393 = vweird.f32 %v1094
    %vm1394 = vweird.f32 %v1388
    %vm1395 = vmor %vm1393, %vm1394
    %v1396 = vsel %vm1395, %v1388, %v1392
    %v1397 = vand.u32 2147483647, %v1094
    %vm1398 = vcmp.eq.f32.partialorder %v1397, 8.507059e+37
    %v1399 = vand.u32 %v1094, 2147483648
    %v1400 = vor.u32 1.1754944e-38, %v1399
    %v1401 = vsel %vm1398, %v1400, %v1396
    %v1402 = vmul.f32 1.0, %v1401
    %v1403 = vrcp.pop %v1095
    %v1404 = vmul.f32 %v1095, %v1403
    %v1405 = vsub.f32 1.0, %v1404
    %v1406 = vmul.f32 %v1403, %v1405
    %v1407 = vadd.f32 %v1403, %v1406
    %vm1408 = vweird.f32 %v1095
    %vm1409 = vweird.f32 %v1403
    %vm1410 = vmor %vm1408, %vm1409
    %v1411 = vsel %vm1410, %v1403, %v1407
    %v1412 = vand.u32 2147483647, %v1095
    %vm1413 = vcmp.eq.f32.partialorder %v1412, 8.507059e+37
    %v1414 = vand.u32 %v1095, 2147483648
    %v1415 = vor.u32 1.1754944e-38, %v1414
    %v1416 = vsel %vm1413, %v1415, %v1411
    %v1417 = vmul.f32 1.0, %v1416
    %v1418 = vrcp.pop %v1096
    %v1419 = vmul.f32 %v1096, %v1418
    %v1420 = vsub.f32 1.0, %v1419
    %v1421 = vmul.f32 %v1418, %v1420
    %v1422 = vadd.f32 %v1418, %v1421
    %vm1423 = vweird.f32 %v1096
    %vm1424 = vweird.f32 %v1418
    %vm1425 = vmor %vm1423, %vm1424
    %v1426 = vsel %vm1425, %v1418, %v1422
    %v1427 = vand.u32 2147483647, %v1096
    %vm1428 = vcmp.eq.f32.partialorder %v1427, 8.507059e+37
    %v1429 = vand.u32 %v1096, 2147483648
    %v1430 = vor.u32 1.1754944e-38, %v1429
    %v1431 = vsel %vm1428, %v1430, %v1426
    %v1432 = vmul.f32 1.0, %v1431
    %v1433 = vrcp.pop %v1097
    %v1434 = vmul.f32 %v1097, %v1433
    %v1435 = vsub.f32 1.0, %v1434
    %v1436 = vmul.f32 %v1433, %v1435
    %v1437 = vadd.f32 %v1433, %v1436
    %vm1438 = vweird.f32 %v1097
    %vm1439 = vweird.f32 %v1433
    %vm1440 = vmor %vm1438, %vm1439
    %v1441 = vsel %vm1440, %v1433, %v1437
    %v1442 = vand.u32 2147483647, %v1097
    %vm1443 = vcmp.eq.f32.partialorder %v1442, 8.507059e+37
    %v1444 = vand.u32 %v1097, 2147483648
    %v1445 = vor.u32 1.1754944e-38, %v1444
    %v1446 = vsel %vm1443, %v1445, %v1441
    %v1447 = vmul.f32 1.0, %v1446
    %v1448 = vrcp.pop %v1098
    %v1449 = vmul.f32 %v1098, %v1448
    %v1450 = vsub.f32 1.0, %v1449
    %v1451 = vmul.f32 %v1448, %v1450
    %v1452 = vadd.f32 %v1448, %v1451
    %vm1453 = vweird.f32 %v1098
    %vm1454 = vweird.f32 %v1448
    %vm1455 = vmor %vm1453, %vm1454
    %v1456 = vsel %vm1455, %v1448, %v1452
    %v1457 = vand.u32 2147483647, %v1098
    %vm1458 = vcmp.eq.f32.partialorder %v1457, 8.507059e+37
    %v1459 = vand.u32 %v1098, 2147483648
    %v1460 = vor.u32 1.1754944e-38, %v1459
    %v1461 = vsel %vm1458, %v1460, %v1456
    %v1462 = vmul.f32 1.0, %v1461
    %v1463 = vrcp.pop %v1099
    %v1464 = vmul.f32 %v1099, %v1463
    %v1465 = vsub.f32 1.0, %v1464
    %v1466 = vmul.f32 %v1463, %v1465
    %v1467 = vadd.f32 %v1463, %v1466
    %vm1468 = vweird.f32 %v1099
    %vm1469 = vweird.f32 %v1463
    %vm1470 = vmor %vm1468, %vm1469
    %v1471 = vsel %vm1470, %v1463, %v1467
    %v1472 = vand.u32 2147483647, %v1099
    %vm1473 = vcmp.eq.f32.partialorder %v1472, 8.507059e+37
    %v1474 = vand.u32 %v1099, 2147483648
    %v1475 = vor.u32 1.1754944e-38, %v1474
    %v1476 = vsel %vm1473, %v1475, %v1471
    %v1477 = vmul.f32 1.0, %v1476
    %v1478 = vrcp.pop %v1100
    %v1479 = vmul.f32 %v1100, %v1478
    %v1480 = vsub.f32 1.0, %v1479
    %v1481 = vmul.f32 %v1478, %v1480
    %v1482 = vadd.f32 %v1478, %v1481
    %vm1483 = vweird.f32 %v1100
    %vm1484 = vweird.f32 %v1478
    %vm1485 = vmor %vm1483, %vm1484
    %v1486 = vsel %vm1485, %v1478, %v1482
    %v1487 = vand.u32 2147483647, %v1100
    %vm1488 = vcmp.eq.f32.partialorder %v1487, 8.507059e+37
    %v1489 = vand.u32 %v1100, 2147483648
    %v1490 = vor.u32 1.1754944e-38, %v1489
    %v1491 = vsel %vm1488, %v1490, %v1486
    %v1492 = vmul.f32 1.0, %v1491
    %v1493 = vrcp.pop %v1101
    %v1494 = vmul.f32 %v1101, %v1493
    %v1495 = vsub.f32 1.0, %v1494
    %v1496 = vmul.f32 %v1493, %v1495
    %v1497 = vadd.f32 %v1493, %v1496
    %vm1498 = vweird.f32 %v1101
    %vm1499 = vweird.f32 %v1493
    %vm1500 = vmor %vm1498, %vm1499
    %v1501 = vsel %vm1500, %v1493, %v1497
    %v1502 = vand.u32 2147483647, %v1101
    %vm1503 = vcmp.eq.f32.partialorder %v1502, 8.507059e+37
    %v1504 = vand.u32 %v1101, 2147483648
    %v1505 = vor.u32 1.1754944e-38, %v1504
    %v1506 = vsel %vm1503, %v1505, %v1501
    %v1507 = vmul.f32 1.0, %v1506
    %v1508 = vrcp.pop %v1102
    %v1509 = vmul.f32 %v1102, %v1508
    %v1510 = vsub.f32 1.0, %v1509
    %v1511 = vmul.f32 %v1508, %v1510
    %v1512 = vadd.f32 %v1508, %v1511
    %vm1513 = vweird.f32 %v1102
    %vm1514 = vweird.f32 %v1508
    %vm1515 = vmor %vm1513, %vm1514
    %v1516 = vsel %vm1515, %v1508, %v1512
    %v1517 = vand.u32 2147483647, %v1102
    %vm1518 = vcmp.eq.f32.partialorder %v1517, 8.507059e+37
    %v1519 = vand.u32 %v1102, 2147483648
    %v1520 = vor.u32 1.1754944e-38, %v1519
    %v1521 = vsel %vm1518, %v1520, %v1516
    %v1522 = vmul.f32 1.0, %v1521
    %v1523 = vrcp.pop %v1103
    %v1524 = vmul.f32 %v1103, %v1523
    %v1525 = vsub.f32 1.0, %v1524
    %v1526 = vmul.f32 %v1523, %v1525
    %v1527 = vadd.f32 %v1523, %v1526
    %vm1528 = vweird.f32 %v1103
    %vm1529 = vweird.f32 %v1523
    %vm1530 = vmor %vm1528, %vm1529
    %v1531 = vsel %vm1530, %v1523, %v1527
    %v1532 = vand.u32 2147483647, %v1103
    %vm1533 = vcmp.eq.f32.partialorder %v1532, 8.507059e+37
    %v1534 = vand.u32 %v1103, 2147483648
    %v1535 = vor.u32 1.1754944e-38, %v1534
    %v1536 = vsel %vm1533, %v1535, %v1531
    %v1537 = vmul.f32 1.0, %v1536
    %v1538 = vrcp.pop %v1104
    %v1539 = vmul.f32 %v1104, %v1538
    %v1540 = vsub.f32 1.0, %v1539
    %v1541 = vmul.f32 %v1538, %v1540
    %v1542 = vadd.f32 %v1538, %v1541
    %vm1543 = vweird.f32 %v1104
    %vm1544 = vweird.f32 %v1538
    %vm1545 = vmor %vm1543, %vm1544
    %v1546 = vsel %vm1545, %v1538, %v1542
    %v1547 = vand.u32 2147483647, %v1104
    %vm1548 = vcmp.eq.f32.partialorder %v1547, 8.507059e+37
    %v1549 = vand.u32 %v1104, 2147483648
    %v1550 = vor.u32 1.1754944e-38, %v1549
    %v1551 = vsel %vm1548, %v1550, %v1546
    %v1552 = vmul.f32 1.0, %v1551
    %v1553 = vrcp.pop %v1105
    %v1554 = vmul.f32 %v1105, %v1553
    %v1555 = vsub.f32 1.0, %v1554
    %v1556 = vmul.f32 %v1553, %v1555
    %v1557 = vadd.f32 %v1553, %v1556
    %vm1558 = vweird.f32 %v1105
    %vm1559 = vweird.f32 %v1553
    %vm1560 = vmor %vm1558, %vm1559
    %v1561 = vsel %vm1560, %v1553, %v1557
    %v1562 = vand.u32 2147483647, %v1105
    %vm1563 = vcmp.eq.f32.partialorder %v1562, 8.507059e+37
    %v1564 = vand.u32 %v1105, 2147483648
    %v1565 = vor.u32 1.1754944e-38, %v1564
    %v1566 = vsel %vm1563, %v1565, %v1561
    %v1567 = vmul.f32 1.0, %v1566
    %v1568 = vrcp.pop %v1106
    %v1569 = vmul.f32 %v1106, %v1568
    %v1570 = vsub.f32 1.0, %v1569
    %v1571 = vmul.f32 %v1568, %v1570
    %v1572 = vadd.f32 %v1568, %v1571
    %vm1573 = vweird.f32 %v1106
    %vm1574 = vweird.f32 %v1568
    %vm1575 = vmor %vm1573, %vm1574
    %v1576 = vsel %vm1575, %v1568, %v1572
    %v1577 = vand.u32 2147483647, %v1106
    %vm1578 = vcmp.eq.f32.partialorder %v1577, 8.507059e+37
    %v1579 = vand.u32 %v1106, 2147483648
    %v1580 = vor.u32 1.1754944e-38, %v1579
    %v1581 = vsel %vm1578, %v1580, %v1576
    %v1582 = vmul.f32 1.0, %v1581
    %v1583 = vrcp.pop %v1107
    %v1584 = vmul.f32 %v1107, %v1583
    %v1585 = vsub.f32 1.0, %v1584
    %v1586 = vmul.f32 %v1583, %v1585
    %v1587 = vadd.f32 %v1583, %v1586
    %vm1588 = vweird.f32 %v1107
    %vm1589 = vweird.f32 %v1583
    %vm1590 = vmor %vm1588, %vm1589
    %v1591 = vsel %vm1590, %v1583, %v1587
    %v1592 = vand.u32 2147483647, %v1107
    %vm1593 = vcmp.eq.f32.partialorder %v1592, 8.507059e+37
    %v1594 = vand.u32 %v1107, 2147483648
    %v1595 = vor.u32 1.1754944e-38, %v1594
    %v1596 = vsel %vm1593, %v1595, %v1591
    %v1597 = vmul.f32 1.0, %v1596
    %v1598 = vrcp.pop %v1108
    %v1599 = vmul.f32 %v1108, %v1598
    %v1600 = vsub.f32 1.0, %v1599
    %v1601 = vmul.f32 %v1598, %v1600
    %v1602 = vadd.f32 %v1598, %v1601
    %vm1603 = vweird.f32 %v1108
    %vm1604 = vweird.f32 %v1598
    %vm1605 = vmor %vm1603, %vm1604
    %v1606 = vsel %vm1605, %v1598, %v1602
    %v1607 = vand.u32 2147483647, %v1108
    %vm1608 = vcmp.eq.f32.partialorder %v1607, 8.507059e+37
    %v1609 = vand.u32 %v1108, 2147483648
    %v1610 = vor.u32 1.1754944e-38, %v1609
    %v1611 = vsel %vm1608, %v1610, %v1606
    %v1612 = vmul.f32 1.0, %v1611
    %v1613 = vrcp.pop %v1109
    %v1614 = vmul.f32 %v1109, %v1613
    %v1615 = vsub.f32 1.0, %v1614
    %v1616 = vmul.f32 %v1613, %v1615
    %v1617 = vadd.f32 %v1613, %v1616
    %vm1618 = vweird.f32 %v1109
    %vm1619 = vweird.f32 %v1613
    %vm1620 = vmor %vm1618, %vm1619
    %v1621 = vsel %vm1620, %v1613, %v1617
    %v1622 = vand.u32 2147483647, %v1109
    %vm1623 = vcmp.eq.f32.partialorder %v1622, 8.507059e+37
    %v1624 = vand.u32 %v1109, 2147483648
    %v1625 = vor.u32 1.1754944e-38, %v1624
    %v1626 = vsel %vm1623, %v1625, %v1621
    %v1627 = vmul.f32 1.0, %v1626
    %v1628 = vrcp.pop %v1110
    %v1629 = vmul.f32 %v1110, %v1628
    %v1630 = vsub.f32 1.0, %v1629
    %v1631 = vmul.f32 %v1628, %v1630
    %v1632 = vadd.f32 %v1628, %v1631
    %vm1633 = vweird.f32 %v1110
    %vm1634 = vweird.f32 %v1628
    %vm1635 = vmor %vm1633, %vm1634
    %v1636 = vsel %vm1635, %v1628, %v1632
    %v1637 = vand.u32 2147483647, %v1110
    %vm1638 = vcmp.eq.f32.partialorder %v1637, 8.507059e+37
    %v1639 = vand.u32 %v1110, 2147483648
    %v1640 = vor.u32 1.1754944e-38, %v1639
    %v1641 = vsel %vm1638, %v1640, %v1636
    %v1642 = vmul.f32 1.0, %v1641
    %v1643 = vrcp.pop %v1111
    %v1644 = vmul.f32 %v1111, %v1643
    %v1645 = vsub.f32 1.0, %v1644
    %v1646 = vmul.f32 %v1643, %v1645
    %v1647 = vadd.f32 %v1643, %v1646
    %vm1648 = vweird.f32 %v1111
    %vm1649 = vweird.f32 %v1643
    %vm1650 = vmor %vm1648, %vm1649
    %v1651 = vsel %vm1650, %v1643, %v1647
    %v1652 = vand.u32 2147483647, %v1111
    %vm1653 = vcmp.eq.f32.partialorder %v1652, 8.507059e+37
    %v1654 = vand.u32 %v1111, 2147483648
    %v1655 = vor.u32 1.1754944e-38, %v1654
    %v1656 = vsel %vm1653, %v1655, %v1651
    %v1657 = vmul.f32 1.0, %v1656
    %v1658 = vrcp.pop %v1112
    %v1659 = vmul.f32 %v1112, %v1658
    %v1660 = vsub.f32 1.0, %v1659
    %v1661 = vmul.f32 %v1658, %v1660
    %v1662 = vadd.f32 %v1658, %v1661
    %vm1663 = vweird.f32 %v1112
    %vm1664 = vweird.f32 %v1658
    %vm1665 = vmor %vm1663, %vm1664
    %v1666 = vsel %vm1665, %v1658, %v1662
    %v1667 = vand.u32 2147483647, %v1112
    %vm1668 = vcmp.eq.f32.partialorder %v1667, 8.507059e+37
    %v1669 = vand.u32 %v1112, 2147483648
    %v1670 = vor.u32 1.1754944e-38, %v1669
    %v1671 = vsel %vm1668, %v1670, %v1666
    %v1672 = vmul.f32 1.0, %v1671
    %v1673 = vrcp.pop %v1113
    %v1674 = vmul.f32 %v1113, %v1673
    %v1675 = vsub.f32 1.0, %v1674
    %v1676 = vmul.f32 %v1673, %v1675
    %v1677 = vadd.f32 %v1673, %v1676
    %vm1678 = vweird.f32 %v1113
    %vm1679 = vweird.f32 %v1673
    %vm1680 = vmor %vm1678, %vm1679
    %v1681 = vsel %vm1680, %v1673, %v1677
    %v1682 = vand.u32 2147483647, %v1113
    %vm1683 = vcmp.eq.f32.partialorder %v1682, 8.507059e+37
    %v1684 = vand.u32 %v1113, 2147483648
    %v1685 = vor.u32 1.1754944e-38, %v1684
    %v1686 = vsel %vm1683, %v1685, %v1681
    %v1687 = vmul.f32 1.0, %v1686
    %v1688 = vrcp.pop %v1114
    %v1689 = vmul.f32 %v1114, %v1688
    %v1690 = vsub.f32 1.0, %v1689
    %v1691 = vmul.f32 %v1688, %v1690
    %v1692 = vadd.f32 %v1688, %v1691
    %vm1693 = vweird.f32 %v1114
    %vm1694 = vweird.f32 %v1688
    %vm1695 = vmor %vm1693, %vm1694
    %v1696 = vsel %vm1695, %v1688, %v1692
    %v1697 = vand.u32 2147483647, %v1114
    %vm1698 = vcmp.eq.f32.partialorder %v1697, 8.507059e+37
    %v1699 = vand.u32 %v1114, 2147483648
    %v1700 = vor.u32 1.1754944e-38, %v1699
    %v1701 = vsel %vm1698, %v1700, %v1696
    %v1702 = vmul.f32 1.0, %v1701
    %v1703 = vrcp.pop %v1115
    %v1704 = vmul.f32 %v1115, %v1703
    %v1705 = vsub.f32 1.0, %v1704
    %v1706 = vmul.f32 %v1703, %v1705
    %v1707 = vadd.f32 %v1703, %v1706
    %vm1708 = vweird.f32 %v1115
    %vm1709 = vweird.f32 %v1703
    %vm1710 = vmor %vm1708, %vm1709
    %v1711 = vsel %vm1710, %v1703, %v1707
    %v1712 = vand.u32 2147483647, %v1115
    %vm1713 = vcmp.eq.f32.partialorder %v1712, 8.507059e+37
    %v1714 = vand.u32 %v1115, 2147483648
    %v1715 = vor.u32 1.1754944e-38, %v1714
    %v1716 = vsel %vm1713, %v1715, %v1711
    %v1717 = vmul.f32 1.0, %v1716
    %v1718 = vrcp.pop %v1116
    %v1719 = vmul.f32 %v1116, %v1718
    %v1720 = vsub.f32 1.0, %v1719
    %v1721 = vmul.f32 %v1718, %v1720
    %v1722 = vadd.f32 %v1718, %v1721
    %vm1723 = vweird.f32 %v1116
    %vm1724 = vweird.f32 %v1718
    %vm1725 = vmor %vm1723, %vm1724
    %v1726 = vsel %vm1725, %v1718, %v1722
    %v1727 = vand.u32 2147483647, %v1116
    %vm1728 = vcmp.eq.f32.partialorder %v1727, 8.507059e+37
    %v1729 = vand.u32 %v1116, 2147483648
    %v1730 = vor.u32 1.1754944e-38, %v1729
    %v1731 = vsel %vm1728, %v1730, %v1726
    %v1732 = vmul.f32 1.0, %v1731
    %v1733 = vrcp.pop %v1117
    %v1734 = vmul.f32 %v1117, %v1733
    %v1735 = vsub.f32 1.0, %v1734
    %v1736 = vmul.f32 %v1733, %v1735
    %v1737 = vadd.f32 %v1733, %v1736
    %vm1738 = vweird.f32 %v1117
    %vm1739 = vweird.f32 %v1733
    %vm1740 = vmor %vm1738, %vm1739
    %v1741 = vsel %vm1740, %v1733, %v1737
    %v1742 = vand.u32 2147483647, %v1117
    %vm1743 = vcmp.eq.f32.partialorder %v1742, 8.507059e+37
    %v1744 = vand.u32 %v1117, 2147483648
    %v1745 = vor.u32 1.1754944e-38, %v1744
    %v1746 = vsel %vm1743, %v1745, %v1741
    %v1747 = vmul.f32 1.0, %v1746
    %v1748 = vrcp.pop %v1118
    %v1749 = vmul.f32 %v1118, %v1748
    %v1750 = vsub.f32 1.0, %v1749
    %v1751 = vmul.f32 %v1748, %v1750
    %v1752 = vadd.f32 %v1748, %v1751
    %vm1753 = vweird.f32 %v1118
    %vm1754 = vweird.f32 %v1748
    %vm1755 = vmor %vm1753, %vm1754
    %v1756 = vsel %vm1755, %v1748, %v1752
    %v1757 = vand.u32 2147483647, %v1118
    %vm1758 = vcmp.eq.f32.partialorder %v1757, 8.507059e+37
    %v1759 = vand.u32 %v1118, 2147483648
    %v1760 = vor.u32 1.1754944e-38, %v1759
    %v1761 = vsel %vm1758, %v1760, %v1756
    %v1762 = vmul.f32 1.0, %v1761
    %v1763 = vrcp.pop %v1119
    %v1764 = vmul.f32 %v1119, %v1763
    %v1765 = vsub.f32 1.0, %v1764
    %v1766 = vmul.f32 %v1763, %v1765
    %v1767 = vadd.f32 %v1763, %v1766
    %vm1768 = vweird.f32 %v1119
    %vm1769 = vweird.f32 %v1763
    %vm1770 = vmor %vm1768, %vm1769
    %v1771 = vsel %vm1770, %v1763, %v1767
    %v1772 = vand.u32 2147483647, %v1119
    %vm1773 = vcmp.eq.f32.partialorder %v1772, 8.507059e+37
    %v1774 = vand.u32 %v1119, 2147483648
    %v1775 = vor.u32 1.1754944e-38, %v1774
    %v1776 = vsel %vm1773, %v1775, %v1771
    %v1777 = vmul.f32 1.0, %v1776
    %v1778 = vrcp.pop %v1120
    %v1779 = vmul.f32 %v1120, %v1778
    %v1780 = vsub.f32 1.0, %v1779
    %v1781 = vmul.f32 %v1778, %v1780
    %v1782 = vadd.f32 %v1778, %v1781
    %vm1783 = vweird.f32 %v1120
    %vm1784 = vweird.f32 %v1778
    %vm1785 = vmor %vm1783, %vm1784
    %v1786 = vsel %vm1785, %v1778, %v1782
    %v1787 = vand.u32 2147483647, %v1120
    %vm1788 = vcmp.eq.f32.partialorder %v1787, 8.507059e+37
    %v1789 = vand.u32 %v1120, 2147483648
    %v1790 = vor.u32 1.1754944e-38, %v1789
    %v1791 = vsel %vm1788, %v1790, %v1786
    %v1792 = vmul.f32 1.0, %v1791
    %v1793 = vrcp.pop %v1121
    %v1794 = vmul.f32 %v1121, %v1793
    %v1795 = vsub.f32 1.0, %v1794
    %v1796 = vmul.f32 %v1793, %v1795
    %v1797 = vadd.f32 %v1793, %v1796
    %vm1798 = vweird.f32 %v1121
    %vm1799 = vweird.f32 %v1793
    %vm1800 = vmor %vm1798, %vm1799
    %v1801 = vsel %vm1800, %v1793, %v1797
    %v1802 = vand.u32 2147483647, %v1121
    %vm1803 = vcmp.eq.f32.partialorder %v1802, 8.507059e+37
    %v1804 = vand.u32 %v1121, 2147483648
    %v1805 = vor.u32 1.1754944e-38, %v1804
    %v1806 = vsel %vm1803, %v1805, %v1801
    %v1807 = vmul.f32 1.0, %v1806
    %v1808 = vrcp.pop %v1122
    %v1809 = vmul.f32 %v1122, %v1808
    %v1810 = vsub.f32 1.0, %v1809
    %v1811 = vmul.f32 %v1808, %v1810
    %v1812 = vadd.f32 %v1808, %v1811
    %vm1813 = vweird.f32 %v1122
    %vm1814 = vweird.f32 %v1808
    %vm1815 = vmor %vm1813, %vm1814
    %v1816 = vsel %vm1815, %v1808, %v1812
    %v1817 = vand.u32 2147483647, %v1122
    %vm1818 = vcmp.eq.f32.partialorder %v1817, 8.507059e+37
    %v1819 = vand.u32 %v1122, 2147483648
    %v1820 = vor.u32 1.1754944e-38, %v1819
    %v1821 = vsel %vm1818, %v1820, %v1816
    %v1822 = vmul.f32 1.0, %v1821
    %v1823 = vrcp.pop %v1123
    %v1824 = vmul.f32 %v1123, %v1823
    %v1825 = vsub.f32 1.0, %v1824
    %v1826 = vmul.f32 %v1823, %v1825
    %v1827 = vadd.f32 %v1823, %v1826
    %vm1828 = vweird.f32 %v1123
    %vm1829 = vweird.f32 %v1823
    %vm1830 = vmor %vm1828, %vm1829
    %v1831 = vsel %vm1830, %v1823, %v1827
    %v1832 = vand.u32 2147483647, %v1123
    %vm1833 = vcmp.eq.f32.partialorder %v1832, 8.507059e+37
    %v1834 = vand.u32 %v1123, 2147483648
    %v1835 = vor.u32 1.1754944e-38, %v1834
    %v1836 = vsel %vm1833, %v1835, %v1831
    %v1837 = vmul.f32 1.0, %v1836
    %v1838 = vrcp.pop %v1124
    %v1839 = vmul.f32 %v1124, %v1838
    %v1840 = vsub.f32 1.0, %v1839
    %v1841 = vmul.f32 %v1838, %v1840
    %v1842 = vadd.f32 %v1838, %v1841
    %vm1843 = vweird.f32 %v1124
    %vm1844 = vweird.f32 %v1838
    %vm1845 = vmor %vm1843, %vm1844
    %v1846 = vsel %vm1845, %v1838, %v1842
    %v1847 = vand.u32 2147483647, %v1124
    %vm1848 = vcmp.eq.f32.partialorder %v1847, 8.507059e+37
    %v1849 = vand.u32 %v1124, 2147483648
    %v1850 = vor.u32 1.1754944e-38, %v1849
    %v1851 = vsel %vm1848, %v1850, %v1846
    %v1852 = vmul.f32 1.0, %v1851
    %v1853 = vrcp.pop %v1125
    %v1854 = vmul.f32 %v1125, %v1853
    %v1855 = vsub.f32 1.0, %v1854
    %v1856 = vmul.f32 %v1853, %v1855
    %v1857 = vadd.f32 %v1853, %v1856
    %vm1858 = vweird.f32 %v1125
    %vm1859 = vweird.f32 %v1853
    %vm1860 = vmor %vm1858, %vm1859
    %v1861 = vsel %vm1860, %v1853, %v1857
    %v1862 = vand.u32 2147483647, %v1125
    %vm1863 = vcmp.eq.f32.partialorder %v1862, 8.507059e+37
    %v1864 = vand.u32 %v1125, 2147483648
    %v1865 = vor.u32 1.1754944e-38, %v1864
    %v1866 = vsel %vm1863, %v1865, %v1861
    %v1867 = vmul.f32 1.0, %v1866
    %v1868 = vrcp.pop %v1126
    %v1869 = vmul.f32 %v1126, %v1868
    %v1870 = vsub.f32 1.0, %v1869
    %v1871 = vmul.f32 %v1868, %v1870
    %v1872 = vadd.f32 %v1868, %v1871
    %vm1873 = vweird.f32 %v1126
    %vm1874 = vweird.f32 %v1868
    %vm1875 = vmor %vm1873, %vm1874
    %v1876 = vsel %vm1875, %v1868, %v1872
    %v1877 = vand.u32 2147483647, %v1126
    %vm1878 = vcmp.eq.f32.partialorder %v1877, 8.507059e+37
    %v1879 = vand.u32 %v1126, 2147483648
    %v1880 = vor.u32 1.1754944e-38, %v1879
    %v1881 = vsel %vm1878, %v1880, %v1876
    %v1882 = vmul.f32 1.0, %v1881
    %v1883 = vrcp.pop %v1127
    %v1884 = vmul.f32 %v1127, %v1883
    %v1885 = vsub.f32 1.0, %v1884
    %v1886 = vmul.f32 %v1883, %v1885
    %v1887 = vadd.f32 %v1883, %v1886
    %vm1888 = vweird.f32 %v1127
    %vm1889 = vweird.f32 %v1883
    %vm1890 = vmor %vm1888, %vm1889
    %v1891 = vsel %vm1890, %v1883, %v1887
    %v1892 = vand.u32 2147483647, %v1127
    %vm1893 = vcmp.eq.f32.partialorder %v1892, 8.507059e+37
    %v1894 = vand.u32 %v1127, 2147483648
    %v1895 = vor.u32 1.1754944e-38, %v1894
    %v1896 = vsel %vm1893, %v1895, %v1891
    %v1897 = vmul.f32 1.0, %v1896
    %v1898 = vrcp.pop %v1128
    %v1899 = vmul.f32 %v1128, %v1898
    %v1900 = vsub.f32 1.0, %v1899
    %v1901 = vmul.f32 %v1898, %v1900
    %v1902 = vadd.f32 %v1898, %v1901
    %vm1903 = vweird.f32 %v1128
    %vm1904 = vweird.f32 %v1898
    %vm1905 = vmor %vm1903, %vm1904
    %v1906 = vsel %vm1905, %v1898, %v1902
    %v1907 = vand.u32 2147483647, %v1128
    %vm1908 = vcmp.eq.f32.partialorder %v1907, 8.507059e+37
    %v1909 = vand.u32 %v1128, 2147483648
    %v1910 = vor.u32 1.1754944e-38, %v1909
    %v1911 = vsel %vm1908, %v1910, %v1906
    %v1912 = vmul.f32 1.0, %v1911
    %v1913 = vrcp.pop %v1129
    %v1914 = vmul.f32 %v1129, %v1913
    %v1915 = vsub.f32 1.0, %v1914
    %v1916 = vmul.f32 %v1913, %v1915
    %v1917 = vadd.f32 %v1913, %v1916
    %vm1918 = vweird.f32 %v1129
    %vm1919 = vweird.f32 %v1913
    %vm1920 = vmor %vm1918, %vm1919
    %v1921 = vsel %vm1920, %v1913, %v1917
    %v1922 = vand.u32 2147483647, %v1129
    %vm1923 = vcmp.eq.f32.partialorder %v1922, 8.507059e+37
    %v1924 = vand.u32 %v1129, 2147483648
    %v1925 = vor.u32 1.1754944e-38, %v1924
    %v1926 = vsel %vm1923, %v1925, %v1921
    %v1927 = vmul.f32 1.0, %v1926
    %v1928 = vrcp.pop %v1130
    %v1929 = vmul.f32 %v1130, %v1928
    %v1930 = vsub.f32 1.0, %v1929
    %v1931 = vmul.f32 %v1928, %v1930
    %v1932 = vadd.f32 %v1928, %v1931
    %vm1933 = vweird.f32 %v1130
    %vm1934 = vweird.f32 %v1928
    %vm1935 = vmor %vm1933, %vm1934
    %v1936 = vsel %vm1935, %v1928, %v1932
    %v1937 = vand.u32 2147483647, %v1130
    %vm1938 = vcmp.eq.f32.partialorder %v1937, 8.507059e+37
    %v1939 = vand.u32 %v1130, 2147483648
    %v1940 = vor.u32 1.1754944e-38, %v1939
    %v1941 = vsel %vm1938, %v1940, %v1936
    %v1942 = vmul.f32 1.0, %v1941
    %v1943 = vrcp.pop %v1131
    %v1944 = vmul.f32 %v1131, %v1943
    %v1945 = vsub.f32 1.0, %v1944
    %v1946 = vmul.f32 %v1943, %v1945
    %v1947 = vadd.f32 %v1943, %v1946
    %vm1948 = vweird.f32 %v1131
    %vm1949 = vweird.f32 %v1943
    %vm1950 = vmor %vm1948, %vm1949
    %v1951 = vsel %vm1950, %v1943, %v1947
    %v1952 = vand.u32 2147483647, %v1131
    %vm1953 = vcmp.eq.f32.partialorder %v1952, 8.507059e+37
    %v1954 = vand.u32 %v1131, 2147483648
    %v1955 = vor.u32 1.1754944e-38, %v1954
    %v1956 = vsel %vm1953, %v1955, %v1951
    %v1957 = vmul.f32 1.0, %v1956
    %v1958 = vrcp.pop %v1132
    %v1959 = vmul.f32 %v1132, %v1958
    %v1960 = vsub.f32 1.0, %v1959
    %v1961 = vmul.f32 %v1958, %v1960
    %v1962 = vadd.f32 %v1958, %v1961
    %vm1963 = vweird.f32 %v1132
    %vm1964 = vweird.f32 %v1958
    %vm1965 = vmor %vm1963, %vm1964
    %v1966 = vsel %vm1965, %v1958, %v1962
    %v1967 = vand.u32 2147483647, %v1132
    %vm1968 = vcmp.eq.f32.partialorder %v1967, 8.507059e+37
    %v1969 = vand.u32 %v1132, 2147483648
    %v1970 = vor.u32 1.1754944e-38, %v1969
    %v1971 = vsel %vm1968, %v1970, %v1966
    %v1972 = vmul.f32 1.0, %v1971
    %vm1973 = vcmask 31744
    %v1974 = vsel %vm1973, %v1147, -inf
    %v1975 = vsel %vm1973, %v1162, -inf
    %v1976 = vmax.f32 %v1974, %v1975
    %v1977 = vsel %vm1973, %v1177, -inf
    %v1978 = vmax.f32 %v1976, %v1977
    %v1979 = vsel %vm1973, %v1192, -inf
    %v1980 = vmax.f32 %v1978, %v1979
    %v1981 = vsel %vm1973, %v1207, -inf
    %v1982 = vmax.f32 %v1980, %v1981
    %v1983 = vsel %vm1973, %v1222, -inf
    %v1984 = vmax.f32 %v1982, %v1983
    %vm1985 = vcmask 24576
    %v1986 = vsel %vm1985, %v1237, -inf
    %v1987 = vmax.f32 %v1984, %v1986
    %v1988 = vrot.slane %v1987, 4
    %v1989 = vmax.f32 %v1987, %v1988
    %v1990 = vrot.slane %v1989, 2
    %v1991 = vmax.f32 %v1989, %v1990
    %v1992 = vrot.slane %v1991, 1
    %v1993 = vmax.f32 %v1991, %v1992
    %v1994 = vsel %vm1973, %v1252, -inf
    %v1995 = vsel %vm1973, %v1267, -inf
    %v1996 = vmax.f32 %v1994, %v1995
    %v1997 = vsel %vm1973, %v1282, -inf
    %v1998 = vmax.f32 %v1996, %v1997
    %v1999 = vsel %vm1973, %v1297, -inf
    %v2000 = vmax.f32 %v1998, %v1999
    %v2001 = vsel %vm1973, %v1312, -inf
    %v2002 = vmax.f32 %v2000, %v2001
    %v2003 = vsel %vm1973, %v1327, -inf
    %v2004 = vmax.f32 %v2002, %v2003
    %v2005 = vsel %vm1985, %v1342, -inf
    %v2006 = vmax.f32 %v2004, %v2005
    %v2007 = vrot.slane %v2006, 4
    %v2008 = vmax.f32 %v2006, %v2007
    %v2009 = vrot.slane %v2008, 2
    %v2010 = vmax.f32 %v2008, %v2009
    %v2011 = vrot.slane %v2010, 1
    %v2012 = vmax.f32 %v2010, %v2011
    %v2013 = vsel %vm1973, %v1357, -inf
    %v2014 = vsel %vm1973, %v1372, -inf
    %v2015 = vmax.f32 %v2013, %v2014
    %v2016 = vsel %vm1973, %v1387, -inf
    %v2017 = vmax.f32 %v2015, %v2016
    %v2018 = vsel %vm1973, %v1402, -inf
    %v2019 = vmax.f32 %v2017, %v2018
    %v2020 = vsel %vm1973, %v1417, -inf
    %v2021 = vmax.f32 %v2019, %v2020
    %v2022 = vsel %vm1973, %v1432, -inf
    %v2023 = vmax.f32 %v2021, %v2022
    %v2024 = vsel %vm1985, %v1447, -inf
    %v2025 = vmax.f32 %v2023, %v2024
    %v2026 = vrot.slane %v2025, 4
    %v2027 = vmax.f32 %v2025, %v2026
    %v2028 = vrot.slane %v2027, 2
    %v2029 = vmax.f32 %v2027, %v2028
    %v2030 = vrot.slane %v2029, 1
    %v2031 = vmax.f32 %v2029, %v2030
    %v2032 = vsel %vm1973, %v1462, -inf
    %v2033 = vsel %vm1973, %v1477, -inf
    %v2034 = vmax.f32 %v2032, %v2033
    %v2035 = vsel %vm1973, %v1492, -inf
    %v2036 = vmax.f32 %v2034, %v2035
    %v2037 = vsel %vm1973, %v1507, -inf
    %v2038 = vmax.f32 %v2036, %v2037
    %v2039 = vsel %vm1973, %v1522, -inf
    %v2040 = vmax.f32 %v2038, %v2039
    %v2041 = vsel %vm1973, %v1537, -inf
    %v2042 = vmax.f32 %v2040, %v2041
    %v2043 = vsel %vm1985, %v1552, -inf
    %v2044 = vmax.f32 %v2042, %v2043
    %v2045 = vrot.slane %v2044, 4
    %v2046 = vmax.f32 %v2044, %v2045
    %v2047 = vrot.slane %v2046, 2
    %v2048 = vmax.f32 %v2046, %v2047
    %v2049 = vrot.slane %v2048, 1
    %v2050 = vmax.f32 %v2048, %v2049
    %v2051 = vsel %vm1973, %v1567, -inf
    %v2052 = vsel %vm1973, %v1582, -inf
    %v2053 = vmax.f32 %v2051, %v2052
    %v2054 = vsel %vm1973, %v1597, -inf
    %v2055 = vmax.f32 %v2053, %v2054
    %v2056 = vsel %vm1973, %v1612, -inf
    %v2057 = vmax.f32 %v2055, %v2056
    %v2058 = vsel %vm1973, %v1627, -inf
    %v2059 = vmax.f32 %v2057, %v2058
    %v2060 = vsel %vm1973, %v1642, -inf
    %v2061 = vmax.f32 %v2059, %v2060
    %v2062 = vsel %vm1985, %v1657, -inf
    %v2063 = vmax.f32 %v2061, %v2062
    %v2064 = vrot.slane %v2063, 4
    %v2065 = vmax.f32 %v2063, %v2064
    %v2066 = vrot.slane %v2065, 2
    %v2067 = vmax.f32 %v2065, %v2066
    %v2068 = vrot.slane %v2067, 1
    %v2069 = vmax.f32 %v2067, %v2068
    %v2070 = vsel %vm1973, %v1672, -inf
    %v2071 = vsel %vm1973, %v1687, -inf
    %v2072 = vmax.f32 %v2070, %v2071
    %v2073 = vsel %vm1973, %v1702, -inf
    %v2074 = vmax.f32 %v2072, %v2073
    %v2075 = vsel %vm1973, %v1717, -inf
    %v2076 = vmax.f32 %v2074, %v2075
    %v2077 = vsel %vm1973, %v1732, -inf
    %v2078 = vmax.f32 %v2076, %v2077
    %v2079 = vsel %vm1973, %v1747, -inf
    %v2080 = vmax.f32 %v2078, %v2079
    %v2081 = vsel %vm1985, %v1762, -inf
    %v2082 = vmax.f32 %v2080, %v2081
    %v2083 = vrot.slane %v2082, 4
    %v2084 = vmax.f32 %v2082, %v2083
    %v2085 = vrot.slane %v2084, 2
    %v2086 = vmax.f32 %v2084, %v2085
    %v2087 = vrot.slane %v2086, 1
    %v2088 = vmax.f32 %v2086, %v2087
    %v2089 = vsel %vm1973, %v1777, -inf
    %v2090 = vsel %vm1973, %v1792, -inf
    %v2091 = vmax.f32 %v2089, %v2090
    %v2092 = vsel %vm1973, %v1807, -inf
    %v2093 = vmax.f32 %v2091, %v2092
    %v2094 = vsel %vm1973, %v1822, -inf
    %v2095 = vmax.f32 %v2093, %v2094
    %v2096 = vsel %vm1973, %v1837, -inf
    %v2097 = vmax.f32 %v2095, %v2096
    %v2098 = vsel %vm1973, %v1852, -inf
    %v2099 = vmax.f32 %v2097, %v2098
    %v2100 = vsel %vm1985, %v1867, -inf
    %v2101 = vmax.f32 %v2099, %v2100
    %v2102 = vrot.slane %v2101, 4
    %v2103 = vmax.f32 %v2101, %v2102
    %v2104 = vrot.slane %v2103, 2
    %v2105 = vmax.f32 %v2103, %v2104
    %v2106 = vrot.slane %v2105, 1
    %v2107 = vmax.f32 %v2105, %v2106
    %v2108 = vsel %vm1973, %v1882, -inf
    %v2109 = vsel %vm1973, %v1897, -inf
    %v2110 = vmax.f32 %v2108, %v2109
    %v2111 = vsel %vm1973, %v1912, -inf
    %v2112 = vmax.f32 %v2110, %v2111
    %v2113 = vsel %vm1973, %v1927, -inf
    %v2114 = vmax.f32 %v2112, %v2113
    %v2115 = vsel %vm1973, %v1942, -inf
    %v2116 = vmax.f32 %v2114, %v2115
    %v2117 = vsel %vm1973, %v1957, -inf
    %v2118 = vmax.f32 %v2116, %v2117
    %v2119 = vsel %vm1985, %v1972, -inf
    %v2120 = vmax.f32 %v2118, %v2119
    %v2121 = vrot.slane %v2120, 4
    %v2122 = vmax.f32 %v2120, %v2121
    %v2123 = vrot.slane %v2122, 2
    %v2124 = vmax.f32 %v2122, %v2123
    %v2125 = vrot.slane %v2124, 1
    %v2126 = vmax.f32 %v2124, %v2125
    %v2127 = vsel %vm1973, %v1993, -inf
    %2128 = vmax.xlane.f32.xlu0 %v2127
    %v2129 = vpop.xlane.xlu0 %2128
    %v2130 = vsel %vm1973, %v2012, -inf
    %2131 = vmax.xlane.f32.xlu0 %v2130
    %v2132 = vpop.xlane.xlu0 %2131
    %v2133 = vsel %vm1973, %v2031, -inf
    %2134 = vmax.xlane.f32.xlu0 %v2133
    %v2135 = vpop.xlane.xlu0 %2134
    %v2136 = vsel %vm1973, %v2050, -inf
    %2137 = vmax.xlane.f32.xlu0 %v2136
    %v2138 = vpop.xlane.xlu0 %2137
    %v2139 = vsel %vm1973, %v2069, -inf
    %2140 = vmax.xlane.f32.xlu0 %v2139
    %v2141 = vpop.xlane.xlu0 %2140
    %v2142 = vsel %vm1973, %v2088, -inf
    %2143 = vmax.xlane.f32.xlu0 %v2142
    %v2144 = vpop.xlane.xlu0 %2143
    %v2145 = vsel %vm1973, %v2107, -inf
    %2146 = vmax.xlane.f32.xlu0 %v2145
    %v2147 = vpop.xlane.xlu0 %2146
    %v2148 = vsel %vm1973, %v2126, -inf
    %2149 = vmax.xlane.f32.xlu0 %v2148
    %v2150 = vpop.xlane.xlu0 %2149
    %v2151 = vmul.f32 %v2129, 0.8
    %v2152 = vmul.f32 %v2132, 0.8
    %v2153 = vmul.f32 %v2135, 0.8
    %v2154 = vmul.f32 %v2138, 0.8
    %v2155 = vmul.f32 %v2141, 0.8
    %v2156 = vmul.f32 %v2144, 0.8
    %v2157 = vmul.f32 %v2147, 0.8
    %v2158 = vmul.f32 %v2150, 0.8
    %vm2159 = vcmp.ge.f32.partialorder %v1993, %v2151
    %vm2160 = vcmp.ge.f32.partialorder %v2012, %v2152
    %vm2161 = vcmp.ge.f32.partialorder %v2031, %v2153
    %vm2162 = vcmp.ge.f32.partialorder %v2050, %v2154
    %vm2163 = vcmp.ge.f32.partialorder %v2069, %v2155
    %vm2164 = vcmp.ge.f32.partialorder %v2088, %v2156
    %vm2165 = vcmp.ge.f32.partialorder %v2107, %v2157
    %vm2166 = vcmp.ge.f32.partialorder %v2126, %v2158
    %v2167 = vsel %vm2159, 1, 0
    %v2168 = vsel %vm2160, 1, 0
    %v2169 = vsel %vm2161, 1, 0
    %v2170 = vsel %vm2162, 1, 0
    %v2171 = vsel %vm2163, 1, 0
    %v2172 = vsel %vm2164, 1, 0
    %v2173 = vsel %vm2165, 1, 0
    %v2174 = vsel %vm2166, 1, 0
    %v2175 = vcvt.s32.f32 %v2167
    %v2176 = vcvt.s32.f32 %v2168
    %v2177 = vcvt.s32.f32 %v2169
    %v2178 = vcvt.s32.f32 %v2170
    %v2179 = vcvt.s32.f32 %v2171
    %v2180 = vcvt.s32.f32 %v2172
    %v2181 = vcvt.s32.f32 %v2173
    %v2182 = vcvt.s32.f32 %v2174
    %v2183 = vmul.f32 %v1147, %v2175
    %v2184 = vmul.f32 %v1162, %v2175
    %v2185 = vmul.f32 %v1177, %v2175
    %v2186 = vmul.f32 %v1192, %v2175
    %v2187 = vmul.f32 %v1207, %v2175
    %v2188 = vmul.f32 %v1222, %v2175
    %v2189 = vmul.f32 %v1237, %v2175
    %v2190 = vmul.f32 %v1252, %v2176
    %v2191 = vmul.f32 %v1267, %v2176
    %v2192 = vmul.f32 %v1282, %v2176
    %v2193 = vmul.f32 %v1297, %v2176
    %v2194 = vmul.f32 %v1312, %v2176
    %v2195 = vmul.f32 %v1327, %v2176
    %v2196 = vmul.f32 %v1342, %v2176
    %v2197 = vmul.f32 %v1357, %v2177
    %v2198 = vmul.f32 %v1372, %v2177
    %v2199 = vmul.f32 %v1387, %v2177
    %v2200 = vmul.f32 %v1402, %v2177
    %v2201 = vmul.f32 %v1417, %v2177
    %v2202 = vmul.f32 %v1432, %v2177
    %v2203 = vmul.f32 %v1447, %v2177
    %v2204 = vmul.f32 %v1462, %v2178
    %v2205 = vmul.f32 %v1477, %v2178
    %v2206 = vmul.f32 %v1492, %v2178
    %v2207 = vmul.f32 %v1507, %v2178
    %v2208 = vmul.f32 %v1522, %v2178
    %v2209 = vmul.f32 %v1537, %v2178
    %v2210 = vmul.f32 %v1552, %v2178
    %v2211 = vmul.f32 %v1567, %v2179
    %v2212 = vmul.f32 %v1582, %v2179
    %v2213 = vmul.f32 %v1597, %v2179
    %v2214 = vmul.f32 %v1612, %v2179
    %v2215 = vmul.f32 %v1627, %v2179
    %v2216 = vmul.f32 %v1642, %v2179
    %v2217 = vmul.f32 %v1657, %v2179
    %v2218 = vmul.f32 %v1672, %v2180
    %v2219 = vmul.f32 %v1687, %v2180
    %v2220 = vmul.f32 %v1702, %v2180
    %v2221 = vmul.f32 %v1717, %v2180
    %v2222 = vmul.f32 %v1732, %v2180
    %v2223 = vmul.f32 %v1747, %v2180
    %v2224 = vmul.f32 %v1762, %v2180
    %v2225 = vmul.f32 %v1777, %v2181
    %v2226 = vmul.f32 %v1792, %v2181
    %v2227 = vmul.f32 %v1807, %v2181
    %v2228 = vmul.f32 %v1822, %v2181
    %v2229 = vmul.f32 %v1837, %v2181
    %v2230 = vmul.f32 %v1852, %v2181
    %v2231 = vmul.f32 %v1867, %v2181
    %v2232 = vmul.f32 %v1882, %v2182
    %v2233 = vmul.f32 %v1897, %v2182
    %v2234 = vmul.f32 %v1912, %v2182
    %v2235 = vmul.f32 %v1927, %v2182
    %v2236 = vmul.f32 %v1942, %v2182
    %v2237 = vmul.f32 %v1957, %v2182
    %v2238 = vmul.f32 %v1972, %v2182
    %2295 = vrot.lane.b32.xlu0 %v853, 124
    %v2296 = vpop.permute.xlu0 %2295
    %2297 = vrot.lane.b32.xlu0 %v854, 124
    %v2298 = vpop.permute.xlu0 %2297
    %2299 = vrot.lane.b32.xlu0 %v855, 124
    %v2300 = vpop.permute.xlu0 %2299
    %2301 = vrot.lane.b32.xlu0 %v856, 124
    %v2302 = vpop.permute.xlu0 %2301
    %2303 = vrot.lane.b32.xlu0 %v857, 124
    %v2304 = vpop.permute.xlu0 %2303
    %2305 = vrot.lane.b32.xlu0 %v858, 124
    %v2306 = vpop.permute.xlu0 %2305
    %2307 = vrot.lane.b32.xlu0 %v859, 124
    %v2308 = vpop.permute.xlu0 %2307
    %2309 = vrot.lane.b32.xlu0 %v860, 124
    %v2310 = vpop.permute.xlu0 %2309
    %2311 = vrot.lane.b32.xlu0 %v861, 124
    %v2312 = vpop.permute.xlu0 %2311
    %2313 = vrot.lane.b32.xlu0 %v862, 124
    %v2314 = vpop.permute.xlu0 %2313
    %2315 = vrot.lane.b32.xlu0 %v863, 124
    %v2316 = vpop.permute.xlu0 %2315
    %2317 = vrot.lane.b32.xlu0 %v864, 124
    %v2318 = vpop.permute.xlu0 %2317
    %2319 = vrot.lane.b32.xlu0 %v865, 124
    %v2320 = vpop.permute.xlu0 %2319
    %2321 = vrot.lane.b32.xlu0 %v866, 124
    %v2322 = vpop.permute.xlu0 %2321
    %2323 = vrot.lane.b32.xlu0 %v867, 124
    %v2324 = vpop.permute.xlu0 %2323
    %2325 = vrot.lane.b32.xlu0 %v868, 124
    %v2326 = vpop.permute.xlu0 %2325
    %2327 = vrot.lane.b32.xlu0 %v869, 124
    %v2328 = vpop.permute.xlu0 %2327
    %2329 = vrot.lane.b32.xlu0 %v870, 124
    %v2330 = vpop.permute.xlu0 %2329
    %2331 = vrot.lane.b32.xlu0 %v871, 124
    %v2332 = vpop.permute.xlu0 %2331
    %2333 = vrot.lane.b32.xlu0 %v872, 124
    %v2334 = vpop.permute.xlu0 %2333
    %2335 = vrot.lane.b32.xlu0 %v873, 124
    %v2336 = vpop.permute.xlu0 %2335
    %2337 = vrot.lane.b32.xlu0 %v874, 124
    %v2338 = vpop.permute.xlu0 %2337
    %2339 = vrot.lane.b32.xlu0 %v875, 124
    %v2340 = vpop.permute.xlu0 %2339
    %2341 = vrot.lane.b32.xlu0 %v876, 124
    %v2342 = vpop.permute.xlu0 %2341
    %2343 = vrot.lane.b32.xlu0 %v877, 124
    %v2344 = vpop.permute.xlu0 %2343
    %2345 = vrot.lane.b32.xlu0 %v878, 124
    %v2346 = vpop.permute.xlu0 %2345
    %2347 = vrot.lane.b32.xlu0 %v879, 124
    %v2348 = vpop.permute.xlu0 %2347
    %2349 = vrot.lane.b32.xlu0 %v880, 124
    %v2350 = vpop.permute.xlu0 %2349
    %2351 = vrot.lane.b32.xlu0 %v881, 124
    %v2352 = vpop.permute.xlu0 %2351
    %2353 = vrot.lane.b32.xlu0 %v882, 124
    %v2354 = vpop.permute.xlu0 %2353
    %2355 = vrot.lane.b32.xlu0 %v883, 124
    %v2356 = vpop.permute.xlu0 %2355
    %2357 = vrot.lane.b32.xlu0 %v884, 124
    %v2358 = vpop.permute.xlu0 %2357
    %2359 = vrot.lane.b32.xlu0 %v885, 124
    %v2360 = vpop.permute.xlu0 %2359
    %2361 = vrot.lane.b32.xlu0 %v886, 124
    %v2362 = vpop.permute.xlu0 %2361
    %2363 = vrot.lane.b32.xlu0 %v887, 124
    %v2364 = vpop.permute.xlu0 %2363
    %2365 = vrot.lane.b32.xlu0 %v888, 124
    %v2366 = vpop.permute.xlu0 %2365
    %2367 = vrot.lane.b32.xlu0 %v889, 124
    %v2368 = vpop.permute.xlu0 %2367
    %2369 = vrot.lane.b32.xlu0 %v890, 124
    %v2370 = vpop.permute.xlu0 %2369
    %2371 = vrot.lane.b32.xlu0 %v891, 124
    %v2372 = vpop.permute.xlu0 %2371
    %2373 = vrot.lane.b32.xlu0 %v892, 124
    %v2374 = vpop.permute.xlu0 %2373
    %2375 = vrot.lane.b32.xlu0 %v893, 124
    %v2376 = vpop.permute.xlu0 %2375
    %2377 = vrot.lane.b32.xlu0 %v894, 124
    %v2378 = vpop.permute.xlu0 %2377
    %2379 = vrot.lane.b32.xlu0 %v895, 124
    %v2380 = vpop.permute.xlu0 %2379
    %2381 = vrot.lane.b32.xlu0 %v896, 124
    %v2382 = vpop.permute.xlu0 %2381
    %2383 = vrot.lane.b32.xlu0 %v897, 124
    %v2384 = vpop.permute.xlu0 %2383
    %2385 = vrot.lane.b32.xlu0 %v898, 124
    %v2386 = vpop.permute.xlu0 %2385
    %2387 = vrot.lane.b32.xlu0 %v899, 124
    %v2388 = vpop.permute.xlu0 %2387
    %2389 = vrot.lane.b32.xlu0 %v900, 124
    %v2390 = vpop.permute.xlu0 %2389
    %2391 = vrot.lane.b32.xlu0 %v901, 124
    %v2392 = vpop.permute.xlu0 %2391
    %2393 = vrot.lane.b32.xlu0 %v902, 124
    %v2394 = vpop.permute.xlu0 %2393
    %2395 = vrot.lane.b32.xlu0 %v903, 124
    %v2396 = vpop.permute.xlu0 %2395
    %2397 = vrot.lane.b32.xlu0 %v904, 124
    %v2398 = vpop.permute.xlu0 %2397
    %2399 = vrot.lane.b32.xlu0 %v905, 124
    %v2400 = vpop.permute.xlu0 %2399
    %2401 = vrot.lane.b32.xlu0 %v906, 124
    %v2402 = vpop.permute.xlu0 %2401
    %2403 = vrot.lane.b32.xlu0 %v907, 124
    %v2404 = vpop.permute.xlu0 %2403
    %2405 = vrot.lane.b32.xlu0 %v908, 124
    %v2406 = vpop.permute.xlu0 %2405
    %2463 = vxpose.xlu0.b32.start [1/16] %v2296, 128
    %2464 = vxpose.xlu0.b32.cont [2/16] %v2298, 128
    %2465 = vxpose.xlu0.b32.cont [3/16] %v2300, 128
    %2466 = vxpose.xlu0.b32.cont [4/16] %v2302, 128
    %2467 = vxpose.xlu0.b32.cont [5/16] %v2304, 128
    %2468 = vxpose.xlu0.b32.cont [6/16] %v2306, 128
    %2469 = vxpose.xlu0.b32.cont [7/16] %v2308, 128
    %2470 = vxpose.xlu0.b32.cont [8/16] 0.0, 128
    %2471 = vxpose.xlu0.b32.cont [9/16] 0.0, 128
    %2472 = vxpose.xlu0.b32.cont [10/16] 0.0, 128
    %2473 = vxpose.xlu0.b32.cont [11/16] 0.0, 128
    %2474 = vxpose.xlu0.b32.cont [12/16] 0.0, 128
    %2475 = vxpose.xlu0.b32.cont [13/16] 0.0, 128
    %2476 = vxpose.xlu0.b32.cont [14/16] 0.0, 128
    %2477 = vxpose.xlu0.b32.cont [15/16] 0.0, 128
    %2478 = vxpose.xlu0.b32.end [16/16] 0.0, 128
    %v2479 = vpop.trf.xlu0
    %v2480 = vpop.trf.xlu0
    %v2481 = vpop.trf.xlu0
    %v2482 = vpop.trf.xlu0
    %v2483 = vpop.trf.xlu0
    %v2484 = vpop.trf.xlu0
    %v2485 = vpop.trf.xlu0
    %v2486 = vpop.trf.xlu0
    %v2487 = vpop.trf.xlu0
    %v2488 = vpop.trf.xlu0
    %v2489 = vpop.trf.xlu0
    %v2490 = vpop.trf.xlu0
    %v2491 = vpop.trf.xlu0
    %v2492 = vpop.trf.xlu0
    %v2493 = vpop.trf.xlu0
    %v2494 = vpop.trf.xlu0
    %2495 = vxpose.xlu0.b32.start [1/16] %v2310, 128
    %2496 = vxpose.xlu0.b32.cont [2/16] %v2312, 128
    %2497 = vxpose.xlu0.b32.cont [3/16] %v2314, 128
    %2498 = vxpose.xlu0.b32.cont [4/16] %v2316, 128
    %2499 = vxpose.xlu0.b32.cont [5/16] %v2318, 128
    %2500 = vxpose.xlu0.b32.cont [6/16] %v2320, 128
    %2501 = vxpose.xlu0.b32.cont [7/16] %v2322, 128
    %2502 = vxpose.xlu0.b32.cont [8/16] 0.0, 128
    %2503 = vxpose.xlu0.b32.cont [9/16] 0.0, 128
    %2504 = vxpose.xlu0.b32.cont [10/16] 0.0, 128
    %2505 = vxpose.xlu0.b32.cont [11/16] 0.0, 128
    %2506 = vxpose.xlu0.b32.cont [12/16] 0.0, 128
    %2507 = vxpose.xlu0.b32.cont [13/16] 0.0, 128
    %2508 = vxpose.xlu0.b32.cont [14/16] 0.0, 128
    %2509 = vxpose.xlu0.b32.cont [15/16] 0.0, 128
    %2510 = vxpose.xlu0.b32.end [16/16] 0.0, 128
    %v2511 = vpop.trf.xlu0
    %v2512 = vpop.trf.xlu0
    %v2513 = vpop.trf.xlu0
    %v2514 = vpop.trf.xlu0
    %v2515 = vpop.trf.xlu0
    %v2516 = vpop.trf.xlu0
    %v2517 = vpop.trf.xlu0
    %v2518 = vpop.trf.xlu0
    %v2519 = vpop.trf.xlu0
    %v2520 = vpop.trf.xlu0
    %v2521 = vpop.trf.xlu0
    %v2522 = vpop.trf.xlu0
    %v2523 = vpop.trf.xlu0
    %v2524 = vpop.trf.xlu0
    %v2525 = vpop.trf.xlu0
    %v2526 = vpop.trf.xlu0
    %2527 = vxpose.xlu0.b32.start [1/16] %v2324, 128
    %2528 = vxpose.xlu0.b32.cont [2/16] %v2326, 128
    %2529 = vxpose.xlu0.b32.cont [3/16] %v2328, 128
    %2530 = vxpose.xlu0.b32.cont [4/16] %v2330, 128
    %2531 = vxpose.xlu0.b32.cont [5/16] %v2332, 128
    %2532 = vxpose.xlu0.b32.cont [6/16] %v2334, 128
    %2533 = vxpose.xlu0.b32.cont [7/16] %v2336, 128
    %2534 = vxpose.xlu0.b32.cont [8/16] 0.0, 128
    %2535 = vxpose.xlu0.b32.cont [9/16] 0.0, 128
    %2536 = vxpose.xlu0.b32.cont [10/16] 0.0, 128
    %2537 = vxpose.xlu0.b32.cont [11/16] 0.0, 128
    %2538 = vxpose.xlu0.b32.cont [12/16] 0.0, 128
    %2539 = vxpose.xlu0.b32.cont [13/16] 0.0, 128
    %2540 = vxpose.xlu0.b32.cont [14/16] 0.0, 128
    %2541 = vxpose.xlu0.b32.cont [15/16] 0.0, 128
    %2542 = vxpose.xlu0.b32.end [16/16] 0.0, 128
    %v2543 = vpop.trf.xlu0
    %v2544 = vpop.trf.xlu0
    %v2545 = vpop.trf.xlu0
    %v2546 = vpop.trf.xlu0
    %v2547 = vpop.trf.xlu0
    %v2548 = vpop.trf.xlu0
    %v2549 = vpop.trf.xlu0
    %v2550 = vpop.trf.xlu0
    %v2551 = vpop.trf.xlu0
    %v2552 = vpop.trf.xlu0
    %v2553 = vpop.trf.xlu0
    %v2554 = vpop.trf.xlu0
    %v2555 = vpop.trf.xlu0
    %v2556 = vpop.trf.xlu0
    %v2557 = vpop.trf.xlu0
    %v2558 = vpop.trf.xlu0
    %2559 = vxpose.xlu0.b32.start [1/16] %v2338, 128
    %2560 = vxpose.xlu0.b32.cont [2/16] %v2340, 128
    %2561 = vxpose.xlu0.b32.cont [3/16] %v2342, 128
    %2562 = vxpose.xlu0.b32.cont [4/16] %v2344, 128
    %2563 = vxpose.xlu0.b32.cont [5/16] %v2346, 128
    %2564 = vxpose.xlu0.b32.cont [6/16] %v2348, 128
    %2565 = vxpose.xlu0.b32.cont [7/16] %v2350, 128
    %2566 = vxpose.xlu0.b32.cont [8/16] 0.0, 128
    %2567 = vxpose.xlu0.b32.cont [9/16] 0.0, 128
    %2568 = vxpose.xlu0.b32.cont [10/16] 0.0, 128
    %2569 = vxpose.xlu0.b32.cont [11/16] 0.0, 128
    %2570 = vxpose.xlu0.b32.cont [12/16] 0.0, 128
    %2571 = vxpose.xlu0.b32.cont [13/16] 0.0, 128
    %2572 = vxpose.xlu0.b32.cont [14/16] 0.0, 128
    %2573 = vxpose.xlu0.b32.cont [15/16] 0.0, 128
    %2574 = vxpose.xlu0.b32.end [16/16] 0.0, 128
    %v2575 = vpop.trf.xlu0
    %v2576 = vpop.trf.xlu0
    %v2577 = vpop.trf.xlu0
    %v2578 = vpop.trf.xlu0
    %v2579 = vpop.trf.xlu0
    %v2580 = vpop.trf.xlu0
    %v2581 = vpop.trf.xlu0
    %v2582 = vpop.trf.xlu0
    %v2583 = vpop.trf.xlu0
    %v2584 = vpop.trf.xlu0
    %v2585 = vpop.trf.xlu0
    %v2586 = vpop.trf.xlu0
    %v2587 = vpop.trf.xlu0
    %v2588 = vpop.trf.xlu0
    %v2589 = vpop.trf.xlu0
    %v2590 = vpop.trf.xlu0
    %2591 = vxpose.xlu0.b32.start [1/16] %v2352, 128
    %2592 = vxpose.xlu0.b32.cont [2/16] %v2354, 128
    %2593 = vxpose.xlu0.b32.cont [3/16] %v2356, 128
    %2594 = vxpose.xlu0.b32.cont [4/16] %v2358, 128
    %2595 = vxpose.xlu0.b32.cont [5/16] %v2360, 128
    %2596 = vxpose.xlu0.b32.cont [6/16] %v2362, 128
    %2597 = vxpose.xlu0.b32.cont [7/16] %v2364, 128
    %2598 = vxpose.xlu0.b32.cont [8/16] 0.0, 128
    %2599 = vxpose.xlu0.b32.cont [9/16] 0.0, 128
    %2600 = vxpose.xlu0.b32.cont [10/16] 0.0, 128
    %2601 = vxpose.xlu0.b32.cont [11/16] 0.0, 128
    %2602 = vxpose.xlu0.b32.cont [12/16] 0.0, 128
    %2603 = vxpose.xlu0.b32.cont [13/16] 0.0, 128
    %2604 = vxpose.xlu0.b32.cont [14/16] 0.0, 128
    %2605 = vxpose.xlu0.b32.cont [15/16] 0.0, 128
    %2606 = vxpose.xlu0.b32.end [16/16] 0.0, 128
    %v2607 = vpop.trf.xlu0
    %v2608 = vpop.trf.xlu0
    %v2609 = vpop.trf.xlu0
    %v2610 = vpop.trf.xlu0
    %v2611 = vpop.trf.xlu0
    %v2612 = vpop.trf.xlu0
    %v2613 = vpop.trf.xlu0
    %v2614 = vpop.trf.xlu0
    %v2615 = vpop.trf.xlu0
    %v2616 = vpop.trf.xlu0
    %v2617 = vpop.trf.xlu0
    %v2618 = vpop.trf.xlu0
    %v2619 = vpop.trf.xlu0
    %v2620 = vpop.trf.xlu0
    %v2621 = vpop.trf.xlu0
    %v2622 = vpop.trf.xlu0
    %2623 = vxpose.xlu0.b32.start [1/16] %v2366, 128
    %2624 = vxpose.xlu0.b32.cont [2/16] %v2368, 128
    %2625 = vxpose.xlu0.b32.cont [3/16] %v2370, 128
    %2626 = vxpose.xlu0.b32.cont [4/16] %v2372, 128
    %2627 = vxpose.xlu0.b32.cont [5/16] %v2374, 128
    %2628 = vxpose.xlu0.b32.cont [6/16] %v2376, 128
    %2629 = vxpose.xlu0.b32.cont [7/16] %v2378, 128
    %2630 = vxpose.xlu0.b32.cont [8/16] 0.0, 128
    %2631 = vxpose.xlu0.b32.cont [9/16] 0.0, 128
    %2632 = vxpose.xlu0.b32.cont [10/16] 0.0, 128
    %2633 = vxpose.xlu0.b32.cont [11/16] 0.0, 128
    %2634 = vxpose.xlu0.b32.cont [12/16] 0.0, 128
    %2635 = vxpose.xlu0.b32.cont [13/16] 0.0, 128
    %2636 = vxpose.xlu0.b32.cont [14/16] 0.0, 128
    %2637 = vxpose.xlu0.b32.cont [15/16] 0.0, 128
    %2638 = vxpose.xlu0.b32.end [16/16] 0.0, 128
    %v2639 = vpop.trf.xlu0
    %v2640 = vpop.trf.xlu0
    %v2641 = vpop.trf.xlu0
    %v2642 = vpop.trf.xlu0
    %v2643 = vpop.trf.xlu0
    %v2644 = vpop.trf.xlu0
    %v2645 = vpop.trf.xlu0
    %v2646 = vpop.trf.xlu0
    %v2647 = vpop.trf.xlu0
    %v2648 = vpop.trf.xlu0
    %v2649 = vpop.trf.xlu0
    %v2650 = vpop.trf.xlu0
    %v2651 = vpop.trf.xlu0
    %v2652 = vpop.trf.xlu0
    %v2653 = vpop.trf.xlu0
    %v2654 = vpop.trf.xlu0
    %2655 = vxpose.xlu0.b32.start [1/16] %v2380, 128
    %2656 = vxpose.xlu0.b32.cont [2/16] %v2382, 128
    %2657 = vxpose.xlu0.b32.cont [3/16] %v2384, 128
    %2658 = vxpose.xlu0.b32.cont [4/16] %v2386, 128
    %2659 = vxpose.xlu0.b32.cont [5/16] %v2388, 128
    %2660 = vxpose.xlu0.b32.cont [6/16] %v2390, 128
    %2661 = vxpose.xlu0.b32.cont [7/16] %v2392, 128
    %2662 = vxpose.xlu0.b32.cont [8/16] 0.0, 128
    %2663 = vxpose.xlu0.b32.cont [9/16] 0.0, 128
    %2664 = vxpose.xlu0.b32.cont [10/16] 0.0, 128
    %2665 = vxpose.xlu0.b32.cont [11/16] 0.0, 128
    %2666 = vxpose.xlu0.b32.cont [12/16] 0.0, 128
    %2667 = vxpose.xlu0.b32.cont [13/16] 0.0, 128
    %2668 = vxpose.xlu0.b32.cont [14/16] 0.0, 128
    %2669 = vxpose.xlu0.b32.cont [15/16] 0.0, 128
    %2670 = vxpose.xlu0.b32.end [16/16] 0.0, 128
    %v2671 = vpop.trf.xlu0
    %v2672 = vpop.trf.xlu0
    %v2673 = vpop.trf.xlu0
    %v2674 = vpop.trf.xlu0
    %v2675 = vpop.trf.xlu0
    %v2676 = vpop.trf.xlu0
    %v2677 = vpop.trf.xlu0
    %v2678 = vpop.trf.xlu0
    %v2679 = vpop.trf.xlu0
    %v2680 = vpop.trf.xlu0
    %v2681 = vpop.trf.xlu0
    %v2682 = vpop.trf.xlu0
    %v2683 = vpop.trf.xlu0
    %v2684 = vpop.trf.xlu0
    %v2685 = vpop.trf.xlu0
    %v2686 = vpop.trf.xlu0
    %2687 = vxpose.xlu0.b32.start [1/16] %v2394, 128
    %2688 = vxpose.xlu0.b32.cont [2/16] %v2396, 128
    %2689 = vxpose.xlu0.b32.cont [3/16] %v2398, 128
    %2690 = vxpose.xlu0.b32.cont [4/16] %v2400, 128
    %2691 = vxpose.xlu0.b32.cont [5/16] %v2402, 128
    %2692 = vxpose.xlu0.b32.cont [6/16] %v2404, 128
    %2693 = vxpose.xlu0.b32.cont [7/16] %v2406, 128
    %2694 = vxpose.xlu0.b32.cont [8/16] 0.0, 128
    %2695 = vxpose.xlu0.b32.cont [9/16] 0.0, 128
    %2696 = vxpose.xlu0.b32.cont [10/16] 0.0, 128
    %2697 = vxpose.xlu0.b32.cont [11/16] 0.0, 128
    %2698 = vxpose.xlu0.b32.cont [12/16] 0.0, 128
    %2699 = vxpose.xlu0.b32.cont [13/16] 0.0, 128
    %2700 = vxpose.xlu0.b32.cont [14/16] 0.0, 128
    %2701 = vxpose.xlu0.b32.cont [15/16] 0.0, 128
    %2702 = vxpose.xlu0.b32.end [16/16] 0.0, 128
    %v2703 = vpop.trf.xlu0
    %v2704 = vpop.trf.xlu0
    %v2705 = vpop.trf.xlu0
    %v2706 = vpop.trf.xlu0
    %v2707 = vpop.trf.xlu0
    %v2708 = vpop.trf.xlu0
    %v2709 = vpop.trf.xlu0
    %v2710 = vpop.trf.xlu0
    %v2711 = vpop.trf.xlu0
    %v2712 = vpop.trf.xlu0
    %v2713 = vpop.trf.xlu0
    %v2714 = vpop.trf.xlu0
    %v2715 = vpop.trf.xlu0
    %v2716 = vpop.trf.xlu0
    %v2717 = vpop.trf.xlu0
    %v2718 = vpop.trf.xlu0
    %2719 = vxpose.xlu0.b32.start [1/16] %v2183, 128
    %2720 = vxpose.xlu0.b32.cont [2/16] %v2184, 128
    %2721 = vxpose.xlu0.b32.cont [3/16] %v2185, 128
    %2722 = vxpose.xlu0.b32.cont [4/16] %v2186, 128
    %2723 = vxpose.xlu0.b32.cont [5/16] %v2187, 128
    %2724 = vxpose.xlu0.b32.cont [6/16] %v2188, 128
    %2725 = vxpose.xlu0.b32.cont [7/16] %v2189, 128
    %2726 = vxpose.xlu0.b32.cont [8/16] 0.0, 128
    %2727 = vxpose.xlu0.b32.cont [9/16] 0.0, 128
    %2728 = vxpose.xlu0.b32.cont [10/16] 0.0, 128
    %2729 = vxpose.xlu0.b32.cont [11/16] 0.0, 128
    %2730 = vxpose.xlu0.b32.cont [12/16] 0.0, 128
    %2731 = vxpose.xlu0.b32.cont [13/16] 0.0, 128
    %2732 = vxpose.xlu0.b32.cont [14/16] 0.0, 128
    %2733 = vxpose.xlu0.b32.cont [15/16] 0.0, 128
    %2734 = vxpose.xlu0.b32.end [16/16] 0.0, 128
    %v2735 = vpop.trf.xlu0
    %v2736 = vpop.trf.xlu0
    %v2737 = vpop.trf.xlu0
    %v2738 = vpop.trf.xlu0
    %v2739 = vpop.trf.xlu0
    %v2740 = vpop.trf.xlu0
    %v2741 = vpop.trf.xlu0
    %v2742 = vpop.trf.xlu0
    %v2743 = vpop.trf.xlu0
    %v2744 = vpop.trf.xlu0
    %v2745 = vpop.trf.xlu0
    %v2746 = vpop.trf.xlu0
    %v2747 = vpop.trf.xlu0
    %v2748 = vpop.trf.xlu0
    %v2749 = vpop.trf.xlu0
    %v2750 = vpop.trf.xlu0
    %2751 = vxpose.xlu0.b32.start [1/16] %v2190, 128
    %2752 = vxpose.xlu0.b32.cont [2/16] %v2191, 128
    %2753 = vxpose.xlu0.b32.cont [3/16] %v2192, 128
    %2754 = vxpose.xlu0.b32.cont [4/16] %v2193, 128
    %2755 = vxpose.xlu0.b32.cont [5/16] %v2194, 128
    %2756 = vxpose.xlu0.b32.cont [6/16] %v2195, 128
    %2757 = vxpose.xlu0.b32.cont [7/16] %v2196, 128
    %2758 = vxpose.xlu0.b32.cont [8/16] 0.0, 128
    %2759 = vxpose.xlu0.b32.cont [9/16] 0.0, 128
    %2760 = vxpose.xlu0.b32.cont [10/16] 0.0, 128
    %2761 = vxpose.xlu0.b32.cont [11/16] 0.0, 128
    %2762 = vxpose.xlu0.b32.cont [12/16] 0.0, 128
    %2763 = vxpose.xlu0.b32.cont [13/16] 0.0, 128
    %2764 = vxpose.xlu0.b32.cont [14/16] 0.0, 128
    %2765 = vxpose.xlu0.b32.cont [15/16] 0.0, 128
    %2766 = vxpose.xlu0.b32.end [16/16] 0.0, 128
    %v2767 = vpop.trf.xlu0
    %v2768 = vpop.trf.xlu0
    %v2769 = vpop.trf.xlu0
    %v2770 = vpop.trf.xlu0
    %v2771 = vpop.trf.xlu0
    %v2772 = vpop.trf.xlu0
    %v2773 = vpop.trf.xlu0
    %v2774 = vpop.trf.xlu0
    %v2775 = vpop.trf.xlu0
    %v2776 = vpop.trf.xlu0
    %v2777 = vpop.trf.xlu0
    %v2778 = vpop.trf.xlu0
    %v2779 = vpop.trf.xlu0
    %v2780 = vpop.trf.xlu0
    %v2781 = vpop.trf.xlu0
    %v2782 = vpop.trf.xlu0
    %2783 = vxpose.xlu0.b32.start [1/16] %v2197, 128
    %2784 = vxpose.xlu0.b32.cont [2/16] %v2198, 128
    %2785 = vxpose.xlu0.b32.cont [3/16] %v2199, 128
    %2786 = vxpose.xlu0.b32.cont [4/16] %v2200, 128
    %2787 = vxpose.xlu0.b32.cont [5/16] %v2201, 128
    %2788 = vxpose.xlu0.b32.cont [6/16] %v2202, 128
    %2789 = vxpose.xlu0.b32.cont [7/16] %v2203, 128
    %2790 = vxpose.xlu0.b32.cont [8/16] 0.0, 128
    %2791 = vxpose.xlu0.b32.cont [9/16] 0.0, 128
    %2792 = vxpose.xlu0.b32.cont [10/16] 0.0, 128
    %2793 = vxpose.xlu0.b32.cont [11/16] 0.0, 128
    %2794 = vxpose.xlu0.b32.cont [12/16] 0.0, 128
    %2795 = vxpose.xlu0.b32.cont [13/16] 0.0, 128
    %2796 = vxpose.xlu0.b32.cont [14/16] 0.0, 128
    %2797 = vxpose.xlu0.b32.cont [15/16] 0.0, 128
    %2798 = vxpose.xlu0.b32.end [16/16] 0.0, 128
    %v2799 = vpop.trf.xlu0
    %v2800 = vpop.trf.xlu0
    %v2801 = vpop.trf.xlu0
    %v2802 = vpop.trf.xlu0
    %v2803 = vpop.trf.xlu0
    %v2804 = vpop.trf.xlu0
    %v2805 = vpop.trf.xlu0
    %v2806 = vpop.trf.xlu0
    %v2807 = vpop.trf.xlu0
    %v2808 = vpop.trf.xlu0
    %v2809 = vpop.trf.xlu0
    %v2810 = vpop.trf.xlu0
    %v2811 = vpop.trf.xlu0
    %v2812 = vpop.trf.xlu0
    %v2813 = vpop.trf.xlu0
    %v2814 = vpop.trf.xlu0
    %2815 = vxpose.xlu0.b32.start [1/16] %v2204, 128
    %2816 = vxpose.xlu0.b32.cont [2/16] %v2205, 128
    %2817 = vxpose.xlu0.b32.cont [3/16] %v2206, 128
    %2818 = vxpose.xlu0.b32.cont [4/16] %v2207, 128
    %2819 = vxpose.xlu0.b32.cont [5/16] %v2208, 128
    %2820 = vxpose.xlu0.b32.cont [6/16] %v2209, 128
    %2821 = vxpose.xlu0.b32.cont [7/16] %v2210, 128
    %2822 = vxpose.xlu0.b32.cont [8/16] 0.0, 128
    %2823 = vxpose.xlu0.b32.cont [9/16] 0.0, 128
    %2824 = vxpose.xlu0.b32.cont [10/16] 0.0, 128
    %2825 = vxpose.xlu0.b32.cont [11/16] 0.0, 128
    %2826 = vxpose.xlu0.b32.cont [12/16] 0.0, 128
    %2827 = vxpose.xlu0.b32.cont [13/16] 0.0, 128
    %2828 = vxpose.xlu0.b32.cont [14/16] 0.0, 128
    %2829 = vxpose.xlu0.b32.cont [15/16] 0.0, 128
    %2830 = vxpose.xlu0.b32.end [16/16] 0.0, 128
    %v2831 = vpop.trf.xlu0
    %v2832 = vpop.trf.xlu0
    %v2833 = vpop.trf.xlu0
    %v2834 = vpop.trf.xlu0
    %v2835 = vpop.trf.xlu0
    %v2836 = vpop.trf.xlu0
    %v2837 = vpop.trf.xlu0
    %v2838 = vpop.trf.xlu0
    %v2839 = vpop.trf.xlu0
    %v2840 = vpop.trf.xlu0
    %v2841 = vpop.trf.xlu0
    %v2842 = vpop.trf.xlu0
    %v2843 = vpop.trf.xlu0
    %v2844 = vpop.trf.xlu0
    %v2845 = vpop.trf.xlu0
    %v2846 = vpop.trf.xlu0
    %2847 = vxpose.xlu0.b32.start [1/16] %v2211, 128
    %2848 = vxpose.xlu0.b32.cont [2/16] %v2212, 128
    %2849 = vxpose.xlu0.b32.cont [3/16] %v2213, 128
    %2850 = vxpose.xlu0.b32.cont [4/16] %v2214, 128
    %2851 = vxpose.xlu0.b32.cont [5/16] %v2215, 128
    %2852 = vxpose.xlu0.b32.cont [6/16] %v2216, 128
    %2853 = vxpose.xlu0.b32.cont [7/16] %v2217, 128
    %2854 = vxpose.xlu0.b32.cont [8/16] 0.0, 128
    %2855 = vxpose.xlu0.b32.cont [9/16] 0.0, 128
    %2856 = vxpose.xlu0.b32.cont [10/16] 0.0, 128
    %2857 = vxpose.xlu0.b32.cont [11/16] 0.0, 128
    %2858 = vxpose.xlu0.b32.cont [12/16] 0.0, 128
    %2859 = vxpose.xlu0.b32.cont [13/16] 0.0, 128
    %2860 = vxpose.xlu0.b32.cont [14/16] 0.0, 128
    %2861 = vxpose.xlu0.b32.cont [15/16] 0.0, 128
    %2862 = vxpose.xlu0.b32.end [16/16] 0.0, 128
    %v2863 = vpop.trf.xlu0
    %v2864 = vpop.trf.xlu0
    %v2865 = vpop.trf.xlu0
    %v2866 = vpop.trf.xlu0
    %v2867 = vpop.trf.xlu0
    %v2868 = vpop.trf.xlu0
    %v2869 = vpop.trf.xlu0
    %v2870 = vpop.trf.xlu0
    %v2871 = vpop.trf.xlu0
    %v2872 = vpop.trf.xlu0
    %v2873 = vpop.trf.xlu0
    %v2874 = vpop.trf.xlu0
    %v2875 = vpop.trf.xlu0
    %v2876 = vpop.trf.xlu0
    %v2877 = vpop.trf.xlu0
    %v2878 = vpop.trf.xlu0
    %2879 = vxpose.xlu0.b32.start [1/16] %v2218, 128
    %2880 = vxpose.xlu0.b32.cont [2/16] %v2219, 128
    %2881 = vxpose.xlu0.b32.cont [3/16] %v2220, 128
    %2882 = vxpose.xlu0.b32.cont [4/16] %v2221, 128
    %2883 = vxpose.xlu0.b32.cont [5/16] %v2222, 128
    %2884 = vxpose.xlu0.b32.cont [6/16] %v2223, 128
    %2885 = vxpose.xlu0.b32.cont [7/16] %v2224, 128
    %2886 = vxpose.xlu0.b32.cont [8/16] 0.0, 128
    %2887 = vxpose.xlu0.b32.cont [9/16] 0.0, 128
    %2888 = vxpose.xlu0.b32.cont [10/16] 0.0, 128
    %2889 = vxpose.xlu0.b32.cont [11/16] 0.0, 128
    %2890 = vxpose.xlu0.b32.cont [12/16] 0.0, 128
    %2891 = vxpose.xlu0.b32.cont [13/16] 0.0, 128
    %2892 = vxpose.xlu0.b32.cont [14/16] 0.0, 128
    %2893 = vxpose.xlu0.b32.cont [15/16] 0.0, 128
    %2894 = vxpose.xlu0.b32.end [16/16] 0.0, 128
    %v2895 = vpop.trf.xlu0
    %v2896 = vpop.trf.xlu0
    %v2897 = vpop.trf.xlu0
    %v2898 = vpop.trf.xlu0
    %v2899 = vpop.trf.xlu0
    %v2900 = vpop.trf.xlu0
    %v2901 = vpop.trf.xlu0
    %v2902 = vpop.trf.xlu0
    %v2903 = vpop.trf.xlu0
    %v2904 = vpop.trf.xlu0
    %v2905 = vpop.trf.xlu0
    %v2906 = vpop.trf.xlu0
    %v2907 = vpop.trf.xlu0
    %v2908 = vpop.trf.xlu0
    %v2909 = vpop.trf.xlu0
    %v2910 = vpop.trf.xlu0
    %2911 = vxpose.xlu0.b32.start [1/16] %v2225, 128
    %2912 = vxpose.xlu0.b32.cont [2/16] %v2226, 128
    %2913 = vxpose.xlu0.b32.cont [3/16] %v2227, 128
    %2914 = vxpose.xlu0.b32.cont [4/16] %v2228, 128
    %2915 = vxpose.xlu0.b32.cont [5/16] %v2229, 128
    %2916 = vxpose.xlu0.b32.cont [6/16] %v2230, 128
    %2917 = vxpose.xlu0.b32.cont [7/16] %v2231, 128
    %2918 = vxpose.xlu0.b32.cont [8/16] 0.0, 128
    %2919 = vxpose.xlu0.b32.cont [9/16] 0.0, 128
    %2920 = vxpose.xlu0.b32.cont [10/16] 0.0, 128
    %2921 = vxpose.xlu0.b32.cont [11/16] 0.0, 128
    %2922 = vxpose.xlu0.b32.cont [12/16] 0.0, 128
    %2923 = vxpose.xlu0.b32.cont [13/16] 0.0, 128
    %2924 = vxpose.xlu0.b32.cont [14/16] 0.0, 128
    %2925 = vxpose.xlu0.b32.cont [15/16] 0.0, 128
    %2926 = vxpose.xlu0.b32.end [16/16] 0.0, 128
    %v2927 = vpop.trf.xlu0
    %v2928 = vpop.trf.xlu0
    %v2929 = vpop.trf.xlu0
    %v2930 = vpop.trf.xlu0
    %v2931 = vpop.trf.xlu0
    %v2932 = vpop.trf.xlu0
    %v2933 = vpop.trf.xlu0
    %v2934 = vpop.trf.xlu0
    %v2935 = vpop.trf.xlu0
    %v2936 = vpop.trf.xlu0
    %v2937 = vpop.trf.xlu0
    %v2938 = vpop.trf.xlu0
    %v2939 = vpop.trf.xlu0
    %v2940 = vpop.trf.xlu0
    %v2941 = vpop.trf.xlu0
    %v2942 = vpop.trf.xlu0
    %2943 = vxpose.xlu0.b32.start [1/16] %v2232, 128
    %2944 = vxpose.xlu0.b32.cont [2/16] %v2233, 128
    %2945 = vxpose.xlu0.b32.cont [3/16] %v2234, 128
    %2946 = vxpose.xlu0.b32.cont [4/16] %v2235, 128
    %2947 = vxpose.xlu0.b32.cont [5/16] %v2236, 128
    %2948 = vxpose.xlu0.b32.cont [6/16] %v2237, 128
    %2949 = vxpose.xlu0.b32.cont [7/16] %v2238, 128
    %2950 = vxpose.xlu0.b32.cont [8/16] 0.0, 128
    %2951 = vxpose.xlu0.b32.cont [9/16] 0.0, 128
    %2952 = vxpose.xlu0.b32.cont [10/16] 0.0, 128
    %2953 = vxpose.xlu0.b32.cont [11/16] 0.0, 128
    %2954 = vxpose.xlu0.b32.cont [12/16] 0.0, 128
    %2955 = vxpose.xlu0.b32.cont [13/16] 0.0, 128
    %2956 = vxpose.xlu0.b32.cont [14/16] 0.0, 128
    %2957 = vxpose.xlu0.b32.cont [15/16] 0.0, 128
    %2958 = vxpose.xlu0.b32.end [16/16] 0.0, 128
    %v2959 = vpop.trf.xlu0
    %v2960 = vpop.trf.xlu0
    %v2961 = vpop.trf.xlu0
    %v2962 = vpop.trf.xlu0
    %v2963 = vpop.trf.xlu0
    %v2964 = vpop.trf.xlu0
    %v2965 = vpop.trf.xlu0
    %v2966 = vpop.trf.xlu0
    %v2967 = vpop.trf.xlu0
    %v2968 = vpop.trf.xlu0
    %v2969 = vpop.trf.xlu0
    %v2970 = vpop.trf.xlu0
    %v2971 = vpop.trf.xlu0
    %v2972 = vpop.trf.xlu0
    %v2973 = vpop.trf.xlu0
    %v2974 = vpop.trf.xlu0
    %v2975 = vperm.slane %v2735, 0
    %v2976 = vperm.slane %v2767, 0
    %v2977 = vperm.slane %v2799, 0
    %v2978 = vperm.slane %v2831, 0
    %v2979 = vperm.slane %v2863, 0
    %v2980 = vperm.slane %v2895, 0
    %v2981 = vperm.slane %v2927, 0
    %v2982 = vperm.slane %v2959, 0
    %v2983 = vmul.f32 %v2479, %v2975
    %v2984 = vmul.f32 %v2511, %v2976
    %v2985 = vmul.f32 %v2543, %v2977
    %v2986 = vmul.f32 %v2575, %v2978
    %v2987 = vmul.f32 %v2607, %v2979
    %v2988 = vmul.f32 %v2639, %v2980
    %v2989 = vmul.f32 %v2671, %v2981
    %v2990 = vmul.f32 %v2703, %v2982
    %v2991 = vperm.slane %v2735, 1
    %v2992 = vperm.slane %v2767, 1
    %v2993 = vperm.slane %v2799, 1
    %v2994 = vperm.slane %v2831, 1
    %v2995 = vperm.slane %v2863, 1
    %v2996 = vperm.slane %v2895, 1
    %v2997 = vperm.slane %v2927, 1
    %v2998 = vperm.slane %v2959, 1
    %v2999 = vmul.f32 %v2479, %v2991
    %v3000 = vmul.f32 %v2511, %v2992
    %v3001 = vmul.f32 %v2543, %v2993
    %v3002 = vmul.f32 %v2575, %v2994
    %v3003 = vmul.f32 %v2607, %v2995
    %v3004 = vmul.f32 %v2639, %v2996
    %v3005 = vmul.f32 %v2671, %v2997
    %v3006 = vmul.f32 %v2703, %v2998
    %v3007 = vperm.slane %v2735, 2
    %v3008 = vperm.slane %v2767, 2
    %v3009 = vperm.slane %v2799, 2
    %v3010 = vperm.slane %v2831, 2
    %v3011 = vperm.slane %v2863, 2
    %v3012 = vperm.slane %v2895, 2
    %v3013 = vperm.slane %v2927, 2
    %v3014 = vperm.slane %v2959, 2
    %v3015 = vmul.f32 %v2479, %v3007
    %v3016 = vmul.f32 %v2511, %v3008
    %v3017 = vmul.f32 %v2543, %v3009
    %v3018 = vmul.f32 %v2575, %v3010
    %v3019 = vmul.f32 %v2607, %v3011
    %v3020 = vmul.f32 %v2639, %v3012
    %v3021 = vmul.f32 %v2671, %v3013
    %v3022 = vmul.f32 %v2703, %v3014
    %v3023 = vperm.slane %v2735, 3
    %v3024 = vperm.slane %v2767, 3
    %v3025 = vperm.slane %v2799, 3
    %v3026 = vperm.slane %v2831, 3
    %v3027 = vperm.slane %v2863, 3
    %v3028 = vperm.slane %v2895, 3
    %v3029 = vperm.slane %v2927, 3
    %v3030 = vperm.slane %v2959, 3
    %v3031 = vmul.f32 %v2479, %v3023
    %v3032 = vmul.f32 %v2511, %v3024
    %v3033 = vmul.f32 %v2543, %v3025
    %v3034 = vmul.f32 %v2575, %v3026
    %v3035 = vmul.f32 %v2607, %v3027
    %v3036 = vmul.f32 %v2639, %v3028
    %v3037 = vmul.f32 %v2671, %v3029
    %v3038 = vmul.f32 %v2703, %v3030
    %v3039 = vpack.c.bf16 %v2983, %v2983
    %v3040 = vpack.c.bf16 %v2999, %v2999
    %v3041 = vpack.c.bf16 %v3015, %v3015
    %v3042 = vpack.c.bf16 %v3031, %v3031
    %v3043 = vpack.c.bf16 %v2984, %v2984
    %v3044 = vpack.c.bf16 %v3000, %v3000
    %v3045 = vpack.c.bf16 %v3016, %v3016
    %v3046 = vpack.c.bf16 %v3032, %v3032
    %v3047 = vpack.c.bf16 %v2985, %v2985
    %v3048 = vpack.c.bf16 %v3001, %v3001
    %v3049 = vpack.c.bf16 %v3017, %v3017
    %v3050 = vpack.c.bf16 %v3033, %v3033
    %v3051 = vpack.c.bf16 %v2986, %v2986
    %v3052 = vpack.c.bf16 %v3002, %v3002
    %v3053 = vpack.c.bf16 %v3018, %v3018
    %v3054 = vpack.c.bf16 %v3034, %v3034
    %v3055 = vpack.c.bf16 %v2987, %v2987
    %v3056 = vpack.c.bf16 %v3003, %v3003
    %v3057 = vpack.c.bf16 %v3019, %v3019
    %v3058 = vpack.c.bf16 %v3035, %v3035
    %v3059 = vpack.c.bf16 %v2988, %v2988
    %v3060 = vpack.c.bf16 %v3004, %v3004
    %v3061 = vpack.c.bf16 %v3020, %v3020
    %v3062 = vpack.c.bf16 %v3036, %v3036
    %v3063 = vpack.c.bf16 %v2989, %v2989
    %v3064 = vpack.c.bf16 %v3005, %v3005
    %v3065 = vpack.c.bf16 %v3021, %v3021
    %v3066 = vpack.c.bf16 %v3037, %v3037
    %v3067 = vpack.c.bf16 %v2990, %v2990
    %v3068 = vpack.c.bf16 %v3006, %v3006
    %v3069 = vpack.c.bf16 %v3022, %v3022
    %v3070 = vpack.c.bf16 %v3038, %v3038
    %v3075 = vunpack.c.l.b16 %v3039
    %v3076 = vunpack.c.l.b16 %v3040
    %v3077 = vunpack.c.l.b16 %v3041
    %v3078 = vunpack.c.l.b16 %v3042
    %v3079 = vpack.c.b16 %v3076, %v3075
    %v3080 = vpack.c.b16 %v3078, %v3077
    %vm3081 = vcmask 400384
    %v3083 = vsel %vm3081, %v3079, 0
    %v3086 = vsel %vm3081, %v3080, 0
    %vm3088 = vcmask 1040384
    %v3089 = vsel 0, 4294967295, 65535
    %v3090 = vsel %vm3088, %v3089, 0
    %v3092 = vand.u32 %v146, %v3090
    %3094 = vmatpush.bf16.msra.mxu0 0
    %3095 = vmatpush.bf16.msra.mxu0 0
    %3096 = vmatpush.bf16.msra.mxu0 0
    %3097 = vmatpush.bf16.msra.mxu0 0
    %3098 = vmatpush.bf16.msra.mxu0 %v3092
    %3099 = vmatpush.bf16.msra.mxu0 %v145
    %3100 = vmatpush.bf16.msra.mxu0 %v144
    %3101 = vmatpush.bf16.msra.mxu0 %v143
    %3102 = vmatmul.bf16.gmra.mxu0 %v3083
    %v3103 = vpop.f32.mrf.mxu0
    %v3104 = vadd.f32 0.0, %v3103
    %v3105 = vpop.f32.mrf.mxu0
    %v3106 = vadd.f32 0.0, %v3105
    %3107 = vmatmul.bf16.gmra.mxu0 %v3086
    %v3108 = vpop.f32.mrf.mxu0
    %v3109 = vadd.f32 0.0, %v3108
    %v3110 = vpop.f32.mrf.mxu0
    %v3111 = vadd.f32 0.0, %v3110
    %3112 = vdwg.mxu0
    %v3117 = vunpack.c.l.b16 %v3043
    %v3118 = vunpack.c.l.b16 %v3044
    %v3119 = vunpack.c.l.b16 %v3045
    %v3120 = vunpack.c.l.b16 %v3046
    %v3121 = vpack.c.b16 %v3118, %v3117
    %v3122 = vpack.c.b16 %v3120, %v3119
    %v3124 = vsel %vm3081, %v3121, 0
    %v3127 = vsel %vm3081, %v3122, 0
    %v3130 = vand.u32 %v244, %v3090
    %3132 = vmatpush.bf16.msra.mxu0 0
    %3133 = vmatpush.bf16.msra.mxu0 0
    %3134 = vmatpush.bf16.msra.mxu0 0
    %3135 = vmatpush.bf16.msra.mxu0 0
    %3136 = vmatpush.bf16.msra.mxu0 %v3130
    %3137 = vmatpush.bf16.msra.mxu0 %v243
    %3138 = vmatpush.bf16.msra.mxu0 %v242
    %3139 = vmatpush.bf16.msra.mxu0 %v241
    %3140 = vmatmul.bf16.gmra.mxu0 %v3124
    %v3141 = vpop.f32.mrf.mxu0
    %v3142 = vadd.f32 0.0, %v3141
    %v3143 = vpop.f32.mrf.mxu0
    %v3144 = vadd.f32 0.0, %v3143
    %3145 = vmatmul.bf16.gmra.mxu0 %v3127
    %v3146 = vpop.f32.mrf.mxu0
    %v3147 = vadd.f32 0.0, %v3146
    %v3148 = vpop.f32.mrf.mxu0
    %v3149 = vadd.f32 0.0, %v3148
    %3150 = vdwg.mxu0
    %v3155 = vunpack.c.l.b16 %v3047
    %v3156 = vunpack.c.l.b16 %v3048
    %v3157 = vunpack.c.l.b16 %v3049
    %v3158 = vunpack.c.l.b16 %v3050
    %v3159 = vpack.c.b16 %v3156, %v3155
    %v3160 = vpack.c.b16 %v3158, %v3157
    %v3162 = vsel %vm3081, %v3159, 0
    %v3165 = vsel %vm3081, %v3160, 0
    %v3168 = vand.u32 %v294, %v3090
    %3170 = vmatpush.bf16.msra.mxu0 0
    %3171 = vmatpush.bf16.msra.mxu0 0
    %3172 = vmatpush.bf16.msra.mxu0 0
    %3173 = vmatpush.bf16.msra.mxu0 0
    %3174 = vmatpush.bf16.msra.mxu0 %v3168
    %3175 = vmatpush.bf16.msra.mxu0 %v293
    %3176 = vmatpush.bf16.msra.mxu0 %v292
    %3177 = vmatpush.bf16.msra.mxu0 %v291
    %3178 = vmatmul.bf16.gmra.mxu0 %v3162
    %v3179 = vpop.f32.mrf.mxu0
    %v3180 = vadd.f32 0.0, %v3179
    %v3181 = vpop.f32.mrf.mxu0
    %v3182 = vadd.f32 0.0, %v3181
    %3183 = vmatmul.bf16.gmra.mxu0 %v3165
    %v3184 = vpop.f32.mrf.mxu0
    %v3185 = vadd.f32 0.0, %v3184
    %v3186 = vpop.f32.mrf.mxu0
    %v3187 = vadd.f32 0.0, %v3186
    %3188 = vdwg.mxu0
    %v3193 = vunpack.c.l.b16 %v3051
    %v3194 = vunpack.c.l.b16 %v3052
    %v3195 = vunpack.c.l.b16 %v3053
    %v3196 = vunpack.c.l.b16 %v3054
    %v3197 = vpack.c.b16 %v3194, %v3193
    %v3198 = vpack.c.b16 %v3196, %v3195
    %v3200 = vsel %vm3081, %v3197, 0
    %v3203 = vsel %vm3081, %v3198, 0
    %v3206 = vand.u32 %v344, %v3090
    %3208 = vmatpush.bf16.msra.mxu0 0
    %3209 = vmatpush.bf16.msra.mxu0 0
    %3210 = vmatpush.bf16.msra.mxu0 0
    %3211 = vmatpush.bf16.msra.mxu0 0
    %3212 = vmatpush.bf16.msra.mxu0 %v3206
    %3213 = vmatpush.bf16.msra.mxu0 %v343
    %3214 = vmatpush.bf16.msra.mxu0 %v342
    %3215 = vmatpush.bf16.msra.mxu0 %v341
    %3216 = vmatmul.bf16.gmra.mxu0 %v3200
    %v3217 = vpop.f32.mrf.mxu0
    %v3218 = vadd.f32 0.0, %v3217
    %v3219 = vpop.f32.mrf.mxu0
    %v3220 = vadd.f32 0.0, %v3219
    %3221 = vmatmul.bf16.gmra.mxu0 %v3203
    %v3222 = vpop.f32.mrf.mxu0
    %v3223 = vadd.f32 0.0, %v3222
    %v3224 = vpop.f32.mrf.mxu0
    %v3225 = vadd.f32 0.0, %v3224
    %3226 = vdwg.mxu0
    %v3231 = vunpack.c.l.b16 %v3055
    %v3232 = vunpack.c.l.b16 %v3056
    %v3233 = vunpack.c.l.b16 %v3057
    %v3234 = vunpack.c.l.b16 %v3058
    %v3235 = vpack.c.b16 %v3232, %v3231
    %v3236 = vpack.c.b16 %v3234, %v3233
    %v3238 = vsel %vm3081, %v3235, 0
    %v3241 = vsel %vm3081, %v3236, 0
    %v3244 = vand.u32 %v394, %v3090
    %3246 = vmatpush.bf16.msra.mxu0 0
    %3247 = vmatpush.bf16.msra.mxu0 0
    %3248 = vmatpush.bf16.msra.mxu0 0
    %3249 = vmatpush.bf16.msra.mxu0 0
    %3250 = vmatpush.bf16.msra.mxu0 %v3244
    %3251 = vmatpush.bf16.msra.mxu0 %v393
    %3252 = vmatpush.bf16.msra.mxu0 %v392
    %3253 = vmatpush.bf16.msra.mxu0 %v391
    %3254 = vmatmul.bf16.gmra.mxu0 %v3238
    %v3255 = vpop.f32.mrf.mxu0
    %v3256 = vadd.f32 0.0, %v3255
    %v3257 = vpop.f32.mrf.mxu0
    %v3258 = vadd.f32 0.0, %v3257
    %3259 = vmatmul.bf16.gmra.mxu0 %v3241
    %v3260 = vpop.f32.mrf.mxu0
    %v3261 = vadd.f32 0.0, %v3260
    %v3262 = vpop.f32.mrf.mxu0
    %v3263 = vadd.f32 0.0, %v3262
    %3264 = vdwg.mxu0
    %v3269 = vunpack.c.l.b16 %v3059
    %v3270 = vunpack.c.l.b16 %v3060
    %v3271 = vunpack.c.l.b16 %v3061
    %v3272 = vunpack.c.l.b16 %v3062
    %v3273 = vpack.c.b16 %v3270, %v3269
    %v3274 = vpack.c.b16 %v3272, %v3271
    %v3276 = vsel %vm3081, %v3273, 0
    %v3279 = vsel %vm3081, %v3274, 0
    %v3282 = vand.u32 %v444, %v3090
    %3284 = vmatpush.bf16.msra.mxu0 0
    %3285 = vmatpush.bf16.msra.mxu0 0
    %3286 = vmatpush.bf16.msra.mxu0 0
    %3287 = vmatpush.bf16.msra.mxu0 0
    %3288 = vmatpush.bf16.msra.mxu0 %v3282
    %3289 = vmatpush.bf16.msra.mxu0 %v443
    %3290 = vmatpush.bf16.msra.mxu0 %v442
    %3291 = vmatpush.bf16.msra.mxu0 %v441
    %3292 = vmatmul.bf16.gmra.mxu0 %v3276
    %v3293 = vpop.f32.mrf.mxu0
    %v3294 = vadd.f32 0.0, %v3293
    %v3295 = vpop.f32.mrf.mxu0
    %v3296 = vadd.f32 0.0, %v3295
    %3297 = vmatmul.bf16.gmra.mxu0 %v3279
    %v3298 = vpop.f32.mrf.mxu0
    %v3299 = vadd.f32 0.0, %v3298
    %v3300 = vpop.f32.mrf.mxu0
    %v3301 = vadd.f32 0.0, %v3300
    %3302 = vdwg.mxu0
    %v3307 = vunpack.c.l.b16 %v3063
    %v3308 = vunpack.c.l.b16 %v3064
    %v3309 = vunpack.c.l.b16 %v3065
    %v3310 = vunpack.c.l.b16 %v3066
    %v3311 = vpack.c.b16 %v3308, %v3307
    %v3312 = vpack.c.b16 %v3310, %v3309
    %v3314 = vsel %vm3081, %v3311, 0
    %v3317 = vsel %vm3081, %v3312, 0
    %v3320 = vand.u32 %v494, %v3090
    %3322 = vmatpush.bf16.msra.mxu0 0
    %3323 = vmatpush.bf16.msra.mxu0 0
    %3324 = vmatpush.bf16.msra.mxu0 0
    %3325 = vmatpush.bf16.msra.mxu0 0
    %3326 = vmatpush.bf16.msra.mxu0 %v3320
    %3327 = vmatpush.bf16.msra.mxu0 %v493
    %3328 = vmatpush.bf16.msra.mxu0 %v492
    %3329 = vmatpush.bf16.msra.mxu0 %v491
    %3330 = vmatmul.bf16.gmra.mxu0 %v3314
    %v3331 = vpop.f32.mrf.mxu0
    %v3332 = vadd.f32 0.0, %v3331
    %v3333 = vpop.f32.mrf.mxu0
    %v3334 = vadd.f32 0.0, %v3333
    %3335 = vmatmul.bf16.gmra.mxu0 %v3317
    %v3336 = vpop.f32.mrf.mxu0
    %v3337 = vadd.f32 0.0, %v3336
    %v3338 = vpop.f32.mrf.mxu0
    %v3339 = vadd.f32 0.0, %v3338
    %3340 = vdwg.mxu0
    %v3345 = vunpack.c.l.b16 %v3067
    %v3346 = vunpack.c.l.b16 %v3068
    %v3347 = vunpack.c.l.b16 %v3069
    %v3348 = vunpack.c.l.b16 %v3070
    %v3349 = vpack.c.b16 %v3346, %v3345
    %v3350 = vpack.c.b16 %v3348, %v3347
    %v3352 = vsel %vm3081, %v3349, 0
    %v3355 = vsel %vm3081, %v3350, 0
    %v3358 = vand.u32 %v544, %v3090
    %3360 = vmatpush.bf16.msra.mxu0 0
    %3361 = vmatpush.bf16.msra.mxu0 0
    %3362 = vmatpush.bf16.msra.mxu0 0
    %3363 = vmatpush.bf16.msra.mxu0 0
    %3364 = vmatpush.bf16.msra.mxu0 %v3358
    %3365 = vmatpush.bf16.msra.mxu0 %v543
    %3366 = vmatpush.bf16.msra.mxu0 %v542
    %3367 = vmatpush.bf16.msra.mxu0 %v541
    %3368 = vmatmul.bf16.gmra.mxu0 %v3352
    %v3369 = vpop.f32.mrf.mxu0
    %v3370 = vadd.f32 0.0, %v3369
    %v3371 = vpop.f32.mrf.mxu0
    %v3372 = vadd.f32 0.0, %v3371
    %3373 = vmatmul.bf16.gmra.mxu0 %v3355
    %v3374 = vpop.f32.mrf.mxu0
    %v3375 = vadd.f32 0.0, %v3374
    %v3376 = vpop.f32.mrf.mxu0
    %v3377 = vadd.f32 0.0, %v3376
    %3378 = vdwg.mxu0
    %v3379 = vmax.f32 %v3104, %v3106
    %v3380 = vmax.f32 %v3142, %v3144
    %v3381 = vmax.f32 %v3180, %v3182
    %v3382 = vmax.f32 %v3218, %v3220
    %v3383 = vmax.f32 %v3256, %v3258
    %v3384 = vmax.f32 %v3294, %v3296
    %v3385 = vmax.f32 %v3332, %v3334
    %v3386 = vmax.f32 %v3370, %v3372
    %v3387 = vmax.f32 %v3379, %v3109
    %v3388 = vmax.f32 %v3380, %v3147
    %v3389 = vmax.f32 %v3381, %v3185
    %v3390 = vmax.f32 %v3382, %v3223
    %v3391 = vmax.f32 %v3383, %v3261
    %v3392 = vmax.f32 %v3384, %v3299
    %v3393 = vmax.f32 %v3385, %v3337
    %v3394 = vmax.f32 %v3386, %v3375
    %v3395 = vmax.f32 %v3387, %v3111
    %v3396 = vmax.f32 %v3388, %v3149
    %v3397 = vmax.f32 %v3389, %v3187
    %v3398 = vmax.f32 %v3390, %v3225
    %v3399 = vmax.f32 %v3391, %v3263
    %v3400 = vmax.f32 %v3392, %v3301
    %v3401 = vmax.f32 %v3393, %v3339
    %v3402 = vmax.f32 %v3394, %v3377
    %v3403 = vpack.c.bf16 %v3395, %v3395
    %v3404 = vpack.c.bf16 %v3396, %v3396
    %v3405 = vpack.c.bf16 %v3397, %v3397
    %v3406 = vpack.c.bf16 %v3398, %v3398
    %v3407 = vpack.c.bf16 %v3399, %v3399
    %v3408 = vpack.c.bf16 %v3400, %v3400
    %v3409 = vpack.c.bf16 %v3401, %v3401
    %v3410 = vpack.c.bf16 %v3402, %v3402
    %v3419 = vunpack.c.l.b16 %v3403
    %v3420 = vunpack.c.l.b16 %v3404
    %v3421 = vunpack.c.l.b16 %v3405
    %v3422 = vunpack.c.l.b16 %v3406
    %v3423 = vunpack.c.l.b16 %v3407
    %v3424 = vunpack.c.l.b16 %v3408
    %v3425 = vunpack.c.l.b16 %v3409
    %v3426 = vunpack.c.l.b16 %v3410
    %v3427 = vpack.c.b16 %v3419, %v3419
    %v3428 = vpack.c.b16 %v3420, %v3420
    %v3429 = vpack.c.b16 %v3421, %v3421
    %v3430 = vpack.c.b16 %v3422, %v3422
    %v3431 = vpack.c.b16 %v3423, %v3423
    %v3432 = vpack.c.b16 %v3424, %v3424
    %v3433 = vpack.c.b16 %v3425, %v3425
    %v3434 = vpack.c.b16 %v3426, %v3426
    %v3435 = vunpack.c.l.b16 %v3427
    %v3436 = vunpack.c.l.b16 %v3428
    %v3437 = vunpack.c.l.b16 %v3429
    %v3438 = vunpack.c.l.b16 %v3430
    %v3439 = vunpack.c.l.b16 %v3431
    %v3440 = vunpack.c.l.b16 %v3432
    %v3441 = vunpack.c.l.b16 %v3433
    %v3442 = vunpack.c.l.b16 %v3434
    %v3443 = vrot.slane %v3436, 7
    %vm3444 = vcmask 1041409
    %v3445 = vsel %vm3444, %v3443, %v3435
    %v3446 = vrot.slane %v3437, 6
    %vm3447 = vcmask 1042434
    %v3448 = vsel %vm3447, %v3446, %v3445
    %v3449 = vrot.slane %v3438, 5
    %vm3450 = vcmask 1043459
    %v3451 = vsel %vm3450, %v3449, %v3448
    %v3452 = vrot.slane %v3439, 4
    %vm3453 = vcmask 1044484
    %v3454 = vsel %vm3453, %v3452, %v3451
    %v3455 = vrot.slane %v3440, 3
    %vm3456 = vcmask 1045509
    %v3457 = vsel %vm3456, %v3455, %v3454
    %v3458 = vrot.slane %v3441, 2
    %vm3459 = vcmask 1046534
    %v3460 = vsel %vm3459, %v3458, %v3457
    %v3461 = vrot.slane %v3442, 1
    %vm3462 = vcmask 1047559
    %v3463 = vsel %vm3462, %v3461, %v3460
    %v3464 = vpack.c.b16 %v3463, %v3463
    %v3466 = vrot.slane %v3435, 1
    %v3467 = vsel %vm3444, %v3436, %v3466
    %v3468 = vrot.slane %v3437, 7
    %v3469 = vsel %vm3447, %v3468, %v3467
    %v3470 = vrot.slane %v3438, 6
    %v3471 = vsel %vm3450, %v3470, %v3469
    %v3472 = vrot.slane %v3439, 5
    %v3473 = vsel %vm3453, %v3472, %v3471
    %v3474 = vrot.slane %v3440, 4
    %v3475 = vsel %vm3456, %v3474, %v3473
    %v3476 = vrot.slane %v3441, 3
    %v3477 = vsel %vm3459, %v3476, %v3475
    %v3478 = vrot.slane %v3442, 2
    %v3479 = vsel %vm3462, %v3478, %v3477
    %v3480 = vpack.c.b16 %v3479, %v3479
    %v3482 = vrot.slane %v3435, 2
    %v3483 = vrot.slane %v3436, 1
    %v3484 = vsel %vm3444, %v3483, %v3482
    %v3485 = vsel %vm3447, %v3437, %v3484
    %v3486 = vrot.slane %v3438, 7
    %v3487 = vsel %vm3450, %v3486, %v3485
    %v3488 = vrot.slane %v3439, 6
    %v3489 = vsel %vm3453, %v3488, %v3487
    %v3490 = vrot.slane %v3440, 5
    %v3491 = vsel %vm3456, %v3490, %v3489
    %v3492 = vrot.slane %v3441, 4
    %v3493 = vsel %vm3459, %v3492, %v3491
    %v3494 = vrot.slane %v3442, 3
    %v3495 = vsel %vm3462, %v3494, %v3493
    %v3496 = vpack.c.b16 %v3495, %v3495
    %v3498 = vrot.slane %v3435, 3
    %v3499 = vrot.slane %v3436, 2
    %v3500 = vsel %vm3444, %v3499, %v3498
    %v3501 = vrot.slane %v3437, 1
    %v3502 = vsel %vm3447, %v3501, %v3500
    %v3503 = vsel %vm3450, %v3438, %v3502
    %v3504 = vrot.slane %v3439, 7
    %v3505 = vsel %vm3453, %v3504, %v3503
    %v3506 = vrot.slane %v3440, 6
    %v3507 = vsel %vm3456, %v3506, %v3505
    %v3508 = vrot.slane %v3441, 5
    %v3509 = vsel %vm3459, %v3508, %v3507
    %v3510 = vrot.slane %v3442, 4
    %v3511 = vsel %vm3462, %v3510, %v3509
    %v3512 = vpack.c.b16 %v3511, %v3511
    %v3514 = vrot.slane %v3435, 4
    %v3515 = vrot.slane %v3436, 3
    %v3516 = vsel %vm3444, %v3515, %v3514
    %v3517 = vrot.slane %v3437, 2
    %v3518 = vsel %vm3447, %v3517, %v3516
    %v3519 = vrot.slane %v3438, 1
    %v3520 = vsel %vm3450, %v3519, %v3518
    %v3521 = vsel %vm3453, %v3439, %v3520
    %v3522 = vrot.slane %v3440, 7
    %v3523 = vsel %vm3456, %v3522, %v3521
    %v3524 = vrot.slane %v3441, 6
    %v3525 = vsel %vm3459, %v3524, %v3523
    %v3526 = vrot.slane %v3442, 5
    %v3527 = vsel %vm3462, %v3526, %v3525
    %v3528 = vpack.c.b16 %v3527, %v3527
    %v3530 = vrot.slane %v3435, 5
    %v3531 = vrot.slane %v3436, 4
    %v3532 = vsel %vm3444, %v3531, %v3530
    %v3533 = vrot.slane %v3437, 3
    %v3534 = vsel %vm3447, %v3533, %v3532
    %v3535 = vrot.slane %v3438, 2
    %v3536 = vsel %vm3450, %v3535, %v3534
    %v3537 = vrot.slane %v3439, 1
    %v3538 = vsel %vm3453, %v3537, %v3536
    %v3539 = vsel %vm3456, %v3440, %v3538
    %v3540 = vrot.slane %v3441, 7
    %v3541 = vsel %vm3459, %v3540, %v3539
    %v3542 = vrot.slane %v3442, 6
    %v3543 = vsel %vm3462, %v3542, %v3541
    %v3544 = vpack.c.b16 %v3543, %v3543
    %v3546 = vrot.slane %v3435, 6
    %v3547 = vrot.slane %v3436, 5
    %v3548 = vsel %vm3444, %v3547, %v3546
    %v3549 = vrot.slane %v3437, 4
    %v3550 = vsel %vm3447, %v3549, %v3548
    %v3551 = vrot.slane %v3438, 3
    %v3552 = vsel %vm3450, %v3551, %v3550
    %v3553 = vrot.slane %v3439, 2
    %v3554 = vsel %vm3453, %v3553, %v3552
    %v3555 = vrot.slane %v3440, 1
    %v3556 = vsel %vm3456, %v3555, %v3554
    %v3557 = vsel %vm3459, %v3441, %v3556
    %v3558 = vrot.slane %v3442, 7
    %v3559 = vsel %vm3462, %v3558, %v3557
    %v3560 = vpack.c.b16 %v3559, %v3559
    %v3562 = vrot.slane %v3435, 7
    %v3563 = vrot.slane %v3436, 6
    %v3564 = vsel %vm3444, %v3563, %v3562
    %v3565 = vrot.slane %v3437, 5
    %v3566 = vsel %vm3447, %v3565, %v3564
    %v3567 = vrot.slane %v3438, 4
    %v3568 = vsel %vm3450, %v3567, %v3566
    %v3569 = vrot.slane %v3439, 3
    %v3570 = vsel %vm3453, %v3569, %v3568
    %v3571 = vrot.slane %v3440, 2
    %v3572 = vsel %vm3456, %v3571, %v3570
    %v3573 = vrot.slane %v3441, 1
    %v3574 = vsel %vm3459, %v3573, %v3572
    %v3575 = vsel %vm3462, %v3442, %v3574
    %v3576 = vpack.c.b16 %v3575, %v3575
    %v3578 = vld [vmem:[%s5] sm:$0xf]
    %v3579 = vld [vmem:[%s5 + $0x4] sm:$0xf]
    %v3580 = vld [vmem:[%s5 + $0x8] sm:$0xf]
    %v3581 = vld [vmem:[%s5 + $0xc] sm:$0xf]
    %v3582 = vld [vmem:[%s5 + $0x10] sm:$0xf]
    %v3583 = vld [vmem:[%s5 + $0x14] sm:$0xf]
    %v3584 = vld [vmem:[%s5 + $0x18] sm:$0xf]
    %v3585 = vld [vmem:[%s5 + $0x1c] sm:$0xf]
    %v3586 = vld [vmem:[%s5 + $0x20] sm:$0xf]
    %v3587 = vld [vmem:[%s5 + $0x24] sm:$0xf]
    %v3588 = vld [vmem:[%s5 + $0x28] sm:$0xf]
    %v3589 = vld [vmem:[%s5 + $0x2c] sm:$0xf]
    %v3590 = vld [vmem:[%s5 + $0x30] sm:$0xf]
    %v3591 = vld [vmem:[%s5 + $0x34] sm:$0xf]
    %v3592 = vld [vmem:[%s5 + $0x38] sm:$0xf]
    %v3593 = vld [vmem:[%s5 + $0x3c] sm:$0xf]
    %v3594 = vld [vmem:[%s5 + $0x40] sm:$0xf]
    %v3595 = vld [vmem:[%s5 + $0x44] sm:$0xf]
    %v3596 = vld [vmem:[%s5 + $0x48] sm:$0xf]
    %v3597 = vld [vmem:[%s5 + $0x4c] sm:$0xf]
    %v3598 = vld [vmem:[%s5 + $0x50] sm:$0xf]
    %v3599 = vld [vmem:[%s5 + $0x54] sm:$0xf]
    %v3600 = vld [vmem:[%s5 + $0x58] sm:$0xf]
    %v3601 = vld [vmem:[%s5 + $0x5c] sm:$0xf]
    %v3602 = vld [vmem:[%s5 + $0x60] sm:$0xf]
    %v3603 = vld [vmem:[%s5 + $0x64] sm:$0xf]
    %v3604 = vld [vmem:[%s5 + $0x68] sm:$0xf]
    %v3605 = vld [vmem:[%s5 + $0x6c] sm:$0xf]
    %v3606 = vld [vmem:[%s5 + $0x70] sm:$0xf]
    %v3607 = vld [vmem:[%s5 + $0x74] sm:$0xf]
    %v3608 = vld [vmem:[%s5 + $0x78] sm:$0xf]
    %v3609 = vld [vmem:[%s5 + $0x7c] sm:$0xf]
    %v3610 = vld [vmem:[%s5 + $0x80] sm:$0xf]
    %v3611 = vld [vmem:[%s5 + $0x84] sm:$0xf]
    %v3612 = vld [vmem:[%s5 + $0x88] sm:$0xf]
    %v3613 = vld [vmem:[%s5 + $0x8c] sm:$0xf]
    %v3614 = vld [vmem:[%s5 + $0x90] sm:$0xf]
    %v3615 = vld [vmem:[%s5 + $0x94] sm:$0xf]
    %v3616 = vld [vmem:[%s5 + $0x98] sm:$0xf]
    %v3617 = vld [vmem:[%s5 + $0x9c] sm:$0xf]
    %v3618 = vld [vmem:[%s5 + $0xa0] sm:$0xf]
    %v3619 = vld [vmem:[%s5 + $0xa4] sm:$0xf]
    %v3620 = vld [vmem:[%s5 + $0xa8] sm:$0xf]
    %v3621 = vld [vmem:[%s5 + $0xac] sm:$0xf]
    %v3622 = vld [vmem:[%s5 + $0xb0] sm:$0xf]
    %v3623 = vld [vmem:[%s5 + $0xb4] sm:$0xf]
    %v3624 = vld [vmem:[%s5 + $0xb8] sm:$0xf]
    %v3625 = vld [vmem:[%s5 + $0xbc] sm:$0xf]
    %v3626 = vld [vmem:[%s5 + $0xc0] sm:$0xf]
    %v3627 = vld [vmem:[%s5 + $0xc4] sm:$0xf]
    %v3628 = vld [vmem:[%s5 + $0xc8] sm:$0xf]
    %v3629 = vld [vmem:[%s5 + $0xcc] sm:$0xf]
    %v3630 = vld [vmem:[%s5 + $0xd0] sm:$0xf]
    %v3631 = vld [vmem:[%s5 + $0xd4] sm:$0xf]
    %v3632 = vld [vmem:[%s5 + $0xd8] sm:$0xf]
    %v3633 = vld [vmem:[%s5 + $0xdc] sm:$0xf]
    %v3634 = vld [vmem:[%s5 + $0xe0] sm:$0xf]
    %v3635 = vld [vmem:[%s5 + $0xe4] sm:$0xf]
    %v3636 = vld [vmem:[%s5 + $0xe8] sm:$0xf]
    %v3637 = vld [vmem:[%s5 + $0xec] sm:$0xf]
    %v3638 = vld [vmem:[%s5 + $0xf0] sm:$0xf]
    %v3639 = vld [vmem:[%s5 + $0xf4] sm:$0xf]
    %v3640 = vld [vmem:[%s5 + $0xf8] sm:$0xf]
    %v3641 = vld [vmem:[%s5 + $0xfc] sm:$0xf]
    %v3642 = vld [vmem:[%s5 + $0x100] sm:$0xf]
    %v3643 = vld [vmem:[%s5 + $0x104] sm:$0xf]
    %v3644 = vld [vmem:[%s5 + $0x108] sm:$0xf]
    %v3645 = vld [vmem:[%s5 + $0x10c] sm:$0xf]
    %v3646 = vld [vmem:[%s5 + $0x110] sm:$0xf]
    %v3647 = vld [vmem:[%s5 + $0x114] sm:$0xf]
    %v3648 = vld [vmem:[%s5 + $0x118] sm:$0xf]
    %v3649 = vld [vmem:[%s5 + $0x11c] sm:$0xf]
    %v3650 = vld [vmem:[%s5 + $0x120] sm:$0xf]
    %v3651 = vld [vmem:[%s5 + $0x124] sm:$0xf]
    %v3652 = vld [vmem:[%s5 + $0x128] sm:$0xf]
    %v3653 = vld [vmem:[%s5 + $0x12c] sm:$0xf]
    %v3654 = vld [vmem:[%s5 + $0x130] sm:$0xf]
    %v3655 = vld [vmem:[%s5 + $0x134] sm:$0xf]
    %v3656 = vld [vmem:[%s5 + $0x138] sm:$0xf]
    %v3657 = vld [vmem:[%s5 + $0x13c] sm:$0xf]
    %v3658 = vld [vmem:[%s5 + $0x140] sm:$0xf]
    %v3659 = vld [vmem:[%s5 + $0x144] sm:$0xf]
    %v3660 = vld [vmem:[%s5 + $0x148] sm:$0xf]
    %v3661 = vld [vmem:[%s5 + $0x14c] sm:$0xf]
    %v3662 = vld [vmem:[%s5 + $0x150] sm:$0xf]
    %v3663 = vld [vmem:[%s5 + $0x154] sm:$0xf]
    %v3664 = vld [vmem:[%s5 + $0x158] sm:$0xf]
    %v3665 = vld [vmem:[%s5 + $0x15c] sm:$0xf]
    %v3666 = vld [vmem:[%s5 + $0x160] sm:$0xf]
    %v3667 = vld [vmem:[%s5 + $0x164] sm:$0xf]
    %v3668 = vld [vmem:[%s5 + $0x168] sm:$0xf]
    %v3669 = vld [vmem:[%s5 + $0x16c] sm:$0xf]
    %v3670 = vld [vmem:[%s5 + $0x170] sm:$0xf]
    %v3671 = vld [vmem:[%s5 + $0x174] sm:$0xf]
    %v3672 = vld [vmem:[%s5 + $0x178] sm:$0xf]
    %v3673 = vld [vmem:[%s5 + $0x17c] sm:$0xf]
    %v3674 = vld [vmem:[%s5 + $0x180] sm:$0xf]
    %v3675 = vld [vmem:[%s5 + $0x184] sm:$0xf]
    %v3676 = vld [vmem:[%s5 + $0x188] sm:$0xf]
    %v3677 = vld [vmem:[%s5 + $0x18c] sm:$0xf]
    %v3678 = vld [vmem:[%s5 + $0x190] sm:$0xf]
    %v3679 = vld [vmem:[%s5 + $0x194] sm:$0xf]
    %v3680 = vld [vmem:[%s5 + $0x198] sm:$0xf]
    %v3681 = vld [vmem:[%s5 + $0x19c] sm:$0xf]
    %v3682 = vld [vmem:[%s5 + $0x1a0] sm:$0xf]
    %v3683 = vld [vmem:[%s5 + $0x1a4] sm:$0xf]
    %v3684 = vld [vmem:[%s5 + $0x1a8] sm:$0xf]
    %v3685 = vld [vmem:[%s5 + $0x1ac] sm:$0xf]
    %v3686 = vld [vmem:[%s5 + $0x1b0] sm:$0xf]
    %v3687 = vld [vmem:[%s5 + $0x1b4] sm:$0xf]
    %v3688 = vld [vmem:[%s5 + $0x1b8] sm:$0xf]
    %v3689 = vld [vmem:[%s5 + $0x1bc] sm:$0xf]
    %v3690 = vld [vmem:[%s5 + $0x1c0] sm:$0xf]
    %v3691 = vld [vmem:[%s5 + $0x1c4] sm:$0xf]
    %v3692 = vld [vmem:[%s5 + $0x1c8] sm:$0xf]
    %v3693 = vld [vmem:[%s5 + $0x1cc] sm:$0xf]
    %v3694 = vld [vmem:[%s5 + $0x1d0] sm:$0xf]
    %v3695 = vld [vmem:[%s5 + $0x1d4] sm:$0xf]
    %v3696 = vld [vmem:[%s5 + $0x1d8] sm:$0xf]
    %v3697 = vld [vmem:[%s5 + $0x1dc] sm:$0xf]
    %v3698 = vld [vmem:[%s5 + $0x1e0] sm:$0xf]
    %v3699 = vld [vmem:[%s5 + $0x1e4] sm:$0xf]
    %v3700 = vld [vmem:[%s5 + $0x1e8] sm:$0xf]
    %v3701 = vld [vmem:[%s5 + $0x1ec] sm:$0xf]
    %v3702 = vld [vmem:[%s5 + $0x1f0] sm:$0xf]
    %v3703 = vld [vmem:[%s5 + $0x1f4] sm:$0xf]
    %v3704 = vld [vmem:[%s5 + $0x1f8] sm:$0xf]
    %v3705 = vld [vmem:[%s5 + $0x1fc] sm:$0xf]
    %v3834 = vunpack.c.l.b16 %v3578
    %v3835 = vunpack.c.l.b16 %v3579
    %v3836 = vunpack.c.l.b16 %v3580
    %v3837 = vunpack.c.l.b16 %v3581
    %v3838 = vunpack.c.l.b16 %v3582
    %v3839 = vunpack.c.l.b16 %v3583
    %v3840 = vunpack.c.l.b16 %v3584
    %v3841 = vunpack.c.l.b16 %v3585
    %v3842 = vunpack.c.l.b16 %v3586
    %v3843 = vunpack.c.l.b16 %v3587
    %v3844 = vunpack.c.l.b16 %v3588
    %v3845 = vunpack.c.l.b16 %v3589
    %v3846 = vunpack.c.l.b16 %v3590
    %v3847 = vunpack.c.l.b16 %v3591
    %v3848 = vunpack.c.l.b16 %v3592
    %v3849 = vunpack.c.l.b16 %v3593
    %v3850 = vunpack.c.l.b16 %v3594
    %v3851 = vunpack.c.l.b16 %v3595
    %v3852 = vunpack.c.l.b16 %v3596
    %v3853 = vunpack.c.l.b16 %v3597
    %v3854 = vunpack.c.l.b16 %v3598
    %v3855 = vunpack.c.l.b16 %v3599
    %v3856 = vunpack.c.l.b16 %v3600
    %v3857 = vunpack.c.l.b16 %v3601
    %v3858 = vunpack.c.l.b16 %v3602
    %v3859 = vunpack.c.l.b16 %v3603
    %v3860 = vunpack.c.l.b16 %v3604
    %v3861 = vunpack.c.l.b16 %v3605
    %v3862 = vunpack.c.l.b16 %v3606
    %v3863 = vunpack.c.l.b16 %v3607
    %v3864 = vunpack.c.l.b16 %v3608
    %v3865 = vunpack.c.l.b16 %v3609
    %v3866 = vunpack.c.l.b16 %v3610
    %v3867 = vunpack.c.l.b16 %v3611
    %v3868 = vunpack.c.l.b16 %v3612
    %v3869 = vunpack.c.l.b16 %v3613
    %v3870 = vunpack.c.l.b16 %v3614
    %v3871 = vunpack.c.l.b16 %v3615
    %v3872 = vunpack.c.l.b16 %v3616
    %v3873 = vunpack.c.l.b16 %v3617
    %v3874 = vunpack.c.l.b16 %v3618
    %v3875 = vunpack.c.l.b16 %v3619
    %v3876 = vunpack.c.l.b16 %v3620
    %v3877 = vunpack.c.l.b16 %v3621
    %v3878 = vunpack.c.l.b16 %v3622
    %v3879 = vunpack.c.l.b16 %v3623
    %v3880 = vunpack.c.l.b16 %v3624
    %v3881 = vunpack.c.l.b16 %v3625
    %v3882 = vunpack.c.l.b16 %v3626
    %v3883 = vunpack.c.l.b16 %v3627
    %v3884 = vunpack.c.l.b16 %v3628
    %v3885 = vunpack.c.l.b16 %v3629
    %v3886 = vunpack.c.l.b16 %v3630
    %v3887 = vunpack.c.l.b16 %v3631
    %v3888 = vunpack.c.l.b16 %v3632
    %v3889 = vunpack.c.l.b16 %v3633
    %v3890 = vunpack.c.l.b16 %v3634
    %v3891 = vunpack.c.l.b16 %v3635
    %v3892 = vunpack.c.l.b16 %v3636
    %v3893 = vunpack.c.l.b16 %v3637
    %v3894 = vunpack.c.l.b16 %v3638
    %v3895 = vunpack.c.l.b16 %v3639
    %v3896 = vunpack.c.l.b16 %v3640
    %v3897 = vunpack.c.l.b16 %v3641
    %v3898 = vunpack.c.l.b16 %v3642
    %v3899 = vunpack.c.l.b16 %v3643
    %v3900 = vunpack.c.l.b16 %v3644
    %v3901 = vunpack.c.l.b16 %v3645
    %v3902 = vunpack.c.l.b16 %v3646
    %v3903 = vunpack.c.l.b16 %v3647
    %v3904 = vunpack.c.l.b16 %v3648
    %v3905 = vunpack.c.l.b16 %v3649
    %v3906 = vunpack.c.l.b16 %v3650
    %v3907 = vunpack.c.l.b16 %v3651
    %v3908 = vunpack.c.l.b16 %v3652
    %v3909 = vunpack.c.l.b16 %v3653
    %v3910 = vunpack.c.l.b16 %v3654
    %v3911 = vunpack.c.l.b16 %v3655
    %v3912 = vunpack.c.l.b16 %v3656
    %v3913 = vunpack.c.l.b16 %v3657
    %v3914 = vunpack.c.l.b16 %v3658
    %v3915 = vunpack.c.l.b16 %v3659
    %v3916 = vunpack.c.l.b16 %v3660
    %v3917 = vunpack.c.l.b16 %v3661
    %v3918 = vunpack.c.l.b16 %v3662
    %v3919 = vunpack.c.l.b16 %v3663
    %v3920 = vunpack.c.l.b16 %v3664
    %v3921 = vunpack.c.l.b16 %v3665
    %v3922 = vunpack.c.l.b16 %v3666
    %v3923 = vunpack.c.l.b16 %v3667
    %v3924 = vunpack.c.l.b16 %v3668
    %v3925 = vunpack.c.l.b16 %v3669
    %v3926 = vunpack.c.l.b16 %v3670
    %v3927 = vunpack.c.l.b16 %v3671
    %v3928 = vunpack.c.l.b16 %v3672
    %v3929 = vunpack.c.l.b16 %v3673
    %v3930 = vunpack.c.l.b16 %v3674
    %v3931 = vunpack.c.l.b16 %v3675
    %v3932 = vunpack.c.l.b16 %v3676
    %v3933 = vunpack.c.l.b16 %v3677
    %v3934 = vunpack.c.l.b16 %v3678
    %v3935 = vunpack.c.l.b16 %v3679
    %v3936 = vunpack.c.l.b16 %v3680
    %v3937 = vunpack.c.l.b16 %v3681
    %v3938 = vunpack.c.l.b16 %v3682
    %v3939 = vunpack.c.l.b16 %v3683
    %v3940 = vunpack.c.l.b16 %v3684
    %v3941 = vunpack.c.l.b16 %v3685
    %v3942 = vunpack.c.l.b16 %v3686
    %v3943 = vunpack.c.l.b16 %v3687
    %v3944 = vunpack.c.l.b16 %v3688
    %v3945 = vunpack.c.l.b16 %v3689
    %v3946 = vunpack.c.l.b16 %v3690
    %v3947 = vunpack.c.l.b16 %v3691
    %v3948 = vunpack.c.l.b16 %v3692
    %v3949 = vunpack.c.l.b16 %v3693
    %v3950 = vunpack.c.l.b16 %v3694
    %v3951 = vunpack.c.l.b16 %v3695
    %v3952 = vunpack.c.l.b16 %v3696
    %v3953 = vunpack.c.l.b16 %v3697
    %v3954 = vunpack.c.l.b16 %v3698
    %v3955 = vunpack.c.l.b16 %v3699
    %v3956 = vunpack.c.l.b16 %v3700
    %v3957 = vunpack.c.l.b16 %v3701
    %v3958 = vunpack.c.l.b16 %v3702
    %v3959 = vunpack.c.l.b16 %v3703
    %v3960 = vunpack.c.l.b16 %v3704
    %v3961 = vunpack.c.l.b16 %v3705
    %v3962 = vpack.c.b16 %v3835, %v3834
    %v3963 = vpack.c.b16 %v3837, %v3836
    %v3964 = vpack.c.b16 %v3839, %v3838
    %v3965 = vpack.c.b16 %v3841, %v3840
    %v3966 = vpack.c.b16 %v3843, %v3842
    %v3967 = vpack.c.b16 %v3845, %v3844
    %v3968 = vpack.c.b16 %v3847, %v3846
    %v3969 = vpack.c.b16 %v3849, %v3848
    %v3970 = vpack.c.b16 %v3851, %v3850
    %v3971 = vpack.c.b16 %v3853, %v3852
    %v3972 = vpack.c.b16 %v3855, %v3854
    %v3973 = vpack.c.b16 %v3857, %v3856
    %v3974 = vpack.c.b16 %v3859, %v3858
    %v3975 = vpack.c.b16 %v3861, %v3860
    %v3976 = vpack.c.b16 %v3863, %v3862
    %v3977 = vpack.c.b16 %v3865, %v3864
    %v3978 = vpack.c.b16 %v3867, %v3866
    %v3979 = vpack.c.b16 %v3869, %v3868
    %v3980 = vpack.c.b16 %v3871, %v3870
    %v3981 = vpack.c.b16 %v3873, %v3872
    %v3982 = vpack.c.b16 %v3875, %v3874
    %v3983 = vpack.c.b16 %v3877, %v3876
    %v3984 = vpack.c.b16 %v3879, %v3878
    %v3985 = vpack.c.b16 %v3881, %v3880
    %v3986 = vpack.c.b16 %v3883, %v3882
    %v3987 = vpack.c.b16 %v3885, %v3884
    %v3988 = vpack.c.b16 %v3887, %v3886
    %v3989 = vpack.c.b16 %v3889, %v3888
    %v3990 = vpack.c.b16 %v3891, %v3890
    %v3991 = vpack.c.b16 %v3893, %v3892
    %v3992 = vpack.c.b16 %v3895, %v3894
    %v3993 = vpack.c.b16 %v3897, %v3896
    %v3994 = vpack.c.b16 %v3899, %v3898
    %v3995 = vpack.c.b16 %v3901, %v3900
    %v3996 = vpack.c.b16 %v3903, %v3902
    %v3997 = vpack.c.b16 %v3905, %v3904
    %v3998 = vpack.c.b16 %v3907, %v3906
    %v3999 = vpack.c.b16 %v3909, %v3908
    %v4000 = vpack.c.b16 %v3911, %v3910
    %v4001 = vpack.c.b16 %v3913, %v3912
    %v4002 = vpack.c.b16 %v3915, %v3914
    %v4003 = vpack.c.b16 %v3917, %v3916
    %v4004 = vpack.c.b16 %v3919, %v3918
    %v4005 = vpack.c.b16 %v3921, %v3920
    %v4006 = vpack.c.b16 %v3923, %v3922
    %v4007 = vpack.c.b16 %v3925, %v3924
    %v4008 = vpack.c.b16 %v3927, %v3926
    %v4009 = vpack.c.b16 %v3929, %v3928
    %v4010 = vpack.c.b16 %v3931, %v3930
    %v4011 = vpack.c.b16 %v3933, %v3932
    %v4012 = vpack.c.b16 %v3935, %v3934
    %v4013 = vpack.c.b16 %v3937, %v3936
    %v4014 = vpack.c.b16 %v3939, %v3938
    %v4015 = vpack.c.b16 %v3941, %v3940
    %v4016 = vpack.c.b16 %v3943, %v3942
    %v4017 = vpack.c.b16 %v3945, %v3944
    %v4018 = vpack.c.b16 %v3947, %v3946
    %v4019 = vpack.c.b16 %v3949, %v3948
    %v4020 = vpack.c.b16 %v3951, %v3950
    %v4021 = vpack.c.b16 %v3953, %v3952
    %v4022 = vpack.c.b16 %v3955, %v3954
    %v4023 = vpack.c.b16 %v3957, %v3956
    %v4024 = vpack.c.b16 %v3959, %v3958
    %v4025 = vpack.c.b16 %v3961, %v3960
    %4090 = vmatpush.bf16.msra.mxu0 %v3969
    %4091 = vmatpush.bf16.msra.mxu0 %v3968
    %4092 = vmatpush.bf16.msra.mxu0 %v3967
    %4093 = vmatpush.bf16.msra.mxu0 %v3966
    %4094 = vmatpush.bf16.msra.mxu0 %v3965
    %4095 = vmatpush.bf16.msra.mxu0 %v3964
    %4096 = vmatpush.bf16.msra.mxu0 %v3963
    %4097 = vmatpush.bf16.msra.mxu0 %v3962
    %4098 = vmatmul.bf16.gmra.mxu0 %v3464
    %v4099 = vpop.f32.mrf.mxu0
    %v4100 = vadd.f32 0.0, %v4099
    %v4101 = vpop.f32.mrf.mxu0
    %4102 = vdwg.mxu0
    %4103 = vmatpush.bf16.msra.mxu0 %v3977
    %4104 = vmatpush.bf16.msra.mxu0 %v3976
    %4105 = vmatpush.bf16.msra.mxu0 %v3975
    %4106 = vmatpush.bf16.msra.mxu0 %v3974
    %4107 = vmatpush.bf16.msra.mxu0 %v3973
    %4108 = vmatpush.bf16.msra.mxu0 %v3972
    %4109 = vmatpush.bf16.msra.mxu0 %v3971
    %4110 = vmatpush.bf16.msra.mxu0 %v3970
    %4111 = vmatmul.bf16.gmra.mxu0 %v3480
    %v4112 = vpop.f32.mrf.mxu0
    %v4113 = vadd.f32 %v4100, %v4112
    %v4114 = vpop.f32.mrf.mxu0
    %4115 = vdwg.mxu0
    %4116 = vmatpush.bf16.msra.mxu0 %v3985
    %4117 = vmatpush.bf16.msra.mxu0 %v3984
    %4118 = vmatpush.bf16.msra.mxu0 %v3983
    %4119 = vmatpush.bf16.msra.mxu0 %v3982
    %4120 = vmatpush.bf16.msra.mxu0 %v3981
    %4121 = vmatpush.bf16.msra.mxu0 %v3980
    %4122 = vmatpush.bf16.msra.mxu0 %v3979
    %4123 = vmatpush.bf16.msra.mxu0 %v3978
    %4124 = vmatmul.bf16.gmra.mxu0 %v3496
    %v4125 = vpop.f32.mrf.mxu0
    %v4126 = vadd.f32 %v4113, %v4125
    %v4127 = vpop.f32.mrf.mxu0
    %4128 = vdwg.mxu0
    %4129 = vmatpush.bf16.msra.mxu0 %v3993
    %4130 = vmatpush.bf16.msra.mxu0 %v3992
    %4131 = vmatpush.bf16.msra.mxu0 %v3991
    %4132 = vmatpush.bf16.msra.mxu0 %v3990
    %4133 = vmatpush.bf16.msra.mxu0 %v3989
    %4134 = vmatpush.bf16.msra.mxu0 %v3988
    %4135 = vmatpush.bf16.msra.mxu0 %v3987
    %4136 = vmatpush.bf16.msra.mxu0 %v3986
    %4137 = vmatmul.bf16.gmra.mxu0 %v3512
    %v4138 = vpop.f32.mrf.mxu0
    %v4139 = vadd.f32 %v4126, %v4138
    %v4140 = vpop.f32.mrf.mxu0
    %4141 = vdwg.mxu0
    %4142 = vmatpush.bf16.msra.mxu0 %v4001
    %4143 = vmatpush.bf16.msra.mxu0 %v4000
    %4144 = vmatpush.bf16.msra.mxu0 %v3999
    %4145 = vmatpush.bf16.msra.mxu0 %v3998
    %4146 = vmatpush.bf16.msra.mxu0 %v3997
    %4147 = vmatpush.bf16.msra.mxu0 %v3996
    %4148 = vmatpush.bf16.msra.mxu0 %v3995
    %4149 = vmatpush.bf16.msra.mxu0 %v3994
    %4150 = vmatmul.bf16.gmra.mxu0 %v3528
    %v4151 = vpop.f32.mrf.mxu0
    %v4152 = vadd.f32 %v4139, %v4151
    %v4153 = vpop.f32.mrf.mxu0
    %4154 = vdwg.mxu0
    %4155 = vmatpush.bf16.msra.mxu0 %v4009
    %4156 = vmatpush.bf16.msra.mxu0 %v4008
    %4157 = vmatpush.bf16.msra.mxu0 %v4007
    %4158 = vmatpush.bf16.msra.mxu0 %v4006
    %4159 = vmatpush.bf16.msra.mxu0 %v4005
    %4160 = vmatpush.bf16.msra.mxu0 %v4004
    %4161 = vmatpush.bf16.msra.mxu0 %v4003
    %4162 = vmatpush.bf16.msra.mxu0 %v4002
    %4163 = vmatmul.bf16.gmra.mxu0 %v3544
    %v4164 = vpop.f32.mrf.mxu0
    %v4165 = vadd.f32 %v4152, %v4164
    %v4166 = vpop.f32.mrf.mxu0
    %4167 = vdwg.mxu0
    %4168 = vmatpush.bf16.msra.mxu0 %v4017
    %4169 = vmatpush.bf16.msra.mxu0 %v4016
    %4170 = vmatpush.bf16.msra.mxu0 %v4015
    %4171 = vmatpush.bf16.msra.mxu0 %v4014
    %4172 = vmatpush.bf16.msra.mxu0 %v4013
    %4173 = vmatpush.bf16.msra.mxu0 %v4012
    %4174 = vmatpush.bf16.msra.mxu0 %v4011
    %4175 = vmatpush.bf16.msra.mxu0 %v4010
    %4176 = vmatmul.bf16.gmra.mxu0 %v3560
    %v4177 = vpop.f32.mrf.mxu0
    %v4178 = vadd.f32 %v4165, %v4177
    %v4179 = vpop.f32.mrf.mxu0
    %4180 = vdwg.mxu0
    %4181 = vmatpush.bf16.msra.mxu0 %v4025
    %4182 = vmatpush.bf16.msra.mxu0 %v4024
    %4183 = vmatpush.bf16.msra.mxu0 %v4023
    %4184 = vmatpush.bf16.msra.mxu0 %v4022
    %4185 = vmatpush.bf16.msra.mxu0 %v4021
    %4186 = vmatpush.bf16.msra.mxu0 %v4020
    %4187 = vmatpush.bf16.msra.mxu0 %v4019
    %4188 = vmatpush.bf16.msra.mxu0 %v4018
    %4189 = vmatmul.bf16.gmra.mxu0 %v3576
    %v4190 = vpop.f32.mrf.mxu0
    %v4191 = vadd.f32 %v4178, %v4190
    %v4192 = vpop.f32.mrf.mxu0
    %4193 = vdwg.mxu0
    %v4194 = vpack.c.bf16 %v2183, %v2183
    %v4195 = vpack.c.bf16 %v2184, %v2184
    %v4196 = vpack.c.bf16 %v2185, %v2185
    %v4197 = vpack.c.bf16 %v2186, %v2186
    %v4198 = vpack.c.bf16 %v2187, %v2187
    %v4199 = vpack.c.bf16 %v2188, %v2188
    %v4200 = vpack.c.bf16 %v2189, %v2189
    %v4201 = vpack.c.bf16 %v2190, %v2190
    %v4202 = vpack.c.bf16 %v2191, %v2191
    %v4203 = vpack.c.bf16 %v2192, %v2192
    %v4204 = vpack.c.bf16 %v2193, %v2193
    %v4205 = vpack.c.bf16 %v2194, %v2194
    %v4206 = vpack.c.bf16 %v2195, %v2195
    %v4207 = vpack.c.bf16 %v2196, %v2196
    %v4208 = vpack.c.bf16 %v2197, %v2197
    %v4209 = vpack.c.bf16 %v2198, %v2198
    %v4210 = vpack.c.bf16 %v2199, %v2199
    %v4211 = vpack.c.bf16 %v2200, %v2200
    %v4212 = vpack.c.bf16 %v2201, %v2201
    %v4213 = vpack.c.bf16 %v2202, %v2202
    %v4214 = vpack.c.bf16 %v2203, %v2203
    %v4215 = vpack.c.bf16 %v2204, %v2204
    %v4216 = vpack.c.bf16 %v2205, %v2205
    %v4217 = vpack.c.bf16 %v2206, %v2206
    %v4218 = vpack.c.bf16 %v2207, %v2207
    %v4219 = vpack.c.bf16 %v2208, %v2208
    %v4220 = vpack.c.bf16 %v2209, %v2209
    %v4221 = vpack.c.bf16 %v2210, %v2210
    %v4222 = vpack.c.bf16 %v2211, %v2211
    %v4223 = vpack.c.bf16 %v2212, %v2212
    %v4224 = vpack.c.bf16 %v2213, %v2213
    %v4225 = vpack.c.bf16 %v2214, %v2214
    %v4226 = vpack.c.bf16 %v2215, %v2215
    %v4227 = vpack.c.bf16 %v2216, %v2216
    %v4228 = vpack.c.bf16 %v2217, %v2217
    %v4229 = vpack.c.bf16 %v2218, %v2218
    %v4230 = vpack.c.bf16 %v2219, %v2219
    %v4231 = vpack.c.bf16 %v2220, %v2220
    %v4232 = vpack.c.bf16 %v2221, %v2221
    %v4233 = vpack.c.bf16 %v2222, %v2222
    %v4234 = vpack.c.bf16 %v2223, %v2223
    %v4235 = vpack.c.bf16 %v2224, %v2224
    %v4236 = vpack.c.bf16 %v2225, %v2225
    %v4237 = vpack.c.bf16 %v2226, %v2226
    %v4238 = vpack.c.bf16 %v2227, %v2227
    %v4239 = vpack.c.bf16 %v2228, %v2228
    %v4240 = vpack.c.bf16 %v2229, %v2229
    %v4241 = vpack.c.bf16 %v2230, %v2230
    %v4242 = vpack.c.bf16 %v2231, %v2231
    %v4243 = vpack.c.bf16 %v2232, %v2232
    %v4244 = vpack.c.bf16 %v2233, %v2233
    %v4245 = vpack.c.bf16 %v2234, %v2234
    %v4246 = vpack.c.bf16 %v2235, %v2235
    %v4247 = vpack.c.bf16 %v2236, %v2236
    %v4248 = vpack.c.bf16 %v2237, %v2237
    %v4249 = vpack.c.bf16 %v2238, %v2238
    %4251 = vset.pattern.permute.xlu0 0
    %4252 = vperm.xlu0 %4251, %v4194
    %v4253 = vpop.permute.xlu0 %4252
    %v4256 = vunpack.c.l.s4 839922192
    %v4257 = vunpack.c.0.s8 %v4256
    %v4258 = vperm.slane %v4253, %v4257
    %4260 = vset.pattern.permute.xlu0 0
    %4261 = vperm.xlu0 %4260, %v4195
    %v4262 = vpop.permute.xlu0 %4261
    %v4265 = vunpack.c.l.s4 839922192
    %v4266 = vunpack.c.0.s8 %v4265
    %v4267 = vperm.slane %v4262, %v4266
    %4269 = vset.pattern.permute.xlu0 0
    %4270 = vperm.xlu0 %4269, %v4196
    %v4271 = vpop.permute.xlu0 %4270
    %v4274 = vunpack.c.l.s4 839922192
    %v4275 = vunpack.c.0.s8 %v4274
    %v4276 = vperm.slane %v4271, %v4275
    %4278 = vset.pattern.permute.xlu0 0
    %4279 = vperm.xlu0 %4278, %v4197
    %v4280 = vpop.permute.xlu0 %4279
    %v4283 = vunpack.c.l.s4 839922192
    %v4284 = vunpack.c.0.s8 %v4283
    %v4285 = vperm.slane %v4280, %v4284
    %4287 = vset.pattern.permute.xlu0 0
    %4288 = vperm.xlu0 %4287, %v4198
    %v4289 = vpop.permute.xlu0 %4288
    %v4292 = vunpack.c.l.s4 839922192
    %v4293 = vunpack.c.0.s8 %v4292
    %v4294 = vperm.slane %v4289, %v4293
    %4296 = vset.pattern.permute.xlu0 0
    %4297 = vperm.xlu0 %4296, %v4199
    %v4298 = vpop.permute.xlu0 %4297
    %v4301 = vunpack.c.l.s4 839922192
    %v4302 = vunpack.c.0.s8 %v4301
    %v4303 = vperm.slane %v4298, %v4302
    %4305 = vset.pattern.permute.xlu0 0
    %4306 = vperm.xlu0 %4305, %v4200
    %v4307 = vpop.permute.xlu0 %4306
    %v4310 = vunpack.c.l.s4 839922192
    %v4311 = vunpack.c.0.s8 %v4310
    %v4312 = vperm.slane %v4307, %v4311
    %4314 = vset.pattern.permute.xlu0 0
    %4315 = vperm.xlu0 %4314, %v4201
    %v4316 = vpop.permute.xlu0 %4315
    %v4319 = vunpack.c.l.s4 839922192
    %v4320 = vunpack.c.0.s8 %v4319
    %v4321 = vperm.slane %v4316, %v4320
    %4323 = vset.pattern.permute.xlu0 0
    %4324 = vperm.xlu0 %4323, %v4202
    %v4325 = vpop.permute.xlu0 %4324
    %v4328 = vunpack.c.l.s4 839922192
    %v4329 = vunpack.c.0.s8 %v4328
    %v4330 = vperm.slane %v4325, %v4329
    %4332 = vset.pattern.permute.xlu0 0
    %4333 = vperm.xlu0 %4332, %v4203
    %v4334 = vpop.permute.xlu0 %4333
    %v4337 = vunpack.c.l.s4 839922192
    %v4338 = vunpack.c.0.s8 %v4337
    %v4339 = vperm.slane %v4334, %v4338
    %4341 = vset.pattern.permute.xlu0 0
    %4342 = vperm.xlu0 %4341, %v4204
    %v4343 = vpop.permute.xlu0 %4342
    %v4346 = vunpack.c.l.s4 839922192
    %v4347 = vunpack.c.0.s8 %v4346
    %v4348 = vperm.slane %v4343, %v4347
    %4350 = vset.pattern.permute.xlu0 0
    %4351 = vperm.xlu0 %4350, %v4205
    %v4352 = vpop.permute.xlu0 %4351
    %v4355 = vunpack.c.l.s4 839922192
    %v4356 = vunpack.c.0.s8 %v4355
    %v4357 = vperm.slane %v4352, %v4356
    %4359 = vset.pattern.permute.xlu0 0
    %4360 = vperm.xlu0 %4359, %v4206
    %v4361 = vpop.permute.xlu0 %4360
    %v4364 = vunpack.c.l.s4 839922192
    %v4365 = vunpack.c.0.s8 %v4364
    %v4366 = vperm.slane %v4361, %v4365
    %4368 = vset.pattern.permute.xlu0 0
    %4369 = vperm.xlu0 %4368, %v4207
    %v4370 = vpop.permute.xlu0 %4369
    %v4373 = vunpack.c.l.s4 839922192
    %v4374 = vunpack.c.0.s8 %v4373
    %v4375 = vperm.slane %v4370, %v4374
    %4377 = vset.pattern.permute.xlu0 0
    %4378 = vperm.xlu0 %4377, %v4208
    %v4379 = vpop.permute.xlu0 %4378
    %v4382 = vunpack.c.l.s4 839922192
    %v4383 = vunpack.c.0.s8 %v4382
    %v4384 = vperm.slane %v4379, %v4383
    %4386 = vset.pattern.permute.xlu0 0
    %4387 = vperm.xlu0 %4386, %v4209
    %v4388 = vpop.permute.xlu0 %4387
    %v4391 = vunpack.c.l.s4 839922192
    %v4392 = vunpack.c.0.s8 %v4391
    %v4393 = vperm.slane %v4388, %v4392
    %4395 = vset.pattern.permute.xlu0 0
    %4396 = vperm.xlu0 %4395, %v4210
    %v4397 = vpop.permute.xlu0 %4396
    %v4400 = vunpack.c.l.s4 839922192
    %v4401 = vunpack.c.0.s8 %v4400
    %v4402 = vperm.slane %v4397, %v4401
    %4404 = vset.pattern.permute.xlu0 0
    %4405 = vperm.xlu0 %4404, %v4211
    %v4406 = vpop.permute.xlu0 %4405
    %v4409 = vunpack.c.l.s4 839922192
    %v4410 = vunpack.c.0.s8 %v4409
    %v4411 = vperm.slane %v4406, %v4410
    %4413 = vset.pattern.permute.xlu0 0
    %4414 = vperm.xlu0 %4413, %v4212
    %v4415 = vpop.permute.xlu0 %4414
    %v4418 = vunpack.c.l.s4 839922192
    %v4419 = vunpack.c.0.s8 %v4418
    %v4420 = vperm.slane %v4415, %v4419
    %4422 = vset.pattern.permute.xlu0 0
    %4423 = vperm.xlu0 %4422, %v4213
    %v4424 = vpop.permute.xlu0 %4423
    %v4427 = vunpack.c.l.s4 839922192
    %v4428 = vunpack.c.0.s8 %v4427
    %v4429 = vperm.slane %v4424, %v4428
    %4431 = vset.pattern.permute.xlu0 0
    %4432 = vperm.xlu0 %4431, %v4214
    %v4433 = vpop.permute.xlu0 %4432
    %v4436 = vunpack.c.l.s4 839922192
    %v4437 = vunpack.c.0.s8 %v4436
    %v4438 = vperm.slane %v4433, %v4437
    %4440 = vset.pattern.permute.xlu0 0
    %4441 = vperm.xlu0 %4440, %v4215
    %v4442 = vpop.permute.xlu0 %4441
    %v4445 = vunpack.c.l.s4 839922192
    %v4446 = vunpack.c.0.s8 %v4445
    %v4447 = vperm.slane %v4442, %v4446
    %4449 = vset.pattern.permute.xlu0 0
    %4450 = vperm.xlu0 %4449, %v4216
    %v4451 = vpop.permute.xlu0 %4450
    %v4454 = vunpack.c.l.s4 839922192
    %v4455 = vunpack.c.0.s8 %v4454
    %v4456 = vperm.slane %v4451, %v4455
    %4458 = vset.pattern.permute.xlu0 0
    %4459 = vperm.xlu0 %4458, %v4217
    %v4460 = vpop.permute.xlu0 %4459
    %v4463 = vunpack.c.l.s4 839922192
    %v4464 = vunpack.c.0.s8 %v4463
    %v4465 = vperm.slane %v4460, %v4464
    %4467 = vset.pattern.permute.xlu0 0
    %4468 = vperm.xlu0 %4467, %v4218
    %v4469 = vpop.permute.xlu0 %4468
    %v4472 = vunpack.c.l.s4 839922192
    %v4473 = vunpack.c.0.s8 %v4472
    %v4474 = vperm.slane %v4469, %v4473
    %4476 = vset.pattern.permute.xlu0 0
    %4477 = vperm.xlu0 %4476, %v4219
    %v4478 = vpop.permute.xlu0 %4477
    %v4481 = vunpack.c.l.s4 839922192
    %v4482 = vunpack.c.0.s8 %v4481
    %v4483 = vperm.slane %v4478, %v4482
    %4485 = vset.pattern.permute.xlu0 0
    %4486 = vperm.xlu0 %4485, %v4220
    %v4487 = vpop.permute.xlu0 %4486
    %v4490 = vunpack.c.l.s4 839922192
    %v4491 = vunpack.c.0.s8 %v4490
    %v4492 = vperm.slane %v4487, %v4491
    %4494 = vset.pattern.permute.xlu0 0
    %4495 = vperm.xlu0 %4494, %v4221
    %v4496 = vpop.permute.xlu0 %4495
    %v4499 = vunpack.c.l.s4 839922192
    %v4500 = vunpack.c.0.s8 %v4499
    %v4501 = vperm.slane %v4496, %v4500
    %4503 = vset.pattern.permute.xlu0 0
    %4504 = vperm.xlu0 %4503, %v4222
    %v4505 = vpop.permute.xlu0 %4504
    %v4508 = vunpack.c.l.s4 839922192
    %v4509 = vunpack.c.0.s8 %v4508
    %v4510 = vperm.slane %v4505, %v4509
    %4512 = vset.pattern.permute.xlu0 0
    %4513 = vperm.xlu0 %4512, %v4223
    %v4514 = vpop.permute.xlu0 %4513
    %v4517 = vunpack.c.l.s4 839922192
    %v4518 = vunpack.c.0.s8 %v4517
    %v4519 = vperm.slane %v4514, %v4518
    %4521 = vset.pattern.permute.xlu0 0
    %4522 = vperm.xlu0 %4521, %v4224
    %v4523 = vpop.permute.xlu0 %4522
    %v4526 = vunpack.c.l.s4 839922192
    %v4527 = vunpack.c.0.s8 %v4526
    %v4528 = vperm.slane %v4523, %v4527
    %4530 = vset.pattern.permute.xlu0 0
    %4531 = vperm.xlu0 %4530, %v4225
    %v4532 = vpop.permute.xlu0 %4531
    %v4535 = vunpack.c.l.s4 839922192
    %v4536 = vunpack.c.0.s8 %v4535
    %v4537 = vperm.slane %v4532, %v4536
    %4539 = vset.pattern.permute.xlu0 0
    %4540 = vperm.xlu0 %4539, %v4226
    %v4541 = vpop.permute.xlu0 %4540
    %v4544 = vunpack.c.l.s4 839922192
    %v4545 = vunpack.c.0.s8 %v4544
    %v4546 = vperm.slane %v4541, %v4545
    %4548 = vset.pattern.permute.xlu0 0
    %4549 = vperm.xlu0 %4548, %v4227
    %v4550 = vpop.permute.xlu0 %4549
    %v4553 = vunpack.c.l.s4 839922192
    %v4554 = vunpack.c.0.s8 %v4553
    %v4555 = vperm.slane %v4550, %v4554
    %4557 = vset.pattern.permute.xlu0 0
    %4558 = vperm.xlu0 %4557, %v4228
    %v4559 = vpop.permute.xlu0 %4558
    %v4562 = vunpack.c.l.s4 839922192
    %v4563 = vunpack.c.0.s8 %v4562
    %v4564 = vperm.slane %v4559, %v4563
    %4566 = vset.pattern.permute.xlu0 0
    %4567 = vperm.xlu0 %4566, %v4229
    %v4568 = vpop.permute.xlu0 %4567
    %v4571 = vunpack.c.l.s4 839922192
    %v4572 = vunpack.c.0.s8 %v4571
    %v4573 = vperm.slane %v4568, %v4572
    %4575 = vset.pattern.permute.xlu0 0
    %4576 = vperm.xlu0 %4575, %v4230
    %v4577 = vpop.permute.xlu0 %4576
    %v4580 = vunpack.c.l.s4 839922192
    %v4581 = vunpack.c.0.s8 %v4580
    %v4582 = vperm.slane %v4577, %v4581
    %4584 = vset.pattern.permute.xlu0 0
    %4585 = vperm.xlu0 %4584, %v4231
    %v4586 = vpop.permute.xlu0 %4585
    %v4589 = vunpack.c.l.s4 839922192
    %v4590 = vunpack.c.0.s8 %v4589
    %v4591 = vperm.slane %v4586, %v4590
    %4593 = vset.pattern.permute.xlu0 0
    %4594 = vperm.xlu0 %4593, %v4232
    %v4595 = vpop.permute.xlu0 %4594
    %v4598 = vunpack.c.l.s4 839922192
    %v4599 = vunpack.c.0.s8 %v4598
    %v4600 = vperm.slane %v4595, %v4599
    %4602 = vset.pattern.permute.xlu0 0
    %4603 = vperm.xlu0 %4602, %v4233
    %v4604 = vpop.permute.xlu0 %4603
    %v4607 = vunpack.c.l.s4 839922192
    %v4608 = vunpack.c.0.s8 %v4607
    %v4609 = vperm.slane %v4604, %v4608
    %4611 = vset.pattern.permute.xlu0 0
    %4612 = vperm.xlu0 %4611, %v4234
    %v4613 = vpop.permute.xlu0 %4612
    %v4616 = vunpack.c.l.s4 839922192
    %v4617 = vunpack.c.0.s8 %v4616
    %v4618 = vperm.slane %v4613, %v4617
    %4620 = vset.pattern.permute.xlu0 0
    %4621 = vperm.xlu0 %4620, %v4235
    %v4622 = vpop.permute.xlu0 %4621
    %v4625 = vunpack.c.l.s4 839922192
    %v4626 = vunpack.c.0.s8 %v4625
    %v4627 = vperm.slane %v4622, %v4626
    %4629 = vset.pattern.permute.xlu0 0
    %4630 = vperm.xlu0 %4629, %v4236
    %v4631 = vpop.permute.xlu0 %4630
    %v4634 = vunpack.c.l.s4 839922192
    %v4635 = vunpack.c.0.s8 %v4634
    %v4636 = vperm.slane %v4631, %v4635
    %4638 = vset.pattern.permute.xlu0 0
    %4639 = vperm.xlu0 %4638, %v4237
    %v4640 = vpop.permute.xlu0 %4639
    %v4643 = vunpack.c.l.s4 839922192
    %v4644 = vunpack.c.0.s8 %v4643
    %v4645 = vperm.slane %v4640, %v4644
    %4647 = vset.pattern.permute.xlu0 0
    %4648 = vperm.xlu0 %4647, %v4238
    %v4649 = vpop.permute.xlu0 %4648
    %v4652 = vunpack.c.l.s4 839922192
    %v4653 = vunpack.c.0.s8 %v4652
    %v4654 = vperm.slane %v4649, %v4653
    %4656 = vset.pattern.permute.xlu0 0
    %4657 = vperm.xlu0 %4656, %v4239
    %v4658 = vpop.permute.xlu0 %4657
    %v4661 = vunpack.c.l.s4 839922192
    %v4662 = vunpack.c.0.s8 %v4661
    %v4663 = vperm.slane %v4658, %v4662
    %4665 = vset.pattern.permute.xlu0 0
    %4666 = vperm.xlu0 %4665, %v4240
    %v4667 = vpop.permute.xlu0 %4666
    %v4670 = vunpack.c.l.s4 839922192
    %v4671 = vunpack.c.0.s8 %v4670
    %v4672 = vperm.slane %v4667, %v4671
    %4674 = vset.pattern.permute.xlu0 0
    %4675 = vperm.xlu0 %4674, %v4241
    %v4676 = vpop.permute.xlu0 %4675
    %v4679 = vunpack.c.l.s4 839922192
    %v4680 = vunpack.c.0.s8 %v4679
    %v4681 = vperm.slane %v4676, %v4680
    %4683 = vset.pattern.permute.xlu0 0
    %4684 = vperm.xlu0 %4683, %v4242
    %v4685 = vpop.permute.xlu0 %4684
    %v4688 = vunpack.c.l.s4 839922192
    %v4689 = vunpack.c.0.s8 %v4688
    %v4690 = vperm.slane %v4685, %v4689
    %4692 = vset.pattern.permute.xlu0 0
    %4693 = vperm.xlu0 %4692, %v4243
    %v4694 = vpop.permute.xlu0 %4693
    %v4697 = vunpack.c.l.s4 839922192
    %v4698 = vunpack.c.0.s8 %v4697
    %v4699 = vperm.slane %v4694, %v4698
    %4701 = vset.pattern.permute.xlu0 0
    %4702 = vperm.xlu0 %4701, %v4244
    %v4703 = vpop.permute.xlu0 %4702
    %v4706 = vunpack.c.l.s4 839922192
    %v4707 = vunpack.c.0.s8 %v4706
    %v4708 = vperm.slane %v4703, %v4707
    %4710 = vset.pattern.permute.xlu0 0
    %4711 = vperm.xlu0 %4710, %v4245
    %v4712 = vpop.permute.xlu0 %4711
    %v4715 = vunpack.c.l.s4 839922192
    %v4716 = vunpack.c.0.s8 %v4715
    %v4717 = vperm.slane %v4712, %v4716
    %4719 = vset.pattern.permute.xlu0 0
    %4720 = vperm.xlu0 %4719, %v4246
    %v4721 = vpop.permute.xlu0 %4720
    %v4724 = vunpack.c.l.s4 839922192
    %v4725 = vunpack.c.0.s8 %v4724
    %v4726 = vperm.slane %v4721, %v4725
    %4728 = vset.pattern.permute.xlu0 0
    %4729 = vperm.xlu0 %4728, %v4247
    %v4730 = vpop.permute.xlu0 %4729
    %v4733 = vunpack.c.l.s4 839922192
    %v4734 = vunpack.c.0.s8 %v4733
    %v4735 = vperm.slane %v4730, %v4734
    %4737 = vset.pattern.permute.xlu0 0
    %4738 = vperm.xlu0 %4737, %v4248
    %v4739 = vpop.permute.xlu0 %4738
    %v4742 = vunpack.c.l.s4 839922192
    %v4743 = vunpack.c.0.s8 %v4742
    %v4744 = vperm.slane %v4739, %v4743
    %4746 = vset.pattern.permute.xlu0 0
    %4747 = vperm.xlu0 %4746, %v4249
    %v4748 = vpop.permute.xlu0 %4747
    %v4751 = vunpack.c.l.s4 839922192
    %v4752 = vunpack.c.0.s8 %v4751
    %v4753 = vperm.slane %v4748, %v4752
    %v4754 = vunpack.c.l.bf16 %v41
    %v4755 = vunpack.c.l.bf16 %v42
    %v4756 = vunpack.c.l.bf16 %v43
    %v4757 = vunpack.c.l.bf16 %v44
    %v4758 = vunpack.c.l.bf16 %v45
    %v4759 = vunpack.c.l.bf16 %v46
    %v4760 = vunpack.c.l.bf16 %v47
    %v4761 = vunpack.c.l.bf16 %v48
    %v4762 = vunpack.c.l.bf16 %v49
    %v4763 = vunpack.c.l.bf16 %v50
    %v4764 = vunpack.c.l.bf16 %v51
    %v4765 = vunpack.c.l.bf16 %v52
    %v4766 = vunpack.c.l.bf16 %v53
    %v4767 = vunpack.c.l.bf16 %v54
    %v4768 = vunpack.c.l.bf16 %v55
    %v4769 = vunpack.c.l.bf16 %v56
    %v4770 = vunpack.c.l.bf16 %v57
    %v4771 = vunpack.c.l.bf16 %v58
    %v4772 = vunpack.c.l.bf16 %v59
    %v4773 = vunpack.c.l.bf16 %v60
    %v4774 = vunpack.c.l.bf16 %v61
    %v4775 = vunpack.c.l.bf16 %v62
    %v4776 = vunpack.c.l.bf16 %v63
    %v4777 = vunpack.c.l.bf16 %v64
    %v4778 = vunpack.c.l.bf16 %v65
    %v4779 = vunpack.c.l.bf16 %v66
    %v4780 = vunpack.c.l.bf16 %v67
    %v4781 = vunpack.c.l.bf16 %v68
    %v4782 = vunpack.c.l.bf16 %v69
    %v4783 = vunpack.c.l.bf16 %v70
    %v4784 = vunpack.c.l.bf16 %v71
    %v4785 = vunpack.c.l.bf16 %v72
    %v4786 = vunpack.c.l.bf16 %v73
    %v4787 = vunpack.c.l.bf16 %v74
    %v4788 = vunpack.c.l.bf16 %v75
    %v4789 = vunpack.c.l.bf16 %v76
    %v4790 = vunpack.c.l.bf16 %v77
    %v4791 = vunpack.c.l.bf16 %v78
    %v4792 = vunpack.c.l.bf16 %v79
    %v4793 = vunpack.c.l.bf16 %v80
    %v4794 = vunpack.c.l.bf16 %v81
    %v4795 = vunpack.c.l.bf16 %v82
    %v4796 = vunpack.c.l.bf16 %v83
    %v4797 = vunpack.c.l.bf16 %v84
    %v4798 = vunpack.c.l.bf16 %v85
    %v4799 = vunpack.c.l.bf16 %v86
    %v4800 = vunpack.c.l.bf16 %v87
    %v4801 = vunpack.c.l.bf16 %v88
    %v4802 = vunpack.c.l.bf16 %v89
    %v4803 = vunpack.c.l.bf16 %v90
    %v4804 = vunpack.c.l.bf16 %v91
    %v4805 = vunpack.c.l.bf16 %v92
    %v4806 = vunpack.c.l.bf16 %v93
    %v4807 = vunpack.c.l.bf16 %v94
    %v4808 = vunpack.c.l.bf16 %v95
    %v4809 = vunpack.c.l.bf16 %v96
    %v4810 = vunpack.c.l.bf16 %v4258
    %v4811 = vunpack.c.l.bf16 %v4267
    %v4812 = vunpack.c.l.bf16 %v4276
    %v4813 = vunpack.c.l.bf16 %v4285
    %v4814 = vunpack.c.l.bf16 %v4294
    %v4815 = vunpack.c.l.bf16 %v4303
    %v4816 = vunpack.c.l.bf16 %v4312
    %v4817 = vunpack.c.l.bf16 %v4321
    %v4818 = vunpack.c.l.bf16 %v4330
    %v4819 = vunpack.c.l.bf16 %v4339
    %v4820 = vunpack.c.l.bf16 %v4348
    %v4821 = vunpack.c.l.bf16 %v4357
    %v4822 = vunpack.c.l.bf16 %v4366
    %v4823 = vunpack.c.l.bf16 %v4375
    %v4824 = vunpack.c.l.bf16 %v4384
    %v4825 = vunpack.c.l.bf16 %v4393
    %v4826 = vunpack.c.l.bf16 %v4402
    %v4827 = vunpack.c.l.bf16 %v4411
    %v4828 = vunpack.c.l.bf16 %v4420
    %v4829 = vunpack.c.l.bf16 %v4429
    %v4830 = vunpack.c.l.bf16 %v4438
    %v4831 = vunpack.c.l.bf16 %v4447
    %v4832 = vunpack.c.l.bf16 %v4456
    %v4833 = vunpack.c.l.bf16 %v4465
    %v4834 = vunpack.c.l.bf16 %v4474
    %v4835 = vunpack.c.l.bf16 %v4483
    %v4836 = vunpack.c.l.bf16 %v4492
    %v4837 = vunpack.c.l.bf16 %v4501
    %v4838 = vunpack.c.l.bf16 %v4510
    %v4839 = vunpack.c.l.bf16 %v4519
    %v4840 = vunpack.c.l.bf16 %v4528
    %v4841 = vunpack.c.l.bf16 %v4537
    %v4842 = vunpack.c.l.bf16 %v4546
    %v4843 = vunpack.c.l.bf16 %v4555
    %v4844 = vunpack.c.l.bf16 %v4564
    %v4845 = vunpack.c.l.bf16 %v4573
    %v4846 = vunpack.c.l.bf16 %v4582
    %v4847 = vunpack.c.l.bf16 %v4591
    %v4848 = vunpack.c.l.bf16 %v4600
    %v4849 = vunpack.c.l.bf16 %v4609
    %v4850 = vunpack.c.l.bf16 %v4618
    %v4851 = vunpack.c.l.bf16 %v4627
    %v4852 = vunpack.c.l.bf16 %v4636
    %v4853 = vunpack.c.l.bf16 %v4645
    %v4854 = vunpack.c.l.bf16 %v4654
    %v4855 = vunpack.c.l.bf16 %v4663
    %v4856 = vunpack.c.l.bf16 %v4672
    %v4857 = vunpack.c.l.bf16 %v4681
    %v4858 = vunpack.c.l.bf16 %v4690
    %v4859 = vunpack.c.l.bf16 %v4699
    %v4860 = vunpack.c.l.bf16 %v4708
    %v4861 = vunpack.c.l.bf16 %v4717
    %v4862 = vunpack.c.l.bf16 %v4726
    %v4863 = vunpack.c.l.bf16 %v4735
    %v4864 = vunpack.c.l.bf16 %v4744
    %v4865 = vunpack.c.l.bf16 %v4753
    %v4866 = vmul.f32 %v4754, %v4810
    %v4867 = vmul.f32 %v4755, %v4811
    %v4868 = vmul.f32 %v4756, %v4812
    %v4869 = vmul.f32 %v4757, %v4813
    %v4870 = vmul.f32 %v4758, %v4814
    %v4871 = vmul.f32 %v4759, %v4815
    %v4872 = vmul.f32 %v4760, %v4816
    %v4873 = vmul.f32 %v4761, %v4817
    %v4874 = vmul.f32 %v4762, %v4818
    %v4875 = vmul.f32 %v4763, %v4819
    %v4876 = vmul.f32 %v4764, %v4820
    %v4877 = vmul.f32 %v4765, %v4821
    %v4878 = vmul.f32 %v4766, %v4822
    %v4879 = vmul.f32 %v4767, %v4823
    %v4880 = vmul.f32 %v4768, %v4824
    %v4881 = vmul.f32 %v4769, %v4825
    %v4882 = vmul.f32 %v4770, %v4826
    %v4883 = vmul.f32 %v4771, %v4827
    %v4884 = vmul.f32 %v4772, %v4828
    %v4885 = vmul.f32 %v4773, %v4829
    %v4886 = vmul.f32 %v4774, %v4830
    %v4887 = vmul.f32 %v4775, %v4831
    %v4888 = vmul.f32 %v4776, %v4832
    %v4889 = vmul.f32 %v4777, %v4833
    %v4890 = vmul.f32 %v4778, %v4834
    %v4891 = vmul.f32 %v4779, %v4835
    %v4892 = vmul.f32 %v4780, %v4836
    %v4893 = vmul.f32 %v4781, %v4837
    %v4894 = vmul.f32 %v4782, %v4838
    %v4895 = vmul.f32 %v4783, %v4839
    %v4896 = vmul.f32 %v4784, %v4840
    %v4897 = vmul.f32 %v4785, %v4841
    %v4898 = vmul.f32 %v4786, %v4842
    %v4899 = vmul.f32 %v4787, %v4843
    %v4900 = vmul.f32 %v4788, %v4844
    %v4901 = vmul.f32 %v4789, %v4845
    %v4902 = vmul.f32 %v4790, %v4846
    %v4903 = vmul.f32 %v4791, %v4847
    %v4904 = vmul.f32 %v4792, %v4848
    %v4905 = vmul.f32 %v4793, %v4849
    %v4906 = vmul.f32 %v4794, %v4850
    %v4907 = vmul.f32 %v4795, %v4851
    %v4908 = vmul.f32 %v4796, %v4852
    %v4909 = vmul.f32 %v4797, %v4853
    %v4910 = vmul.f32 %v4798, %v4854
    %v4911 = vmul.f32 %v4799, %v4855
    %v4912 = vmul.f32 %v4800, %v4856
    %v4913 = vmul.f32 %v4801, %v4857
    %v4914 = vmul.f32 %v4802, %v4858
    %v4915 = vmul.f32 %v4803, %v4859
    %v4916 = vmul.f32 %v4804, %v4860
    %v4917 = vmul.f32 %v4805, %v4861
    %v4918 = vmul.f32 %v4806, %v4862
    %v4919 = vmul.f32 %v4807, %v4863
    %v4920 = vmul.f32 %v4808, %v4864
    %v4921 = vmul.f32 %v4809, %v4865
    %v4922 = vpack.c.bf16 %v4867, %v4866
    %v4923 = vpack.c.bf16 %v4869, %v4868
    %v4924 = vpack.c.bf16 %v4871, %v4870
    %v4925 = vpack.c.bf16 %v4872, %v4872
    %v4926 = vpack.c.bf16 %v4874, %v4873
    %v4927 = vpack.c.bf16 %v4876, %v4875
    %v4928 = vpack.c.bf16 %v4878, %v4877
    %v4929 = vpack.c.bf16 %v4879, %v4879
    %v4930 = vpack.c.bf16 %v4881, %v4880
    %v4931 = vpack.c.bf16 %v4883, %v4882
    %v4932 = vpack.c.bf16 %v4885, %v4884
    %v4933 = vpack.c.bf16 %v4886, %v4886
    %v4934 = vpack.c.bf16 %v4888, %v4887
    %v4935 = vpack.c.bf16 %v4890, %v4889
    %v4936 = vpack.c.bf16 %v4892, %v4891
    %v4937 = vpack.c.bf16 %v4893, %v4893
    %v4938 = vpack.c.bf16 %v4895, %v4894
    %v4939 = vpack.c.bf16 %v4897, %v4896
    %v4940 = vpack.c.bf16 %v4899, %v4898
    %v4941 = vpack.c.bf16 %v4900, %v4900
    %v4942 = vpack.c.bf16 %v4902, %v4901
    %v4943 = vpack.c.bf16 %v4904, %v4903
    %v4944 = vpack.c.bf16 %v4906, %v4905
    %v4945 = vpack.c.bf16 %v4907, %v4907
    %v4946 = vpack.c.bf16 %v4909, %v4908
    %v4947 = vpack.c.bf16 %v4911, %v4910
    %v4948 = vpack.c.bf16 %v4913, %v4912
    %v4949 = vpack.c.bf16 %v4914, %v4914
    %v4950 = vpack.c.bf16 %v4916, %v4915
    %v4951 = vpack.c.bf16 %v4918, %v4917
    %v4952 = vpack.c.bf16 %v4920, %v4919
    %v4953 = vpack.c.bf16 %v4921, %v4921
    %v4954 = vunpack.c.l.bf16 %v4922
    %v4955 = vunpack.c.h.bf16 %v4922
    %v4956 = vunpack.c.l.bf16 %v4923
    %v4957 = vunpack.c.h.bf16 %v4923
    %v4958 = vunpack.c.l.bf16 %v4924
    %v4959 = vunpack.c.h.bf16 %v4924
    %v4960 = vunpack.c.l.bf16 %v4925
    %v4961 = vunpack.c.l.bf16 %v4926
    %v4962 = vunpack.c.h.bf16 %v4926
    %v4963 = vunpack.c.l.bf16 %v4927
    %v4964 = vunpack.c.h.bf16 %v4927
    %v4965 = vunpack.c.l.bf16 %v4928
    %v4966 = vunpack.c.h.bf16 %v4928
    %v4967 = vunpack.c.l.bf16 %v4929
    %v4968 = vunpack.c.l.bf16 %v4930
    %v4969 = vunpack.c.h.bf16 %v4930
    %v4970 = vunpack.c.l.bf16 %v4931
    %v4971 = vunpack.c.h.bf16 %v4931
    %v4972 = vunpack.c.l.bf16 %v4932
    %v4973 = vunpack.c.h.bf16 %v4932
    %v4974 = vunpack.c.l.bf16 %v4933
    %v4975 = vunpack.c.l.bf16 %v4934
    %v4976 = vunpack.c.h.bf16 %v4934
    %v4977 = vunpack.c.l.bf16 %v4935
    %v4978 = vunpack.c.h.bf16 %v4935
    %v4979 = vunpack.c.l.bf16 %v4936
    %v4980 = vunpack.c.h.bf16 %v4936
    %v4981 = vunpack.c.l.bf16 %v4937
    %v4982 = vunpack.c.l.bf16 %v4938
    %v4983 = vunpack.c.h.bf16 %v4938
    %v4984 = vunpack.c.l.bf16 %v4939
    %v4985 = vunpack.c.h.bf16 %v4939
    %v4986 = vunpack.c.l.bf16 %v4940
    %v4987 = vunpack.c.h.bf16 %v4940
    %v4988 = vunpack.c.l.bf16 %v4941
    %v4989 = vunpack.c.l.bf16 %v4942
    %v4990 = vunpack.c.h.bf16 %v4942
    %v4991 = vunpack.c.l.bf16 %v4943
    %v4992 = vunpack.c.h.bf16 %v4943
    %v4993 = vunpack.c.l.bf16 %v4944
    %v4994 = vunpack.c.h.bf16 %v4944
    %v4995 = vunpack.c.l.bf16 %v4945
    %v4996 = vunpack.c.l.bf16 %v4946
    %v4997 = vunpack.c.h.bf16 %v4946
    %v4998 = vunpack.c.l.bf16 %v4947
    %v4999 = vunpack.c.h.bf16 %v4947
    %v5000 = vunpack.c.l.bf16 %v4948
    %v5001 = vunpack.c.h.bf16 %v4948
    %v5002 = vunpack.c.l.bf16 %v4949
    %v5003 = vunpack.c.l.bf16 %v4950
    %v5004 = vunpack.c.h.bf16 %v4950
    %v5005 = vunpack.c.l.bf16 %v4951
    %v5006 = vunpack.c.h.bf16 %v4951
    %v5007 = vunpack.c.l.bf16 %v4952
    %v5008 = vunpack.c.h.bf16 %v4952
    %v5009 = vunpack.c.l.bf16 %v4953
    %v5010 = vmax.f32 %v4954, %v4955
    %v5011 = vmax.f32 %v5010, %v4956
    %v5012 = vmax.f32 %v5011, %v4957
    %v5013 = vmax.f32 %v5012, %v4958
    %v5014 = vmax.f32 %v5013, %v4959
    %v5015 = vsel %vm3088, %v4960, -inf
    %v5016 = vmax.f32 %v5014, %v5015
    %v5017 = vrot.slane %v5016, 4
    %v5018 = vmax.f32 %v5016, %v5017
    %v5019 = vrot.slane %v5018, 2
    %v5020 = vmax.f32 %v5018, %v5019
    %v5021 = vrot.slane %v5020, 1
    %v5022 = vmax.f32 %v5020, %v5021
    %v5023 = vmax.f32 %v4961, %v4962
    %v5024 = vmax.f32 %v5023, %v4963
    %v5025 = vmax.f32 %v5024, %v4964
    %v5026 = vmax.f32 %v5025, %v4965
    %v5027 = vmax.f32 %v5026, %v4966
    %v5028 = vsel %vm3088, %v4967, -inf
    %v5029 = vmax.f32 %v5027, %v5028
    %v5030 = vrot.slane %v5029, 4
    %v5031 = vmax.f32 %v5029, %v5030
    %v5032 = vrot.slane %v5031, 2
    %v5033 = vmax.f32 %v5031, %v5032
    %v5034 = vrot.slane %v5033, 1
    %v5035 = vmax.f32 %v5033, %v5034
    %v5036 = vmax.f32 %v4968, %v4969
    %v5037 = vmax.f32 %v5036, %v4970
    %v5038 = vmax.f32 %v5037, %v4971
    %v5039 = vmax.f32 %v5038, %v4972
    %v5040 = vmax.f32 %v5039, %v4973
    %v5041 = vsel %vm3088, %v4974, -inf
    %v5042 = vmax.f32 %v5040, %v5041
    %v5043 = vrot.slane %v5042, 4
    %v5044 = vmax.f32 %v5042, %v5043
    %v5045 = vrot.slane %v5044, 2
    %v5046 = vmax.f32 %v5044, %v5045
    %v5047 = vrot.slane %v5046, 1
    %v5048 = vmax.f32 %v5046, %v5047
    %v5049 = vmax.f32 %v4975, %v4976
    %v5050 = vmax.f32 %v5049, %v4977
    %v5051 = vmax.f32 %v5050, %v4978
    %v5052 = vmax.f32 %v5051, %v4979
    %v5053 = vmax.f32 %v5052, %v4980
    %v5054 = vsel %vm3088, %v4981, -inf
    %v5055 = vmax.f32 %v5053, %v5054
    %v5056 = vrot.slane %v5055, 4
    %v5057 = vmax.f32 %v5055, %v5056
    %v5058 = vrot.slane %v5057, 2
    %v5059 = vmax.f32 %v5057, %v5058
    %v5060 = vrot.slane %v5059, 1
    %v5061 = vmax.f32 %v5059, %v5060
    %v5062 = vmax.f32 %v4982, %v4983
    %v5063 = vmax.f32 %v5062, %v4984
    %v5064 = vmax.f32 %v5063, %v4985
    %v5065 = vmax.f32 %v5064, %v4986
    %v5066 = vmax.f32 %v5065, %v4987
    %v5067 = vsel %vm3088, %v4988, -inf
    %v5068 = vmax.f32 %v5066, %v5067
    %v5069 = vrot.slane %v5068, 4
    %v5070 = vmax.f32 %v5068, %v5069
    %v5071 = vrot.slane %v5070, 2
    %v5072 = vmax.f32 %v5070, %v5071
    %v5073 = vrot.slane %v5072, 1
    %v5074 = vmax.f32 %v5072, %v5073
    %v5075 = vmax.f32 %v4989, %v4990
    %v5076 = vmax.f32 %v5075, %v4991
    %v5077 = vmax.f32 %v5076, %v4992
    %v5078 = vmax.f32 %v5077, %v4993
    %v5079 = vmax.f32 %v5078, %v4994
    %v5080 = vsel %vm3088, %v4995, -inf
    %v5081 = vmax.f32 %v5079, %v5080
    %v5082 = vrot.slane %v5081, 4
    %v5083 = vmax.f32 %v5081, %v5082
    %v5084 = vrot.slane %v5083, 2
    %v5085 = vmax.f32 %v5083, %v5084
    %v5086 = vrot.slane %v5085, 1
    %v5087 = vmax.f32 %v5085, %v5086
    %v5088 = vmax.f32 %v4996, %v4997
    %v5089 = vmax.f32 %v5088, %v4998
    %v5090 = vmax.f32 %v5089, %v4999
    %v5091 = vmax.f32 %v5090, %v5000
    %v5092 = vmax.f32 %v5091, %v5001
    %v5093 = vsel %vm3088, %v5002, -inf
    %v5094 = vmax.f32 %v5092, %v5093
    %v5095 = vrot.slane %v5094, 4
    %v5096 = vmax.f32 %v5094, %v5095
    %v5097 = vrot.slane %v5096, 2
    %v5098 = vmax.f32 %v5096, %v5097
    %v5099 = vrot.slane %v5098, 1
    %v5100 = vmax.f32 %v5098, %v5099
    %v5101 = vmax.f32 %v5003, %v5004
    %v5102 = vmax.f32 %v5101, %v5005
    %v5103 = vmax.f32 %v5102, %v5006
    %v5104 = vmax.f32 %v5103, %v5007
    %v5105 = vmax.f32 %v5104, %v5008
    %v5106 = vsel %vm3088, %v5009, -inf
    %v5107 = vmax.f32 %v5105, %v5106
    %v5108 = vrot.slane %v5107, 4
    %v5109 = vmax.f32 %v5107, %v5108
    %v5110 = vrot.slane %v5109, 2
    %v5111 = vmax.f32 %v5109, %v5110
    %v5112 = vrot.slane %v5111, 1
    %v5113 = vmax.f32 %v5111, %v5112
    %v5114 = vpack.c.bf16 %v5022, %v5022
    %v5115 = vpack.c.bf16 %v5035, %v5035
    %v5116 = vpack.c.bf16 %v5048, %v5048
    %v5117 = vpack.c.bf16 %v5061, %v5061
    %v5118 = vpack.c.bf16 %v5074, %v5074
    %v5119 = vpack.c.bf16 %v5087, %v5087
    %v5120 = vpack.c.bf16 %v5100, %v5100
    %v5121 = vpack.c.bf16 %v5113, %v5113
    %5122 = vset.pattern.permute.xlu0 1
    %5123 = vperm.xlu0 %5122, %v4194
    %v5124 = vpop.permute.xlu0 %5123
    %v5127 = vunpack.c.l.s4 839922192
    %v5128 = vunpack.c.0.s8 %v5127
    %v5129 = vperm.slane %v5124, %v5128
    %5130 = vset.pattern.permute.xlu0 1
    %5131 = vperm.xlu0 %5130, %v4195
    %v5132 = vpop.permute.xlu0 %5131
    %v5135 = vunpack.c.l.s4 839922192
    %v5136 = vunpack.c.0.s8 %v5135
    %v5137 = vperm.slane %v5132, %v5136
    %5138 = vset.pattern.permute.xlu0 1
    %5139 = vperm.xlu0 %5138, %v4196
    %v5140 = vpop.permute.xlu0 %5139
    %v5143 = vunpack.c.l.s4 839922192
    %v5144 = vunpack.c.0.s8 %v5143
    %v5145 = vperm.slane %v5140, %v5144
    %5146 = vset.pattern.permute.xlu0 1
    %5147 = vperm.xlu0 %5146, %v4197
    %v5148 = vpop.permute.xlu0 %5147
    %v5151 = vunpack.c.l.s4 839922192
    %v5152 = vunpack.c.0.s8 %v5151
    %v5153 = vperm.slane %v5148, %v5152
    %5154 = vset.pattern.permute.xlu0 1
    %5155 = vperm.xlu0 %5154, %v4198
    %v5156 = vpop.permute.xlu0 %5155
    %v5159 = vunpack.c.l.s4 839922192
    %v5160 = vunpack.c.0.s8 %v5159
    %v5161 = vperm.slane %v5156, %v5160
    %5162 = vset.pattern.permute.xlu0 1
    %5163 = vperm.xlu0 %5162, %v4199
    %v5164 = vpop.permute.xlu0 %5163
    %v5167 = vunpack.c.l.s4 839922192
    %v5168 = vunpack.c.0.s8 %v5167
    %v5169 = vperm.slane %v5164, %v5168
    %5170 = vset.pattern.permute.xlu0 1
    %5171 = vperm.xlu0 %5170, %v4200
    %v5172 = vpop.permute.xlu0 %5171
    %v5175 = vunpack.c.l.s4 839922192
    %v5176 = vunpack.c.0.s8 %v5175
    %v5177 = vperm.slane %v5172, %v5176
    %5178 = vset.pattern.permute.xlu0 1
    %5179 = vperm.xlu0 %5178, %v4201
    %v5180 = vpop.permute.xlu0 %5179
    %v5183 = vunpack.c.l.s4 839922192
    %v5184 = vunpack.c.0.s8 %v5183
    %v5185 = vperm.slane %v5180, %v5184
    %5186 = vset.pattern.permute.xlu0 1
    %5187 = vperm.xlu0 %5186, %v4202
    %v5188 = vpop.permute.xlu0 %5187
    %v5191 = vunpack.c.l.s4 839922192
    %v5192 = vunpack.c.0.s8 %v5191
    %v5193 = vperm.slane %v5188, %v5192
    %5194 = vset.pattern.permute.xlu0 1
    %5195 = vperm.xlu0 %5194, %v4203
    %v5196 = vpop.permute.xlu0 %5195
    %v5199 = vunpack.c.l.s4 839922192
    %v5200 = vunpack.c.0.s8 %v5199
    %v5201 = vperm.slane %v5196, %v5200
    %5202 = vset.pattern.permute.xlu0 1
    %5203 = vperm.xlu0 %5202, %v4204
    %v5204 = vpop.permute.xlu0 %5203
    %v5207 = vunpack.c.l.s4 839922192
    %v5208 = vunpack.c.0.s8 %v5207
    %v5209 = vperm.slane %v5204, %v5208
    %5210 = vset.pattern.permute.xlu0 1
    %5211 = vperm.xlu0 %5210, %v4205
    %v5212 = vpop.permute.xlu0 %5211
    %v5215 = vunpack.c.l.s4 839922192
    %v5216 = vunpack.c.0.s8 %v5215
    %v5217 = vperm.slane %v5212, %v5216
    %5218 = vset.pattern.permute.xlu0 1
    %5219 = vperm.xlu0 %5218, %v4206
    %v5220 = vpop.permute.xlu0 %5219
    %v5223 = vunpack.c.l.s4 839922192
    %v5224 = vunpack.c.0.s8 %v5223
    %v5225 = vperm.slane %v5220, %v5224
    %5226 = vset.pattern.permute.xlu0 1
    %5227 = vperm.xlu0 %5226, %v4207
    %v5228 = vpop.permute.xlu0 %5227
    %v5231 = vunpack.c.l.s4 839922192
    %v5232 = vunpack.c.0.s8 %v5231
    %v5233 = vperm.slane %v5228, %v5232
    %5234 = vset.pattern.permute.xlu0 1
    %5235 = vperm.xlu0 %5234, %v4208
    %v5236 = vpop.permute.xlu0 %5235
    %v5239 = vunpack.c.l.s4 839922192
    %v5240 = vunpack.c.0.s8 %v5239
    %v5241 = vperm.slane %v5236, %v5240
    %5242 = vset.pattern.permute.xlu0 1
    %5243 = vperm.xlu0 %5242, %v4209
    %v5244 = vpop.permute.xlu0 %5243
    %v5247 = vunpack.c.l.s4 839922192
    %v5248 = vunpack.c.0.s8 %v5247
    %v5249 = vperm.slane %v5244, %v5248
    %5250 = vset.pattern.permute.xlu0 1
    %5251 = vperm.xlu0 %5250, %v4210
    %v5252 = vpop.permute.xlu0 %5251
    %v5255 = vunpack.c.l.s4 839922192
    %v5256 = vunpack.c.0.s8 %v5255
    %v5257 = vperm.slane %v5252, %v5256
    %5258 = vset.pattern.permute.xlu0 1
    %5259 = vperm.xlu0 %5258, %v4211
    %v5260 = vpop.permute.xlu0 %5259
    %v5263 = vunpack.c.l.s4 839922192
    %v5264 = vunpack.c.0.s8 %v5263
    %v5265 = vperm.slane %v5260, %v5264
    %5266 = vset.pattern.permute.xlu0 1
    %5267 = vperm.xlu0 %5266, %v4212
    %v5268 = vpop.permute.xlu0 %5267
    %v5271 = vunpack.c.l.s4 839922192
    %v5272 = vunpack.c.0.s8 %v5271
    %v5273 = vperm.slane %v5268, %v5272
    %5274 = vset.pattern.permute.xlu0 1
    %5275 = vperm.xlu0 %5274, %v4213
    %v5276 = vpop.permute.xlu0 %5275
    %v5279 = vunpack.c.l.s4 839922192
    %v5280 = vunpack.c.0.s8 %v5279
    %v5281 = vperm.slane %v5276, %v5280
    %5282 = vset.pattern.permute.xlu0 1
    %5283 = vperm.xlu0 %5282, %v4214
    %v5284 = vpop.permute.xlu0 %5283
    %v5287 = vunpack.c.l.s4 839922192
    %v5288 = vunpack.c.0.s8 %v5287
    %v5289 = vperm.slane %v5284, %v5288
    %5290 = vset.pattern.permute.xlu0 1
    %5291 = vperm.xlu0 %5290, %v4215
    %v5292 = vpop.permute.xlu0 %5291
    %v5295 = vunpack.c.l.s4 839922192
    %v5296 = vunpack.c.0.s8 %v5295
    %v5297 = vperm.slane %v5292, %v5296
    %5298 = vset.pattern.permute.xlu0 1
    %5299 = vperm.xlu0 %5298, %v4216
    %v5300 = vpop.permute.xlu0 %5299
    %v5303 = vunpack.c.l.s4 839922192
    %v5304 = vunpack.c.0.s8 %v5303
    %v5305 = vperm.slane %v5300, %v5304
    %5306 = vset.pattern.permute.xlu0 1
    %5307 = vperm.xlu0 %5306, %v4217
    %v5308 = vpop.permute.xlu0 %5307
    %v5311 = vunpack.c.l.s4 839922192
    %v5312 = vunpack.c.0.s8 %v5311
    %v5313 = vperm.slane %v5308, %v5312
    %5314 = vset.pattern.permute.xlu0 1
    %5315 = vperm.xlu0 %5314, %v4218
    %v5316 = vpop.permute.xlu0 %5315
    %v5319 = vunpack.c.l.s4 839922192
    %v5320 = vunpack.c.0.s8 %v5319
    %v5321 = vperm.slane %v5316, %v5320
    %5322 = vset.pattern.permute.xlu0 1
    %5323 = vperm.xlu0 %5322, %v4219
    %v5324 = vpop.permute.xlu0 %5323
    %v5327 = vunpack.c.l.s4 839922192
    %v5328 = vunpack.c.0.s8 %v5327
    %v5329 = vperm.slane %v5324, %v5328
    %5330 = vset.pattern.permute.xlu0 1
    %5331 = vperm.xlu0 %5330, %v4220
    %v5332 = vpop.permute.xlu0 %5331
    %v5335 = vunpack.c.l.s4 839922192
    %v5336 = vunpack.c.0.s8 %v5335
    %v5337 = vperm.slane %v5332, %v5336
    %5338 = vset.pattern.permute.xlu0 1
    %5339 = vperm.xlu0 %5338, %v4221
    %v5340 = vpop.permute.xlu0 %5339
    %v5343 = vunpack.c.l.s4 839922192
    %v5344 = vunpack.c.0.s8 %v5343
    %v5345 = vperm.slane %v5340, %v5344
    %5346 = vset.pattern.permute.xlu0 1
    %5347 = vperm.xlu0 %5346, %v4222
    %v5348 = vpop.permute.xlu0 %5347
    %v5351 = vunpack.c.l.s4 839922192
    %v5352 = vunpack.c.0.s8 %v5351
    %v5353 = vperm.slane %v5348, %v5352
    %5354 = vset.pattern.permute.xlu0 1
    %5355 = vperm.xlu0 %5354, %v4223
    %v5356 = vpop.permute.xlu0 %5355
    %v5359 = vunpack.c.l.s4 839922192
    %v5360 = vunpack.c.0.s8 %v5359
    %v5361 = vperm.slane %v5356, %v5360
    %5362 = vset.pattern.permute.xlu0 1
    %5363 = vperm.xlu0 %5362, %v4224
    %v5364 = vpop.permute.xlu0 %5363
    %v5367 = vunpack.c.l.s4 839922192
    %v5368 = vunpack.c.0.s8 %v5367
    %v5369 = vperm.slane %v5364, %v5368
    %5370 = vset.pattern.permute.xlu0 1
    %5371 = vperm.xlu0 %5370, %v4225
    %v5372 = vpop.permute.xlu0 %5371
    %v5375 = vunpack.c.l.s4 839922192
    %v5376 = vunpack.c.0.s8 %v5375
    %v5377 = vperm.slane %v5372, %v5376
    %5378 = vset.pattern.permute.xlu0 1
    %5379 = vperm.xlu0 %5378, %v4226
    %v5380 = vpop.permute.xlu0 %5379
    %v5383 = vunpack.c.l.s4 839922192
    %v5384 = vunpack.c.0.s8 %v5383
    %v5385 = vperm.slane %v5380, %v5384
    %5386 = vset.pattern.permute.xlu0 1
    %5387 = vperm.xlu0 %5386, %v4227
    %v5388 = vpop.permute.xlu0 %5387
    %v5391 = vunpack.c.l.s4 839922192
    %v5392 = vunpack.c.0.s8 %v5391
    %v5393 = vperm.slane %v5388, %v5392
    %5394 = vset.pattern.permute.xlu0 1
    %5395 = vperm.xlu0 %5394, %v4228
    %v5396 = vpop.permute.xlu0 %5395
    %v5399 = vunpack.c.l.s4 839922192
    %v5400 = vunpack.c.0.s8 %v5399
    %v5401 = vperm.slane %v5396, %v5400
    %5402 = vset.pattern.permute.xlu0 1
    %5403 = vperm.xlu0 %5402, %v4229
    %v5404 = vpop.permute.xlu0 %5403
    %v5407 = vunpack.c.l.s4 839922192
    %v5408 = vunpack.c.0.s8 %v5407
    %v5409 = vperm.slane %v5404, %v5408
    %5410 = vset.pattern.permute.xlu0 1
    %5411 = vperm.xlu0 %5410, %v4230
    %v5412 = vpop.permute.xlu0 %5411
    %v5415 = vunpack.c.l.s4 839922192
    %v5416 = vunpack.c.0.s8 %v5415
    %v5417 = vperm.slane %v5412, %v5416
    %5418 = vset.pattern.permute.xlu0 1
    %5419 = vperm.xlu0 %5418, %v4231
    %v5420 = vpop.permute.xlu0 %5419
    %v5423 = vunpack.c.l.s4 839922192
    %v5424 = vunpack.c.0.s8 %v5423
    %v5425 = vperm.slane %v5420, %v5424
    %5426 = vset.pattern.permute.xlu0 1
    %5427 = vperm.xlu0 %5426, %v4232
    %v5428 = vpop.permute.xlu0 %5427
    %v5431 = vunpack.c.l.s4 839922192
    %v5432 = vunpack.c.0.s8 %v5431
    %v5433 = vperm.slane %v5428, %v5432
    %5434 = vset.pattern.permute.xlu0 1
    %5435 = vperm.xlu0 %5434, %v4233
    %v5436 = vpop.permute.xlu0 %5435
    %v5439 = vunpack.c.l.s4 839922192
    %v5440 = vunpack.c.0.s8 %v5439
    %v5441 = vperm.slane %v5436, %v5440
    %5442 = vset.pattern.permute.xlu0 1
    %5443 = vperm.xlu0 %5442, %v4234
    %v5444 = vpop.permute.xlu0 %5443
    %v5447 = vunpack.c.l.s4 839922192
    %v5448 = vunpack.c.0.s8 %v5447
    %v5449 = vperm.slane %v5444, %v5448
    %5450 = vset.pattern.permute.xlu0 1
    %5451 = vperm.xlu0 %5450, %v4235
    %v5452 = vpop.permute.xlu0 %5451
    %v5455 = vunpack.c.l.s4 839922192
    %v5456 = vunpack.c.0.s8 %v5455
    %v5457 = vperm.slane %v5452, %v5456
    %5458 = vset.pattern.permute.xlu0 1
    %5459 = vperm.xlu0 %5458, %v4236
    %v5460 = vpop.permute.xlu0 %5459
    %v5463 = vunpack.c.l.s4 839922192
    %v5464 = vunpack.c.0.s8 %v5463
    %v5465 = vperm.slane %v5460, %v5464
    %5466 = vset.pattern.permute.xlu0 1
    %5467 = vperm.xlu0 %5466, %v4237
    %v5468 = vpop.permute.xlu0 %5467
    %v5471 = vunpack.c.l.s4 839922192
    %v5472 = vunpack.c.0.s8 %v5471
    %v5473 = vperm.slane %v5468, %v5472
    %5474 = vset.pattern.permute.xlu0 1
    %5475 = vperm.xlu0 %5474, %v4238
    %v5476 = vpop.permute.xlu0 %5475
    %v5479 = vunpack.c.l.s4 839922192
    %v5480 = vunpack.c.0.s8 %v5479
    %v5481 = vperm.slane %v5476, %v5480
    %5482 = vset.pattern.permute.xlu0 1
    %5483 = vperm.xlu0 %5482, %v4239
    %v5484 = vpop.permute.xlu0 %5483
    %v5487 = vunpack.c.l.s4 839922192
    %v5488 = vunpack.c.0.s8 %v5487
    %v5489 = vperm.slane %v5484, %v5488
    %5490 = vset.pattern.permute.xlu0 1
    %5491 = vperm.xlu0 %5490, %v4240
    %v5492 = vpop.permute.xlu0 %5491
    %v5495 = vunpack.c.l.s4 839922192
    %v5496 = vunpack.c.0.s8 %v5495
    %v5497 = vperm.slane %v5492, %v5496
    %5498 = vset.pattern.permute.xlu0 1
    %5499 = vperm.xlu0 %5498, %v4241
    %v5500 = vpop.permute.xlu0 %5499
    %v5503 = vunpack.c.l.s4 839922192
    %v5504 = vunpack.c.0.s8 %v5503
    %v5505 = vperm.slane %v5500, %v5504
    %5506 = vset.pattern.permute.xlu0 1
    %5507 = vperm.xlu0 %5506, %v4242
    %v5508 = vpop.permute.xlu0 %5507
    %v5511 = vunpack.c.l.s4 839922192
    %v5512 = vunpack.c.0.s8 %v5511
    %v5513 = vperm.slane %v5508, %v5512
    %5514 = vset.pattern.permute.xlu0 1
    %5515 = vperm.xlu0 %5514, %v4243
    %v5516 = vpop.permute.xlu0 %5515
    %v5519 = vunpack.c.l.s4 839922192
    %v5520 = vunpack.c.0.s8 %v5519
    %v5521 = vperm.slane %v5516, %v5520
    %5522 = vset.pattern.permute.xlu0 1
    %5523 = vperm.xlu0 %5522, %v4244
    %v5524 = vpop.permute.xlu0 %5523
    %v5527 = vunpack.c.l.s4 839922192
    %v5528 = vunpack.c.0.s8 %v5527
    %v5529 = vperm.slane %v5524, %v5528
    %5530 = vset.pattern.permute.xlu0 1
    %5531 = vperm.xlu0 %5530, %v4245
    %v5532 = vpop.permute.xlu0 %5531
    %v5535 = vunpack.c.l.s4 839922192
    %v5536 = vunpack.c.0.s8 %v5535
    %v5537 = vperm.slane %v5532, %v5536
    %5538 = vset.pattern.permute.xlu0 1
    %5539 = vperm.xlu0 %5538, %v4246
    %v5540 = vpop.permute.xlu0 %5539
    %v5543 = vunpack.c.l.s4 839922192
    %v5544 = vunpack.c.0.s8 %v5543
    %v5545 = vperm.slane %v5540, %v5544
    %5546 = vset.pattern.permute.xlu0 1
    %5547 = vperm.xlu0 %5546, %v4247
    %v5548 = vpop.permute.xlu0 %5547
    %v5551 = vunpack.c.l.s4 839922192
    %v5552 = vunpack.c.0.s8 %v5551
    %v5553 = vperm.slane %v5548, %v5552
    %5554 = vset.pattern.permute.xlu0 1
    %5555 = vperm.xlu0 %5554, %v4248
    %v5556 = vpop.permute.xlu0 %5555
    %v5559 = vunpack.c.l.s4 839922192
    %v5560 = vunpack.c.0.s8 %v5559
    %v5561 = vperm.slane %v5556, %v5560
    %5562 = vset.pattern.permute.xlu0 1
    %5563 = vperm.xlu0 %5562, %v4249
    %v5564 = vpop.permute.xlu0 %5563
    %v5567 = vunpack.c.l.s4 839922192
    %v5568 = vunpack.c.0.s8 %v5567
    %v5569 = vperm.slane %v5564, %v5568
    %v5570 = vunpack.c.l.bf16 %v5129
    %v5571 = vunpack.c.l.bf16 %v5137
    %v5572 = vunpack.c.l.bf16 %v5145
    %v5573 = vunpack.c.l.bf16 %v5153
    %v5574 = vunpack.c.l.bf16 %v5161
    %v5575 = vunpack.c.l.bf16 %v5169
    %v5576 = vunpack.c.l.bf16 %v5177
    %v5577 = vunpack.c.l.bf16 %v5185
    %v5578 = vunpack.c.l.bf16 %v5193
    %v5579 = vunpack.c.l.bf16 %v5201
    %v5580 = vunpack.c.l.bf16 %v5209
    %v5581 = vunpack.c.l.bf16 %v5217
    %v5582 = vunpack.c.l.bf16 %v5225
    %v5583 = vunpack.c.l.bf16 %v5233
    %v5584 = vunpack.c.l.bf16 %v5241
    %v5585 = vunpack.c.l.bf16 %v5249
    %v5586 = vunpack.c.l.bf16 %v5257
    %v5587 = vunpack.c.l.bf16 %v5265
    %v5588 = vunpack.c.l.bf16 %v5273
    %v5589 = vunpack.c.l.bf16 %v5281
    %v5590 = vunpack.c.l.bf16 %v5289
    %v5591 = vunpack.c.l.bf16 %v5297
    %v5592 = vunpack.c.l.bf16 %v5305
    %v5593 = vunpack.c.l.bf16 %v5313
    %v5594 = vunpack.c.l.bf16 %v5321
    %v5595 = vunpack.c.l.bf16 %v5329
    %v5596 = vunpack.c.l.bf16 %v5337
    %v5597 = vunpack.c.l.bf16 %v5345
    %v5598 = vunpack.c.l.bf16 %v5353
    %v5599 = vunpack.c.l.bf16 %v5361
    %v5600 = vunpack.c.l.bf16 %v5369
    %v5601 = vunpack.c.l.bf16 %v5377
    %v5602 = vunpack.c.l.bf16 %v5385
    %v5603 = vunpack.c.l.bf16 %v5393
    %v5604 = vunpack.c.l.bf16 %v5401
    %v5605 = vunpack.c.l.bf16 %v5409
    %v5606 = vunpack.c.l.bf16 %v5417
    %v5607 = vunpack.c.l.bf16 %v5425
    %v5608 = vunpack.c.l.bf16 %v5433
    %v5609 = vunpack.c.l.bf16 %v5441
    %v5610 = vunpack.c.l.bf16 %v5449
    %v5611 = vunpack.c.l.bf16 %v5457
    %v5612 = vunpack.c.l.bf16 %v5465
    %v5613 = vunpack.c.l.bf16 %v5473
    %v5614 = vunpack.c.l.bf16 %v5481
    %v5615 = vunpack.c.l.bf16 %v5489
    %v5616 = vunpack.c.l.bf16 %v5497
    %v5617 = vunpack.c.l.bf16 %v5505
    %v5618 = vunpack.c.l.bf16 %v5513
    %v5619 = vunpack.c.l.bf16 %v5521
    %v5620 = vunpack.c.l.bf16 %v5529
    %v5621 = vunpack.c.l.bf16 %v5537
    %v5622 = vunpack.c.l.bf16 %v5545
    %v5623 = vunpack.c.l.bf16 %v5553
    %v5624 = vunpack.c.l.bf16 %v5561
    %v5625 = vunpack.c.l.bf16 %v5569
    %v5626 = vmul.f32 %v4754, %v5570
    %v5627 = vmul.f32 %v4755, %v5571
    %v5628 = vmul.f32 %v4756, %v5572
    %v5629 = vmul.f32 %v4757, %v5573
    %v5630 = vmul.f32 %v4758, %v5574
    %v5631 = vmul.f32 %v4759, %v5575
    %v5632 = vmul.f32 %v4760, %v5576
    %v5633 = vmul.f32 %v4761, %v5577
    %v5634 = vmul.f32 %v4762, %v5578
    %v5635 = vmul.f32 %v4763, %v5579
    %v5636 = vmul.f32 %v4764, %v5580
    %v5637 = vmul.f32 %v4765, %v5581
    %v5638 = vmul.f32 %v4766, %v5582
    %v5639 = vmul.f32 %v4767, %v5583
    %v5640 = vmul.f32 %v4768, %v5584
    %v5641 = vmul.f32 %v4769, %v5585
    %v5642 = vmul.f32 %v4770, %v5586
    %v5643 = vmul.f32 %v4771, %v5587
    %v5644 = vmul.f32 %v4772, %v5588
    %v5645 = vmul.f32 %v4773, %v5589
    %v5646 = vmul.f32 %v4774, %v5590
    %v5647 = vmul.f32 %v4775, %v5591
    %v5648 = vmul.f32 %v4776, %v5592
    %v5649 = vmul.f32 %v4777, %v5593
    %v5650 = vmul.f32 %v4778, %v5594
    %v5651 = vmul.f32 %v4779, %v5595
    %v5652 = vmul.f32 %v4780, %v5596
    %v5653 = vmul.f32 %v4781, %v5597
    %v5654 = vmul.f32 %v4782, %v5598
    %v5655 = vmul.f32 %v4783, %v5599
    %v5656 = vmul.f32 %v4784, %v5600
    %v5657 = vmul.f32 %v4785, %v5601
    %v5658 = vmul.f32 %v4786, %v5602
    %v5659 = vmul.f32 %v4787, %v5603
    %v5660 = vmul.f32 %v4788, %v5604
    %v5661 = vmul.f32 %v4789, %v5605
    %v5662 = vmul.f32 %v4790, %v5606
    %v5663 = vmul.f32 %v4791, %v5607
    %v5664 = vmul.f32 %v4792, %v5608
    %v5665 = vmul.f32 %v4793, %v5609
    %v5666 = vmul.f32 %v4794, %v5610
    %v5667 = vmul.f32 %v4795, %v5611
    %v5668 = vmul.f32 %v4796, %v5612
    %v5669 = vmul.f32 %v4797, %v5613
    %v5670 = vmul.f32 %v4798, %v5614
    %v5671 = vmul.f32 %v4799, %v5615
    %v5672 = vmul.f32 %v4800, %v5616
    %v5673 = vmul.f32 %v4801, %v5617
    %v5674 = vmul.f32 %v4802, %v5618
    %v5675 = vmul.f32 %v4803, %v5619
    %v5676 = vmul.f32 %v4804, %v5620
    %v5677 = vmul.f32 %v4805, %v5621
    %v5678 = vmul.f32 %v4806, %v5622
    %v5679 = vmul.f32 %v4807, %v5623
    %v5680 = vmul.f32 %v4808, %v5624
    %v5681 = vmul.f32 %v4809, %v5625
    %v5682 = vpack.c.bf16 %v5627, %v5626
    %v5683 = vpack.c.bf16 %v5629, %v5628
    %v5684 = vpack.c.bf16 %v5631, %v5630
    %v5685 = vpack.c.bf16 %v5632, %v5632
    %v5686 = vpack.c.bf16 %v5634, %v5633
    %v5687 = vpack.c.bf16 %v5636, %v5635
    %v5688 = vpack.c.bf16 %v5638, %v5637
    %v5689 = vpack.c.bf16 %v5639, %v5639
    %v5690 = vpack.c.bf16 %v5641, %v5640
    %v5691 = vpack.c.bf16 %v5643, %v5642
    %v5692 = vpack.c.bf16 %v5645, %v5644
    %v5693 = vpack.c.bf16 %v5646, %v5646
    %v5694 = vpack.c.bf16 %v5648, %v5647
    %v5695 = vpack.c.bf16 %v5650, %v5649
    %v5696 = vpack.c.bf16 %v5652, %v5651
    %v5697 = vpack.c.bf16 %v5653, %v5653
    %v5698 = vpack.c.bf16 %v5655, %v5654
    %v5699 = vpack.c.bf16 %v5657, %v5656
    %v5700 = vpack.c.bf16 %v5659, %v5658
    %v5701 = vpack.c.bf16 %v5660, %v5660
    %v5702 = vpack.c.bf16 %v5662, %v5661
    %v5703 = vpack.c.bf16 %v5664, %v5663
    %v5704 = vpack.c.bf16 %v5666, %v5665
    %v5705 = vpack.c.bf16 %v5667, %v5667
    %v5706 = vpack.c.bf16 %v5669, %v5668
    %v5707 = vpack.c.bf16 %v5671, %v5670
    %v5708 = vpack.c.bf16 %v5673, %v5672
    %v5709 = vpack.c.bf16 %v5674, %v5674
    %v5710 = vpack.c.bf16 %v5676, %v5675
    %v5711 = vpack.c.bf16 %v5678, %v5677
    %v5712 = vpack.c.bf16 %v5680, %v5679
    %v5713 = vpack.c.bf16 %v5681, %v5681
    %v5714 = vunpack.c.l.bf16 %v5682
    %v5715 = vunpack.c.h.bf16 %v5682
    %v5716 = vunpack.c.l.bf16 %v5683
    %v5717 = vunpack.c.h.bf16 %v5683
    %v5718 = vunpack.c.l.bf16 %v5684
    %v5719 = vunpack.c.h.bf16 %v5684
    %v5720 = vunpack.c.l.bf16 %v5685
    %v5721 = vunpack.c.l.bf16 %v5686
    %v5722 = vunpack.c.h.bf16 %v5686
    %v5723 = vunpack.c.l.bf16 %v5687
    %v5724 = vunpack.c.h.bf16 %v5687
    %v5725 = vunpack.c.l.bf16 %v5688
    %v5726 = vunpack.c.h.bf16 %v5688
    %v5727 = vunpack.c.l.bf16 %v5689
    %v5728 = vunpack.c.l.bf16 %v5690
    %v5729 = vunpack.c.h.bf16 %v5690
    %v5730 = vunpack.c.l.bf16 %v5691
    %v5731 = vunpack.c.h.bf16 %v5691
    %v5732 = vunpack.c.l.bf16 %v5692
    %v5733 = vunpack.c.h.bf16 %v5692
    %v5734 = vunpack.c.l.bf16 %v5693
    %v5735 = vunpack.c.l.bf16 %v5694
    %v5736 = vunpack.c.h.bf16 %v5694
    %v5737 = vunpack.c.l.bf16 %v5695
    %v5738 = vunpack.c.h.bf16 %v5695
    %v5739 = vunpack.c.l.bf16 %v5696
    %v5740 = vunpack.c.h.bf16 %v5696
    %v5741 = vunpack.c.l.bf16 %v5697
    %v5742 = vunpack.c.l.bf16 %v5698
    %v5743 = vunpack.c.h.bf16 %v5698
    %v5744 = vunpack.c.l.bf16 %v5699
    %v5745 = vunpack.c.h.bf16 %v5699
    %v5746 = vunpack.c.l.bf16 %v5700
    %v5747 = vunpack.c.h.bf16 %v5700
    %v5748 = vunpack.c.l.bf16 %v5701
    %v5749 = vunpack.c.l.bf16 %v5702
    %v5750 = vunpack.c.h.bf16 %v5702
    %v5751 = vunpack.c.l.bf16 %v5703
    %v5752 = vunpack.c.h.bf16 %v5703
    %v5753 = vunpack.c.l.bf16 %v5704
    %v5754 = vunpack.c.h.bf16 %v5704
    %v5755 = vunpack.c.l.bf16 %v5705
    %v5756 = vunpack.c.l.bf16 %v5706
    %v5757 = vunpack.c.h.bf16 %v5706
    %v5758 = vunpack.c.l.bf16 %v5707
    %v5759 = vunpack.c.h.bf16 %v5707
    %v5760 = vunpack.c.l.bf16 %v5708
    %v5761 = vunpack.c.h.bf16 %v5708
    %v5762 = vunpack.c.l.bf16 %v5709
    %v5763 = vunpack.c.l.bf16 %v5710
    %v5764 = vunpack.c.h.bf16 %v5710
    %v5765 = vunpack.c.l.bf16 %v5711
    %v5766 = vunpack.c.h.bf16 %v5711
    %v5767 = vunpack.c.l.bf16 %v5712
    %v5768 = vunpack.c.h.bf16 %v5712
    %v5769 = vunpack.c.l.bf16 %v5713
    %v5770 = vmax.f32 %v5714, %v5715
    %v5771 = vmax.f32 %v5770, %v5716
    %v5772 = vmax.f32 %v5771, %v5717
    %v5773 = vmax.f32 %v5772, %v5718
    %v5774 = vmax.f32 %v5773, %v5719
    %v5775 = vsel %vm3088, %v5720, -inf
    %v5776 = vmax.f32 %v5774, %v5775
    %v5777 = vrot.slane %v5776, 4
    %v5778 = vmax.f32 %v5776, %v5777
    %v5779 = vrot.slane %v5778, 2
    %v5780 = vmax.f32 %v5778, %v5779
    %v5781 = vrot.slane %v5780, 1
    %v5782 = vmax.f32 %v5780, %v5781
    %v5783 = vmax.f32 %v5721, %v5722
    %v5784 = vmax.f32 %v5783, %v5723
    %v5785 = vmax.f32 %v5784, %v5724
    %v5786 = vmax.f32 %v5785, %v5725
    %v5787 = vmax.f32 %v5786, %v5726
    %v5788 = vsel %vm3088, %v5727, -inf
    %v5789 = vmax.f32 %v5787, %v5788
    %v5790 = vrot.slane %v5789, 4
    %v5791 = vmax.f32 %v5789, %v5790
    %v5792 = vrot.slane %v5791, 2
    %v5793 = vmax.f32 %v5791, %v5792
    %v5794 = vrot.slane %v5793, 1
    %v5795 = vmax.f32 %v5793, %v5794
    %v5796 = vmax.f32 %v5728, %v5729
    %v5797 = vmax.f32 %v5796, %v5730
    %v5798 = vmax.f32 %v5797, %v5731
    %v5799 = vmax.f32 %v5798, %v5732
    %v5800 = vmax.f32 %v5799, %v5733
    %v5801 = vsel %vm3088, %v5734, -inf
    %v5802 = vmax.f32 %v5800, %v5801
    %v5803 = vrot.slane %v5802, 4
    %v5804 = vmax.f32 %v5802, %v5803
    %v5805 = vrot.slane %v5804, 2
    %v5806 = vmax.f32 %v5804, %v5805
    %v5807 = vrot.slane %v5806, 1
    %v5808 = vmax.f32 %v5806, %v5807
    %v5809 = vmax.f32 %v5735, %v5736
    %v5810 = vmax.f32 %v5809, %v5737
    %v5811 = vmax.f32 %v5810, %v5738
    %v5812 = vmax.f32 %v5811, %v5739
    %v5813 = vmax.f32 %v5812, %v5740
    %v5814 = vsel %vm3088, %v5741, -inf
    %v5815 = vmax.f32 %v5813, %v5814
    %v5816 = vrot.slane %v5815, 4
    %v5817 = vmax.f32 %v5815, %v5816
    %v5818 = vrot.slane %v5817, 2
    %v5819 = vmax.f32 %v5817, %v5818
    %v5820 = vrot.slane %v5819, 1
    %v5821 = vmax.f32 %v5819, %v5820
    %v5822 = vmax.f32 %v5742, %v5743
    %v5823 = vmax.f32 %v5822, %v5744
    %v5824 = vmax.f32 %v5823, %v5745
    %v5825 = vmax.f32 %v5824, %v5746
    %v5826 = vmax.f32 %v5825, %v5747
    %v5827 = vsel %vm3088, %v5748, -inf
    %v5828 = vmax.f32 %v5826, %v5827
    %v5829 = vrot.slane %v5828, 4
    %v5830 = vmax.f32 %v5828, %v5829
    %v5831 = vrot.slane %v5830, 2
    %v5832 = vmax.f32 %v5830, %v5831
    %v5833 = vrot.slane %v5832, 1
    %v5834 = vmax.f32 %v5832, %v5833
    %v5835 = vmax.f32 %v5749, %v5750
    %v5836 = vmax.f32 %v5835, %v5751
    %v5837 = vmax.f32 %v5836, %v5752
    %v5838 = vmax.f32 %v5837, %v5753
    %v5839 = vmax.f32 %v5838, %v5754
    %v5840 = vsel %vm3088, %v5755, -inf
    %v5841 = vmax.f32 %v5839, %v5840
    %v5842 = vrot.slane %v5841, 4
    %v5843 = vmax.f32 %v5841, %v5842
    %v5844 = vrot.slane %v5843, 2
    %v5845 = vmax.f32 %v5843, %v5844
    %v5846 = vrot.slane %v5845, 1
    %v5847 = vmax.f32 %v5845, %v5846
    %v5848 = vmax.f32 %v5756, %v5757
    %v5849 = vmax.f32 %v5848, %v5758
    %v5850 = vmax.f32 %v5849, %v5759
    %v5851 = vmax.f32 %v5850, %v5760
    %v5852 = vmax.f32 %v5851, %v5761
    %v5853 = vsel %vm3088, %v5762, -inf
    %v5854 = vmax.f32 %v5852, %v5853
    %v5855 = vrot.slane %v5854, 4
    %v5856 = vmax.f32 %v5854, %v5855
    %v5857 = vrot.slane %v5856, 2
    %v5858 = vmax.f32 %v5856, %v5857
    %v5859 = vrot.slane %v5858, 1
    %v5860 = vmax.f32 %v5858, %v5859
    %v5861 = vmax.f32 %v5763, %v5764
    %v5862 = vmax.f32 %v5861, %v5765
    %v5863 = vmax.f32 %v5862, %v5766
    %v5864 = vmax.f32 %v5863, %v5767
    %v5865 = vmax.f32 %v5864, %v5768
    %v5866 = vsel %vm3088, %v5769, -inf
    %v5867 = vmax.f32 %v5865, %v5866
    %v5868 = vrot.slane %v5867, 4
    %v5869 = vmax.f32 %v5867, %v5868
    %v5870 = vrot.slane %v5869, 2
    %v5871 = vmax.f32 %v5869, %v5870
    %v5872 = vrot.slane %v5871, 1
    %v5873 = vmax.f32 %v5871, %v5872
    %v5874 = vpack.c.bf16 %v5782, %v5782
    %v5875 = vpack.c.bf16 %v5795, %v5795
    %v5876 = vpack.c.bf16 %v5808, %v5808
    %v5877 = vpack.c.bf16 %v5821, %v5821
    %v5878 = vpack.c.bf16 %v5834, %v5834
    %v5879 = vpack.c.bf16 %v5847, %v5847
    %v5880 = vpack.c.bf16 %v5860, %v5860
    %v5881 = vpack.c.bf16 %v5873, %v5873
    %5882 = vset.pattern.permute.xlu0 2
    %5883 = vperm.xlu0 %5882, %v4194
    %v5884 = vpop.permute.xlu0 %5883
    %v5887 = vunpack.c.l.s4 839922192
    %v5888 = vunpack.c.0.s8 %v5887
    %v5889 = vperm.slane %v5884, %v5888
    %5890 = vset.pattern.permute.xlu0 2
    %5891 = vperm.xlu0 %5890, %v4195
    %v5892 = vpop.permute.xlu0 %5891
    %v5895 = vunpack.c.l.s4 839922192
    %v5896 = vunpack.c.0.s8 %v5895
    %v5897 = vperm.slane %v5892, %v5896
    %5898 = vset.pattern.permute.xlu0 2
    %5899 = vperm.xlu0 %5898, %v4196
    %v5900 = vpop.permute.xlu0 %5899
    %v5903 = vunpack.c.l.s4 839922192
    %v5904 = vunpack.c.0.s8 %v5903
    %v5905 = vperm.slane %v5900, %v5904
    %5906 = vset.pattern.permute.xlu0 2
    %5907 = vperm.xlu0 %5906, %v4197
    %v5908 = vpop.permute.xlu0 %5907
    %v5911 = vunpack.c.l.s4 839922192
    %v5912 = vunpack.c.0.s8 %v5911
    %v5913 = vperm.slane %v5908, %v5912
    %5914 = vset.pattern.permute.xlu0 2
    %5915 = vperm.xlu0 %5914, %v4198
    %v5916 = vpop.permute.xlu0 %5915
    %v5919 = vunpack.c.l.s4 839922192
    %v5920 = vunpack.c.0.s8 %v5919
    %v5921 = vperm.slane %v5916, %v5920
    %5922 = vset.pattern.permute.xlu0 2
    %5923 = vperm.xlu0 %5922, %v4199
    %v5924 = vpop.permute.xlu0 %5923
    %v5927 = vunpack.c.l.s4 839922192
    %v5928 = vunpack.c.0.s8 %v5927
    %v5929 = vperm.slane %v5924, %v5928
    %5930 = vset.pattern.permute.xlu0 2
    %5931 = vperm.xlu0 %5930, %v4200
    %v5932 = vpop.permute.xlu0 %5931
    %v5935 = vunpack.c.l.s4 839922192
    %v5936 = vunpack.c.0.s8 %v5935
    %v5937 = vperm.slane %v5932, %v5936
    %5938 = vset.pattern.permute.xlu0 2
    %5939 = vperm.xlu0 %5938, %v4201
    %v5940 = vpop.permute.xlu0 %5939
    %v5943 = vunpack.c.l.s4 839922192
    %v5944 = vunpack.c.0.s8 %v5943
    %v5945 = vperm.slane %v5940, %v5944
    %5946 = vset.pattern.permute.xlu0 2
    %5947 = vperm.xlu0 %5946, %v4202
    %v5948 = vpop.permute.xlu0 %5947
    %v5951 = vunpack.c.l.s4 839922192
    %v5952 = vunpack.c.0.s8 %v5951
    %v5953 = vperm.slane %v5948, %v5952
    %5954 = vset.pattern.permute.xlu0 2
    %5955 = vperm.xlu0 %5954, %v4203
    %v5956 = vpop.permute.xlu0 %5955
    %v5959 = vunpack.c.l.s4 839922192
    %v5960 = vunpack.c.0.s8 %v5959
    %v5961 = vperm.slane %v5956, %v5960
    %5962 = vset.pattern.permute.xlu0 2
    %5963 = vperm.xlu0 %5962, %v4204
    %v5964 = vpop.permute.xlu0 %5963
    %v5967 = vunpack.c.l.s4 839922192
    %v5968 = vunpack.c.0.s8 %v5967
    %v5969 = vperm.slane %v5964, %v5968
    %5970 = vset.pattern.permute.xlu0 2
    %5971 = vperm.xlu0 %5970, %v4205
    %v5972 = vpop.permute.xlu0 %5971
    %v5975 = vunpack.c.l.s4 839922192
    %v5976 = vunpack.c.0.s8 %v5975
    %v5977 = vperm.slane %v5972, %v5976
    %5978 = vset.pattern.permute.xlu0 2
    %5979 = vperm.xlu0 %5978, %v4206
    %v5980 = vpop.permute.xlu0 %5979
    %v5983 = vunpack.c.l.s4 839922192
    %v5984 = vunpack.c.0.s8 %v5983
    %v5985 = vperm.slane %v5980, %v5984
    %5986 = vset.pattern.permute.xlu0 2
    %5987 = vperm.xlu0 %5986, %v4207
    %v5988 = vpop.permute.xlu0 %5987
    %v5991 = vunpack.c.l.s4 839922192
    %v5992 = vunpack.c.0.s8 %v5991
    %v5993 = vperm.slane %v5988, %v5992
    %5994 = vset.pattern.permute.xlu0 2
    %5995 = vperm.xlu0 %5994, %v4208
    %v5996 = vpop.permute.xlu0 %5995
    %v5999 = vunpack.c.l.s4 839922192
    %v6000 = vunpack.c.0.s8 %v5999
    %v6001 = vperm.slane %v5996, %v6000
    %6002 = vset.pattern.permute.xlu0 2
    %6003 = vperm.xlu0 %6002, %v4209
    %v6004 = vpop.permute.xlu0 %6003
    %v6007 = vunpack.c.l.s4 839922192
    %v6008 = vunpack.c.0.s8 %v6007
    %v6009 = vperm.slane %v6004, %v6008
    %6010 = vset.pattern.permute.xlu0 2
    %6011 = vperm.xlu0 %6010, %v4210
    %v6012 = vpop.permute.xlu0 %6011
    %v6015 = vunpack.c.l.s4 839922192
    %v6016 = vunpack.c.0.s8 %v6015
    %v6017 = vperm.slane %v6012, %v6016
    %6018 = vset.pattern.permute.xlu0 2
    %6019 = vperm.xlu0 %6018, %v4211
    %v6020 = vpop.permute.xlu0 %6019
    %v6023 = vunpack.c.l.s4 839922192
    %v6024 = vunpack.c.0.s8 %v6023
    %v6025 = vperm.slane %v6020, %v6024
    %6026 = vset.pattern.permute.xlu0 2
    %6027 = vperm.xlu0 %6026, %v4212
    %v6028 = vpop.permute.xlu0 %6027
    %v6031 = vunpack.c.l.s4 839922192
    %v6032 = vunpack.c.0.s8 %v6031
    %v6033 = vperm.slane %v6028, %v6032
    %6034 = vset.pattern.permute.xlu0 2
    %6035 = vperm.xlu0 %6034, %v4213
    %v6036 = vpop.permute.xlu0 %6035
    %v6039 = vunpack.c.l.s4 839922192
    %v6040 = vunpack.c.0.s8 %v6039
    %v6041 = vperm.slane %v6036, %v6040
    %6042 = vset.pattern.permute.xlu0 2
    %6043 = vperm.xlu0 %6042, %v4214
    %v6044 = vpop.permute.xlu0 %6043
    %v6047 = vunpack.c.l.s4 839922192
    %v6048 = vunpack.c.0.s8 %v6047
    %v6049 = vperm.slane %v6044, %v6048
    %6050 = vset.pattern.permute.xlu0 2
    %6051 = vperm.xlu0 %6050, %v4215
    %v6052 = vpop.permute.xlu0 %6051
    %v6055 = vunpack.c.l.s4 839922192
    %v6056 = vunpack.c.0.s8 %v6055
    %v6057 = vperm.slane %v6052, %v6056
    %6058 = vset.pattern.permute.xlu0 2
    %6059 = vperm.xlu0 %6058, %v4216
    %v6060 = vpop.permute.xlu0 %6059
    %v6063 = vunpack.c.l.s4 839922192
    %v6064 = vunpack.c.0.s8 %v6063
    %v6065 = vperm.slane %v6060, %v6064
    %6066 = vset.pattern.permute.xlu0 2
    %6067 = vperm.xlu0 %6066, %v4217
    %v6068 = vpop.permute.xlu0 %6067
    %v6071 = vunpack.c.l.s4 839922192
    %v6072 = vunpack.c.0.s8 %v6071
    %v6073 = vperm.slane %v6068, %v6072
    %6074 = vset.pattern.permute.xlu0 2
    %6075 = vperm.xlu0 %6074, %v4218
    %v6076 = vpop.permute.xlu0 %6075
    %v6079 = vunpack.c.l.s4 839922192
    %v6080 = vunpack.c.0.s8 %v6079
    %v6081 = vperm.slane %v6076, %v6080
    %6082 = vset.pattern.permute.xlu0 2
    %6083 = vperm.xlu0 %6082, %v4219
    %v6084 = vpop.permute.xlu0 %6083
    %v6087 = vunpack.c.l.s4 839922192
    %v6088 = vunpack.c.0.s8 %v6087
    %v6089 = vperm.slane %v6084, %v6088
    %6090 = vset.pattern.permute.xlu0 2
    %6091 = vperm.xlu0 %6090, %v4220
    %v6092 = vpop.permute.xlu0 %6091
    %v6095 = vunpack.c.l.s4 839922192
    %v6096 = vunpack.c.0.s8 %v6095
    %v6097 = vperm.slane %v6092, %v6096
    %6098 = vset.pattern.permute.xlu0 2
    %6099 = vperm.xlu0 %6098, %v4221
    %v6100 = vpop.permute.xlu0 %6099
    %v6103 = vunpack.c.l.s4 839922192
    %v6104 = vunpack.c.0.s8 %v6103
    %v6105 = vperm.slane %v6100, %v6104
    %6106 = vset.pattern.permute.xlu0 2
    %6107 = vperm.xlu0 %6106, %v4222
    %v6108 = vpop.permute.xlu0 %6107
    %v6111 = vunpack.c.l.s4 839922192
    %v6112 = vunpack.c.0.s8 %v6111
    %v6113 = vperm.slane %v6108, %v6112
    %6114 = vset.pattern.permute.xlu0 2
    %6115 = vperm.xlu0 %6114, %v4223
    %v6116 = vpop.permute.xlu0 %6115
    %v6119 = vunpack.c.l.s4 839922192
    %v6120 = vunpack.c.0.s8 %v6119
    %v6121 = vperm.slane %v6116, %v6120
    %6122 = vset.pattern.permute.xlu0 2
    %6123 = vperm.xlu0 %6122, %v4224
    %v6124 = vpop.permute.xlu0 %6123
    %v6127 = vunpack.c.l.s4 839922192
    %v6128 = vunpack.c.0.s8 %v6127
    %v6129 = vperm.slane %v6124, %v6128
    %6130 = vset.pattern.permute.xlu0 2
    %6131 = vperm.xlu0 %6130, %v4225
    %v6132 = vpop.permute.xlu0 %6131
    %v6135 = vunpack.c.l.s4 839922192
    %v6136 = vunpack.c.0.s8 %v6135
    %v6137 = vperm.slane %v6132, %v6136
    %6138 = vset.pattern.permute.xlu0 2
    %6139 = vperm.xlu0 %6138, %v4226
    %v6140 = vpop.permute.xlu0 %6139
    %v6143 = vunpack.c.l.s4 839922192
    %v6144 = vunpack.c.0.s8 %v6143
    %v6145 = vperm.slane %v6140, %v6144
    %6146 = vset.pattern.permute.xlu0 2
    %6147 = vperm.xlu0 %6146, %v4227
    %v6148 = vpop.permute.xlu0 %6147
    %v6151 = vunpack.c.l.s4 839922192
    %v6152 = vunpack.c.0.s8 %v6151
    %v6153 = vperm.slane %v6148, %v6152
    %6154 = vset.pattern.permute.xlu0 2
    %6155 = vperm.xlu0 %6154, %v4228
    %v6156 = vpop.permute.xlu0 %6155
    %v6159 = vunpack.c.l.s4 839922192
    %v6160 = vunpack.c.0.s8 %v6159
    %v6161 = vperm.slane %v6156, %v6160
    %6162 = vset.pattern.permute.xlu0 2
    %6163 = vperm.xlu0 %6162, %v4229
    %v6164 = vpop.permute.xlu0 %6163
    %v6167 = vunpack.c.l.s4 839922192
    %v6168 = vunpack.c.0.s8 %v6167
    %v6169 = vperm.slane %v6164, %v6168
    %6170 = vset.pattern.permute.xlu0 2
    %6171 = vperm.xlu0 %6170, %v4230
    %v6172 = vpop.permute.xlu0 %6171
    %v6175 = vunpack.c.l.s4 839922192
    %v6176 = vunpack.c.0.s8 %v6175
    %v6177 = vperm.slane %v6172, %v6176
    %6178 = vset.pattern.permute.xlu0 2
    %6179 = vperm.xlu0 %6178, %v4231
    %v6180 = vpop.permute.xlu0 %6179
    %v6183 = vunpack.c.l.s4 839922192
    %v6184 = vunpack.c.0.s8 %v6183
    %v6185 = vperm.slane %v6180, %v6184
    %6186 = vset.pattern.permute.xlu0 2
    %6187 = vperm.xlu0 %6186, %v4232
    %v6188 = vpop.permute.xlu0 %6187
    %v6191 = vunpack.c.l.s4 839922192
    %v6192 = vunpack.c.0.s8 %v6191
    %v6193 = vperm.slane %v6188, %v6192
    %6194 = vset.pattern.permute.xlu0 2
    %6195 = vperm.xlu0 %6194, %v4233
    %v6196 = vpop.permute.xlu0 %6195
    %v6199 = vunpack.c.l.s4 839922192
    %v6200 = vunpack.c.0.s8 %v6199
    %v6201 = vperm.slane %v6196, %v6200
    %6202 = vset.pattern.permute.xlu0 2
    %6203 = vperm.xlu0 %6202, %v4234
    %v6204 = vpop.permute.xlu0 %6203
    %v6207 = vunpack.c.l.s4 839922192
    %v6208 = vunpack.c.0.s8 %v6207
    %v6209 = vperm.slane %v6204, %v6208
    %6210 = vset.pattern.permute.xlu0 2
    %6211 = vperm.xlu0 %6210, %v4235
    %v6212 = vpop.permute.xlu0 %6211
    %v6215 = vunpack.c.l.s4 839922192
    %v6216 = vunpack.c.0.s8 %v6215
    %v6217 = vperm.slane %v6212, %v6216
    %6218 = vset.pattern.permute.xlu0 2
    %6219 = vperm.xlu0 %6218, %v4236
    %v6220 = vpop.permute.xlu0 %6219
    %v6223 = vunpack.c.l.s4 839922192
    %v6224 = vunpack.c.0.s8 %v6223
    %v6225 = vperm.slane %v6220, %v6224
    %6226 = vset.pattern.permute.xlu0 2
    %6227 = vperm.xlu0 %6226, %v4237
    %v6228 = vpop.permute.xlu0 %6227
    %v6231 = vunpack.c.l.s4 839922192
    %v6232 = vunpack.c.0.s8 %v6231
    %v6233 = vperm.slane %v6228, %v6232
    %6234 = vset.pattern.permute.xlu0 2
    %6235 = vperm.xlu0 %6234, %v4238
    %v6236 = vpop.permute.xlu0 %6235
    %v6239 = vunpack.c.l.s4 839922192
    %v6240 = vunpack.c.0.s8 %v6239
    %v6241 = vperm.slane %v6236, %v6240
    %6242 = vset.pattern.permute.xlu0 2
    %6243 = vperm.xlu0 %6242, %v4239
    %v6244 = vpop.permute.xlu0 %6243
    %v6247 = vunpack.c.l.s4 839922192
    %v6248 = vunpack.c.0.s8 %v6247
    %v6249 = vperm.slane %v6244, %v6248
    %6250 = vset.pattern.permute.xlu0 2
    %6251 = vperm.xlu0 %6250, %v4240
    %v6252 = vpop.permute.xlu0 %6251
    %v6255 = vunpack.c.l.s4 839922192
    %v6256 = vunpack.c.0.s8 %v6255
    %v6257 = vperm.slane %v6252, %v6256
    %6258 = vset.pattern.permute.xlu0 2
    %6259 = vperm.xlu0 %6258, %v4241
    %v6260 = vpop.permute.xlu0 %6259
    %v6263 = vunpack.c.l.s4 839922192
    %v6264 = vunpack.c.0.s8 %v6263
    %v6265 = vperm.slane %v6260, %v6264
    %6266 = vset.pattern.permute.xlu0 2
    %6267 = vperm.xlu0 %6266, %v4242
    %v6268 = vpop.permute.xlu0 %6267
    %v6271 = vunpack.c.l.s4 839922192
    %v6272 = vunpack.c.0.s8 %v6271
    %v6273 = vperm.slane %v6268, %v6272
    %6274 = vset.pattern.permute.xlu0 2
    %6275 = vperm.xlu0 %6274, %v4243
    %v6276 = vpop.permute.xlu0 %6275
    %v6279 = vunpack.c.l.s4 839922192
    %v6280 = vunpack.c.0.s8 %v6279
    %v6281 = vperm.slane %v6276, %v6280
    %6282 = vset.pattern.permute.xlu0 2
    %6283 = vperm.xlu0 %6282, %v4244
    %v6284 = vpop.permute.xlu0 %6283
    %v6287 = vunpack.c.l.s4 839922192
    %v6288 = vunpack.c.0.s8 %v6287
    %v6289 = vperm.slane %v6284, %v6288
    %6290 = vset.pattern.permute.xlu0 2
    %6291 = vperm.xlu0 %6290, %v4245
    %v6292 = vpop.permute.xlu0 %6291
    %v6295 = vunpack.c.l.s4 839922192
    %v6296 = vunpack.c.0.s8 %v6295
    %v6297 = vperm.slane %v6292, %v6296
    %6298 = vset.pattern.permute.xlu0 2
    %6299 = vperm.xlu0 %6298, %v4246
    %v6300 = vpop.permute.xlu0 %6299
    %v6303 = vunpack.c.l.s4 839922192
    %v6304 = vunpack.c.0.s8 %v6303
    %v6305 = vperm.slane %v6300, %v6304
    %6306 = vset.pattern.permute.xlu0 2
    %6307 = vperm.xlu0 %6306, %v4247
    %v6308 = vpop.permute.xlu0 %6307
    %v6311 = vunpack.c.l.s4 839922192
    %v6312 = vunpack.c.0.s8 %v6311
    %v6313 = vperm.slane %v6308, %v6312
    %6314 = vset.pattern.permute.xlu0 2
    %6315 = vperm.xlu0 %6314, %v4248
    %v6316 = vpop.permute.xlu0 %6315
    %v6319 = vunpack.c.l.s4 839922192
    %v6320 = vunpack.c.0.s8 %v6319
    %v6321 = vperm.slane %v6316, %v6320
    %6322 = vset.pattern.permute.xlu0 2
    %6323 = vperm.xlu0 %6322, %v4249
    %v6324 = vpop.permute.xlu0 %6323
    %v6327 = vunpack.c.l.s4 839922192
    %v6328 = vunpack.c.0.s8 %v6327
    %v6329 = vperm.slane %v6324, %v6328
    %v6330 = vunpack.c.l.bf16 %v5889
    %v6331 = vunpack.c.l.bf16 %v5897
    %v6332 = vunpack.c.l.bf16 %v5905
    %v6333 = vunpack.c.l.bf16 %v5913
    %v6334 = vunpack.c.l.bf16 %v5921
    %v6335 = vunpack.c.l.bf16 %v5929
    %v6336 = vunpack.c.l.bf16 %v5937
    %v6337 = vunpack.c.l.bf16 %v5945
    %v6338 = vunpack.c.l.bf16 %v5953
    %v6339 = vunpack.c.l.bf16 %v5961
    %v6340 = vunpack.c.l.bf16 %v5969
    %v6341 = vunpack.c.l.bf16 %v5977
    %v6342 = vunpack.c.l.bf16 %v5985
    %v6343 = vunpack.c.l.bf16 %v5993
    %v6344 = vunpack.c.l.bf16 %v6001
    %v6345 = vunpack.c.l.bf16 %v6009
    %v6346 = vunpack.c.l.bf16 %v6017
    %v6347 = vunpack.c.l.bf16 %v6025
    %v6348 = vunpack.c.l.bf16 %v6033
    %v6349 = vunpack.c.l.bf16 %v6041
    %v6350 = vunpack.c.l.bf16 %v6049
    %v6351 = vunpack.c.l.bf16 %v6057
    %v6352 = vunpack.c.l.bf16 %v6065
    %v6353 = vunpack.c.l.bf16 %v6073
    %v6354 = vunpack.c.l.bf16 %v6081
    %v6355 = vunpack.c.l.bf16 %v6089
    %v6356 = vunpack.c.l.bf16 %v6097
    %v6357 = vunpack.c.l.bf16 %v6105
    %v6358 = vunpack.c.l.bf16 %v6113
    %v6359 = vunpack.c.l.bf16 %v6121
    %v6360 = vunpack.c.l.bf16 %v6129
    %v6361 = vunpack.c.l.bf16 %v6137
    %v6362 = vunpack.c.l.bf16 %v6145
    %v6363 = vunpack.c.l.bf16 %v6153
    %v6364 = vunpack.c.l.bf16 %v6161
    %v6365 = vunpack.c.l.bf16 %v6169
    %v6366 = vunpack.c.l.bf16 %v6177
    %v6367 = vunpack.c.l.bf16 %v6185
    %v6368 = vunpack.c.l.bf16 %v6193
    %v6369 = vunpack.c.l.bf16 %v6201
    %v6370 = vunpack.c.l.bf16 %v6209
    %v6371 = vunpack.c.l.bf16 %v6217
    %v6372 = vunpack.c.l.bf16 %v6225
    %v6373 = vunpack.c.l.bf16 %v6233
    %v6374 = vunpack.c.l.bf16 %v6241
    %v6375 = vunpack.c.l.bf16 %v6249
    %v6376 = vunpack.c.l.bf16 %v6257
    %v6377 = vunpack.c.l.bf16 %v6265
    %v6378 = vunpack.c.l.bf16 %v6273
    %v6379 = vunpack.c.l.bf16 %v6281
    %v6380 = vunpack.c.l.bf16 %v6289
    %v6381 = vunpack.c.l.bf16 %v6297
    %v6382 = vunpack.c.l.bf16 %v6305
    %v6383 = vunpack.c.l.bf16 %v6313
    %v6384 = vunpack.c.l.bf16 %v6321
    %v6385 = vunpack.c.l.bf16 %v6329
    %v6386 = vmul.f32 %v4754, %v6330
    %v6387 = vmul.f32 %v4755, %v6331
    %v6388 = vmul.f32 %v4756, %v6332
    %v6389 = vmul.f32 %v4757, %v6333
    %v6390 = vmul.f32 %v4758, %v6334
    %v6391 = vmul.f32 %v4759, %v6335
    %v6392 = vmul.f32 %v4760, %v6336
    %v6393 = vmul.f32 %v4761, %v6337
    %v6394 = vmul.f32 %v4762, %v6338
    %v6395 = vmul.f32 %v4763, %v6339
    %v6396 = vmul.f32 %v4764, %v6340
    %v6397 = vmul.f32 %v4765, %v6341
    %v6398 = vmul.f32 %v4766, %v6342
    %v6399 = vmul.f32 %v4767, %v6343
    %v6400 = vmul.f32 %v4768, %v6344
    %v6401 = vmul.f32 %v4769, %v6345
    %v6402 = vmul.f32 %v4770, %v6346
    %v6403 = vmul.f32 %v4771, %v6347
    %v6404 = vmul.f32 %v4772, %v6348
    %v6405 = vmul.f32 %v4773, %v6349
    %v6406 = vmul.f32 %v4774, %v6350
    %v6407 = vmul.f32 %v4775, %v6351
    %v6408 = vmul.f32 %v4776, %v6352
    %v6409 = vmul.f32 %v4777, %v6353
    %v6410 = vmul.f32 %v4778, %v6354
    %v6411 = vmul.f32 %v4779, %v6355
    %v6412 = vmul.f32 %v4780, %v6356
    %v6413 = vmul.f32 %v4781, %v6357
    %v6414 = vmul.f32 %v4782, %v6358
    %v6415 = vmul.f32 %v4783, %v6359
    %v6416 = vmul.f32 %v4784, %v6360
    %v6417 = vmul.f32 %v4785, %v6361
    %v6418 = vmul.f32 %v4786, %v6362
    %v6419 = vmul.f32 %v4787, %v6363
    %v6420 = vmul.f32 %v4788, %v6364
    %v6421 = vmul.f32 %v4789, %v6365
    %v6422 = vmul.f32 %v4790, %v6366
    %v6423 = vmul.f32 %v4791, %v6367
    %v6424 = vmul.f32 %v4792, %v6368
    %v6425 = vmul.f32 %v4793, %v6369
    %v6426 = vmul.f32 %v4794, %v6370
    %v6427 = vmul.f32 %v4795, %v6371
    %v6428 = vmul.f32 %v4796, %v6372
    %v6429 = vmul.f32 %v4797, %v6373
    %v6430 = vmul.f32 %v4798, %v6374
    %v6431 = vmul.f32 %v4799, %v6375
    %v6432 = vmul.f32 %v4800, %v6376
    %v6433 = vmul.f32 %v4801, %v6377
    %v6434 = vmul.f32 %v4802, %v6378
    %v6435 = vmul.f32 %v4803, %v6379
    %v6436 = vmul.f32 %v4804, %v6380
    %v6437 = vmul.f32 %v4805, %v6381
    %v6438 = vmul.f32 %v4806, %v6382
    %v6439 = vmul.f32 %v4807, %v6383
    %v6440 = vmul.f32 %v4808, %v6384
    %v6441 = vmul.f32 %v4809, %v6385
    %v6442 = vpack.c.bf16 %v6387, %v6386
    %v6443 = vpack.c.bf16 %v6389, %v6388
    %v6444 = vpack.c.bf16 %v6391, %v6390
    %v6445 = vpack.c.bf16 %v6392, %v6392
    %v6446 = vpack.c.bf16 %v6394, %v6393
    %v6447 = vpack.c.bf16 %v6396, %v6395
    %v6448 = vpack.c.bf16 %v6398, %v6397
    %v6449 = vpack.c.bf16 %v6399, %v6399
    %v6450 = vpack.c.bf16 %v6401, %v6400
    %v6451 = vpack.c.bf16 %v6403, %v6402
    %v6452 = vpack.c.bf16 %v6405, %v6404
    %v6453 = vpack.c.bf16 %v6406, %v6406
    %v6454 = vpack.c.bf16 %v6408, %v6407
    %v6455 = vpack.c.bf16 %v6410, %v6409
    %v6456 = vpack.c.bf16 %v6412, %v6411
    %v6457 = vpack.c.bf16 %v6413, %v6413
    %v6458 = vpack.c.bf16 %v6415, %v6414
    %v6459 = vpack.c.bf16 %v6417, %v6416
    %v6460 = vpack.c.bf16 %v6419, %v6418
    %v6461 = vpack.c.bf16 %v6420, %v6420
    %v6462 = vpack.c.bf16 %v6422, %v6421
    %v6463 = vpack.c.bf16 %v6424, %v6423
    %v6464 = vpack.c.bf16 %v6426, %v6425
    %v6465 = vpack.c.bf16 %v6427, %v6427
    %v6466 = vpack.c.bf16 %v6429, %v6428
    %v6467 = vpack.c.bf16 %v6431, %v6430
    %v6468 = vpack.c.bf16 %v6433, %v6432
    %v6469 = vpack.c.bf16 %v6434, %v6434
    %v6470 = vpack.c.bf16 %v6436, %v6435
    %v6471 = vpack.c.bf16 %v6438, %v6437
    %v6472 = vpack.c.bf16 %v6440, %v6439
    %v6473 = vpack.c.bf16 %v6441, %v6441
    %v6474 = vunpack.c.l.bf16 %v6442
    %v6475 = vunpack.c.h.bf16 %v6442
    %v6476 = vunpack.c.l.bf16 %v6443
    %v6477 = vunpack.c.h.bf16 %v6443
    %v6478 = vunpack.c.l.bf16 %v6444
    %v6479 = vunpack.c.h.bf16 %v6444
    %v6480 = vunpack.c.l.bf16 %v6445
    %v6481 = vunpack.c.l.bf16 %v6446
    %v6482 = vunpack.c.h.bf16 %v6446
    %v6483 = vunpack.c.l.bf16 %v6447
    %v6484 = vunpack.c.h.bf16 %v6447
    %v6485 = vunpack.c.l.bf16 %v6448
    %v6486 = vunpack.c.h.bf16 %v6448
    %v6487 = vunpack.c.l.bf16 %v6449
    %v6488 = vunpack.c.l.bf16 %v6450
    %v6489 = vunpack.c.h.bf16 %v6450
    %v6490 = vunpack.c.l.bf16 %v6451
    %v6491 = vunpack.c.h.bf16 %v6451
    %v6492 = vunpack.c.l.bf16 %v6452
    %v6493 = vunpack.c.h.bf16 %v6452
    %v6494 = vunpack.c.l.bf16 %v6453
    %v6495 = vunpack.c.l.bf16 %v6454
    %v6496 = vunpack.c.h.bf16 %v6454
    %v6497 = vunpack.c.l.bf16 %v6455
    %v6498 = vunpack.c.h.bf16 %v6455
    %v6499 = vunpack.c.l.bf16 %v6456
    %v6500 = vunpack.c.h.bf16 %v6456
    %v6501 = vunpack.c.l.bf16 %v6457
    %v6502 = vunpack.c.l.bf16 %v6458
    %v6503 = vunpack.c.h.bf16 %v6458
    %v6504 = vunpack.c.l.bf16 %v6459
    %v6505 = vunpack.c.h.bf16 %v6459
    %v6506 = vunpack.c.l.bf16 %v6460
    %v6507 = vunpack.c.h.bf16 %v6460
    %v6508 = vunpack.c.l.bf16 %v6461
    %v6509 = vunpack.c.l.bf16 %v6462
    %v6510 = vunpack.c.h.bf16 %v6462
    %v6511 = vunpack.c.l.bf16 %v6463
    %v6512 = vunpack.c.h.bf16 %v6463
    %v6513 = vunpack.c.l.bf16 %v6464
    %v6514 = vunpack.c.h.bf16 %v6464
    %v6515 = vunpack.c.l.bf16 %v6465
    %v6516 = vunpack.c.l.bf16 %v6466
    %v6517 = vunpack.c.h.bf16 %v6466
    %v6518 = vunpack.c.l.bf16 %v6467
    %v6519 = vunpack.c.h.bf16 %v6467
    %v6520 = vunpack.c.l.bf16 %v6468
    %v6521 = vunpack.c.h.bf16 %v6468
    %v6522 = vunpack.c.l.bf16 %v6469
    %v6523 = vunpack.c.l.bf16 %v6470
    %v6524 = vunpack.c.h.bf16 %v6470
    %v6525 = vunpack.c.l.bf16 %v6471
    %v6526 = vunpack.c.h.bf16 %v6471
    %v6527 = vunpack.c.l.bf16 %v6472
    %v6528 = vunpack.c.h.bf16 %v6472
    %v6529 = vunpack.c.l.bf16 %v6473
    %v6530 = vmax.f32 %v6474, %v6475
    %v6531 = vmax.f32 %v6530, %v6476
    %v6532 = vmax.f32 %v6531, %v6477
    %v6533 = vmax.f32 %v6532, %v6478
    %v6534 = vmax.f32 %v6533, %v6479
    %v6535 = vsel %vm3088, %v6480, -inf
    %v6536 = vmax.f32 %v6534, %v6535
    %v6537 = vrot.slane %v6536, 4
    %v6538 = vmax.f32 %v6536, %v6537
    %v6539 = vrot.slane %v6538, 2
    %v6540 = vmax.f32 %v6538, %v6539
    %v6541 = vrot.slane %v6540, 1
    %v6542 = vmax.f32 %v6540, %v6541
    %v6543 = vmax.f32 %v6481, %v6482
    %v6544 = vmax.f32 %v6543, %v6483
    %v6545 = vmax.f32 %v6544, %v6484
    %v6546 = vmax.f32 %v6545, %v6485
    %v6547 = vmax.f32 %v6546, %v6486
    %v6548 = vsel %vm3088, %v6487, -inf
    %v6549 = vmax.f32 %v6547, %v6548
    %v6550 = vrot.slane %v6549, 4
    %v6551 = vmax.f32 %v6549, %v6550
    %v6552 = vrot.slane %v6551, 2
    %v6553 = vmax.f32 %v6551, %v6552
    %v6554 = vrot.slane %v6553, 1
    %v6555 = vmax.f32 %v6553, %v6554
    %v6556 = vmax.f32 %v6488, %v6489
    %v6557 = vmax.f32 %v6556, %v6490
    %v6558 = vmax.f32 %v6557, %v6491
    %v6559 = vmax.f32 %v6558, %v6492
    %v6560 = vmax.f32 %v6559, %v6493
    %v6561 = vsel %vm3088, %v6494, -inf
    %v6562 = vmax.f32 %v6560, %v6561
    %v6563 = vrot.slane %v6562, 4
    %v6564 = vmax.f32 %v6562, %v6563
    %v6565 = vrot.slane %v6564, 2
    %v6566 = vmax.f32 %v6564, %v6565
    %v6567 = vrot.slane %v6566, 1
    %v6568 = vmax.f32 %v6566, %v6567
    %v6569 = vmax.f32 %v6495, %v6496
    %v6570 = vmax.f32 %v6569, %v6497
    %v6571 = vmax.f32 %v6570, %v6498
    %v6572 = vmax.f32 %v6571, %v6499
    %v6573 = vmax.f32 %v6572, %v6500
    %v6574 = vsel %vm3088, %v6501, -inf
    %v6575 = vmax.f32 %v6573, %v6574
    %v6576 = vrot.slane %v6575, 4
    %v6577 = vmax.f32 %v6575, %v6576
    %v6578 = vrot.slane %v6577, 2
    %v6579 = vmax.f32 %v6577, %v6578
    %v6580 = vrot.slane %v6579, 1
    %v6581 = vmax.f32 %v6579, %v6580
    %v6582 = vmax.f32 %v6502, %v6503
    %v6583 = vmax.f32 %v6582, %v6504
    %v6584 = vmax.f32 %v6583, %v6505
    %v6585 = vmax.f32 %v6584, %v6506
    %v6586 = vmax.f32 %v6585, %v6507
    %v6587 = vsel %vm3088, %v6508, -inf
    %v6588 = vmax.f32 %v6586, %v6587
    %v6589 = vrot.slane %v6588, 4
    %v6590 = vmax.f32 %v6588, %v6589
    %v6591 = vrot.slane %v6590, 2
    %v6592 = vmax.f32 %v6590, %v6591
    %v6593 = vrot.slane %v6592, 1
    %v6594 = vmax.f32 %v6592, %v6593
    %v6595 = vmax.f32 %v6509, %v6510
    %v6596 = vmax.f32 %v6595, %v6511
    %v6597 = vmax.f32 %v6596, %v6512
    %v6598 = vmax.f32 %v6597, %v6513
    %v6599 = vmax.f32 %v6598, %v6514
    %v6600 = vsel %vm3088, %v6515, -inf
    %v6601 = vmax.f32 %v6599, %v6600
    %v6602 = vrot.slane %v6601, 4
    %v6603 = vmax.f32 %v6601, %v6602
    %v6604 = vrot.slane %v6603, 2
    %v6605 = vmax.f32 %v6603, %v6604
    %v6606 = vrot.slane %v6605, 1
    %v6607 = vmax.f32 %v6605, %v6606
    %v6608 = vmax.f32 %v6516, %v6517
    %v6609 = vmax.f32 %v6608, %v6518
    %v6610 = vmax.f32 %v6609, %v6519
    %v6611 = vmax.f32 %v6610, %v6520
    %v6612 = vmax.f32 %v6611, %v6521
    %v6613 = vsel %vm3088, %v6522, -inf
    %v6614 = vmax.f32 %v6612, %v6613
    %v6615 = vrot.slane %v6614, 4
    %v6616 = vmax.f32 %v6614, %v6615
    %v6617 = vrot.slane %v6616, 2
    %v6618 = vmax.f32 %v6616, %v6617
    %v6619 = vrot.slane %v6618, 1
    %v6620 = vmax.f32 %v6618, %v6619
    %v6621 = vmax.f32 %v6523, %v6524
    %v6622 = vmax.f32 %v6621, %v6525
    %v6623 = vmax.f32 %v6622, %v6526
    %v6624 = vmax.f32 %v6623, %v6527
    %v6625 = vmax.f32 %v6624, %v6528
    %v6626 = vsel %vm3088, %v6529, -inf
    %v6627 = vmax.f32 %v6625, %v6626
    %v6628 = vrot.slane %v6627, 4
    %v6629 = vmax.f32 %v6627, %v6628
    %v6630 = vrot.slane %v6629, 2
    %v6631 = vmax.f32 %v6629, %v6630
    %v6632 = vrot.slane %v6631, 1
    %v6633 = vmax.f32 %v6631, %v6632
    %v6634 = vpack.c.bf16 %v6542, %v6542
    %v6635 = vpack.c.bf16 %v6555, %v6555
    %v6636 = vpack.c.bf16 %v6568, %v6568
    %v6637 = vpack.c.bf16 %v6581, %v6581
    %v6638 = vpack.c.bf16 %v6594, %v6594
    %v6639 = vpack.c.bf16 %v6607, %v6607
    %v6640 = vpack.c.bf16 %v6620, %v6620
    %v6641 = vpack.c.bf16 %v6633, %v6633
    %6642 = vset.pattern.permute.xlu0 3
    %6643 = vperm.xlu0 %6642, %v4194
    %v6644 = vpop.permute.xlu0 %6643
    %v6647 = vunpack.c.l.s4 839922192
    %v6648 = vunpack.c.0.s8 %v6647
    %v6649 = vperm.slane %v6644, %v6648
    %6650 = vset.pattern.permute.xlu0 3
    %6651 = vperm.xlu0 %6650, %v4195
    %v6652 = vpop.permute.xlu0 %6651
    %v6655 = vunpack.c.l.s4 839922192
    %v6656 = vunpack.c.0.s8 %v6655
    %v6657 = vperm.slane %v6652, %v6656
    %6658 = vset.pattern.permute.xlu0 3
    %6659 = vperm.xlu0 %6658, %v4196
    %v6660 = vpop.permute.xlu0 %6659
    %v6663 = vunpack.c.l.s4 839922192
    %v6664 = vunpack.c.0.s8 %v6663
    %v6665 = vperm.slane %v6660, %v6664
    %6666 = vset.pattern.permute.xlu0 3
    %6667 = vperm.xlu0 %6666, %v4197
    %v6668 = vpop.permute.xlu0 %6667
    %v6671 = vunpack.c.l.s4 839922192
    %v6672 = vunpack.c.0.s8 %v6671
    %v6673 = vperm.slane %v6668, %v6672
    %6674 = vset.pattern.permute.xlu0 3
    %6675 = vperm.xlu0 %6674, %v4198
    %v6676 = vpop.permute.xlu0 %6675
    %v6679 = vunpack.c.l.s4 839922192
    %v6680 = vunpack.c.0.s8 %v6679
    %v6681 = vperm.slane %v6676, %v6680
    %6682 = vset.pattern.permute.xlu0 3
    %6683 = vperm.xlu0 %6682, %v4199
    %v6684 = vpop.permute.xlu0 %6683
    %v6687 = vunpack.c.l.s4 839922192
    %v6688 = vunpack.c.0.s8 %v6687
    %v6689 = vperm.slane %v6684, %v6688
    %6690 = vset.pattern.permute.xlu0 3
    %6691 = vperm.xlu0 %6690, %v4200
    %v6692 = vpop.permute.xlu0 %6691
    %v6695 = vunpack.c.l.s4 839922192
    %v6696 = vunpack.c.0.s8 %v6695
    %v6697 = vperm.slane %v6692, %v6696
    %6698 = vset.pattern.permute.xlu0 3
    %6699 = vperm.xlu0 %6698, %v4201
    %v6700 = vpop.permute.xlu0 %6699
    %v6703 = vunpack.c.l.s4 839922192
    %v6704 = vunpack.c.0.s8 %v6703
    %v6705 = vperm.slane %v6700, %v6704
    %6706 = vset.pattern.permute.xlu0 3
    %6707 = vperm.xlu0 %6706, %v4202
    %v6708 = vpop.permute.xlu0 %6707
    %v6711 = vunpack.c.l.s4 839922192
    %v6712 = vunpack.c.0.s8 %v6711
    %v6713 = vperm.slane %v6708, %v6712
    %6714 = vset.pattern.permute.xlu0 3
    %6715 = vperm.xlu0 %6714, %v4203
    %v6716 = vpop.permute.xlu0 %6715
    %v6719 = vunpack.c.l.s4 839922192
    %v6720 = vunpack.c.0.s8 %v6719
    %v6721 = vperm.slane %v6716, %v6720
    %6722 = vset.pattern.permute.xlu0 3
    %6723 = vperm.xlu0 %6722, %v4204
    %v6724 = vpop.permute.xlu0 %6723
    %v6727 = vunpack.c.l.s4 839922192
    %v6728 = vunpack.c.0.s8 %v6727
    %v6729 = vperm.slane %v6724, %v6728
    %6730 = vset.pattern.permute.xlu0 3
    %6731 = vperm.xlu0 %6730, %v4205
    %v6732 = vpop.permute.xlu0 %6731
    %v6735 = vunpack.c.l.s4 839922192
    %v6736 = vunpack.c.0.s8 %v6735
    %v6737 = vperm.slane %v6732, %v6736
    %6738 = vset.pattern.permute.xlu0 3
    %6739 = vperm.xlu0 %6738, %v4206
    %v6740 = vpop.permute.xlu0 %6739
    %v6743 = vunpack.c.l.s4 839922192
    %v6744 = vunpack.c.0.s8 %v6743
    %v6745 = vperm.slane %v6740, %v6744
    %6746 = vset.pattern.permute.xlu0 3
    %6747 = vperm.xlu0 %6746, %v4207
    %v6748 = vpop.permute.xlu0 %6747
    %v6751 = vunpack.c.l.s4 839922192
    %v6752 = vunpack.c.0.s8 %v6751
    %v6753 = vperm.slane %v6748, %v6752
    %6754 = vset.pattern.permute.xlu0 3
    %6755 = vperm.xlu0 %6754, %v4208
    %v6756 = vpop.permute.xlu0 %6755
    %v6759 = vunpack.c.l.s4 839922192
    %v6760 = vunpack.c.0.s8 %v6759
    %v6761 = vperm.slane %v6756, %v6760
    %6762 = vset.pattern.permute.xlu0 3
    %6763 = vperm.xlu0 %6762, %v4209
    %v6764 = vpop.permute.xlu0 %6763
    %v6767 = vunpack.c.l.s4 839922192
    %v6768 = vunpack.c.0.s8 %v6767
    %v6769 = vperm.slane %v6764, %v6768
    %6770 = vset.pattern.permute.xlu0 3
    %6771 = vperm.xlu0 %6770, %v4210
    %v6772 = vpop.permute.xlu0 %6771
    %v6775 = vunpack.c.l.s4 839922192
    %v6776 = vunpack.c.0.s8 %v6775
    %v6777 = vperm.slane %v6772, %v6776
    %6778 = vset.pattern.permute.xlu0 3
    %6779 = vperm.xlu0 %6778, %v4211
    %v6780 = vpop.permute.xlu0 %6779
    %v6783 = vunpack.c.l.s4 839922192
    %v6784 = vunpack.c.0.s8 %v6783
    %v6785 = vperm.slane %v6780, %v6784
    %6786 = vset.pattern.permute.xlu0 3
    %6787 = vperm.xlu0 %6786, %v4212
    %v6788 = vpop.permute.xlu0 %6787
    %v6791 = vunpack.c.l.s4 839922192
    %v6792 = vunpack.c.0.s8 %v6791
    %v6793 = vperm.slane %v6788, %v6792
    %6794 = vset.pattern.permute.xlu0 3
    %6795 = vperm.xlu0 %6794, %v4213
    %v6796 = vpop.permute.xlu0 %6795
    %v6799 = vunpack.c.l.s4 839922192
    %v6800 = vunpack.c.0.s8 %v6799
    %v6801 = vperm.slane %v6796, %v6800
    %6802 = vset.pattern.permute.xlu0 3
    %6803 = vperm.xlu0 %6802, %v4214
    %v6804 = vpop.permute.xlu0 %6803
    %v6807 = vunpack.c.l.s4 839922192
    %v6808 = vunpack.c.0.s8 %v6807
    %v6809 = vperm.slane %v6804, %v6808
    %6810 = vset.pattern.permute.xlu0 3
    %6811 = vperm.xlu0 %6810, %v4215
    %v6812 = vpop.permute.xlu0 %6811
    %v6815 = vunpack.c.l.s4 839922192
    %v6816 = vunpack.c.0.s8 %v6815
    %v6817 = vperm.slane %v6812, %v6816
    %6818 = vset.pattern.permute.xlu0 3
    %6819 = vperm.xlu0 %6818, %v4216
    %v6820 = vpop.permute.xlu0 %6819
    %v6823 = vunpack.c.l.s4 839922192
    %v6824 = vunpack.c.0.s8 %v6823
    %v6825 = vperm.slane %v6820, %v6824
    %6826 = vset.pattern.permute.xlu0 3
    %6827 = vperm.xlu0 %6826, %v4217
    %v6828 = vpop.permute.xlu0 %6827
    %v6831 = vunpack.c.l.s4 839922192
    %v6832 = vunpack.c.0.s8 %v6831
    %v6833 = vperm.slane %v6828, %v6832
    %6834 = vset.pattern.permute.xlu0 3
    %6835 = vperm.xlu0 %6834, %v4218
    %v6836 = vpop.permute.xlu0 %6835
    %v6839 = vunpack.c.l.s4 839922192
    %v6840 = vunpack.c.0.s8 %v6839
    %v6841 = vperm.slane %v6836, %v6840
    %6842 = vset.pattern.permute.xlu0 3
    %6843 = vperm.xlu0 %6842, %v4219
    %v6844 = vpop.permute.xlu0 %6843
    %v6847 = vunpack.c.l.s4 839922192
    %v6848 = vunpack.c.0.s8 %v6847
    %v6849 = vperm.slane %v6844, %v6848
    %6850 = vset.pattern.permute.xlu0 3
    %6851 = vperm.xlu0 %6850, %v4220
    %v6852 = vpop.permute.xlu0 %6851
    %v6855 = vunpack.c.l.s4 839922192
    %v6856 = vunpack.c.0.s8 %v6855
    %v6857 = vperm.slane %v6852, %v6856
    %6858 = vset.pattern.permute.xlu0 3
    %6859 = vperm.xlu0 %6858, %v4221
    %v6860 = vpop.permute.xlu0 %6859
    %v6863 = vunpack.c.l.s4 839922192
    %v6864 = vunpack.c.0.s8 %v6863
    %v6865 = vperm.slane %v6860, %v6864
    %6866 = vset.pattern.permute.xlu0 3
    %6867 = vperm.xlu0 %6866, %v4222
    %v6868 = vpop.permute.xlu0 %6867
    %v6871 = vunpack.c.l.s4 839922192
    %v6872 = vunpack.c.0.s8 %v6871
    %v6873 = vperm.slane %v6868, %v6872
    %6874 = vset.pattern.permute.xlu0 3
    %6875 = vperm.xlu0 %6874, %v4223
    %v6876 = vpop.permute.xlu0 %6875
    %v6879 = vunpack.c.l.s4 839922192
    %v6880 = vunpack.c.0.s8 %v6879
    %v6881 = vperm.slane %v6876, %v6880
    %6882 = vset.pattern.permute.xlu0 3
    %6883 = vperm.xlu0 %6882, %v4224
    %v6884 = vpop.permute.xlu0 %6883
    %v6887 = vunpack.c.l.s4 839922192
    %v6888 = vunpack.c.0.s8 %v6887
    %v6889 = vperm.slane %v6884, %v6888
    %6890 = vset.pattern.permute.xlu0 3
    %6891 = vperm.xlu0 %6890, %v4225
    %v6892 = vpop.permute.xlu0 %6891
    %v6895 = vunpack.c.l.s4 839922192
    %v6896 = vunpack.c.0.s8 %v6895
    %v6897 = vperm.slane %v6892, %v6896
    %6898 = vset.pattern.permute.xlu0 3
    %6899 = vperm.xlu0 %6898, %v4226
    %v6900 = vpop.permute.xlu0 %6899
    %v6903 = vunpack.c.l.s4 839922192
    %v6904 = vunpack.c.0.s8 %v6903
    %v6905 = vperm.slane %v6900, %v6904
    %6906 = vset.pattern.permute.xlu0 3
    %6907 = vperm.xlu0 %6906, %v4227
    %v6908 = vpop.permute.xlu0 %6907
    %v6911 = vunpack.c.l.s4 839922192
    %v6912 = vunpack.c.0.s8 %v6911
    %v6913 = vperm.slane %v6908, %v6912
    %6914 = vset.pattern.permute.xlu0 3
    %6915 = vperm.xlu0 %6914, %v4228
    %v6916 = vpop.permute.xlu0 %6915
    %v6919 = vunpack.c.l.s4 839922192
    %v6920 = vunpack.c.0.s8 %v6919
    %v6921 = vperm.slane %v6916, %v6920
    %6922 = vset.pattern.permute.xlu0 3
    %6923 = vperm.xlu0 %6922, %v4229
    %v6924 = vpop.permute.xlu0 %6923
    %v6927 = vunpack.c.l.s4 839922192
    %v6928 = vunpack.c.0.s8 %v6927
    %v6929 = vperm.slane %v6924, %v6928
    %6930 = vset.pattern.permute.xlu0 3
    %6931 = vperm.xlu0 %6930, %v4230
    %v6932 = vpop.permute.xlu0 %6931
    %v6935 = vunpack.c.l.s4 839922192
    %v6936 = vunpack.c.0.s8 %v6935
    %v6937 = vperm.slane %v6932, %v6936
    %6938 = vset.pattern.permute.xlu0 3
    %6939 = vperm.xlu0 %6938, %v4231
    %v6940 = vpop.permute.xlu0 %6939
    %v6943 = vunpack.c.l.s4 839922192
    %v6944 = vunpack.c.0.s8 %v6943
    %v6945 = vperm.slane %v6940, %v6944
    %6946 = vset.pattern.permute.xlu0 3
    %6947 = vperm.xlu0 %6946, %v4232
    %v6948 = vpop.permute.xlu0 %6947
    %v6951 = vunpack.c.l.s4 839922192
    %v6952 = vunpack.c.0.s8 %v6951
    %v6953 = vperm.slane %v6948, %v6952
    %6954 = vset.pattern.permute.xlu0 3
    %6955 = vperm.xlu0 %6954, %v4233
    %v6956 = vpop.permute.xlu0 %6955
    %v6959 = vunpack.c.l.s4 839922192
    %v6960 = vunpack.c.0.s8 %v6959
    %v6961 = vperm.slane %v6956, %v6960
    %6962 = vset.pattern.permute.xlu0 3
    %6963 = vperm.xlu0 %6962, %v4234
    %v6964 = vpop.permute.xlu0 %6963
    %v6967 = vunpack.c.l.s4 839922192
    %v6968 = vunpack.c.0.s8 %v6967
    %v6969 = vperm.slane %v6964, %v6968
    %6970 = vset.pattern.permute.xlu0 3
    %6971 = vperm.xlu0 %6970, %v4235
    %v6972 = vpop.permute.xlu0 %6971
    %v6975 = vunpack.c.l.s4 839922192
    %v6976 = vunpack.c.0.s8 %v6975
    %v6977 = vperm.slane %v6972, %v6976
    %6978 = vset.pattern.permute.xlu0 3
    %6979 = vperm.xlu0 %6978, %v4236
    %v6980 = vpop.permute.xlu0 %6979
    %v6983 = vunpack.c.l.s4 839922192
    %v6984 = vunpack.c.0.s8 %v6983
    %v6985 = vperm.slane %v6980, %v6984
    %6986 = vset.pattern.permute.xlu0 3
    %6987 = vperm.xlu0 %6986, %v4237
    %v6988 = vpop.permute.xlu0 %6987
    %v6991 = vunpack.c.l.s4 839922192
    %v6992 = vunpack.c.0.s8 %v6991
    %v6993 = vperm.slane %v6988, %v6992
    %6994 = vset.pattern.permute.xlu0 3
    %6995 = vperm.xlu0 %6994, %v4238
    %v6996 = vpop.permute.xlu0 %6995
    %v6999 = vunpack.c.l.s4 839922192
    %v7000 = vunpack.c.0.s8 %v6999
    %v7001 = vperm.slane %v6996, %v7000
    %7002 = vset.pattern.permute.xlu0 3
    %7003 = vperm.xlu0 %7002, %v4239
    %v7004 = vpop.permute.xlu0 %7003
    %v7007 = vunpack.c.l.s4 839922192
    %v7008 = vunpack.c.0.s8 %v7007
    %v7009 = vperm.slane %v7004, %v7008
    %7010 = vset.pattern.permute.xlu0 3
    %7011 = vperm.xlu0 %7010, %v4240
    %v7012 = vpop.permute.xlu0 %7011
    %v7015 = vunpack.c.l.s4 839922192
    %v7016 = vunpack.c.0.s8 %v7015
    %v7017 = vperm.slane %v7012, %v7016
    %7018 = vset.pattern.permute.xlu0 3
    %7019 = vperm.xlu0 %7018, %v4241
    %v7020 = vpop.permute.xlu0 %7019
    %v7023 = vunpack.c.l.s4 839922192
    %v7024 = vunpack.c.0.s8 %v7023
    %v7025 = vperm.slane %v7020, %v7024
    %7026 = vset.pattern.permute.xlu0 3
    %7027 = vperm.xlu0 %7026, %v4242
    %v7028 = vpop.permute.xlu0 %7027
    %v7031 = vunpack.c.l.s4 839922192
    %v7032 = vunpack.c.0.s8 %v7031
    %v7033 = vperm.slane %v7028, %v7032
    %7034 = vset.pattern.permute.xlu0 3
    %7035 = vperm.xlu0 %7034, %v4243
    %v7036 = vpop.permute.xlu0 %7035
    %v7039 = vunpack.c.l.s4 839922192
    %v7040 = vunpack.c.0.s8 %v7039
    %v7041 = vperm.slane %v7036, %v7040
    %7042 = vset.pattern.permute.xlu0 3
    %7043 = vperm.xlu0 %7042, %v4244
    %v7044 = vpop.permute.xlu0 %7043
    %v7047 = vunpack.c.l.s4 839922192
    %v7048 = vunpack.c.0.s8 %v7047
    %v7049 = vperm.slane %v7044, %v7048
    %7050 = vset.pattern.permute.xlu0 3
    %7051 = vperm.xlu0 %7050, %v4245
    %v7052 = vpop.permute.xlu0 %7051
    %v7055 = vunpack.c.l.s4 839922192
    %v7056 = vunpack.c.0.s8 %v7055
    %v7057 = vperm.slane %v7052, %v7056
    %7058 = vset.pattern.permute.xlu0 3
    %7059 = vperm.xlu0 %7058, %v4246
    %v7060 = vpop.permute.xlu0 %7059
    %v7063 = vunpack.c.l.s4 839922192
    %v7064 = vunpack.c.0.s8 %v7063
    %v7065 = vperm.slane %v7060, %v7064
    %7066 = vset.pattern.permute.xlu0 3
    %7067 = vperm.xlu0 %7066, %v4247
    %v7068 = vpop.permute.xlu0 %7067
    %v7071 = vunpack.c.l.s4 839922192
    %v7072 = vunpack.c.0.s8 %v7071
    %v7073 = vperm.slane %v7068, %v7072
    %7074 = vset.pattern.permute.xlu0 3
    %7075 = vperm.xlu0 %7074, %v4248
    %v7076 = vpop.permute.xlu0 %7075
    %v7079 = vunpack.c.l.s4 839922192
    %v7080 = vunpack.c.0.s8 %v7079
    %v7081 = vperm.slane %v7076, %v7080
    %7082 = vset.pattern.permute.xlu0 3
    %7083 = vperm.xlu0 %7082, %v4249
    %v7084 = vpop.permute.xlu0 %7083
    %v7087 = vunpack.c.l.s4 839922192
    %v7088 = vunpack.c.0.s8 %v7087
    %v7089 = vperm.slane %v7084, %v7088
    %v7090 = vunpack.c.l.bf16 %v6649
    %v7091 = vunpack.c.l.bf16 %v6657
    %v7092 = vunpack.c.l.bf16 %v6665
    %v7093 = vunpack.c.l.bf16 %v6673
    %v7094 = vunpack.c.l.bf16 %v6681
    %v7095 = vunpack.c.l.bf16 %v6689
    %v7096 = vunpack.c.l.bf16 %v6697
    %v7097 = vunpack.c.l.bf16 %v6705
    %v7098 = vunpack.c.l.bf16 %v6713
    %v7099 = vunpack.c.l.bf16 %v6721
    %v7100 = vunpack.c.l.bf16 %v6729
    %v7101 = vunpack.c.l.bf16 %v6737
    %v7102 = vunpack.c.l.bf16 %v6745
    %v7103 = vunpack.c.l.bf16 %v6753
    %v7104 = vunpack.c.l.bf16 %v6761
    %v7105 = vunpack.c.l.bf16 %v6769
    %v7106 = vunpack.c.l.bf16 %v6777
    %v7107 = vunpack.c.l.bf16 %v6785
    %v7108 = vunpack.c.l.bf16 %v6793
    %v7109 = vunpack.c.l.bf16 %v6801
    %v7110 = vunpack.c.l.bf16 %v6809
    %v7111 = vunpack.c.l.bf16 %v6817
    %v7112 = vunpack.c.l.bf16 %v6825
    %v7113 = vunpack.c.l.bf16 %v6833
    %v7114 = vunpack.c.l.bf16 %v6841
    %v7115 = vunpack.c.l.bf16 %v6849
    %v7116 = vunpack.c.l.bf16 %v6857
    %v7117 = vunpack.c.l.bf16 %v6865
    %v7118 = vunpack.c.l.bf16 %v6873
    %v7119 = vunpack.c.l.bf16 %v6881
    %v7120 = vunpack.c.l.bf16 %v6889
    %v7121 = vunpack.c.l.bf16 %v6897
    %v7122 = vunpack.c.l.bf16 %v6905
    %v7123 = vunpack.c.l.bf16 %v6913
    %v7124 = vunpack.c.l.bf16 %v6921
    %v7125 = vunpack.c.l.bf16 %v6929
    %v7126 = vunpack.c.l.bf16 %v6937
    %v7127 = vunpack.c.l.bf16 %v6945
    %v7128 = vunpack.c.l.bf16 %v6953
    %v7129 = vunpack.c.l.bf16 %v6961
    %v7130 = vunpack.c.l.bf16 %v6969
    %v7131 = vunpack.c.l.bf16 %v6977
    %v7132 = vunpack.c.l.bf16 %v6985
    %v7133 = vunpack.c.l.bf16 %v6993
    %v7134 = vunpack.c.l.bf16 %v7001
    %v7135 = vunpack.c.l.bf16 %v7009
    %v7136 = vunpack.c.l.bf16 %v7017
    %v7137 = vunpack.c.l.bf16 %v7025
    %v7138 = vunpack.c.l.bf16 %v7033
    %v7139 = vunpack.c.l.bf16 %v7041
    %v7140 = vunpack.c.l.bf16 %v7049
    %v7141 = vunpack.c.l.bf16 %v7057
    %v7142 = vunpack.c.l.bf16 %v7065
    %v7143 = vunpack.c.l.bf16 %v7073
    %v7144 = vunpack.c.l.bf16 %v7081
    %v7145 = vunpack.c.l.bf16 %v7089
    %v7146 = vmul.f32 %v4754, %v7090
    %v7147 = vmul.f32 %v4755, %v7091
    %v7148 = vmul.f32 %v4756, %v7092
    %v7149 = vmul.f32 %v4757, %v7093
    %v7150 = vmul.f32 %v4758, %v7094
    %v7151 = vmul.f32 %v4759, %v7095
    %v7152 = vmul.f32 %v4760, %v7096
    %v7153 = vmul.f32 %v4761, %v7097
    %v7154 = vmul.f32 %v4762, %v7098
    %v7155 = vmul.f32 %v4763, %v7099
    %v7156 = vmul.f32 %v4764, %v7100
    %v7157 = vmul.f32 %v4765, %v7101
    %v7158 = vmul.f32 %v4766, %v7102
    %v7159 = vmul.f32 %v4767, %v7103
    %v7160 = vmul.f32 %v4768, %v7104
    %v7161 = vmul.f32 %v4769, %v7105
    %v7162 = vmul.f32 %v4770, %v7106
    %v7163 = vmul.f32 %v4771, %v7107
    %v7164 = vmul.f32 %v4772, %v7108
    %v7165 = vmul.f32 %v4773, %v7109
    %v7166 = vmul.f32 %v4774, %v7110
    %v7167 = vmul.f32 %v4775, %v7111
    %v7168 = vmul.f32 %v4776, %v7112
    %v7169 = vmul.f32 %v4777, %v7113
    %v7170 = vmul.f32 %v4778, %v7114
    %v7171 = vmul.f32 %v4779, %v7115
    %v7172 = vmul.f32 %v4780, %v7116
    %v7173 = vmul.f32 %v4781, %v7117
    %v7174 = vmul.f32 %v4782, %v7118
    %v7175 = vmul.f32 %v4783, %v7119
    %v7176 = vmul.f32 %v4784, %v7120
    %v7177 = vmul.f32 %v4785, %v7121
    %v7178 = vmul.f32 %v4786, %v7122
    %v7179 = vmul.f32 %v4787, %v7123
    %v7180 = vmul.f32 %v4788, %v7124
    %v7181 = vmul.f32 %v4789, %v7125
    %v7182 = vmul.f32 %v4790, %v7126
    %v7183 = vmul.f32 %v4791, %v7127
    %v7184 = vmul.f32 %v4792, %v7128
    %v7185 = vmul.f32 %v4793, %v7129
    %v7186 = vmul.f32 %v4794, %v7130
    %v7187 = vmul.f32 %v4795, %v7131
    %v7188 = vmul.f32 %v4796, %v7132
    %v7189 = vmul.f32 %v4797, %v7133
    %v7190 = vmul.f32 %v4798, %v7134
    %v7191 = vmul.f32 %v4799, %v7135
    %v7192 = vmul.f32 %v4800, %v7136
    %v7193 = vmul.f32 %v4801, %v7137
    %v7194 = vmul.f32 %v4802, %v7138
    %v7195 = vmul.f32 %v4803, %v7139
    %v7196 = vmul.f32 %v4804, %v7140
    %v7197 = vmul.f32 %v4805, %v7141
    %v7198 = vmul.f32 %v4806, %v7142
    %v7199 = vmul.f32 %v4807, %v7143
    %v7200 = vmul.f32 %v4808, %v7144
    %v7201 = vmul.f32 %v4809, %v7145
    %v7202 = vpack.c.bf16 %v7147, %v7146
    %v7203 = vpack.c.bf16 %v7149, %v7148
    %v7204 = vpack.c.bf16 %v7151, %v7150
    %v7205 = vpack.c.bf16 %v7152, %v7152
    %v7206 = vpack.c.bf16 %v7154, %v7153
    %v7207 = vpack.c.bf16 %v7156, %v7155
    %v7208 = vpack.c.bf16 %v7158, %v7157
    %v7209 = vpack.c.bf16 %v7159, %v7159
    %v7210 = vpack.c.bf16 %v7161, %v7160
    %v7211 = vpack.c.bf16 %v7163, %v7162
    %v7212 = vpack.c.bf16 %v7165, %v7164
    %v7213 = vpack.c.bf16 %v7166, %v7166
    %v7214 = vpack.c.bf16 %v7168, %v7167
    %v7215 = vpack.c.bf16 %v7170, %v7169
    %v7216 = vpack.c.bf16 %v7172, %v7171
    %v7217 = vpack.c.bf16 %v7173, %v7173
    %v7218 = vpack.c.bf16 %v7175, %v7174
    %v7219 = vpack.c.bf16 %v7177, %v7176
    %v7220 = vpack.c.bf16 %v7179, %v7178
    %v7221 = vpack.c.bf16 %v7180, %v7180
    %v7222 = vpack.c.bf16 %v7182, %v7181
    %v7223 = vpack.c.bf16 %v7184, %v7183
    %v7224 = vpack.c.bf16 %v7186, %v7185
    %v7225 = vpack.c.bf16 %v7187, %v7187
    %v7226 = vpack.c.bf16 %v7189, %v7188
    %v7227 = vpack.c.bf16 %v7191, %v7190
    %v7228 = vpack.c.bf16 %v7193, %v7192
    %v7229 = vpack.c.bf16 %v7194, %v7194
    %v7230 = vpack.c.bf16 %v7196, %v7195
    %v7231 = vpack.c.bf16 %v7198, %v7197
    %v7232 = vpack.c.bf16 %v7200, %v7199
    %v7233 = vpack.c.bf16 %v7201, %v7201
    %v7234 = vunpack.c.l.bf16 %v7202
    %v7235 = vunpack.c.h.bf16 %v7202
    %v7236 = vunpack.c.l.bf16 %v7203
    %v7237 = vunpack.c.h.bf16 %v7203
    %v7238 = vunpack.c.l.bf16 %v7204
    %v7239 = vunpack.c.h.bf16 %v7204
    %v7240 = vunpack.c.l.bf16 %v7205
    %v7241 = vunpack.c.l.bf16 %v7206
    %v7242 = vunpack.c.h.bf16 %v7206
    %v7243 = vunpack.c.l.bf16 %v7207
    %v7244 = vunpack.c.h.bf16 %v7207
    %v7245 = vunpack.c.l.bf16 %v7208
    %v7246 = vunpack.c.h.bf16 %v7208
    %v7247 = vunpack.c.l.bf16 %v7209
    %v7248 = vunpack.c.l.bf16 %v7210
    %v7249 = vunpack.c.h.bf16 %v7210
    %v7250 = vunpack.c.l.bf16 %v7211
    %v7251 = vunpack.c.h.bf16 %v7211
    %v7252 = vunpack.c.l.bf16 %v7212
    %v7253 = vunpack.c.h.bf16 %v7212
    %v7254 = vunpack.c.l.bf16 %v7213
    %v7255 = vunpack.c.l.bf16 %v7214
    %v7256 = vunpack.c.h.bf16 %v7214
    %v7257 = vunpack.c.l.bf16 %v7215
    %v7258 = vunpack.c.h.bf16 %v7215
    %v7259 = vunpack.c.l.bf16 %v7216
    %v7260 = vunpack.c.h.bf16 %v7216
    %v7261 = vunpack.c.l.bf16 %v7217
    %v7262 = vunpack.c.l.bf16 %v7218
    %v7263 = vunpack.c.h.bf16 %v7218
    %v7264 = vunpack.c.l.bf16 %v7219
    %v7265 = vunpack.c.h.bf16 %v7219
    %v7266 = vunpack.c.l.bf16 %v7220
    %v7267 = vunpack.c.h.bf16 %v7220
    %v7268 = vunpack.c.l.bf16 %v7221
    %v7269 = vunpack.c.l.bf16 %v7222
    %v7270 = vunpack.c.h.bf16 %v7222
    %v7271 = vunpack.c.l.bf16 %v7223
    %v7272 = vunpack.c.h.bf16 %v7223
    %v7273 = vunpack.c.l.bf16 %v7224
    %v7274 = vunpack.c.h.bf16 %v7224
    %v7275 = vunpack.c.l.bf16 %v7225
    %v7276 = vunpack.c.l.bf16 %v7226
    %v7277 = vunpack.c.h.bf16 %v7226
    %v7278 = vunpack.c.l.bf16 %v7227
    %v7279 = vunpack.c.h.bf16 %v7227
    %v7280 = vunpack.c.l.bf16 %v7228
    %v7281 = vunpack.c.h.bf16 %v7228
    %v7282 = vunpack.c.l.bf16 %v7229
    %v7283 = vunpack.c.l.bf16 %v7230
    %v7284 = vunpack.c.h.bf16 %v7230
    %v7285 = vunpack.c.l.bf16 %v7231
    %v7286 = vunpack.c.h.bf16 %v7231
    %v7287 = vunpack.c.l.bf16 %v7232
    %v7288 = vunpack.c.h.bf16 %v7232
    %v7289 = vunpack.c.l.bf16 %v7233
    %v7290 = vmax.f32 %v7234, %v7235
    %v7291 = vmax.f32 %v7290, %v7236
    %v7292 = vmax.f32 %v7291, %v7237
    %v7293 = vmax.f32 %v7292, %v7238
    %v7294 = vmax.f32 %v7293, %v7239
    %v7295 = vsel %vm3088, %v7240, -inf
    %v7296 = vmax.f32 %v7294, %v7295
    %v7297 = vrot.slane %v7296, 4
    %v7298 = vmax.f32 %v7296, %v7297
    %v7299 = vrot.slane %v7298, 2
    %v7300 = vmax.f32 %v7298, %v7299
    %v7301 = vrot.slane %v7300, 1
    %v7302 = vmax.f32 %v7300, %v7301
    %v7303 = vmax.f32 %v7241, %v7242
    %v7304 = vmax.f32 %v7303, %v7243
    %v7305 = vmax.f32 %v7304, %v7244
    %v7306 = vmax.f32 %v7305, %v7245
    %v7307 = vmax.f32 %v7306, %v7246
    %v7308 = vsel %vm3088, %v7247, -inf
    %v7309 = vmax.f32 %v7307, %v7308
    %v7310 = vrot.slane %v7309, 4
    %v7311 = vmax.f32 %v7309, %v7310
    %v7312 = vrot.slane %v7311, 2
    %v7313 = vmax.f32 %v7311, %v7312
    %v7314 = vrot.slane %v7313, 1
    %v7315 = vmax.f32 %v7313, %v7314
    %v7316 = vmax.f32 %v7248, %v7249
    %v7317 = vmax.f32 %v7316, %v7250
    %v7318 = vmax.f32 %v7317, %v7251
    %v7319 = vmax.f32 %v7318, %v7252
    %v7320 = vmax.f32 %v7319, %v7253
    %v7321 = vsel %vm3088, %v7254, -inf
    %v7322 = vmax.f32 %v7320, %v7321
    %v7323 = vrot.slane %v7322, 4
    %v7324 = vmax.f32 %v7322, %v7323
    %v7325 = vrot.slane %v7324, 2
    %v7326 = vmax.f32 %v7324, %v7325
    %v7327 = vrot.slane %v7326, 1
    %v7328 = vmax.f32 %v7326, %v7327
    %v7329 = vmax.f32 %v7255, %v7256
    %v7330 = vmax.f32 %v7329, %v7257
    %v7331 = vmax.f32 %v7330, %v7258
    %v7332 = vmax.f32 %v7331, %v7259
    %v7333 = vmax.f32 %v7332, %v7260
    %v7334 = vsel %vm3088, %v7261, -inf
    %v7335 = vmax.f32 %v7333, %v7334
    %v7336 = vrot.slane %v7335, 4
    %v7337 = vmax.f32 %v7335, %v7336
    %v7338 = vrot.slane %v7337, 2
    %v7339 = vmax.f32 %v7337, %v7338
    %v7340 = vrot.slane %v7339, 1
    %v7341 = vmax.f32 %v7339, %v7340
    %v7342 = vmax.f32 %v7262, %v7263
    %v7343 = vmax.f32 %v7342, %v7264
    %v7344 = vmax.f32 %v7343, %v7265
    %v7345 = vmax.f32 %v7344, %v7266
    %v7346 = vmax.f32 %v7345, %v7267
    %v7347 = vsel %vm3088, %v7268, -inf
    %v7348 = vmax.f32 %v7346, %v7347
    %v7349 = vrot.slane %v7348, 4
    %v7350 = vmax.f32 %v7348, %v7349
    %v7351 = vrot.slane %v7350, 2
    %v7352 = vmax.f32 %v7350, %v7351
    %v7353 = vrot.slane %v7352, 1
    %v7354 = vmax.f32 %v7352, %v7353
    %v7355 = vmax.f32 %v7269, %v7270
    %v7356 = vmax.f32 %v7355, %v7271
    %v7357 = vmax.f32 %v7356, %v7272
    %v7358 = vmax.f32 %v7357, %v7273
    %v7359 = vmax.f32 %v7358, %v7274
    %v7360 = vsel %vm3088, %v7275, -inf
    %v7361 = vmax.f32 %v7359, %v7360
    %v7362 = vrot.slane %v7361, 4
    %v7363 = vmax.f32 %v7361, %v7362
    %v7364 = vrot.slane %v7363, 2
    %v7365 = vmax.f32 %v7363, %v7364
    %v7366 = vrot.slane %v7365, 1
    %v7367 = vmax.f32 %v7365, %v7366
    %v7368 = vmax.f32 %v7276, %v7277
    %v7369 = vmax.f32 %v7368, %v7278
    %v7370 = vmax.f32 %v7369, %v7279
    %v7371 = vmax.f32 %v7370, %v7280
    %v7372 = vmax.f32 %v7371, %v7281
    %v7373 = vsel %vm3088, %v7282, -inf
    %v7374 = vmax.f32 %v7372, %v7373
    %v7375 = vrot.slane %v7374, 4
    %v7376 = vmax.f32 %v7374, %v7375
    %v7377 = vrot.slane %v7376, 2
    %v7378 = vmax.f32 %v7376, %v7377
    %v7379 = vrot.slane %v7378, 1
    %v7380 = vmax.f32 %v7378, %v7379
    %v7381 = vmax.f32 %v7283, %v7284
    %v7382 = vmax.f32 %v7381, %v7285
    %v7383 = vmax.f32 %v7382, %v7286
    %v7384 = vmax.f32 %v7383, %v7287
    %v7385 = vmax.f32 %v7384, %v7288
    %v7386 = vsel %vm3088, %v7289, -inf
    %v7387 = vmax.f32 %v7385, %v7386
    %v7388 = vrot.slane %v7387, 4
    %v7389 = vmax.f32 %v7387, %v7388
    %v7390 = vrot.slane %v7389, 2
    %v7391 = vmax.f32 %v7389, %v7390
    %v7392 = vrot.slane %v7391, 1
    %v7393 = vmax.f32 %v7391, %v7392
    %v7394 = vpack.c.bf16 %v7302, %v7302
    %v7395 = vpack.c.bf16 %v7315, %v7315
    %v7396 = vpack.c.bf16 %v7328, %v7328
    %v7397 = vpack.c.bf16 %v7341, %v7341
    %v7398 = vpack.c.bf16 %v7354, %v7354
    %v7399 = vpack.c.bf16 %v7367, %v7367
    %v7400 = vpack.c.bf16 %v7380, %v7380
    %v7401 = vpack.c.bf16 %v7393, %v7393
    %v7410 = vperm.slane %v5114, 0
    %v7411 = vperm.slane %v5115, 0
    %v7412 = vperm.slane %v5116, 0
    %v7413 = vperm.slane %v5117, 0
    %v7414 = vperm.slane %v5118, 0
    %v7415 = vperm.slane %v5119, 0
    %v7416 = vperm.slane %v5120, 0
    %v7417 = vperm.slane %v5121, 0
    %v7418 = vunpack.c.l.b16 %v7410
    %v7419 = vunpack.c.l.b16 %v7411
    %v7420 = vunpack.c.l.b16 %v7412
    %v7421 = vunpack.c.l.b16 %v7413
    %v7422 = vunpack.c.l.b16 %v7414
    %v7423 = vunpack.c.l.b16 %v7415
    %v7424 = vunpack.c.l.b16 %v7416
    %v7425 = vunpack.c.l.b16 %v7417
    %v7426 = vsel %vm3444, %v7419, %v7418
    %v7427 = vsel %vm3447, %v7420, %v7426
    %v7428 = vsel %vm3450, %v7421, %v7427
    %v7429 = vsel %vm3453, %v7422, %v7428
    %v7430 = vsel %vm3456, %v7423, %v7429
    %v7431 = vsel %vm3459, %v7424, %v7430
    %v7432 = vsel %vm3462, %v7425, %v7431
    %v7433 = vpack.c.b16 %v7432, %v7432
    %v7443 = vperm.slane %v5874, 0
    %v7444 = vperm.slane %v5875, 0
    %v7445 = vperm.slane %v5876, 0
    %v7446 = vperm.slane %v5877, 0
    %v7447 = vperm.slane %v5878, 0
    %v7448 = vperm.slane %v5879, 0
    %v7449 = vperm.slane %v5880, 0
    %v7450 = vperm.slane %v5881, 0
    %v7451 = vunpack.c.l.b16 %v7443
    %v7452 = vunpack.c.l.b16 %v7444
    %v7453 = vunpack.c.l.b16 %v7445
    %v7454 = vunpack.c.l.b16 %v7446
    %v7455 = vunpack.c.l.b16 %v7447
    %v7456 = vunpack.c.l.b16 %v7448
    %v7457 = vunpack.c.l.b16 %v7449
    %v7458 = vunpack.c.l.b16 %v7450
    %v7459 = vsel %vm3444, %v7452, %v7451
    %v7460 = vsel %vm3447, %v7453, %v7459
    %v7461 = vsel %vm3450, %v7454, %v7460
    %v7462 = vsel %vm3453, %v7455, %v7461
    %v7463 = vsel %vm3456, %v7456, %v7462
    %v7464 = vsel %vm3459, %v7457, %v7463
    %v7465 = vsel %vm3462, %v7458, %v7464
    %v7466 = vpack.c.b16 %v7465, %v7465
    %v7476 = vperm.slane %v6634, 0
    %v7477 = vperm.slane %v6635, 0
    %v7478 = vperm.slane %v6636, 0
    %v7479 = vperm.slane %v6637, 0
    %v7480 = vperm.slane %v6638, 0
    %v7481 = vperm.slane %v6639, 0
    %v7482 = vperm.slane %v6640, 0
    %v7483 = vperm.slane %v6641, 0
    %v7484 = vunpack.c.l.b16 %v7476
    %v7485 = vunpack.c.l.b16 %v7477
    %v7486 = vunpack.c.l.b16 %v7478
    %v7487 = vunpack.c.l.b16 %v7479
    %v7488 = vunpack.c.l.b16 %v7480
    %v7489 = vunpack.c.l.b16 %v7481
    %v7490 = vunpack.c.l.b16 %v7482
    %v7491 = vunpack.c.l.b16 %v7483
    %v7492 = vsel %vm3444, %v7485, %v7484
    %v7493 = vsel %vm3447, %v7486, %v7492
    %v7494 = vsel %vm3450, %v7487, %v7493
    %v7495 = vsel %vm3453, %v7488, %v7494
    %v7496 = vsel %vm3456, %v7489, %v7495
    %v7497 = vsel %vm3459, %v7490, %v7496
    %v7498 = vsel %vm3462, %v7491, %v7497
    %v7499 = vpack.c.b16 %v7498, %v7498
    %v7509 = vperm.slane %v7394, 0
    %v7510 = vperm.slane %v7395, 0
    %v7511 = vperm.slane %v7396, 0
    %v7512 = vperm.slane %v7397, 0
    %v7513 = vperm.slane %v7398, 0
    %v7514 = vperm.slane %v7399, 0
    %v7515 = vperm.slane %v7400, 0
    %v7516 = vperm.slane %v7401, 0
    %v7517 = vunpack.c.l.b16 %v7509
    %v7518 = vunpack.c.l.b16 %v7510
    %v7519 = vunpack.c.l.b16 %v7511
    %v7520 = vunpack.c.l.b16 %v7512
    %v7521 = vunpack.c.l.b16 %v7513
    %v7522 = vunpack.c.l.b16 %v7514
    %v7523 = vunpack.c.l.b16 %v7515
    %v7524 = vunpack.c.l.b16 %v7516
    %v7525 = vsel %vm3444, %v7518, %v7517
    %v7526 = vsel %vm3447, %v7519, %v7525
    %v7527 = vsel %vm3450, %v7520, %v7526
    %v7528 = vsel %vm3453, %v7521, %v7527
    %v7529 = vsel %vm3456, %v7522, %v7528
    %v7530 = vsel %vm3459, %v7523, %v7529
    %v7531 = vsel %vm3462, %v7524, %v7530
    %v7532 = vpack.c.b16 %v7531, %v7531
    %v7534 = vld [vmem:[#allocation2] sm:$0xf]
    %v7535 = vld [vmem:[#allocation2 + $0x4] sm:$0xf]
    %v7536 = vld [vmem:[#allocation2 + $0x8] sm:$0xf]
    %v7537 = vld [vmem:[#allocation2 + $0xc] sm:$0xf]
    %v7538 = vld [vmem:[#allocation2 + $0x10] sm:$0xf]
    %v7539 = vld [vmem:[#allocation2 + $0x14] sm:$0xf]
    %v7540 = vld [vmem:[#allocation2 + $0x18] sm:$0xf]
    %v7541 = vld [vmem:[#allocation2 + $0x1c] sm:$0xf]
    %v7542 = vld [vmem:[#allocation2 + $0x20] sm:$0xf]
    %v7543 = vld [vmem:[#allocation2 + $0x24] sm:$0xf]
    %v7544 = vld [vmem:[#allocation2 + $0x28] sm:$0xf]
    %v7545 = vld [vmem:[#allocation2 + $0x2c] sm:$0xf]
    %v7546 = vld [vmem:[#allocation2 + $0x30] sm:$0xf]
    %v7547 = vld [vmem:[#allocation2 + $0x34] sm:$0xf]
    %v7548 = vld [vmem:[#allocation2 + $0x38] sm:$0xf]
    %v7549 = vld [vmem:[#allocation2 + $0x3c] sm:$0xf]
    %v7550 = vld [vmem:[#allocation2 + $0x40] sm:$0xf]
    %v7551 = vld [vmem:[#allocation2 + $0x44] sm:$0xf]
    %v7552 = vld [vmem:[#allocation2 + $0x48] sm:$0xf]
    %v7553 = vld [vmem:[#allocation2 + $0x4c] sm:$0xf]
    %v7554 = vld [vmem:[#allocation2 + $0x50] sm:$0xf]
    %v7555 = vld [vmem:[#allocation2 + $0x54] sm:$0xf]
    %v7556 = vld [vmem:[#allocation2 + $0x58] sm:$0xf]
    %v7557 = vld [vmem:[#allocation2 + $0x5c] sm:$0xf]
    %v7558 = vld [vmem:[#allocation2 + $0x60] sm:$0xf]
    %v7559 = vld [vmem:[#allocation2 + $0x64] sm:$0xf]
    %v7560 = vld [vmem:[#allocation2 + $0x68] sm:$0xf]
    %v7561 = vld [vmem:[#allocation2 + $0x6c] sm:$0xf]
    %v7562 = vld [vmem:[#allocation2 + $0x70] sm:$0xf]
    %v7563 = vld [vmem:[#allocation2 + $0x74] sm:$0xf]
    %v7564 = vld [vmem:[#allocation2 + $0x78] sm:$0xf]
    %v7565 = vld [vmem:[#allocation2 + $0x7c] sm:$0xf]
    %v7566 = vld [vmem:[#allocation2 + $0x80] sm:$0xf]
    %v7567 = vld [vmem:[#allocation2 + $0x84] sm:$0xf]
    %v7568 = vld [vmem:[#allocation2 + $0x88] sm:$0xf]
    %v7569 = vld [vmem:[#allocation2 + $0x8c] sm:$0xf]
    %v7570 = vld [vmem:[#allocation2 + $0x90] sm:$0xf]
    %v7571 = vld [vmem:[#allocation2 + $0x94] sm:$0xf]
    %v7572 = vld [vmem:[#allocation2 + $0x98] sm:$0xf]
    %v7573 = vld [vmem:[#allocation2 + $0x9c] sm:$0xf]
    %v7574 = vld [vmem:[#allocation2 + $0xa0] sm:$0xf]
    %v7575 = vld [vmem:[#allocation2 + $0xa4] sm:$0xf]
    %v7576 = vld [vmem:[#allocation2 + $0xa8] sm:$0xf]
    %v7577 = vld [vmem:[#allocation2 + $0xac] sm:$0xf]
    %v7578 = vld [vmem:[#allocation2 + $0xb0] sm:$0xf]
    %v7579 = vld [vmem:[#allocation2 + $0xb4] sm:$0xf]
    %v7580 = vld [vmem:[#allocation2 + $0xb8] sm:$0xf]
    %v7581 = vld [vmem:[#allocation2 + $0xbc] sm:$0xf]
    %v7582 = vld [vmem:[#allocation2 + $0xc0] sm:$0xf]
    %v7583 = vld [vmem:[#allocation2 + $0xc4] sm:$0xf]
    %v7584 = vld [vmem:[#allocation2 + $0xc8] sm:$0xf]
    %v7585 = vld [vmem:[#allocation2 + $0xcc] sm:$0xf]
    %v7586 = vld [vmem:[#allocation2 + $0xd0] sm:$0xf]
    %v7587 = vld [vmem:[#allocation2 + $0xd4] sm:$0xf]
    %v7588 = vld [vmem:[#allocation2 + $0xd8] sm:$0xf]
    %v7589 = vld [vmem:[#allocation2 + $0xdc] sm:$0xf]
    %v7590 = vld [vmem:[#allocation2 + $0xe0] sm:$0xf]
    %v7591 = vld [vmem:[#allocation2 + $0xe4] sm:$0xf]
    %v7592 = vld [vmem:[#allocation2 + $0xe8] sm:$0xf]
    %v7593 = vld [vmem:[#allocation2 + $0xec] sm:$0xf]
    %v7594 = vld [vmem:[#allocation2 + $0xf0] sm:$0xf]
    %v7595 = vld [vmem:[#allocation2 + $0xf4] sm:$0xf]
    %v7596 = vld [vmem:[#allocation2 + $0xf8] sm:$0xf]
    %v7597 = vld [vmem:[#allocation2 + $0xfc] sm:$0xf]
    %v7662 = vunpack.c.l.b16 %v7534
    %v7663 = vunpack.c.l.b16 %v7535
    %v7664 = vunpack.c.l.b16 %v7536
    %v7665 = vunpack.c.l.b16 %v7537
    %v7666 = vunpack.c.l.b16 %v7538
    %v7667 = vunpack.c.l.b16 %v7539
    %v7668 = vunpack.c.l.b16 %v7540
    %v7669 = vunpack.c.l.b16 %v7541
    %v7670 = vunpack.c.l.b16 %v7542
    %v7671 = vunpack.c.l.b16 %v7543
    %v7672 = vunpack.c.l.b16 %v7544
    %v7673 = vunpack.c.l.b16 %v7545
    %v7674 = vunpack.c.l.b16 %v7546
    %v7675 = vunpack.c.l.b16 %v7547
    %v7676 = vunpack.c.l.b16 %v7548
    %v7677 = vunpack.c.l.b16 %v7549
    %v7678 = vunpack.c.l.b16 %v7550
    %v7679 = vunpack.c.l.b16 %v7551
    %v7680 = vunpack.c.l.b16 %v7552
    %v7681 = vunpack.c.l.b16 %v7553
    %v7682 = vunpack.c.l.b16 %v7554
    %v7683 = vunpack.c.l.b16 %v7555
    %v7684 = vunpack.c.l.b16 %v7556
    %v7685 = vunpack.c.l.b16 %v7557
    %v7686 = vunpack.c.l.b16 %v7558
    %v7687 = vunpack.c.l.b16 %v7559
    %v7688 = vunpack.c.l.b16 %v7560
    %v7689 = vunpack.c.l.b16 %v7561
    %v7690 = vunpack.c.l.b16 %v7562
    %v7691 = vunpack.c.l.b16 %v7563
    %v7692 = vunpack.c.l.b16 %v7564
    %v7693 = vunpack.c.l.b16 %v7565
    %v7694 = vunpack.c.l.b16 %v7566
    %v7695 = vunpack.c.l.b16 %v7567
    %v7696 = vunpack.c.l.b16 %v7568
    %v7697 = vunpack.c.l.b16 %v7569
    %v7698 = vunpack.c.l.b16 %v7570
    %v7699 = vunpack.c.l.b16 %v7571
    %v7700 = vunpack.c.l.b16 %v7572
    %v7701 = vunpack.c.l.b16 %v7573
    %v7702 = vunpack.c.l.b16 %v7574
    %v7703 = vunpack.c.l.b16 %v7575
    %v7704 = vunpack.c.l.b16 %v7576
    %v7705 = vunpack.c.l.b16 %v7577
    %v7706 = vunpack.c.l.b16 %v7578
    %v7707 = vunpack.c.l.b16 %v7579
    %v7708 = vunpack.c.l.b16 %v7580
    %v7709 = vunpack.c.l.b16 %v7581
    %v7710 = vunpack.c.l.b16 %v7582
    %v7711 = vunpack.c.l.b16 %v7583
    %v7712 = vunpack.c.l.b16 %v7584
    %v7713 = vunpack.c.l.b16 %v7585
    %v7714 = vunpack.c.l.b16 %v7586
    %v7715 = vunpack.c.l.b16 %v7587
    %v7716 = vunpack.c.l.b16 %v7588
    %v7717 = vunpack.c.l.b16 %v7589
    %v7718 = vunpack.c.l.b16 %v7590
    %v7719 = vunpack.c.l.b16 %v7591
    %v7720 = vunpack.c.l.b16 %v7592
    %v7721 = vunpack.c.l.b16 %v7593
    %v7722 = vunpack.c.l.b16 %v7594
    %v7723 = vunpack.c.l.b16 %v7595
    %v7724 = vunpack.c.l.b16 %v7596
    %v7725 = vunpack.c.l.b16 %v7597
    %v7726 = vpack.c.b16 %v7663, %v7662
    %v7727 = vpack.c.b16 %v7665, %v7664
    %v7728 = vpack.c.b16 %v7667, %v7666
    %v7729 = vpack.c.b16 %v7669, %v7668
    %v7730 = vpack.c.b16 %v7671, %v7670
    %v7731 = vpack.c.b16 %v7673, %v7672
    %v7732 = vpack.c.b16 %v7675, %v7674
    %v7733 = vpack.c.b16 %v7677, %v7676
    %v7734 = vpack.c.b16 %v7679, %v7678
    %v7735 = vpack.c.b16 %v7681, %v7680
    %v7736 = vpack.c.b16 %v7683, %v7682
    %v7737 = vpack.c.b16 %v7685, %v7684
    %v7738 = vpack.c.b16 %v7687, %v7686
    %v7739 = vpack.c.b16 %v7689, %v7688
    %v7740 = vpack.c.b16 %v7691, %v7690
    %v7741 = vpack.c.b16 %v7693, %v7692
    %v7742 = vpack.c.b16 %v7695, %v7694
    %v7743 = vpack.c.b16 %v7697, %v7696
    %v7744 = vpack.c.b16 %v7699, %v7698
    %v7745 = vpack.c.b16 %v7701, %v7700
    %v7746 = vpack.c.b16 %v7703, %v7702
    %v7747 = vpack.c.b16 %v7705, %v7704
    %v7748 = vpack.c.b16 %v7707, %v7706
    %v7749 = vpack.c.b16 %v7709, %v7708
    %v7750 = vpack.c.b16 %v7711, %v7710
    %v7751 = vpack.c.b16 %v7713, %v7712
    %v7752 = vpack.c.b16 %v7715, %v7714
    %v7753 = vpack.c.b16 %v7717, %v7716
    %v7754 = vpack.c.b16 %v7719, %v7718
    %v7755 = vpack.c.b16 %v7721, %v7720
    %v7756 = vpack.c.b16 %v7723, %v7722
    %v7757 = vpack.c.b16 %v7725, %v7724
    %7790 = vmatpush.bf16.msra.mxu0 %v7733
    %7791 = vmatpush.bf16.msra.mxu0 %v7732
    %7792 = vmatpush.bf16.msra.mxu0 %v7731
    %7793 = vmatpush.bf16.msra.mxu0 %v7730
    %7794 = vmatpush.bf16.msra.mxu0 %v7729
    %7795 = vmatpush.bf16.msra.mxu0 %v7728
    %7796 = vmatpush.bf16.msra.mxu0 %v7727
    %7797 = vmatpush.bf16.msra.mxu0 %v7726
    %7798 = vmatmul.bf16.gmra.mxu0 %v7433
    %v7799 = vpop.f32.mrf.mxu0
    %v7800 = vadd.f32 0.0, %v7799
    %v7801 = vpop.f32.mrf.mxu0
    %7802 = vdwg.mxu0
    %7803 = vmatpush.bf16.msra.mxu0 %v7741
    %7804 = vmatpush.bf16.msra.mxu0 %v7740
    %7805 = vmatpush.bf16.msra.mxu0 %v7739
    %7806 = vmatpush.bf16.msra.mxu0 %v7738
    %7807 = vmatpush.bf16.msra.mxu0 %v7737
    %7808 = vmatpush.bf16.msra.mxu0 %v7736
    %7809 = vmatpush.bf16.msra.mxu0 %v7735
    %7810 = vmatpush.bf16.msra.mxu0 %v7734
    %7811 = vmatmul.bf16.gmra.mxu0 %v7466
    %v7812 = vpop.f32.mrf.mxu0
    %v7813 = vadd.f32 %v7800, %v7812
    %v7814 = vpop.f32.mrf.mxu0
    %7815 = vdwg.mxu0
    %7816 = vmatpush.bf16.msra.mxu0 %v7749
    %7817 = vmatpush.bf16.msra.mxu0 %v7748
    %7818 = vmatpush.bf16.msra.mxu0 %v7747
    %7819 = vmatpush.bf16.msra.mxu0 %v7746
    %7820 = vmatpush.bf16.msra.mxu0 %v7745
    %7821 = vmatpush.bf16.msra.mxu0 %v7744
    %7822 = vmatpush.bf16.msra.mxu0 %v7743
    %7823 = vmatpush.bf16.msra.mxu0 %v7742
    %7824 = vmatmul.bf16.gmra.mxu0 %v7499
    %v7825 = vpop.f32.mrf.mxu0
    %v7826 = vadd.f32 %v7813, %v7825
    %v7827 = vpop.f32.mrf.mxu0
    %7828 = vdwg.mxu0
    %7829 = vmatpush.bf16.msra.mxu0 %v7757
    %7830 = vmatpush.bf16.msra.mxu0 %v7756
    %7831 = vmatpush.bf16.msra.mxu0 %v7755
    %7832 = vmatpush.bf16.msra.mxu0 %v7754
    %7833 = vmatpush.bf16.msra.mxu0 %v7753
    %7834 = vmatpush.bf16.msra.mxu0 %v7752
    %7835 = vmatpush.bf16.msra.mxu0 %v7751
    %7836 = vmatpush.bf16.msra.mxu0 %v7750
    %7837 = vmatmul.bf16.gmra.mxu0 %v7532
    %v7838 = vpop.f32.mrf.mxu0
    %v7839 = vadd.f32 %v7826, %v7838
    %v7840 = vpop.f32.mrf.mxu0
    %7841 = vdwg.mxu0
    %v7843 = vrot.slane %v7839, 1
    %v7844 = vrot.slane %v7839, 2
    %v7845 = vrot.slane %v7839, 3
    %v7846 = vrot.slane %v7839, 4
    %v7847 = vrot.slane %v7839, 5
    %v7848 = vrot.slane %v7839, 6
    %v7849 = vrot.slane %v7839, 7
    %v7858 = vrot.slane %v4191, 1
    %v7859 = vrot.slane %v4191, 2
    %v7860 = vrot.slane %v4191, 3
    %v7861 = vrot.slane %v4191, 4
    %v7862 = vrot.slane %v4191, 5
    %v7863 = vrot.slane %v4191, 6
    %v7864 = vrot.slane %v4191, 7
    %v7865 = vperm.slane %v4191, 0
    %v7866 = vperm.slane %v7858, 0
    %v7867 = vperm.slane %v7859, 0
    %v7868 = vperm.slane %v7860, 0
    %v7869 = vperm.slane %v7861, 0
    %v7870 = vperm.slane %v7862, 0
    %v7871 = vperm.slane %v7863, 0
    %v7872 = vperm.slane %v7864, 0
    %v7881 = vsel %vm3088, %v7839, %v7865
    %v7882 = vsel %vm3088, %v7843, %v7866
    %v7883 = vsel %vm3088, %v7844, %v7867
    %v7884 = vsel %vm3088, %v7845, %v7868
    %v7885 = vsel %vm3088, %v7846, %v7869
    %v7886 = vsel %vm3088, %v7847, %v7870
    %v7887 = vsel %vm3088, %v7848, %v7871
    %v7888 = vsel %vm3088, %v7849, %v7872
    %7889 = vst [vmem:[#allocation5] sm:$0x3] %v7881
    %7890 = vst [vmem:[#allocation5 + $0x2] sm:$0x3] %v7882
    %7891 = vst [vmem:[#allocation5 + $0x4] sm:$0x3] %v7883
    %7892 = vst [vmem:[#allocation5 + $0x6] sm:$0x3] %v7884
    %7893 = vst [vmem:[#allocation5 + $0x8] sm:$0x3] %v7885
    %7894 = vst [vmem:[#allocation5 + $0xa] sm:$0x3] %v7886
    %7895 = vst [vmem:[#allocation5 + $0xc] sm:$0x3] %v7887
    %7896 = vst [vmem:[#allocation5 + $0xe] sm:$0x3] %v7888
    // Predicated region
    $region30: #{tpu_custom_call.1} parent=1 // pred_check
      _
    $region31: #{tpu_custom_call.1} parent=1 // pred_check_branch
      %7898 = sbr.rel (0) target = $region33
    $region32: #{tpu_custom_call.1} parent=1 // pred_region
      %7900 = vsyncadd [#allocation4], 0
      %s7901 = sshll.u32 [#allocation5], 4
      %s7902 = int_to_ptr.vmem [resolvable:$true] %s7901
      %s7903 = sshll.u32 %s6, 4
      %s7904 = int_to_ptr.hbm [resolvable:$true] %s7903
      %7909 = dma.vmem_to_hbm [thread:$0]  %s7902, 256, %s7904, [#allocation4], 32, 32, 2
    $region33: #{tpu_custom_call.1} parent=1 // pred_fallthru
      _
    // Predicated region
    $region34: #{tpu_custom_call.1} parent=1 // pred_check
      _
    $region35: #{tpu_custom_call.1} parent=1 // pred_check_branch
      %7911 = sbr.rel (0) target = $region37
    $region36: #{tpu_custom_call.1} parent=1 // pred_region
      %7913 = dma.done [#allocation4], 256
    $region37: #{tpu_custom_call.1} parent=1 // pred_fallthru
      _
    %7914 = vsyncpa [#allocation3], 1
    %7915 = vsyncpa [#allocation4], 1

</llo_original>
